<compile_context>
chip_gen: v7x
topology: tpu7x:2x2x1
jax: 0.10.0
libtpu: 0.0.40
codegen_flags: <defaults>
</compile_context>

<pallas_src>
import functools
import math

import jax
import jax.numpy as jnp
from jax import lax
from jax.experimental import pallas as pl
from jax.experimental.pallas import tpu as pltpu

_LN_EPS = 1e-12
_ROW_TILE_CAP = 512                 # larger M tiles amortize per-grid-step cost
_VMEM_LIMIT = 64 * 1024 * 1024      # fits v7x physical VMEM; v5e/v6e have 128 MiB
_LANE = 128


# ------------------------------ small helpers -------------------------------

def _bf16(x):
    return x.astype(jnp.bfloat16)


def _act(y, act):
    if act == "relu":
        return jnp.maximum(y, 0.0)
    if act == "swish":
        return y * jax.nn.sigmoid(y)
    return y


def _row_tile(M, cap=_ROW_TILE_CAP):
    """Pick an M tile; pad M up to a multiple of the tile when tiling."""
    if M <= cap:
        return M, M
    Mp = ((M + cap - 1) // cap) * cap
    return cap, Mp


def _lane_pad(n):
    return ((n + _LANE - 1) // _LANE) * _LANE


def _pad_rows(x, Mp):
    M = x.shape[0]
    if Mp == M:
        return x
    return jnp.pad(x, ((0, Mp - M),) + ((0, 0),) * (x.ndim - 1))


def _pad_cols(x, Np):
    n = x.shape[-1]
    if Np == n:
        return x
    return jnp.pad(x, ((0, 0),) * (x.ndim - 1) + ((0, Np - n),))


def _cparams(*sem):
    return pltpu.CompilerParams(dimension_semantics=sem,
                                vmem_limit_bytes=_VMEM_LIMIT)


# ------------------------------ Pallas kernels -------------------------------

def _linear_kernel(x_ref, w_ref, b_ref, o_ref, *, act):
    y = jnp.dot(x_ref[...], w_ref[...],
                preferred_element_type=jnp.float32) + b_ref[...]
    o_ref[...] = _act(y, act)


def _linear_nb_kernel(x_ref, w_ref, o_ref, *, act):
    y = jnp.dot(x_ref[...], w_ref[...], preferred_element_type=jnp.float32)
    o_ref[...] = _act(y, act)


def pallas_linear(x, w, b=None, act="none"):
    """Row-tiled (M,K)@(K,N)+b; bf16 MXU operands, f32 accumulation.
    Output columns are padded to a lane multiple (unmasked vst) and sliced
    back in the wrapper; no dummy bias DMA when b is None."""
    M, K = x.shape
    N = w.shape[1]
    Np = _lane_pad(N)
    tm, Mp = _row_tile(M)
    xp = _pad_rows(_bf16(x), Mp)
    wp = _pad_cols(_bf16(w), Np)
    in_specs = [pl.BlockSpec((tm, K), lambda i: (i, 0)),
                pl.BlockSpec((K, Np), lambda i: (0, 0))]
    args = [xp, wp]
    if b is None:
        kernel = functools.partial(_linear_nb_kernel, act=act)
    else:
        kernel = functools.partial(_linear_kernel, act=act)
        in_specs.append(pl.BlockSpec((1, Np), lambda i: (0, 0)))
        args.append(_pad_cols(b.reshape(1, N).astype(jnp.float32), Np))
    out = pl.pallas_call(
        kernel,
        grid=(Mp // tm,),
        in_specs=in_specs,
        out_specs=pl.BlockSpec((tm, Np), lambda i: (i, 0)),
        out_shape=jax.ShapeDtypeStruct((Mp, Np), jnp.float32),
        compiler_params=_cparams("parallel"),
    )(*args)
    if Mp == M and Np == N:
        return out
    return out[:M, :N]


def _ln_linear_kernel(x_ref, g_ref, be_ref, w_ref, b_ref, o_ref, *, act, eps):
    x = x_ref[...]
    mean = jnp.mean(x, axis=-1, keepdims=True)
    var = jnp.mean(jnp.square(x - mean), axis=-1, keepdims=True)
    xn = (x - mean) * lax.rsqrt(var + eps) * g_ref[...] + be_ref[...]
    y = jnp.dot(_bf16(xn), w_ref[...],
                preferred_element_type=jnp.float32) + b_ref[...]
    o_ref[...] = _act(y, act)


def pallas_ln_linear(x, ln, w, b=None, act="none", eps=_LN_EPS):
    """Fused LayerNorm (f32) + matmul (bf16 MXU) + activation."""
    M, K = x.shape
    N = w.shape[1]
    Np = _lane_pad(N)
    g, be = ln
    if b is None:
        b = jnp.zeros((N,), jnp.float32)
    tm, Mp = _row_tile(M)
    xp = _pad_rows(x.astype(jnp.float32), Mp)
    out = pl.pallas_call(
        functools.partial(_ln_linear_kernel, act=act, eps=eps),
        grid=(Mp // tm,),
        in_specs=[pl.BlockSpec((tm, K), lambda i: (i, 0)),
                  pl.BlockSpec((1, K), lambda i: (0, 0)),
                  pl.BlockSpec((1, K), lambda i: (0, 0)),
                  pl.BlockSpec((K, Np), lambda i: (0, 0)),
                  pl.BlockSpec((1, Np), lambda i: (0, 0))],
        out_specs=pl.BlockSpec((tm, Np), lambda i: (i, 0)),
        out_shape=jax.ShapeDtypeStruct((Mp, Np), jnp.float32),
        compiler_params=_cparams("parallel"),
    )(xp, g.reshape(1, K).astype(jnp.float32),
      be.reshape(1, K).astype(jnp.float32),
      _pad_cols(_bf16(w), Np),
      _pad_cols(b.reshape(1, N).astype(jnp.float32), Np))
    if Mp == M and Np == N:
        return out
    return out[:M, :N]


def _ln_ffn_kernel(x_ref, g_ref, be_ref, w1_ref, b1_ref, w2_ref, b2_ref, o_ref,
                   *, eps, res_scale):
    x = x_ref[...]
    mean = jnp.mean(x, axis=-1, keepdims=True)
    var = jnp.mean(jnp.square(x - mean), axis=-1, keepdims=True)
    xn = (x - mean) * lax.rsqrt(var + eps) * g_ref[...] + be_ref[...]
    h = jnp.dot(_bf16(xn), w1_ref[...],
                preferred_element_type=jnp.float32) + b1_ref[...]
    h = h * jax.nn.sigmoid(h)                       # swish in f32
    y = jnp.dot(_bf16(h), w2_ref[...],
                preferred_element_type=jnp.float32) + b2_ref[...]
    o_ref[...] = x + res_scale * y                  # fused residual add


def pallas_ln_ffn(x, ln, ff, res_scale=0.5, eps=_LN_EPS):
    """Macaron FF: LN + w1 + swish + w2 + scaled residual, hidden kept in VMEM."""
    M, D = x.shape
    Hu = ff["w1"].shape[1]
    g, be = ln
    tm, Mp = _row_tile(M)
    xp = _pad_rows(x.astype(jnp.float32), Mp)
    out = pl.pallas_call(
        functools.partial(_ln_ffn_kernel, eps=eps, res_scale=float(res_scale)),
        grid=(Mp // tm,),
        in_specs=[pl.BlockSpec((tm, D), lambda i: (i, 0)),
                  pl.BlockSpec((1, D), lambda i: (0, 0)),
                  pl.BlockSpec((1, D), lambda i: (0, 0)),
                  pl.BlockSpec((D, Hu), lambda i: (0, 0)),
                  pl.BlockSpec((1, Hu), lambda i: (0, 0)),
                  pl.BlockSpec((Hu, D), lambda i: (0, 0)),
                  pl.BlockSpec((1, D), lambda i: (0, 0))],
        out_specs=pl.BlockSpec((tm, D), lambda i: (i, 0)),
        out_shape=jax.ShapeDtypeStruct((Mp, D), jnp.float32),
        compiler_params=_cparams("parallel"),
    )(xp, g.reshape(1, D).astype(jnp.float32),
      be.reshape(1, D).astype(jnp.float32),
      _bf16(ff["w1"]), ff["b1"].reshape(1, Hu).astype(jnp.float32),
      _bf16(ff["w2"]), ff["b2"].reshape(1, D).astype(jnp.float32))
    return out if Mp == M else out[:M]


def _ln_glu_kernel(x_ref, g_ref, be_ref, wa_ref, ba_ref, wb_ref, bb_ref, o_ref,
                   *, eps):
    # GLU as two lane-dense GEMMs (no mid-vreg lane slice).
    x = x_ref[...]
    mean = jnp.mean(x, axis=-1, keepdims=True)
    var = jnp.mean(jnp.square(x - mean), axis=-1, keepdims=True)
    xn = _bf16((x - mean) * lax.rsqrt(var + eps) * g_ref[...] + be_ref[...])
    ya = jnp.dot(xn, wa_ref[...], preferred_element_type=jnp.float32) + ba_ref[...]
    yb = jnp.dot(xn, wb_ref[...], preferred_element_type=jnp.float32) + bb_ref[...]
    o_ref[...] = ya * jax.nn.sigmoid(yb)


def pallas_ln_glu(x, ln, w, b, eps=_LN_EPS):
    """Fused LN + pointwise_conv1 + GLU (pw1 split into two lane-dense halves)."""
    M, D = x.shape
    N2 = w.shape[1]
    Dg = N2 // 2
    g, be = ln
    tm, Mp = _row_tile(M)
    xp = _pad_rows(x.astype(jnp.float32), Mp)
    out = pl.pallas_call(
        functools.partial(_ln_glu_kernel, eps=eps),
        grid=(Mp // tm,),
        in_specs=[pl.BlockSpec((tm, D), lambda i: (i, 0)),
                  pl.BlockSpec((1, D), lambda i: (0, 0)),
                  pl.BlockSpec((1, D), lambda i: (0, 0)),
                  pl.BlockSpec((D, Dg), lambda i: (0, 0)),
                  pl.BlockSpec((1, Dg), lambda i: (0, 0)),
                  pl.BlockSpec((D, Dg), lambda i: (0, 0)),
                  pl.BlockSpec((1, Dg), lambda i: (0, 0))],
        out_specs=pl.BlockSpec((tm, Dg), lambda i: (i, 0)),
        out_shape=jax.ShapeDtypeStruct((Mp, Dg), jnp.float32),
        compiler_params=_cparams("parallel"),
    )(xp, g.reshape(1, D).astype(jnp.float32),
      be.reshape(1, D).astype(jnp.float32),
      _bf16(w[:, :Dg]), b[:Dg].reshape(1, Dg).astype(jnp.float32),
      _bf16(w[:, Dg:]), b[Dg:].reshape(1, Dg).astype(jnp.float32))
    return out if Mp == M else out[:M]


def _moe_kernel(x_ref, emb_ref, g_ref, be_ref, rwx_ref, rwe_ref,
                w1_ref, b1_ref, w2_ref, b2_ref, fg_ref, fb_ref, o_ref,
                *, eps, res_scale, num_experts):
    # Pre-LN + "catEmbed" router + dense soft mixture over all experts +
    # scaled residual + trailing norm_final, in one kernel.  All expert
    # weights are resident in VMEM; the expert loop is fully unrolled.
    x = x_ref[...]
    mean = jnp.mean(x, axis=-1, keepdims=True)
    var = jnp.mean(jnp.square(x - mean), axis=-1, keepdims=True)
    xn = (x - mean) * lax.rsqrt(var + eps) * g_ref[...] + be_ref[...]
    xb = _bf16(xn)
    # router over concat(xn, embed) == xn @ Wx + embed @ We (no concat relayout)
    logits = (jnp.dot(xb, rwx_ref[...], preferred_element_type=jnp.float32) +
              jnp.dot(emb_ref[...], rwe_ref[...],
                      preferred_element_type=jnp.float32))
    logits = logits - jnp.max(logits, axis=-1, keepdims=True)
    p = jnp.exp(logits)
    gate = p / jnp.sum(p, axis=-1, keepdims=True)   # exact softmax for routing
    acc = jnp.zeros_like(x)
    for e in range(num_experts):
        h = jnp.dot(xb, w1_ref[e], preferred_element_type=jnp.float32) + b1_ref[e]
        h = h * jax.nn.sigmoid(h)                   # swish
        y = jnp.dot(_bf16(h), w2_ref[e],
                    preferred_element_type=jnp.float32) + b2_ref[e]
        sel = (lax.broadcasted_iota(jnp.int32, gate.shape, 1) == e)
        ge = jnp.sum(gate * sel.astype(jnp.float32), axis=-1, keepdims=True)
        acc = acc + ge * y
    z = x + res_scale * acc                         # fused residual
    mean = jnp.mean(z, axis=-1, keepdims=True)
    var = jnp.mean(jnp.square(z - mean), axis=-1, keepdims=True)
    o_ref[...] = (z - mean) * lax.rsqrt(var + eps) * fg_ref[...] + fb_ref[...]


def pallas_moe_ffn(x, embed, ln, norm_final, moe, num_experts,
                   res_scale=0.5, eps=_LN_EPS):
    """LocalFmoeCatEmbedFeedForward (dense soft mixture over experts) with
    fused pre-LN, router, all experts, residual add and norm_final.
    TODO(synk): FMoE top-k hard dispatch / capacity_factor not modeled.
    TODO(synk): on v7x at production sizes, stream experts over a grid axis
    with pipeline_mode=pl.Buffered(2) instead of full VMEM residency."""
    M, D = x.shape
    E = embed.shape[1]
    Ne = num_experts
    Hu = moe["w1"].shape[2]
    g, be = ln
    fg, fb = norm_final
    tm, Mp = _row_tile(M)
    xp = _pad_rows(x.astype(jnp.float32), Mp)
    ep = _pad_rows(_bf16(embed), Mp)
    out = pl.pallas_call(
        functools.partial(_moe_kernel, eps=eps, res_scale=float(res_scale),
                          num_experts=Ne),
        grid=(Mp // tm,),
        in_specs=[pl.BlockSpec((tm, D), lambda m: (m, 0)),
                  pl.BlockSpec((tm, E), lambda m: (m, 0)),
                  pl.BlockSpec((1, D), lambda m: (0, 0)),
                  pl.BlockSpec((1, D), lambda m: (0, 0)),
                  pl.BlockSpec((D, Ne), lambda m: (0, 0)),
                  pl.BlockSpec((E, Ne), lambda m: (0, 0)),
                  pl.BlockSpec((Ne, D, Hu), lambda m: (0, 0, 0)),
                  pl.BlockSpec((Ne, 1, Hu), lambda m: (0, 0, 0)),
                  pl.BlockSpec((Ne, Hu, D), lambda m: (0, 0, 0)),
                  pl.BlockSpec((Ne, 1, D), lambda m: (0, 0, 0)),
                  pl.BlockSpec((1, D), lambda m: (0, 0)),
                  pl.BlockSpec((1, D), lambda m: (0, 0))],
        out_specs=pl.BlockSpec((tm, D), lambda m: (m, 0)),
        out_shape=jax.ShapeDtypeStruct((Mp, D), jnp.float32),
        compiler_params=_cparams("parallel"),
    )(xp, ep,
      g.reshape(1, D).astype(jnp.float32), be.reshape(1, D).astype(jnp.float32),
      _bf16(moe["router_w"][:D]), _bf16(moe["router_w"][D:]),
      _bf16(moe["w1"]), moe["b1"].reshape(Ne, 1, Hu).astype(jnp.float32),
      _bf16(moe["w2"]), moe["b2"].reshape(Ne, 1, D).astype(jnp.float32),
      fg.reshape(1, D).astype(jnp.float32), fb.reshape(1, D).astype(jnp.float32))
    return out if Mp == M else out[:M]


def _rel_attn_kernel(qkv_ref, pe_ref, bu_ref, bv_ref, wo_ref, bo_ref, res_ref,
                     o_ref, *, heads, dk, T, scale):
    # Transformer-XL style relative attention (wenet variant, no rel_shift).
    # Heads are a batch dim of a single dot_general; output projection and
    # residual add are fused so only one lane-dense (T, D) store per batch.
    qkv = qkv_ref[0].astype(jnp.float32)        # (3H, T, dk)
    q = qkv[0:heads]
    k = qkv[heads:2 * heads]
    v = qkv[2 * heads:3 * heads]
    p = pe_ref[...].astype(jnp.float32)         # (H, T, dk)
    qu = q + bu_ref[...]                        # (H, T, dk) + (H, 1, dk)
    qv = q + bv_ref[...]
    dn = (((2,), (2,)), ((0,), (0,)))           # contract dk, batch over heads
    ac = lax.dot_general(_bf16(qu), _bf16(k), dn,
                         preferred_element_type=jnp.float32)
    bd = lax.dot_general(_bf16(qv), _bf16(p), dn,
                         preferred_element_type=jnp.float32)
    s = (ac + bd) * scale                       # (H, T, T)
    s = s - jnp.max(s, axis=-1, keepdims=True)
    ex = jnp.exp(s)
    attn = ex * pl.reciprocal(jnp.sum(ex, axis=-1, keepdims=True), approx=True)
    dn2 = (((2,), (1,)), ((0,), (0,)))          # (H,T,T) x (H,T,dk) -> (H,T,dk)
    ctx = lax.dot_general(_bf16(attn), _bf16(v), dn2,
                          preferred_element_type=jnp.float32)
    ctx = jnp.transpose(ctx, (1, 0, 2)).reshape(T, heads * dk)   # (T, D)
    y = jnp.dot(_bf16(ctx), wo_ref[...],
                preferred_element_type=jnp.float32) + bo_ref[...]
    o_ref[0] = res_ref[0] + y                   # fused out-proj + residual


def pallas_rel_attention(qkv, pe, pos_bias_u, pos_bias_v, wo, bo, residual,
                         heads):
    """Rel-pos MHA with fused output projection + residual, per batch element.
    TODO(synk): for long production T on v7x, tile queries (flash-style online
    softmax) to bound the (H,T,T) score buffer within 64 MiB VMEM."""
    B, T, threeD = qkv.shape
    D = threeD // 3
    dk = D // heads
    # head-major layout: (B, 3H, T, dk) == [q heads | k heads | v heads]
    qkv_hm = _bf16(qkv).reshape(B, T, 3, heads, dk)
    qkv_hm = qkv_hm.transpose(0, 2, 3, 1, 4).reshape(B, 3 * heads, T, dk)
    pe_hm = _bf16(pe).reshape(T, heads, dk).transpose(1, 0, 2)     # (H, T, dk)
    return pl.pallas_call(
        functools.partial(_rel_attn_kernel, heads=heads, dk=dk, T=T,
                          scale=1.0 / math.sqrt(dk)),
        grid=(B,),
        in_specs=[pl.BlockSpec((1, 3 * heads, T, dk), lambda b: (b, 0, 0, 0)),
                  pl.BlockSpec((heads, T, dk), lambda b: (0, 0, 0)),
                  pl.BlockSpec((heads, 1, dk), lambda b: (0, 0, 0)),
                  pl.BlockSpec((heads, 1, dk), lambda b: (0, 0, 0)),
                  pl.BlockSpec((D, D), lambda b: (0, 0)),
                  pl.BlockSpec((1, D), lambda b: (0, 0)),
                  pl.BlockSpec((1, T, D), lambda b: (b, 0, 0))],
        out_specs=pl.BlockSpec((1, T, D), lambda b: (b, 0, 0)),
        out_shape=jax.ShapeDtypeStruct((B, T, D), jnp.float32),
        compiler_params=_cparams("parallel"),
    )(qkv_hm, pe_hm,
      pos_bias_u.reshape(heads, 1, dk).astype(jnp.float32),
      pos_bias_v.reshape(heads, 1, dk).astype(jnp.float32),
      _bf16(wo), bo.reshape(1, D).astype(jnp.float32),
      residual.astype(jnp.float32))


def _conv_tail_kernel(hp_ref, dw_ref, dwb_ref, bns_ref, bnt_ref,
                      pw2w_ref, pw2b_ref, res_ref, o_ref, *, K, T):
    # TODO(synk): depthwise conv via K shifted sublane slices; a pltpu.roll /
    # banded-MXU formulation would move the taps off the vld/VALU path.
    hp = hp_ref[0].astype(jnp.float32)             # (T+K-1, D), DMA'd as bf16
    acc = hp[0:T, :] * dw_ref[0:1, :]
    for kk in range(1, K):
        acc = acc + hp[kk:kk + T, :] * dw_ref[kk:kk + 1, :]
    acc = acc + dwb_ref[...]
    h = acc * bns_ref[...] + bnt_ref[...]          # folded BatchNorm (inference)
    h = h * jax.nn.sigmoid(h)                      # swish
    y = jnp.dot(_bf16(h), pw2w_ref[...],
                preferred_element_type=jnp.float32) + pw2b_ref[...]
    o_ref[0] = res_ref[0] + y                      # fused residual add


def pallas_conv_tail(h_pad, conv_p, residual):
    """Depthwise conv + BN + swish + pointwise conv2 + residual, per batch."""
    B, Tp, D = h_pad.shape
    T = residual.shape[1]
    K = conv_p["dw_w"].shape[0]
    bn_s = conv_p["bn_g"] * lax.rsqrt(conv_p["bn_var"] + 1e-5)
    bn_t = conv_p["bn_b"] - conv_p["bn_mean"] * bn_s
    return pl.pallas_call(
        functools.partial(_conv_tail_kernel, K=K, T=T),
        grid=(B,),
        in_specs=[pl.BlockSpec((1, Tp, D), lambda b: (b, 0, 0)),
                  pl.BlockSpec((K, D), lambda b: (0, 0)),
                  pl.BlockSpec((1, D), lambda b: (0, 0)),
                  pl.BlockSpec((1, D), lambda b: (0, 0)),
                  pl.BlockSpec((1, D), lambda b: (0, 0)),
                  pl.BlockSpec((D, D), lambda b: (0, 0)),
                  pl.BlockSpec((1, D), lambda b: (0, 0)),
                  pl.BlockSpec((1, T, D), lambda b: (b, 0, 0))],
        out_specs=pl.BlockSpec((1, T, D), lambda b: (b, 0, 0)),
        out_shape=jax.ShapeDtypeStruct((B, T, D), jnp.float32),
        compiler_params=_cparams("parallel"),
    )(_bf16(h_pad), conv_p["dw_w"].astype(jnp.float32),
      conv_p["dw_b"].reshape(1, D).astype(jnp.float32),
      bn_s.reshape(1, D).astype(jnp.float32),
      bn_t.reshape(1, D).astype(jnp.float32),
      _bf16(conv_p["pw2_w"]), conv_p["pw2_b"].reshape(1, D).astype(jnp.float32),
      residual.astype(jnp.float32))


# ---------------------------- module components -----------------------------

def conv2d_k3s2_valid(x_nhwc, w_flat, b, act="relu"):
    """3x3 stride-2 valid conv via im2col (bf16 patches) + tiled Pallas matmul.
    TODO(synk): an in-kernel gather would remove the 9x HBM read amplification
    of the materialized patches array."""
    B, H, W, C = x_nhwc.shape
    Ho = (H - 3) // 2 + 1
    Wo = (W - 3) // 2 + 1
    cols = []
    for di in range(3):
        for dj in range(3):
            cols.append(x_nhwc[:, di::2, dj::2, :][:, :Ho, :Wo, :])
    patches = _bf16(jnp.concatenate(cols, axis=-1))              # (B,Ho,Wo,9C)
    y = pallas_linear(patches.reshape(B * Ho * Wo, 9 * C), w_flat, b, act=act)
    return y.reshape(B, Ho, Wo, -1)


def conv2d_subsampling4(x, p):
    """Conv2dSubsampling4: (B, T, F) -> (B, ((T-1)//2-1)//2, D)."""
    h = x[..., None]                                             # NHWC, C_in=1
    h = conv2d_k3s2_valid(h, p["conv1_w"], p["conv1_b"], act="relu")
    h = conv2d_k3s2_valid(h, p["conv2_w"], p["conv2_b"], act="relu")
    B, T2, F2, C = h.shape
    h = jnp.transpose(h, (0, 1, 3, 2)).reshape(B, T2, C * F2)    # (B,T,C*F)
    out = pallas_linear(h.reshape(B * T2, C * F2), p["out_w"], p["out_b"])
    return out.reshape(B, T2, -1)


def rel_positional_encoding(x, d_model):
    B, T, D = x.shape
    x = x * math.sqrt(d_model)
    pos = jnp.arange(T, dtype=jnp.float32)[:, None]
    div = jnp.exp(jnp.arange(0, D, 2, dtype=jnp.float32) * -(math.log(10000.0) / D))
    pe = jnp.zeros((T, D), jnp.float32)
    pe = pe.at[:, 0::2].set(jnp.sin(pos * div))
    pe = pe.at[:, 1::2].set(jnp.cos(pos * div))
    return x, pe[None]                                           # (1, T, D)


def conformer_block(x, embed2, pos_emb, p, heads, num_experts):
    # dropouts are identity at inference time
    B, T, D = x.shape
    M = B * T
    x2 = x.reshape(M, D)

    # macaron feed-forward: LN + w1 + swish + w2 + 0.5*residual (1 kernel)
    x2 = pallas_ln_ffn(x2, p["norm_ff_macaron"], p["ff_macaron"], res_scale=0.5)

    # self-attention: fused LN+QKV GEMM, then one kernel doing batched-head
    # rel-pos attention + output projection + residual add
    qkv = pallas_ln_linear(x2, p["norm_mha"], p["attn"]["wqkv"], p["attn"]["bqkv"])
    pe = pallas_linear(pos_emb.reshape(-1, D), p["attn"]["wpos"])    # no bias
    x2 = pallas_rel_attention(qkv.reshape(B, T, 3 * D), pe,
                              p["attn"]["pos_bias_u"], p["attn"]["pos_bias_v"],
                              p["attn"]["wo"], p["attn"]["bo"],
                              x2.reshape(B, T, D), heads).reshape(M, D)

    # convolution module: LN + pw1 + GLU (1 kernel), then
    # dwconv + BN + swish + pw2 + residual (1 kernel)
    h = pallas_ln_glu(x2, p["norm_conv"], p["conv"]["pw1_w"], p["conv"]["pw1_b"])
    K = p["conv"]["dw_w"].shape[0]
    pad = (K - 1) // 2
    hp = jnp.pad(h.reshape(B, T, D), ((0, 0), (pad, pad), (0, 0)))
    x2 = pallas_conv_tail(hp, p["conv"], x2.reshape(B, T, D)).reshape(M, D)

    # MoE feed-forward + 0.5*residual + norm_final (1 kernel, experts resident)
    x2 = pallas_moe_ffn(x2, embed2, p["norm_ff"], p["norm_final"], p["moe"],
                        num_experts, res_scale=0.5)
    return x2.reshape(B, T, D)


def net_forward(params, xs, xs_len, cfg, output_embed=False):
    # ConformerEmbed stand-in: conv2d subsampling to embed_dim plus
    # utterance-level domain/accent heads.
    # TODO(synk): internal conformer blocks of ConformerEmbed are not specified
    # in the reference; only its interface (per-frame embed + logits) is modeled.
    embed = conv2d_subsampling4(xs, params["embed"]["subsampling"])   # (B,T',E)
    pooled = jnp.mean(embed, axis=1)
    domain_logits = pallas_linear(pooled, params["embed"]["domain_w"],
                                  params["embed"]["domain_b"])
    acc_logits = pallas_linear(pooled, params["embed"]["acc_w"],
                               params["embed"]["acc_b"])
    embed_out = (domain_logits, acc_logits)

    x = conv2d_subsampling4(xs, params["subsampling"])                # (B,T',D)
    xs_len = ((xs_len - 1) // 2 - 1) // 2
    # TODO(synk): xs_len padding masks are not applied (test uses full lengths).
    x, pos_emb = rel_positional_encoding(x, cfg["attention_dim"])
    B, T, D = x.shape
    embed2 = embed.reshape(B * T, -1)
    for blk in params["blocks"]:
        x = conformer_block(x, embed2, pos_emb, blk,
                            cfg["attention_heads"], cfg["num_experts"])
    # after_norm + out_linear fused into one kernel
    out = pallas_ln_linear(x.reshape(B * T, D),
                           (params["after_norm_g"], params["after_norm_b"]),
                           params["out_w"], params["out_b"]).reshape(B, T, -1)
    if output_embed:
        return out, embed_out
    return out


# ------------------------------ parameter init ------------------------------

class _Init:
    def __init__(self, key):
        self.key = key

    def normal(self, shape, scale=0.02, dtype=jnp.float32):
        self.key, sub = jax.random.split(self.key)
        return (scale * jax.random.normal(sub, shape, jnp.float32)).astype(dtype)

    @staticmethod
    def zeros(shape):
        return jnp.zeros(shape, jnp.float32)

    @staticmethod
    def ones(shape):
        return jnp.ones(shape, jnp.float32)


def init_net_params(key, cfg):
    ini = _Init(key)
    D = cfg["attention_dim"]
    E = cfg["embed_dim"]
    H = cfg["attention_heads"]
    Hu = cfg["hidden_units"]
    Ne = cfg["num_experts"]
    K = cfg["cnn_module_kernel"]
    F_ = cfg["input_dim"]
    F2 = (((F_ - 1) // 2) - 1) // 2
    bf = jnp.bfloat16        # matmul weights stored in bf16 once at init

    def sub_params(odim):
        return {
            "conv1_w": ini.normal((9 * 1, odim), dtype=bf),
            "conv1_b": ini.zeros((odim,)),
            "conv2_w": ini.normal((9 * odim, odim), dtype=bf),
            "conv2_b": ini.zeros((odim,)),
            "out_w": ini.normal((odim * F2, odim), dtype=bf),
            "out_b": ini.zeros((odim,)),
        }

    def ln():
        return (ini.ones((D,)), ini.zeros((D,)))

    params = {
        "subsampling": sub_params(D),
        "embed": {
            "subsampling": sub_params(E),
            "domain_w": ini.normal((E, cfg["output_dim_domain"]), dtype=bf),
            "domain_b": ini.zeros((cfg["output_dim_domain"],)),
            "acc_w": ini.normal((E, cfg["output_dim_acc"]), dtype=bf),
            "acc_b": ini.zeros((cfg["output_dim_acc"],)),
        },
        "blocks": [],
        "after_norm_g": ini.ones((D,)),
        "after_norm_b": ini.zeros((D,)),
        "out_w": ini.normal((D, cfg["output_dim"]), dtype=bf),
        "out_b": ini.zeros((cfg["output_dim"],)),
    }
    for _ in range(cfg["num_blocks"]):
        params["blocks"].append({
            "norm_ff_macaron": ln(),
            "ff_macaron": {"w1": ini.normal((D, Hu), dtype=bf), "b1": ini.zeros((Hu,)),
                           "w2": ini.normal((Hu, D), dtype=bf), "b2": ini.zeros((D,))},
            "norm_mha": ln(),
            "attn": {"wqkv": ini.normal((D, 3 * D), dtype=bf),   # fused Q/K/V
                     "bqkv": ini.zeros((3 * D,)),
                     "wo": ini.normal((D, D), dtype=bf), "bo": ini.zeros((D,)),
                     "wpos": ini.normal((D, D), dtype=bf),
                     "pos_bias_u": ini.normal((H, D // H)),
                     "pos_bias_v": ini.normal((H, D // H))},
            "norm_conv": ln(),
            "conv": {"pw1_w": ini.normal((D, 2 * D), dtype=bf), "pw1_b": ini.zeros((2 * D,)),
                     "dw_w": ini.normal((K, D)), "dw_b": ini.zeros((D,)),
                     "bn_g": ini.ones((D,)), "bn_b": ini.zeros((D,)),
                     "bn_mean": ini.zeros((D,)), "bn_var": ini.ones((D,)),
                     "pw2_w": ini.normal((D, D), dtype=bf), "pw2_b": ini.zeros((D,))},
            "norm_ff": ln(),
            "moe": {"router_w": ini.normal((D + E, Ne), dtype=bf),
                    "w1": ini.normal((Ne, D, Hu), dtype=bf), "b1": ini.zeros((Ne, Hu)),
                    "w2": ini.normal((Ne, Hu, D), dtype=bf), "b2": ini.zeros((Ne, D))},
            "norm_final": ln(),
        })
    return params


# ----------------------------------- main ------------------------------------

if __name__ == "__main__":
    cfg = dict(input_dim=16, output_dim=10, attention_dim=64, attention_heads=4,
               num_blocks=2, hidden_units=128, num_experts=4, embed_dim=64,
               cnn_module_kernel=15, output_dim_domain=6, output_dim_acc=8)

    key = jax.random.PRNGKey(0)
    pkey, xkey = jax.random.split(key)
    params = init_net_params(pkey, cfg)

    B, T = 2, 32
    xs = jax.random.normal(xkey, (B, T, cfg["input_dim"]), jnp.float32)
    xs_len = jnp.array([T, T], jnp.int32)

    fwd = jax.jit(functools.partial(net_forward, cfg=cfg, output_embed=True))
    out, (domain_logits, acc_logits) = fwd(params, xs, xs_len)
    jax.block_until_ready(out)
    jax.block_until_ready(domain_logits)
    jax.block_until_ready(acc_logits)

    T_sub = ((T - 1) // 2 - 1) // 2
    assert out.shape == (B, T_sub, cfg["output_dim"])
    assert domain_logits.shape == (B, cfg["output_dim_domain"])
    assert acc_logits.shape == (B, cfg["output_dim_acc"])
    print("KERNEL_OK")
</pallas_src>

<mosaic_0001>
module attributes {stable_mosaic.version = 11 : i64} {
  func.func @_linear_kernel(%arg0: i32, %arg1: memref<210x9xbf16, #tpu.memory_space<vmem>>, %arg2: memref<9x128xbf16, #tpu.memory_space<vmem>>, %arg3: memref<1x128xf32, #tpu.memory_space<vmem>>, %arg4: memref<210x128xf32, #tpu.memory_space<vmem>>) attributes {dimension_semantics = [#tpu.dimension_semantics<parallel>], iteration_bounds = array<i64: 1>, scalar_prefetch = 0 : i64, scratch_operands = 0 : i64, tpu.core_type = #tpu.core_type<tc>, window_params = [{transform_indices = @transform_0, window_bounds = array<i64: 210, 9>}, {pipeline_mode = #tpu.pipeline_mode<synchronous>, transform_indices = @transform_1, window_bounds = array<i64: 9, 128>}, {pipeline_mode = #tpu.pipeline_mode<synchronous>, transform_indices = @transform_2, window_bounds = array<i64: 1, 128>}, {transform_indices = @transform_3, window_bounds = array<i64: 210, 128>}]} {
    %c0 = arith.constant 0 : index
    %c0_0 = arith.constant 0 : index
    %0 = vector.load %arg1[%c0, %c0_0] : memref<210x9xbf16, #tpu.memory_space<vmem>>, vector<210x9xbf16>
    %c0_1 = arith.constant 0 : index
    %c0_2 = arith.constant 0 : index
    %1 = vector.load %arg2[%c0_1, %c0_2] : memref<9x128xbf16, #tpu.memory_space<vmem>>, vector<9x128xbf16>
    %cst = arith.constant dense<0.000000e+00> : vector<210x128xf32>
    %2 = tpu.matmul %0, %1, %cst {dimension_numbers = #tpu.dot_dimension_numbers<[1], [0], [0], [1], [0, 0, 1, 1], [], []>} : vector<210x9xbf16>, vector<9x128xbf16>, vector<210x128xf32> -> vector<210x128xf32>
    %c0_3 = arith.constant 0 : index
    %c0_4 = arith.constant 0 : index
    %3 = vector.load %arg3[%c0_3, %c0_4] : memref<1x128xf32, #tpu.memory_space<vmem>>, vector<1x128xf32>
    %4 = vector.broadcast %3 : vector<1x128xf32> to vector<210x128xf32>
    %5 = arith.addf %2, %4 : vector<210x128xf32>
    %cst_5 = arith.constant 0.000000e+00 : f32
    %6 = vector.broadcast %cst_5 : f32 to vector<210x128xf32>
    %7 = arith.maximumf %5, %6 : vector<210x128xf32>
    %c0_6 = arith.constant 0 : index
    %c0_7 = arith.constant 0 : index
    %8 = vector.load %arg4[%c0_6, %c0_7] : memref<210x128xf32, #tpu.memory_space<vmem>>, vector<210x128xf32>
    tpu.vector_store %arg4[%c0_6, %c0_7], %7 {strides = array<i32>} : memref<210x128xf32, #tpu.memory_space<vmem>>, vector<210x128xf32>,
    return
  }
  func.func @transform_0(%arg0: i32) -> (i32, i32) {
    %c0_i32 = arith.constant 0 : i32
    %c0_i32_0 = arith.constant 0 : i32
    return %arg0, %c0_i32 : i32, i32
  }
  func.func @transform_1(%arg0: i32) -> (i32, i32) {
    %c0_i32 = arith.constant 0 : i32
    %c0_i32_0 = arith.constant 0 : i32
    %c0_i32_1 = arith.constant 0 : i32
    return %c0_i32, %c0_i32_0 : i32, i32
  }
  func.func @transform_2(%arg0: i32) -> (i32, i32) {
    %c0_i32 = arith.constant 0 : i32
    %c0_i32_0 = arith.constant 0 : i32
    %c0_i32_1 = arith.constant 0 : i32
    return %c0_i32, %c0_i32_0 : i32, i32
  }
  func.func @transform_3(%arg0: i32) -> (i32, i32) {
    %c0_i32 = arith.constant 0 : i32
    %c0_i32_0 = arith.constant 0 : i32
    return %arg0, %c0_i32 : i32, i32
  }
}

module attributes {stable_mosaic.version = 11 : i64} {
  func.func @_linear_kernel(%arg0: i32, %arg1: memref<42x576xbf16, #tpu.memory_space<vmem>>, %arg2: memref<576x128xbf16, #tpu.memory_space<vmem>>, %arg3: memref<1x128xf32, #tpu.memory_space<vmem>>, %arg4: memref<42x128xf32, #tpu.memory_space<vmem>>) attributes {dimension_semantics = [#tpu.dimension_semantics<parallel>], iteration_bounds = array<i64: 1>, scalar_prefetch = 0 : i64, scratch_operands = 0 : i64, tpu.core_type = #tpu.core_type<tc>, window_params = [{transform_indices = @transform_0, window_bounds = array<i64: 42, 576>}, {pipeline_mode = #tpu.pipeline_mode<synchronous>, transform_indices = @transform_1, window_bounds = array<i64: 576, 128>}, {pipeline_mode = #tpu.pipeline_mode<synchronous>, transform_indices = @transform_2, window_bounds = array<i64: 1, 128>}, {transform_indices = @transform_3, window_bounds = array<i64: 42, 128>}]} {
    %c0 = arith.constant 0 : index
    %c0_0 = arith.constant 0 : index
    %0 = vector.load %arg1[%c0, %c0_0] : memref<42x576xbf16, #tpu.memory_space<vmem>>, vector<42x576xbf16>
    %c0_1 = arith.constant 0 : index
    %c0_2 = arith.constant 0 : index
    %1 = vector.load %arg2[%c0_1, %c0_2] : memref<576x128xbf16, #tpu.memory_space<vmem>>, vector<576x128xbf16>
    %cst = arith.constant dense<0.000000e+00> : vector<42x128xf32>
    %2 = tpu.matmul %0, %1, %cst {dimension_numbers = #tpu.dot_dimension_numbers<[1], [0], [0], [1], [0, 0, 1, 1], [], []>} : vector<42x576xbf16>, vector<576x128xbf16>, vector<42x128xf32> -> vector<42x128xf32>
    %c0_3 = arith.constant 0 : index
    %c0_4 = arith.constant 0 : index
    %3 = vector.load %arg3[%c0_3, %c0_4] : memref<1x128xf32, #tpu.memory_space<vmem>>, vector<1x128xf32>
    %4 = vector.broadcast %3 : vector<1x128xf32> to vector<42x128xf32>
    %5 = arith.addf %2, %4 : vector<42x128xf32>
    %cst_5 = arith.constant 0.000000e+00 : f32
    %6 = vector.broadcast %cst_5 : f32 to vector<42x128xf32>
    %7 = arith.maximumf %5, %6 : vector<42x128xf32>
    %c0_6 = arith.constant 0 : index
    %c0_7 = arith.constant 0 : index
    %8 = vector.load %arg4[%c0_6, %c0_7] : memref<42x128xf32, #tpu.memory_space<vmem>>, vector<42x128xf32>
    tpu.vector_store %arg4[%c0_6, %c0_7], %7 {strides = array<i32>} : memref<42x128xf32, #tpu.memory_space<vmem>>, vector<42x128xf32>,
    return
  }
  func.func @transform_0(%arg0: i32) -> (i32, i32) {
    %c0_i32 = arith.constant 0 : i32
    %c0_i32_0 = arith.constant 0 : i32
    return %arg0, %c0_i32 : i32, i32
  }
  func.func @transform_1(%arg0: i32) -> (i32, i32) {
    %c0_i32 = arith.constant 0 : i32
    %c0_i32_0 = arith.constant 0 : i32
    %c0_i32_1 = arith.constant 0 : i32
    return %c0_i32, %c0_i32_0 : i32, i32
  }
  func.func @transform_2(%arg0: i32) -> (i32, i32) {
    %c0_i32 = arith.constant 0 : i32
    %c0_i32_0 = arith.constant 0 : i32
    %c0_i32_1 = arith.constant 0 : i32
    return %c0_i32, %c0_i32_0 : i32, i32
  }
  func.func @transform_3(%arg0: i32) -> (i32, i32) {
    %c0_i32 = arith.constant 0 : i32
    %c0_i32_0 = arith.constant 0 : i32
    return %arg0, %c0_i32 : i32, i32
  }
}

module attributes {stable_mosaic.version = 11 : i64} {
  func.func @_ln_linear_kernel(%arg0: i32, %arg1: memref<14x64xf32, #tpu.memory_space<vmem>>, %arg2: memref<1x64xf32, #tpu.memory_space<vmem>>, %arg3: memref<1x64xf32, #tpu.memory_space<vmem>>, %arg4: memref<64x256xbf16, #tpu.memory_space<vmem>>, %arg5: memref<1x256xf32, #tpu.memory_space<vmem>>, %arg6: memref<14x256xf32, #tpu.memory_space<vmem>>) attributes {dimension_semantics = [#tpu.dimension_semantics<parallel>], iteration_bounds = array<i64: 1>, scalar_prefetch = 0 : i64, scratch_operands = 0 : i64, tpu.core_type = #tpu.core_type<tc>, window_params = [{transform_indices = @transform_0, window_bounds = array<i64: 14, 64>}, {pipeline_mode = #tpu.pipeline_mode<synchronous>, transform_indices = @transform_1, window_bounds = array<i64: 1, 64>}, {pipeline_mode = #tpu.pipeline_mode<synchronous>, transform_indices = @transform_2, window_bounds = array<i64: 1, 64>}, {pipeline_mode = #tpu.pipeline_mode<synchronous>, transform_indices = @transform_3, window_bounds = array<i64: 64, 256>}, {pipeline_mode = #tpu.pipeline_mode<synchronous>, transform_indices = @transform_4, window_bounds = array<i64: 1, 256>}, {transform_indices = @transform_5, window_bounds = array<i64: 14, 256>}]} {
    %c0 = arith.constant 0 : index
    %c0_0 = arith.constant 0 : index
    %0 = vector.load %arg1[%c0, %c0_0] : memref<14x64xf32, #tpu.memory_space<vmem>>, vector<14x64xf32>
    %cst = arith.constant dense<0.000000e+00> : vector<14xf32>
    %1 = vector.multi_reduction <add>, %0, %cst [1] : vector<14x64xf32> to vector<14xf32>
    %2 = vector.shape_cast %1 : vector<14xf32> to vector<14x1xf32>
    %cst_1 = arith.constant 6.400000e+01 : f32
    %3 = vector.broadcast %cst_1 : f32 to vector<14x1xf32>
    %4 = arith.divf %2, %3 : vector<14x1xf32>
    %5 = vector.broadcast %4 : vector<14x1xf32> to vector<14x64xf32>
    %6 = arith.subf %0, %5 : vector<14x64xf32>
    %7 = arith.mulf %6, %6 : vector<14x64xf32>
    %cst_2 = arith.constant dense<0.000000e+00> : vector<14xf32>
    %8 = vector.multi_reduction <add>, %7, %cst_2 [1] : vector<14x64xf32> to vector<14xf32>
    %9 = vector.shape_cast %8 : vector<14xf32> to vector<14x1xf32>
    %cst_3 = arith.constant 6.400000e+01 : f32
    %10 = vector.broadcast %cst_3 : f32 to vector<14x1xf32>
    %11 = arith.divf %9, %10 : vector<14x1xf32>
    %12 = vector.broadcast %4 : vector<14x1xf32> to vector<14x64xf32>
    %13 = arith.subf %0, %12 : vector<14x64xf32>
    %cst_4 = arith.constant 9.99999996E-13 : f32
    %14 = vector.broadcast %cst_4 : f32 to vector<14x1xf32>
    %15 = arith.addf %11, %14 : vector<14x1xf32>
    %16 = math.rsqrt %15 : vector<14x1xf32>
    %17 = vector.broadcast %16 : vector<14x1xf32> to vector<14x64xf32>
    %18 = arith.mulf %13, %17 : vector<14x64xf32>
    %c0_5 = arith.constant 0 : index
    %c0_6 = arith.constant 0 : index
    %19 = vector.load %arg2[%c0_5, %c0_6] : memref<1x64xf32, #tpu.memory_space<vmem>>, vector<1x64xf32>
    %20 = vector.broadcast %19 : vector<1x64xf32> to vector<14x64xf32>
    %21 = arith.mulf %18, %20 : vector<14x64xf32>
    %c0_7 = arith.constant 0 : index
    %c0_8 = arith.constant 0 : index
    %22 = vector.load %arg3[%c0_7, %c0_8] : memref<1x64xf32, #tpu.memory_space<vmem>>, vector<1x64xf32>
    %23 = vector.broadcast %22 : vector<1x64xf32> to vector<14x64xf32>
    %24 = arith.addf %21, %23 : vector<14x64xf32>
    %25 = arith.truncf %24 : vector<14x64xf32> to vector<14x64xbf16>
    %c0_9 = arith.constant 0 : index
    %c0_10 = arith.constant 0 : index
    %26 = vector.load %arg4[%c0_9, %c0_10] : memref<64x256xbf16, #tpu.memory_space<vmem>>, vector<64x256xbf16>
    %cst_11 = arith.constant dense<0.000000e+00> : vector<14x256xf32>
    %27 = tpu.matmul %25, %26, %cst_11 {dimension_numbers = #tpu.dot_dimension_numbers<[1], [0], [0], [1], [0, 0, 1, 1], [], []>} : vector<14x64xbf16>, vector<64x256xbf16>, vector<14x256xf32> -> vector<14x256xf32>
    %c0_12 = arith.constant 0 : index
    %c0_13 = arith.constant 0 : index
    %28 = vector.load %arg5[%c0_12, %c0_13] : memref<1x256xf32, #tpu.memory_space<vmem>>, vector<1x256xf32>
    %29 = vector.broadcast %28 : vector<1x256xf32> to vector<14x256xf32>
    %30 = arith.addf %27, %29 : vector<14x256xf32>
    %c0_14 = arith.constant 0 : index
    %c0_15 = arith.constant 0 : index
    %31 = vector.load %arg6[%c0_14, %c0_15] : memref<14x256xf32, #tpu.memory_space<vmem>>, vector<14x256xf32>
    tpu.vector_store %arg6[%c0_14, %c0_15], %30 {strides = array<i32>} : memref<14x256xf32, #tpu.memory_space<vmem>>, vector<14x256xf32>,
    return
  }
  func.func @transform_0(%arg0: i32) -> (i32, i32) {
    %c0_i32 = arith.constant 0 : i32
    %c0_i32_0 = arith.constant 0 : i32
    return %arg0, %c0_i32 : i32, i32
  }
  func.func @transform_1(%arg0: i32) -> (i32, i32) {
    %c0_i32 = arith.constant 0 : i32
    %c0_i32_0 = arith.constant 0 : i32
    %c0_i32_1 = arith.constant 0 : i32
    return %c0_i32, %c0_i32_0 : i32, i32
  }
  func.func @transform_2(%arg0: i32) -> (i32, i32) {
    %c0_i32 = arith.constant 0 : i32
    %c0_i32_0 = arith.constant 0 : i32
    %c0_i32_1 = arith.constant 0 : i32
    return %c0_i32, %c0_i32_0 : i32, i32
  }
  func.func @transform_3(%arg0: i32) -> (i32, i32) {
    %c0_i32 = arith.constant 0 : i32
    %c0_i32_0 = arith.constant 0 : i32
    %c0_i32_1 = arith.constant 0 : i32
    return %c0_i32, %c0_i32_0 : i32, i32
  }
  func.func @transform_4(%arg0: i32) -> (i32, i32) {
    %c0_i32 = arith.constant 0 : i32
    %c0_i32_0 = arith.constant 0 : i32
    %c0_i32_1 = arith.constant 0 : i32
    return %c0_i32, %c0_i32_0 : i32, i32
  }
  func.func @transform_5(%arg0: i32) -> (i32, i32) {
    %c0_i32 = arith.constant 0 : i32
    %c0_i32_0 = arith.constant 0 : i32
    return %arg0, %c0_i32 : i32, i32
  }
}

module attributes {stable_mosaic.version = 11 : i64} {
  func.func @_linear_kernel(%arg0: i32, %arg1: memref<14x192xbf16, #tpu.memory_space<vmem>>, %arg2: memref<192x128xbf16, #tpu.memory_space<vmem>>, %arg3: memref<1x128xf32, #tpu.memory_space<vmem>>, %arg4: memref<14x128xf32, #tpu.memory_space<vmem>>) attributes {dimension_semantics = [#tpu.dimension_semantics<parallel>], iteration_bounds = array<i64: 1>, scalar_prefetch = 0 : i64, scratch_operands = 0 : i64, tpu.core_type = #tpu.core_type<tc>, window_params = [{transform_indices = @transform_0, window_bounds = array<i64: 14, 192>}, {pipeline_mode = #tpu.pipeline_mode<synchronous>, transform_indices = @transform_1, window_bounds = array<i64: 192, 128>}, {pipeline_mode = #tpu.pipeline_mode<synchronous>, transform_indices = @transform_2, window_bounds = array<i64: 1, 128>}, {transform_indices = @transform_3, window_bounds = array<i64: 14, 128>}]} {
    %c0 = arith.constant 0 : index
    %c0_0 = arith.constant 0 : index
    %0 = vector.load %arg1[%c0, %c0_0] : memref<14x192xbf16, #tpu.memory_space<vmem>>, vector<14x192xbf16>
    %c0_1 = arith.constant 0 : index
    %c0_2 = arith.constant 0 : index
    %1 = vector.load %arg2[%c0_1, %c0_2] : memref<192x128xbf16, #tpu.memory_space<vmem>>, vector<192x128xbf16>
    %cst = arith.constant dense<0.000000e+00> : vector<14x128xf32>
    %2 = tpu.matmul %0, %1, %cst {dimension_numbers = #tpu.dot_dimension_numbers<[1], [0], [0], [1], [0, 0, 1, 1], [], []>} : vector<14x192xbf16>, vector<192x128xbf16>, vector<14x128xf32> -> vector<14x128xf32>
    %c0_3 = arith.constant 0 : index
    %c0_4 = arith.constant 0 : index
    %3 = vector.load %arg3[%c0_3, %c0_4] : memref<1x128xf32, #tpu.memory_space<vmem>>, vector<1x128xf32>
    %4 = vector.broadcast %3 : vector<1x128xf32> to vector<14x128xf32>
    %5 = arith.addf %2, %4 : vector<14x128xf32>
    %c0_5 = arith.constant 0 : index
    %c0_6 = arith.constant 0 : index
    %6 = vector.load %arg4[%c0_5, %c0_6] : memref<14x128xf32, #tpu.memory_space<vmem>>, vector<14x128xf32>
    tpu.vector_store %arg4[%c0_5, %c0_6], %5 {strides = array<i32>} : memref<14x128xf32, #tpu.memory_space<vmem>>, vector<14x128xf32>,
    return
  }
  func.func @transform_0(%arg0: i32) -> (i32, i32) {
    %c0_i32 = arith.constant 0 : i32
    %c0_i32_0 = arith.constant 0 : i32
    return %arg0, %c0_i32 : i32, i32
  }
  func.func @transform_1(%arg0: i32) -> (i32, i32) {
    %c0_i32 = arith.constant 0 : i32
    %c0_i32_0 = arith.constant 0 : i32
    %c0_i32_1 = arith.constant 0 : i32
    return %c0_i32, %c0_i32_0 : i32, i32
  }
  func.func @transform_2(%arg0: i32) -> (i32, i32) {
    %c0_i32 = arith.constant 0 : i32
    %c0_i32_0 = arith.constant 0 : i32
    %c0_i32_1 = arith.constant 0 : i32
    return %c0_i32, %c0_i32_0 : i32, i32
  }
  func.func @transform_3(%arg0: i32) -> (i32, i32) {
    %c0_i32 = arith.constant 0 : i32
    %c0_i32_0 = arith.constant 0 : i32
    return %arg0, %c0_i32 : i32, i32
  }
}

module attributes {stable_mosaic.version = 11 : i64} {
  func.func @_ln_ffn_kernel(%arg0: i32, %arg1: memref<14x64xf32, #tpu.memory_space<vmem>>, %arg2: memref<1x64xf32, #tpu.memory_space<vmem>>, %arg3: memref<1x64xf32, #tpu.memory_space<vmem>>, %arg4: memref<64x128xbf16, #tpu.memory_space<vmem>>, %arg5: memref<1x128xf32, #tpu.memory_space<vmem>>, %arg6: memref<128x64xbf16, #tpu.memory_space<vmem>>, %arg7: memref<1x64xf32, #tpu.memory_space<vmem>>, %arg8: memref<14x64xf32, #tpu.memory_space<vmem>>) attributes {dimension_semantics = [#tpu.dimension_semantics<parallel>], iteration_bounds = array<i64: 1>, scalar_prefetch = 0 : i64, scratch_operands = 0 : i64, tpu.core_type = #tpu.core_type<tc>, window_params = [{transform_indices = @transform_0, window_bounds = array<i64: 14, 64>}, {pipeline_mode = #tpu.pipeline_mode<synchronous>, transform_indices = @transform_1, window_bounds = array<i64: 1, 64>}, {pipeline_mode = #tpu.pipeline_mode<synchronous>, transform_indices = @transform_2, window_bounds = array<i64: 1, 64>}, {pipeline_mode = #tpu.pipeline_mode<synchronous>, transform_indices = @transform_3, window_bounds = array<i64: 64, 128>}, {pipeline_mode = #tpu.pipeline_mode<synchronous>, transform_indices = @transform_4, window_bounds = array<i64: 1, 128>}, {pipeline_mode = #tpu.pipeline_mode<synchronous>, transform_indices = @transform_5, window_bounds = array<i64: 128, 64>}, {pipeline_mode = #tpu.pipeline_mode<synchronous>, transform_indices = @transform_6, window_bounds = array<i64: 1, 64>}, {transform_indices = @transform_7, window_bounds = array<i64: 14, 64>}]} {
    %c0 = arith.constant 0 : index
    %c0_0 = arith.constant 0 : index
    %0 = vector.load %arg1[%c0, %c0_0] : memref<14x64xf32, #tpu.memory_space<vmem>>, vector<14x64xf32>
    %cst = arith.constant dense<0.000000e+00> : vector<14xf32>
    %1 = vector.multi_reduction <add>, %0, %cst [1] : vector<14x64xf32> to vector<14xf32>
    %2 = vector.shape_cast %1 : vector<14xf32> to vector<14x1xf32>
    %cst_1 = arith.constant 6.400000e+01 : f32
    %3 = vector.broadcast %cst_1 : f32 to vector<14x1xf32>
    %4 = arith.divf %2, %3 : vector<14x1xf32>
    %5 = vector.broadcast %4 : vector<14x1xf32> to vector<14x64xf32>
    %6 = arith.subf %0, %5 : vector<14x64xf32>
    %7 = arith.mulf %6, %6 : vector<14x64xf32>
    %cst_2 = arith.constant dense<0.000000e+00> : vector<14xf32>
    %8 = vector.multi_reduction <add>, %7, %cst_2 [1] : vector<14x64xf32> to vector<14xf32>
    %9 = vector.shape_cast %8 : vector<14xf32> to vector<14x1xf32>
    %cst_3 = arith.constant 6.400000e+01 : f32
    %10 = vector.broadcast %cst_3 : f32 to vector<14x1xf32>
    %11 = arith.divf %9, %10 : vector<14x1xf32>
    %12 = vector.broadcast %4 : vector<14x1xf32> to vector<14x64xf32>
    %13 = arith.subf %0, %12 : vector<14x64xf32>
    %cst_4 = arith.constant 9.99999996E-13 : f32
    %14 = vector.broadcast %cst_4 : f32 to vector<14x1xf32>
    %15 = arith.addf %11, %14 : vector<14x1xf32>
    %16 = math.rsqrt %15 : vector<14x1xf32>
    %17 = vector.broadcast %16 : vector<14x1xf32> to vector<14x64xf32>
    %18 = arith.mulf %13, %17 : vector<14x64xf32>
    %c0_5 = arith.constant 0 : index
    %c0_6 = arith.constant 0 : index
    %19 = vector.load %arg2[%c0_5, %c0_6] : memref<1x64xf32, #tpu.memory_space<vmem>>, vector<1x64xf32>
    %20 = vector.broadcast %19 : vector<1x64xf32> to vector<14x64xf32>
    %21 = arith.mulf %18, %20 : vector<14x64xf32>
    %c0_7 = arith.constant 0 : index
    %c0_8 = arith.constant 0 : index
    %22 = vector.load %arg3[%c0_7, %c0_8] : memref<1x64xf32, #tpu.memory_space<vmem>>, vector<1x64xf32>
    %23 = vector.broadcast %22 : vector<1x64xf32> to vector<14x64xf32>
    %24 = arith.addf %21, %23 : vector<14x64xf32>
    %25 = arith.truncf %24 : vector<14x64xf32> to vector<14x64xbf16>
    %c0_9 = arith.constant 0 : index
    %c0_10 = arith.constant 0 : index
    %26 = vector.load %arg4[%c0_9, %c0_10] : memref<64x128xbf16, #tpu.memory_space<vmem>>, vector<64x128xbf16>
    %cst_11 = arith.constant dense<0.000000e+00> : vector<14x128xf32>
    %27 = tpu.matmul %25, %26, %cst_11 {dimension_numbers = #tpu.dot_dimension_numbers<[1], [0], [0], [1], [0, 0, 1, 1], [], []>} : vector<14x64xbf16>, vector<64x128xbf16>, vector<14x128xf32> -> vector<14x128xf32>
    %c0_12 = arith.constant 0 : index
    %c0_13 = arith.constant 0 : index
    %28 = vector.load %arg5[%c0_12, %c0_13] : memref<1x128xf32, #tpu.memory_space<vmem>>, vector<1x128xf32>
    %29 = vector.broadcast %28 : vector<1x128xf32> to vector<14x128xf32>
    %30 = arith.addf %27, %29 : vector<14x128xf32>
    %31 = arith.negf %30 : vector<14x128xf32>
    %32 = math.exp %31 : vector<14x128xf32>
    %cst_14 = arith.constant 1.000000e+00 : f32
    %33 = vector.broadcast %cst_14 : f32 to vector<14x128xf32>
    %34 = arith.addf %33, %32 : vector<14x128xf32>
    %35 = arith.divf %33, %34 : vector<14x128xf32>
    %36 = arith.mulf %30, %35 : vector<14x128xf32>
    %37 = arith.truncf %36 : vector<14x128xf32> to vector<14x128xbf16>
    %c0_15 = arith.constant 0 : index
    %c0_16 = arith.constant 0 : index
    %38 = vector.load %arg6[%c0_15, %c0_16] : memref<128x64xbf16, #tpu.memory_space<vmem>>, vector<128x64xbf16>
    %cst_17 = arith.constant dense<0.000000e+00> : vector<14x64xf32>
    %39 = tpu.matmul %37, %38, %cst_17 {dimension_numbers = #tpu.dot_dimension_numbers<[1], [0], [0], [1], [0, 0, 1, 1], [], []>} : vector<14x128xbf16>, vector<128x64xbf16>, vector<14x64xf32> -> vector<14x64xf32>
    %c0_18 = arith.constant 0 : index
    %c0_19 = arith.constant 0 : index
    %40 = vector.load %arg7[%c0_18, %c0_19] : memref<1x64xf32, #tpu.memory_space<vmem>>, vector<1x64xf32>
    %41 = vector.broadcast %40 : vector<1x64xf32> to vector<14x64xf32>
    %42 = arith.addf %39, %41 : vector<14x64xf32>
    %cst_20 = arith.constant 5.000000e-01 : f32
    %43 = vector.broadcast %cst_20 : f32 to vector<14x64xf32>
    %44 = arith.mulf %43, %42 : vector<14x64xf32>
    %45 = arith.addf %0, %44 : vector<14x64xf32>
    %c0_21 = arith.constant 0 : index
    %c0_22 = arith.constant 0 : index
    %46 = vector.load %arg8[%c0_21, %c0_22] : memref<14x64xf32, #tpu.memory_space<vmem>>, vector<14x64xf32>
    tpu.vector_store %arg8[%c0_21, %c0_22], %45 {strides = array<i32>} : memref<14x64xf32, #tpu.memory_space<vmem>>, vector<14x64xf32>,
    return
  }
  func.func @transform_0(%arg0: i32) -> (i32, i32) {
    %c0_i32 = arith.constant 0 : i32
    %c0_i32_0 = arith.constant 0 : i32
    return %arg0, %c0_i32 : i32, i32
  }
  func.func @transform_1(%arg0: i32) -> (i32, i32) {
    %c0_i32 = arith.constant 0 : i32
    %c0_i32_0 = arith.constant 0 : i32
    %c0_i32_1 = arith.constant 0 : i32
    return %c0_i32, %c0_i32_0 : i32, i32
  }
  func.func @transform_2(%arg0: i32) -> (i32, i32) {
    %c0_i32 = arith.constant 0 : i32
    %c0_i32_0 = arith.constant 0 : i32
    %c0_i32_1 = arith.constant 0 : i32
    return %c0_i32, %c0_i32_0 : i32, i32
  }
  func.func @transform_3(%arg0: i32) -> (i32, i32) {
    %c0_i32 = arith.constant 0 : i32
    %c0_i32_0 = arith.constant 0 : i32
    %c0_i32_1 = arith.constant 0 : i32
    return %c0_i32, %c0_i32_0 : i32, i32
  }
  func.func @transform_4(%arg0: i32) -> (i32, i32) {
    %c0_i32 = arith.constant 0 : i32
    %c0_i32_0 = arith.constant 0 : i32
    %c0_i32_1 = arith.constant 0 : i32
    return %c0_i32, %c0_i32_0 : i32, i32
  }
  func.func @transform_5(%arg0: i32) -> (i32, i32) {
    %c0_i32 = arith.constant 0 : i32
    %c0_i32_0 = arith.constant 0 : i32
    %c0_i32_1 = arith.constant 0 : i32
    return %c0_i32, %c0_i32_0 : i32, i32
  }
  func.func @transform_6(%arg0: i32) -> (i32, i32) {
    %c0_i32 = arith.constant 0 : i32
    %c0_i32_0 = arith.constant 0 : i32
    %c0_i32_1 = arith.constant 0 : i32
    return %c0_i32, %c0_i32_0 : i32, i32
  }
  func.func @transform_7(%arg0: i32) -> (i32, i32) {
    %c0_i32 = arith.constant 0 : i32
    %c0_i32_0 = arith.constant 0 : i32
    return %arg0, %c0_i32 : i32, i32
  }
}

module attributes {stable_mosaic.version = 11 : i64} {
  func.func @_linear_nb_kernel(%arg0: i32, %arg1: memref<7x64xbf16, #tpu.memory_space<vmem>>, %arg2: memref<64x128xbf16, #tpu.memory_space<vmem>>, %arg3: memref<7x128xf32, #tpu.memory_space<vmem>>) attributes {dimension_semantics = [#tpu.dimension_semantics<parallel>], iteration_bounds = array<i64: 1>, scalar_prefetch = 0 : i64, scratch_operands = 0 : i64, tpu.core_type = #tpu.core_type<tc>, window_params = [{transform_indices = @transform_0, window_bounds = array<i64: 7, 64>}, {pipeline_mode = #tpu.pipeline_mode<synchronous>, transform_indices = @transform_1, window_bounds = array<i64: 64, 128>}, {transform_indices = @transform_2, window_bounds = array<i64: 7, 128>}]} {
    %c0 = arith.constant 0 : index
    %c0_0 = arith.constant 0 : index
    %0 = vector.load %arg1[%c0, %c0_0] : memref<7x64xbf16, #tpu.memory_space<vmem>>, vector<7x64xbf16>
    %c0_1 = arith.constant 0 : index
    %c0_2 = arith.constant 0 : index
    %1 = vector.load %arg2[%c0_1, %c0_2] : memref<64x128xbf16, #tpu.memory_space<vmem>>, vector<64x128xbf16>
    %cst = arith.constant dense<0.000000e+00> : vector<7x128xf32>
    %2 = tpu.matmul %0, %1, %cst {dimension_numbers = #tpu.dot_dimension_numbers<[1], [0], [0], [1], [0, 0, 1, 1], [], []>} : vector<7x64xbf16>, vector<64x128xbf16>, vector<7x128xf32> -> vector<7x128xf32>
    %c0_3 = arith.constant 0 : index
    %c0_4 = arith.constant 0 : index
    %3 = vector.load %arg3[%c0_3, %c0_4] : memref<7x128xf32, #tpu.memory_space<vmem>>, vector<7x128xf32>
    tpu.vector_store %arg3[%c0_3, %c0_4], %2 {strides = array<i32>} : memref<7x128xf32, #tpu.memory_space<vmem>>, vector<7x128xf32>,
    return
  }
  func.func @transform_0(%arg0: i32) -> (i32, i32) {
    %c0_i32 = arith.constant 0 : i32
    %c0_i32_0 = arith.constant 0 : i32
    return %arg0, %c0_i32 : i32, i32
  }
  func.func @transform_1(%arg0: i32) -> (i32, i32) {
    %c0_i32 = arith.constant 0 : i32
    %c0_i32_0 = arith.constant 0 : i32
    %c0_i32_1 = arith.constant 0 : i32
    return %c0_i32, %c0_i32_0 : i32, i32
  }
  func.func @transform_2(%arg0: i32) -> (i32, i32) {
    %c0_i32 = arith.constant 0 : i32
    %c0_i32_0 = arith.constant 0 : i32
    return %arg0, %c0_i32 : i32, i32
  }
}

module attributes {stable_mosaic.version = 11 : i64} {
  func.func @_rel_attn_kernel(%arg0: i32, %arg1: memref<1x12x7x16xbf16, #tpu.memory_space<vmem>>, %arg2: memref<4x7x16xbf16, #tpu.memory_space<vmem>>, %arg3: memref<4x1x16xf32, #tpu.memory_space<vmem>>, %arg4: memref<4x1x16xf32, #tpu.memory_space<vmem>>, %arg5: memref<64x64xbf16, #tpu.memory_space<vmem>>, %arg6: memref<1x64xf32, #tpu.memory_space<vmem>>, %arg7: memref<1x7x64xf32, #tpu.memory_space<vmem>>, %arg8: memref<1x7x64xf32, #tpu.memory_space<vmem>>) attributes {dimension_semantics = [#tpu.dimension_semantics<parallel>], iteration_bounds = array<i64: 2>, scalar_prefetch = 0 : i64, scratch_operands = 0 : i64, tpu.core_type = #tpu.core_type<tc>, window_params = [{transform_indices = @transform_0, window_bounds = array<i64: 1, 12, 7, 16>}, {pipeline_mode = #tpu.pipeline_mode<synchronous>, transform_indices = @transform_1, window_bounds = array<i64: 4, 7, 16>}, {pipeline_mode = #tpu.pipeline_mode<synchronous>, transform_indices = @transform_2, window_bounds = array<i64: 4, 1, 16>}, {pipeline_mode = #tpu.pipeline_mode<synchronous>, transform_indices = @transform_3, window_bounds = array<i64: 4, 1, 16>}, {pipeline_mode = #tpu.pipeline_mode<synchronous>, transform_indices = @transform_4, window_bounds = array<i64: 64, 64>}, {pipeline_mode = #tpu.pipeline_mode<synchronous>, transform_indices = @transform_5, window_bounds = array<i64: 1, 64>}, {transform_indices = @transform_6, window_bounds = array<i64: 1, 7, 64>}, {transform_indices = @transform_7, window_bounds = array<i64: 1, 7, 64>}]} {
    %c0 = arith.constant 0 : index
    %c0_0 = arith.constant 0 : index
    %c0_1 = arith.constant 0 : index
    %c0_2 = arith.constant 0 : index
    %0 = vector.load %arg1[%c0, %c0_0, %c0_1, %c0_2] : memref<1x12x7x16xbf16, #tpu.memory_space<vmem>>, vector<1x12x7x16xbf16>
    %1 = vector.shape_cast %0 : vector<1x12x7x16xbf16> to vector<12x7x16xbf16>
    %2 = arith.extf %1 : vector<12x7x16xbf16> to vector<12x7x16xf32>
    %3 = vector.extract_strided_slice %2 {offsets = [0, 0, 0], sizes = [4, 7, 16], strides = [1, 1, 1]} : vector<12x7x16xf32> to vector<4x7x16xf32>
    %4 = vector.extract_strided_slice %2 {offsets = [4, 0, 0], sizes = [4, 7, 16], strides = [1, 1, 1]} : vector<12x7x16xf32> to vector<4x7x16xf32>
    %5 = vector.extract_strided_slice %2 {offsets = [8, 0, 0], sizes = [4, 7, 16], strides = [1, 1, 1]} : vector<12x7x16xf32> to vector<4x7x16xf32>
    %c0_3 = arith.constant 0 : index
    %c0_4 = arith.constant 0 : index
    %c0_5 = arith.constant 0 : index
    %6 = vector.load %arg2[%c0_3, %c0_4, %c0_5] : memref<4x7x16xbf16, #tpu.memory_space<vmem>>, vector<4x7x16xbf16>
    %7 = arith.extf %6 : vector<4x7x16xbf16> to vector<4x7x16xf32>
    %c0_6 = arith.constant 0 : index
    %c0_7 = arith.constant 0 : index
    %c0_8 = arith.constant 0 : index
    %8 = vector.load %arg3[%c0_6, %c0_7, %c0_8] : memref<4x1x16xf32, #tpu.memory_space<vmem>>, vector<4x1x16xf32>
    %9 = vector.broadcast %8 : vector<4x1x16xf32> to vector<4x7x16xf32>
    %10 = arith.addf %3, %9 : vector<4x7x16xf32>
    %c0_9 = arith.constant 0 : index
    %c0_10 = arith.constant 0 : index
    %c0_11 = arith.constant 0 : index
    %11 = vector.load %arg4[%c0_9, %c0_10, %c0_11] : memref<4x1x16xf32, #tpu.memory_space<vmem>>, vector<4x1x16xf32>
    %12 = vector.broadcast %11 : vector<4x1x16xf32> to vector<4x7x16xf32>
    %13 = arith.addf %3, %12 : vector<4x7x16xf32>
    %14 = arith.truncf %10 : vector<4x7x16xf32> to vector<4x7x16xbf16>
    %15 = arith.truncf %4 : vector<4x7x16xf32> to vector<4x7x16xbf16>
    %cst = arith.constant dense<0.000000e+00> : vector<4x7x7xf32>
    %16 = tpu.matmul %14, %15, %cst {dimension_numbers = #tpu.dot_dimension_numbers<[2], [2], [1], [1], [0, 0, 0, 1, 1, 1], [0], [0]>} : vector<4x7x16xbf16>, vector<4x7x16xbf16>, vector<4x7x7xf32> -> vector<4x7x7xf32>
    %17 = arith.truncf %13 : vector<4x7x16xf32> to vector<4x7x16xbf16>
    %18 = arith.truncf %7 : vector<4x7x16xf32> to vector<4x7x16xbf16>
    %cst_12 = arith.constant dense<0.000000e+00> : vector<4x7x7xf32>
    %19 = tpu.matmul %17, %18, %cst_12 {dimension_numbers = #tpu.dot_dimension_numbers<[2], [2], [1], [1], [0, 0, 0, 1, 1, 1], [0], [0]>} : vector<4x7x16xbf16>, vector<4x7x16xbf16>, vector<4x7x7xf32> -> vector<4x7x7xf32>
    %20 = arith.addf %16, %19 : vector<4x7x7xf32>
    %cst_13 = arith.constant 2.500000e-01 : f32
    %21 = vector.broadcast %cst_13 : f32 to vector<4x7x7xf32>
    %22 = arith.mulf %20, %21 : vector<4x7x7xf32>
    %cst_14 = arith.constant dense<0xFF800000> : vector<4x7xf32>
    %23 = vector.multi_reduction <maximumf>, %22, %cst_14 [2] : vector<4x7x7xf32> to vector<4x7xf32>
    %24 = vector.shape_cast %23 : vector<4x7xf32> to vector<4x7x1xf32>
    %25 = vector.broadcast %24 : vector<4x7x1xf32> to vector<4x7x7xf32>
    %26 = arith.subf %22, %25 : vector<4x7x7xf32>
    %27 = math.exp %26 : vector<4x7x7xf32>
    %cst_15 = arith.constant dense<0.000000e+00> : vector<4x7xf32>
    %28 = vector.multi_reduction <add>, %27, %cst_15 [2] : vector<4x7x7xf32> to vector<4x7xf32>
    %29 = vector.shape_cast %28 : vector<4x7xf32> to vector<4x7x1xf32>
    %30 = tpu.reciprocal %29 {approx = true} : vector<4x7x1xf32> -> vector<4x7x1xf32>
    %31 = vector.broadcast %30 : vector<4x7x1xf32> to vector<4x7x7xf32>
    %32 = arith.mulf %27, %31 : vector<4x7x7xf32>
    %33 = arith.truncf %32 : vector<4x7x7xf32> to vector<4x7x7xbf16>
    %34 = arith.truncf %5 : vector<4x7x16xf32> to vector<4x7x16xbf16>
    %cst_16 = arith.constant dense<0.000000e+00> : vector<4x7x16xf32>
    %35 = tpu.matmul %33, %34, %cst_16 {dimension_numbers = #tpu.dot_dimension_numbers<[2], [1], [1], [2], [0, 0, 0, 1, 1, 2], [0], [0]>} : vector<4x7x7xbf16>, vector<4x7x16xbf16>, vector<4x7x16xf32> -> vector<4x7x16xf32>
    %36 = tpu.transpose %35, [1, 0, 2] : vector<4x7x16xf32> -> vector<7x4x16xf32>
    %37 = vector.shape_cast %36 : vector<7x4x16xf32> to vector<7x64xf32>
    %38 = arith.truncf %37 : vector<7x64xf32> to vector<7x64xbf16>
    %c0_17 = arith.constant 0 : index
    %c0_18 = arith.constant 0 : index
    %39 = vector.load %arg5[%c0_17, %c0_18] : memref<64x64xbf16, #tpu.memory_space<vmem>>, vector<64x64xbf16>
    %cst_19 = arith.constant dense<0.000000e+00> : vector<7x64xf32>
    %40 = tpu.matmul %38, %39, %cst_19 {dimension_numbers = #tpu.dot_dimension_numbers<[1], [0], [0], [1], [0, 0, 1, 1], [], []>} : vector<7x64xbf16>, vector<64x64xbf16>, vector<7x64xf32> -> vector<7x64xf32>
    %c0_20 = arith.constant 0 : index
    %c0_21 = arith.constant 0 : index
    %41 = vector.load %arg6[%c0_20, %c0_21] : memref<1x64xf32, #tpu.memory_space<vmem>>, vector<1x64xf32>
    %42 = vector.broadcast %41 : vector<1x64xf32> to vector<7x64xf32>
    %43 = arith.addf %40, %42 : vector<7x64xf32>
    %c0_22 = arith.constant 0 : index
    %c0_23 = arith.constant 0 : index
    %c0_24 = arith.constant 0 : index
    %44 = vector.load %arg7[%c0_22, %c0_23, %c0_24] : memref<1x7x64xf32, #tpu.memory_space<vmem>>, vector<1x7x64xf32>
    %45 = vector.shape_cast %44 : vector<1x7x64xf32> to vector<7x64xf32>
    %46 = arith.addf %45, %43 : vector<7x64xf32>
    %c0_25 = arith.constant 0 : index
    %c0_26 = arith.constant 0 : index
    %c0_27 = arith.constant 0 : index
    %47 = vector.load %arg8[%c0_25, %c0_26, %c0_27] : memref<1x7x64xf32, #tpu.memory_space<vmem>>, vector<1x7x64xf32>
    %48 = vector.shape_cast %47 : vector<1x7x64xf32> to vector<7x64xf32>
    %49 = vector.shape_cast %46 : vector<7x64xf32> to vector<1x7x64xf32>
    tpu.vector_store %arg8[%c0_25, %c0_26, %c0_27], %49 {strides = array<i32>} : memref<1x7x64xf32, #tpu.memory_space<vmem>>, vector<1x7x64xf32>,
    return
  }
  func.func @transform_0(%arg0: i32) -> (i32, i32, i32, i32) {
    %c0_i32 = arith.constant 0 : i32
    %c0_i32_0 = arith.constant 0 : i32
    %c0_i32_1 = arith.constant 0 : i32
    %c0_i32_2 = arith.constant 0 : i32
    return %arg0, %c0_i32, %c0_i32_0, %c0_i32_1 : i32, i32, i32, i32
  }
  func.func @transform_1(%arg0: i32) -> (i32, i32, i32) {
    %c0_i32 = arith.constant 0 : i32
    %c0_i32_0 = arith.constant 0 : i32
    %c0_i32_1 = arith.constant 0 : i32
    %c0_i32_2 = arith.constant 0 : i32
    return %c0_i32, %c0_i32_0, %c0_i32_1 : i32, i32, i32
  }
  func.func @transform_2(%arg0: i32) -> (i32, i32, i32) {
    %c0_i32 = arith.constant 0 : i32
    %c0_i32_0 = arith.constant 0 : i32
    %c0_i32_1 = arith.constant 0 : i32
    %c0_i32_2 = arith.constant 0 : i32
    return %c0_i32, %c0_i32_0, %c0_i32_1 : i32, i32, i32
  }
  func.func @transform_3(%arg0: i32) -> (i32, i32, i32) {
    %c0_i32 = arith.constant 0 : i32
    %c0_i32_0 = arith.constant 0 : i32
    %c0_i32_1 = arith.constant 0 : i32
    %c0_i32_2 = arith.constant 0 : i32
    return %c0_i32, %c0_i32_0, %c0_i32_1 : i32, i32, i32
  }
  func.func @transform_4(%arg0: i32) -> (i32, i32) {
    %c0_i32 = arith.constant 0 : i32
    %c0_i32_0 = arith.constant 0 : i32
    %c0_i32_1 = arith.constant 0 : i32
    return %c0_i32, %c0_i32_0 : i32, i32
  }
  func.func @transform_5(%arg0: i32) -> (i32, i32) {
    %c0_i32 = arith.constant 0 : i32
    %c0_i32_0 = arith.constant 0 : i32
    %c0_i32_1 = arith.constant 0 : i32
    return %c0_i32, %c0_i32_0 : i32, i32
  }
  func.func @transform_6(%arg0: i32) -> (i32, i32, i32) {
    %c0_i32 = arith.constant 0 : i32
    %c0_i32_0 = arith.constant 0 : i32
    %c0_i32_1 = arith.constant 0 : i32
    return %arg0, %c0_i32, %c0_i32_0 : i32, i32, i32
  }
  func.func @transform_7(%arg0: i32) -> (i32, i32, i32) {
    %c0_i32 = arith.constant 0 : i32
    %c0_i32_0 = arith.constant 0 : i32
    %c0_i32_1 = arith.constant 0 : i32
    return %arg0, %c0_i32, %c0_i32_0 : i32, i32, i32
  }
}

module attributes {stable_mosaic.version = 11 : i64} {
  func.func @_moe_kernel(%arg0: i32, %arg1: memref<14x64xf32, #tpu.memory_space<vmem>>, %arg2: memref<14x64xbf16, #tpu.memory_space<vmem>>, %arg3: memref<1x64xf32, #tpu.memory_space<vmem>>, %arg4: memref<1x64xf32, #tpu.memory_space<vmem>>, %arg5: memref<64x4xbf16, #tpu.memory_space<vmem>>, %arg6: memref<64x4xbf16, #tpu.memory_space<vmem>>, %arg7: memref<4x64x128xbf16, #tpu.memory_space<vmem>>, %arg8: memref<4x1x128xf32, #tpu.memory_space<vmem>>, %arg9: memref<4x128x64xbf16, #tpu.memory_space<vmem>>, %arg10: memref<4x1x64xf32, #tpu.memory_space<vmem>>, %arg11: memref<1x64xf32, #tpu.memory_space<vmem>>, %arg12: memref<1x64xf32, #tpu.memory_space<vmem>>, %arg13: memref<14x64xf32, #tpu.memory_space<vmem>>) attributes {dimension_semantics = [#tpu.dimension_semantics<parallel>], iteration_bounds = array<i64: 1>, scalar_prefetch = 0 : i64, scratch_operands = 0 : i64, tpu.core_type = #tpu.core_type<tc>, window_params = [{transform_indices = @transform_0, window_bounds = array<i64: 14, 64>}, {transform_indices = @transform_1, window_bounds = array<i64: 14, 64>}, {pipeline_mode = #tpu.pipeline_mode<synchronous>, transform_indices = @transform_2, window_bounds = array<i64: 1, 64>}, {pipeline_mode = #tpu.pipeline_mode<synchronous>, transform_indices = @transform_3, window_bounds = array<i64: 1, 64>}, {pipeline_mode = #tpu.pipeline_mode<synchronous>, transform_indices = @transform_4, window_bounds = array<i64: 64, 4>}, {pipeline_mode = #tpu.pipeline_mode<synchronous>, transform_indices = @transform_5, window_bounds = array<i64: 64, 4>}, {pipeline_mode = #tpu.pipeline_mode<synchronous>, transform_indices = @transform_6, window_bounds = array<i64: 4, 64, 128>}, {pipeline_mode = #tpu.pipeline_mode<synchronous>, transform_indices = @transform_7, window_bounds = array<i64: 4, 1, 128>}, {pipeline_mode = #tpu.pipeline_mode<synchronous>, transform_indices = @transform_8, window_bounds = array<i64: 4, 128, 64>}, {pipeline_mode = #tpu.pipeline_mode<synchronous>, transform_indices = @transform_9, window_bounds = array<i64: 4, 1, 64>}, {pipeline_mode = #tpu.pipeline_mode<synchronous>, transform_indices = @transform_10, window_bounds = array<i64: 1, 64>}, {pipeline_mode = #tpu.pipeline_mode<synchronous>, transform_indices = @transform_11, window_bounds = array<i64: 1, 64>}, {transform_indices = @transform_12, window_bounds = array<i64: 14, 64>}]} {
    %c0 = arith.constant 0 : index
    %c0_0 = arith.constant 0 : index
    %0 = vector.load %arg1[%c0, %c0_0] : memref<14x64xf32, #tpu.memory_space<vmem>>, vector<14x64xf32>
    %cst = arith.constant dense<0.000000e+00> : vector<14xf32>
    %1 = vector.multi_reduction <add>, %0, %cst [1] : vector<14x64xf32> to vector<14xf32>
    %2 = vector.shape_cast %1 : vector<14xf32> to vector<14x1xf32>
    %cst_1 = arith.constant 6.400000e+01 : f32
    %3 = vector.broadcast %cst_1 : f32 to vector<14x1xf32>
    %4 = arith.divf %2, %3 : vector<14x1xf32>
    %5 = vector.broadcast %4 : vector<14x1xf32> to vector<14x64xf32>
    %6 = arith.subf %0, %5 : vector<14x64xf32>
    %7 = arith.mulf %6, %6 : vector<14x64xf32>
    %cst_2 = arith.constant dense<0.000000e+00> : vector<14xf32>
    %8 = vector.multi_reduction <add>, %7, %cst_2 [1] : vector<14x64xf32> to vector<14xf32>
    %9 = vector.shape_cast %8 : vector<14xf32> to vector<14x1xf32>
    %cst_3 = arith.constant 6.400000e+01 : f32
    %10 = vector.broadcast %cst_3 : f32 to vector<14x1xf32>
    %11 = arith.divf %9, %10 : vector<14x1xf32>
    %12 = vector.broadcast %4 : vector<14x1xf32> to vector<14x64xf32>
    %13 = arith.subf %0, %12 : vector<14x64xf32>
    %cst_4 = arith.constant 9.99999996E-13 : f32
    %14 = vector.broadcast %cst_4 : f32 to vector<14x1xf32>
    %15 = arith.addf %11, %14 : vector<14x1xf32>
    %16 = math.rsqrt %15 : vector<14x1xf32>
    %17 = vector.broadcast %16 : vector<14x1xf32> to vector<14x64xf32>
    %18 = arith.mulf %13, %17 : vector<14x64xf32>
    %c0_5 = arith.constant 0 : index
    %c0_6 = arith.constant 0 : index
    %19 = vector.load %arg3[%c0_5, %c0_6] : memref<1x64xf32, #tpu.memory_space<vmem>>, vector<1x64xf32>
    %20 = vector.broadcast %19 : vector<1x64xf32> to vector<14x64xf32>
    %21 = arith.mulf %18, %20 : vector<14x64xf32>
    %c0_7 = arith.constant 0 : index
    %c0_8 = arith.constant 0 : index
    %22 = vector.load %arg4[%c0_7, %c0_8] : memref<1x64xf32, #tpu.memory_space<vmem>>, vector<1x64xf32>
    %23 = vector.broadcast %22 : vector<1x64xf32> to vector<14x64xf32>
    %24 = arith.addf %21, %23 : vector<14x64xf32>
    %25 = arith.truncf %24 : vector<14x64xf32> to vector<14x64xbf16>
    %c0_9 = arith.constant 0 : index
    %c0_10 = arith.constant 0 : index
    %26 = vector.load %arg5[%c0_9, %c0_10] : memref<64x4xbf16, #tpu.memory_space<vmem>>, vector<64x4xbf16>
    %cst_11 = arith.constant dense<0.000000e+00> : vector<14x4xf32>
    %27 = tpu.matmul %25, %26, %cst_11 {dimension_numbers = #tpu.dot_dimension_numbers<[1], [0], [0], [1], [0, 0, 1, 1], [], []>} : vector<14x64xbf16>, vector<64x4xbf16>, vector<14x4xf32> -> vector<14x4xf32>
    %c0_12 = arith.constant 0 : index
    %c0_13 = arith.constant 0 : index
    %28 = vector.load %arg2[%c0_12, %c0_13] : memref<14x64xbf16, #tpu.memory_space<vmem>>, vector<14x64xbf16>
    %c0_14 = arith.constant 0 : index
    %c0_15 = arith.constant 0 : index
    %29 = vector.load %arg6[%c0_14, %c0_15] : memref<64x4xbf16, #tpu.memory_space<vmem>>, vector<64x4xbf16>
    %cst_16 = arith.constant dense<0.000000e+00> : vector<14x4xf32>
    %30 = tpu.matmul %28, %29, %cst_16 {dimension_numbers = #tpu.dot_dimension_numbers<[1], [0], [0], [1], [0, 0, 1, 1], [], []>} : vector<14x64xbf16>, vector<64x4xbf16>, vector<14x4xf32> -> vector<14x4xf32>
    %31 = arith.addf %27, %30 : vector<14x4xf32>
    %cst_17 = arith.constant dense<0xFF800000> : vector<14xf32>
    %32 = vector.multi_reduction <maximumf>, %31, %cst_17 [1] : vector<14x4xf32> to vector<14xf32>
    %33 = vector.shape_cast %32 : vector<14xf32> to vector<14x1xf32>
    %34 = vector.broadcast %33 : vector<14x1xf32> to vector<14x4xf32>
    %35 = arith.subf %31, %34 : vector<14x4xf32>
    %36 = math.exp %35 : vector<14x4xf32>
    %cst_18 = arith.constant dense<0.000000e+00> : vector<14xf32>
    %37 = vector.multi_reduction <add>, %36, %cst_18 [1] : vector<14x4xf32> to vector<14xf32>
    %38 = vector.shape_cast %37 : vector<14xf32> to vector<14x1xf32>
    %39 = vector.broadcast %38 : vector<14x1xf32> to vector<14x4xf32>
    %40 = arith.divf %36, %39 : vector<14x4xf32>
    %cst_19 = arith.constant 0.000000e+00 : f32
    %41 = vector.broadcast %cst_19 : f32 to vector<14x64xf32>
    %c0_20 = arith.constant 0 : index
    %c0_21 = arith.constant 0 : index
    %c0_22 = arith.constant 0 : index
    %42 = vector.load %arg7[%c0_20, %c0_21, %c0_22] : memref<4x64x128xbf16, #tpu.memory_space<vmem>>, vector<1x64x128xbf16>
    %43 = vector.shape_cast %42 : vector<1x64x128xbf16> to vector<64x128xbf16>
    %cst_23 = arith.constant dense<0.000000e+00> : vector<14x128xf32>
    %44 = tpu.matmul %25, %43, %cst_23 {dimension_numbers = #tpu.dot_dimension_numbers<[1], [0], [0], [1], [0, 0, 1, 1], [], []>} : vector<14x64xbf16>, vector<64x128xbf16>, vector<14x128xf32> -> vector<14x128xf32>
    %c0_24 = arith.constant 0 : index
    %c0_25 = arith.constant 0 : index
    %c0_26 = arith.constant 0 : index
    %45 = vector.load %arg8[%c0_24, %c0_25, %c0_26] : memref<4x1x128xf32, #tpu.memory_space<vmem>>, vector<1x1x128xf32>
    %46 = vector.shape_cast %45 : vector<1x1x128xf32> to vector<1x128xf32>
    %47 = vector.broadcast %46 : vector<1x128xf32> to vector<14x128xf32>
    %48 = arith.addf %44, %47 : vector<14x128xf32>
    %49 = arith.negf %48 : vector<14x128xf32>
    %50 = math.exp %49 : vector<14x128xf32>
    %cst_27 = arith.constant 1.000000e+00 : f32
    %51 = vector.broadcast %cst_27 : f32 to vector<14x128xf32>
    %52 = arith.addf %51, %50 : vector<14x128xf32>
    %53 = arith.divf %51, %52 : vector<14x128xf32>
    %54 = arith.mulf %48, %53 : vector<14x128xf32>
    %55 = arith.truncf %54 : vector<14x128xf32> to vector<14x128xbf16>
    %c0_28 = arith.constant 0 : index
    %c0_29 = arith.constant 0 : index
    %c0_30 = arith.constant 0 : index
    %56 = vector.load %arg9[%c0_28, %c0_29, %c0_30] : memref<4x128x64xbf16, #tpu.memory_space<vmem>>, vector<1x128x64xbf16>
    %57 = vector.shape_cast %56 : vector<1x128x64xbf16> to vector<128x64xbf16>
    %cst_31 = arith.constant dense<0.000000e+00> : vector<14x64xf32>
    %58 = tpu.matmul %55, %57, %cst_31 {dimension_numbers = #tpu.dot_dimension_numbers<[1], [0], [0], [1], [0, 0, 1, 1], [], []>} : vector<14x128xbf16>, vector<128x64xbf16>, vector<14x64xf32> -> vector<14x64xf32>
    %c0_32 = arith.constant 0 : index
    %c0_33 = arith.constant 0 : index
    %c0_34 = arith.constant 0 : index
    %59 = vector.load %arg10[%c0_32, %c0_33, %c0_34] : memref<4x1x64xf32, #tpu.memory_space<vmem>>, vector<1x1x64xf32>
    %60 = vector.shape_cast %59 : vector<1x1x64xf32> to vector<1x64xf32>
    %61 = vector.broadcast %60 : vector<1x64xf32> to vector<14x64xf32>
    %62 = arith.addf %58, %61 : vector<14x64xf32>
    %63 = tpu.iota {dimensions = array<i32: 1>} : vector<14x4xi32>
    %c0_i32 = arith.constant 0 : i32
    %64 = vector.broadcast %c0_i32 : i32 to vector<14x4xi32>
    %65 = arith.cmpi eq, %63, %64 : vector<14x4xi32>
    %66 = arith.extui %65 : vector<14x4xi1> to vector<14x4xi32>
    %67 = arith.sitofp %66 : vector<14x4xi32> to vector<14x4xf32>
    %68 = arith.mulf %40, %67 : vector<14x4xf32>
    %cst_35 = arith.constant dense<0.000000e+00> : vector<14xf32>
    %69 = vector.multi_reduction <add>, %68, %cst_35 [1] : vector<14x4xf32> to vector<14xf32>
    %70 = vector.shape_cast %69 : vector<14xf32> to vector<14x1xf32>
    %71 = vector.broadcast %70 : vector<14x1xf32> to vector<14x64xf32>
    %72 = arith.mulf %71, %62 : vector<14x64xf32>
    %73 = arith.addf %41, %72 : vector<14x64xf32>
    %c1 = arith.constant 1 : index
    %c0_36 = arith.constant 0 : index
    %c0_37 = arith.constant 0 : index
    %74 = vector.load %arg7[%c1, %c0_36, %c0_37] : memref<4x64x128xbf16, #tpu.memory_space<vmem>>, vector<1x64x128xbf16>
    %75 = vector.shape_cast %74 : vector<1x64x128xbf16> to vector<64x128xbf16>
    %cst_38 = arith.constant dense<0.000000e+00> : vector<14x128xf32>
    %76 = tpu.matmul %25, %75, %cst_38 {dimension_numbers = #tpu.dot_dimension_numbers<[1], [0], [0], [1], [0, 0, 1, 1], [], []>} : vector<14x64xbf16>, vector<64x128xbf16>, vector<14x128xf32> -> vector<14x128xf32>
    %c1_39 = arith.constant 1 : index
    %c0_40 = arith.constant 0 : index
    %c0_41 = arith.constant 0 : index
    %77 = vector.load %arg8[%c1_39, %c0_40, %c0_41] : memref<4x1x128xf32, #tpu.memory_space<vmem>>, vector<1x1x128xf32>
    %78 = vector.shape_cast %77 : vector<1x1x128xf32> to vector<1x128xf32>
    %79 = vector.broadcast %78 : vector<1x128xf32> to vector<14x128xf32>
    %80 = arith.addf %76, %79 : vector<14x128xf32>
    %81 = arith.negf %80 : vector<14x128xf32>
    %82 = math.exp %81 : vector<14x128xf32>
    %cst_42 = arith.constant 1.000000e+00 : f32
    %83 = vector.broadcast %cst_42 : f32 to vector<14x128xf32>
    %84 = arith.addf %83, %82 : vector<14x128xf32>
    %85 = arith.divf %83, %84 : vector<14x128xf32>
    %86 = arith.mulf %80, %85 : vector<14x128xf32>
    %87 = arith.truncf %86 : vector<14x128xf32> to vector<14x128xbf16>
    %c1_43 = arith.constant 1 : index
    %c0_44 = arith.constant 0 : index
    %c0_45 = arith.constant 0 : index
    %88 = vector.load %arg9[%c1_43, %c0_44, %c0_45] : memref<4x128x64xbf16, #tpu.memory_space<vmem>>, vector<1x128x64xbf16>
    %89 = vector.shape_cast %88 : vector<1x128x64xbf16> to vector<128x64xbf16>
    %cst_46 = arith.constant dense<0.000000e+00> : vector<14x64xf32>
    %90 = tpu.matmul %87, %89, %cst_46 {dimension_numbers = #tpu.dot_dimension_numbers<[1], [0], [0], [1], [0, 0, 1, 1], [], []>} : vector<14x128xbf16>, vector<128x64xbf16>, vector<14x64xf32> -> vector<14x64xf32>
    %c1_47 = arith.constant 1 : index
    %c0_48 = arith.constant 0 : index
    %c0_49 = arith.constant 0 : index
    %91 = vector.load %arg10[%c1_47, %c0_48, %c0_49] : memref<4x1x64xf32, #tpu.memory_space<vmem>>, vector<1x1x64xf32>
    %92 = vector.shape_cast %91 : vector<1x1x64xf32> to vector<1x64xf32>
    %93 = vector.broadcast %92 : vector<1x64xf32> to vector<14x64xf32>
    %94 = arith.addf %90, %93 : vector<14x64xf32>
    %95 = tpu.iota {dimensions = array<i32: 1>} : vector<14x4xi32>
    %c1_i32 = arith.constant 1 : i32
    %96 = vector.broadcast %c1_i32 : i32 to vector<14x4xi32>
    %97 = arith.cmpi eq, %95, %96 : vector<14x4xi32>
    %98 = arith.extui %97 : vector<14x4xi1> to vector<14x4xi32>
    %99 = arith.sitofp %98 : vector<14x4xi32> to vector<14x4xf32>
    %100 = arith.mulf %40, %99 : vector<14x4xf32>
    %cst_50 = arith.constant dense<0.000000e+00> : vector<14xf32>
    %101 = vector.multi_reduction <add>, %100, %cst_50 [1] : vector<14x4xf32> to vector<14xf32>
    %102 = vector.shape_cast %101 : vector<14xf32> to vector<14x1xf32>
    %103 = vector.broadcast %102 : vector<14x1xf32> to vector<14x64xf32>
    %104 = arith.mulf %103, %94 : vector<14x64xf32>
    %105 = arith.addf %73, %104 : vector<14x64xf32>
    %c2 = arith.constant 2 : index
    %c0_51 = arith.constant 0 : index
    %c0_52 = arith.constant 0 : index
    %106 = vector.load %arg7[%c2, %c0_51, %c0_52] : memref<4x64x128xbf16, #tpu.memory_space<vmem>>, vector<1x64x128xbf16>
    %107 = vector.shape_cast %106 : vector<1x64x128xbf16> to vector<64x128xbf16>
    %cst_53 = arith.constant dense<0.000000e+00> : vector<14x128xf32>
    %108 = tpu.matmul %25, %107, %cst_53 {dimension_numbers = #tpu.dot_dimension_numbers<[1], [0], [0], [1], [0, 0, 1, 1], [], []>} : vector<14x64xbf16>, vector<64x128xbf16>, vector<14x128xf32> -> vector<14x128xf32>
    %c2_54 = arith.constant 2 : index
    %c0_55 = arith.constant 0 : index
    %c0_56 = arith.constant 0 : index
    %109 = vector.load %arg8[%c2_54, %c0_55, %c0_56] : memref<4x1x128xf32, #tpu.memory_space<vmem>>, vector<1x1x128xf32>
    %110 = vector.shape_cast %109 : vector<1x1x128xf32> to vector<1x128xf32>
    %111 = vector.broadcast %110 : vector<1x128xf32> to vector<14x128xf32>
    %112 = arith.addf %108, %111 : vector<14x128xf32>
    %113 = arith.negf %112 : vector<14x128xf32>
    %114 = math.exp %113 : vector<14x128xf32>
    %cst_57 = arith.constant 1.000000e+00 : f32
    %115 = vector.broadcast %cst_57 : f32 to vector<14x128xf32>
    %116 = arith.addf %115, %114 : vector<14x128xf32>
    %117 = arith.divf %115, %116 : vector<14x128xf32>
    %118 = arith.mulf %112, %117 : vector<14x128xf32>
    %119 = arith.truncf %118 : vector<14x128xf32> to vector<14x128xbf16>
    %c2_58 = arith.constant 2 : index
    %c0_59 = arith.constant 0 : index
    %c0_60 = arith.constant 0 : index
    %120 = vector.load %arg9[%c2_58, %c0_59, %c0_60] : memref<4x128x64xbf16, #tpu.memory_space<vmem>>, vector<1x128x64xbf16>
    %121 = vector.shape_cast %120 : vector<1x128x64xbf16> to vector<128x64xbf16>
    %cst_61 = arith.constant dense<0.000000e+00> : vector<14x64xf32>
    %122 = tpu.matmul %119, %121, %cst_61 {dimension_numbers = #tpu.dot_dimension_numbers<[1], [0], [0], [1], [0, 0, 1, 1], [], []>} : vector<14x128xbf16>, vector<128x64xbf16>, vector<14x64xf32> -> vector<14x64xf32>
    %c2_62 = arith.constant 2 : index
    %c0_63 = arith.constant 0 : index
    %c0_64 = arith.constant 0 : index
    %123 = vector.load %arg10[%c2_62, %c0_63, %c0_64] : memref<4x1x64xf32, #tpu.memory_space<vmem>>, vector<1x1x64xf32>
    %124 = vector.shape_cast %123 : vector<1x1x64xf32> to vector<1x64xf32>
    %125 = vector.broadcast %124 : vector<1x64xf32> to vector<14x64xf32>
    %126 = arith.addf %122, %125 : vector<14x64xf32>
    %127 = tpu.iota {dimensions = array<i32: 1>} : vector<14x4xi32>
    %c2_i32 = arith.constant 2 : i32
    %128 = vector.broadcast %c2_i32 : i32 to vector<14x4xi32>
    %129 = arith.cmpi eq, %127, %128 : vector<14x4xi32>
    %130 = arith.extui %129 : vector<14x4xi1> to vector<14x4xi32>
    %131 = arith.sitofp %130 : vector<14x4xi32> to vector<14x4xf32>
    %132 = arith.mulf %40, %131 : vector<14x4xf32>
    %cst_65 = arith.constant dense<0.000000e+00> : vector<14xf32>
    %133 = vector.multi_reduction <add>, %132, %cst_65 [1] : vector<14x4xf32> to vector<14xf32>
    %134 = vector.shape_cast %133 : vector<14xf32> to vector<14x1xf32>
    %135 = vector.broadcast %134 : vector<14x1xf32> to vector<14x64xf32>
    %136 = arith.mulf %135, %126 : vector<14x64xf32>
    %137 = arith.addf %105, %136 : vector<14x64xf32>
    %c3 = arith.constant 3 : index
    %c0_66 = arith.constant 0 : index
    %c0_67 = arith.constant 0 : index
    %138 = vector.load %arg7[%c3, %c0_66, %c0_67] : memref<4x64x128xbf16, #tpu.memory_space<vmem>>, vector<1x64x128xbf16>
    %139 = vector.shape_cast %138 : vector<1x64x128xbf16> to vector<64x128xbf16>
    %cst_68 = arith.constant dense<0.000000e+00> : vector<14x128xf32>
    %140 = tpu.matmul %25, %139, %cst_68 {dimension_numbers = #tpu.dot_dimension_numbers<[1], [0], [0], [1], [0, 0, 1, 1], [], []>} : vector<14x64xbf16>, vector<64x128xbf16>, vector<14x128xf32> -> vector<14x128xf32>
    %c3_69 = arith.constant 3 : index
    %c0_70 = arith.constant 0 : index
    %c0_71 = arith.constant 0 : index
    %141 = vector.load %arg8[%c3_69, %c0_70, %c0_71] : memref<4x1x128xf32, #tpu.memory_space<vmem>>, vector<1x1x128xf32>
    %142 = vector.shape_cast %141 : vector<1x1x128xf32> to vector<1x128xf32>
    %143 = vector.broadcast %142 : vector<1x128xf32> to vector<14x128xf32>
    %144 = arith.addf %140, %143 : vector<14x128xf32>
    %145 = arith.negf %144 : vector<14x128xf32>
    %146 = math.exp %145 : vector<14x128xf32>
    %cst_72 = arith.constant 1.000000e+00 : f32
    %147 = vector.broadcast %cst_72 : f32 to vector<14x128xf32>
    %148 = arith.addf %147, %146 : vector<14x128xf32>
    %149 = arith.divf %147, %148 : vector<14x128xf32>
    %150 = arith.mulf %144, %149 : vector<14x128xf32>
    %151 = arith.truncf %150 : vector<14x128xf32> to vector<14x128xbf16>
    %c3_73 = arith.constant 3 : index
    %c0_74 = arith.constant 0 : index
    %c0_75 = arith.constant 0 : index
    %152 = vector.load %arg9[%c3_73, %c0_74, %c0_75] : memref<4x128x64xbf16, #tpu.memory_space<vmem>>, vector<1x128x64xbf16>
    %153 = vector.shape_cast %152 : vector<1x128x64xbf16> to vector<128x64xbf16>
    %cst_76 = arith.constant dense<0.000000e+00> : vector<14x64xf32>
    %154 = tpu.matmul %151, %153, %cst_76 {dimension_numbers = #tpu.dot_dimension_numbers<[1], [0], [0], [1], [0, 0, 1, 1], [], []>} : vector<14x128xbf16>, vector<128x64xbf16>, vector<14x64xf32> -> vector<14x64xf32>
    %c3_77 = arith.constant 3 : index
    %c0_78 = arith.constant 0 : index
    %c0_79 = arith.constant 0 : index
    %155 = vector.load %arg10[%c3_77, %c0_78, %c0_79] : memref<4x1x64xf32, #tpu.memory_space<vmem>>, vector<1x1x64xf32>
    %156 = vector.shape_cast %155 : vector<1x1x64xf32> to vector<1x64xf32>
    %157 = vector.broadcast %156 : vector<1x64xf32> to vector<14x64xf32>
    %158 = arith.addf %154, %157 : vector<14x64xf32>
    %159 = tpu.iota {dimensions = array<i32: 1>} : vector<14x4xi32>
    %c3_i32 = arith.constant 3 : i32
    %160 = vector.broadcast %c3_i32 : i32 to vector<14x4xi32>
    %161 = arith.cmpi eq, %159, %160 : vector<14x4xi32>
    %162 = arith.extui %161 : vector<14x4xi1> to vector<14x4xi32>
    %163 = arith.sitofp %162 : vector<14x4xi32> to vector<14x4xf32>
    %164 = arith.mulf %40, %163 : vector<14x4xf32>
    %cst_80 = arith.constant dense<0.000000e+00> : vector<14xf32>
    %165 = vector.multi_reduction <add>, %164, %cst_80 [1] : vector<14x4xf32> to vector<14xf32>
    %166 = vector.shape_cast %165 : vector<14xf32> to vector<14x1xf32>
    %167 = vector.broadcast %166 : vector<14x1xf32> to vector<14x64xf32>
    %168 = arith.mulf %167, %158 : vector<14x64xf32>
    %169 = arith.addf %137, %168 : vector<14x64xf32>
    %cst_81 = arith.constant 5.000000e-01 : f32
    %170 = vector.broadcast %cst_81 : f32 to vector<14x64xf32>
    %171 = arith.mulf %170, %169 : vector<14x64xf32>
    %172 = arith.addf %0, %171 : vector<14x64xf32>
    %cst_82 = arith.constant dense<0.000000e+00> : vector<14xf32>
    %173 = vector.multi_reduction <add>, %172, %cst_82 [1] : vector<14x64xf32> to vector<14xf32>
    %174 = vector.shape_cast %173 : vector<14xf32> to vector<14x1xf32>
    %cst_83 = arith.constant 6.400000e+01 : f32
    %175 = vector.broadcast %cst_83 : f32 to vector<14x1xf32>
    %176 = arith.divf %174, %175 : vector<14x1xf32>
    %177 = vector.broadcast %176 : vector<14x1xf32> to vector<14x64xf32>
    %178 = arith.subf %172, %177 : vector<14x64xf32>
    %179 = arith.mulf %178, %178 : vector<14x64xf32>
    %cst_84 = arith.constant dense<0.000000e+00> : vector<14xf32>
    %180 = vector.multi_reduction <add>, %179, %cst_84 [1] : vector<14x64xf32> to vector<14xf32>
    %181 = vector.shape_cast %180 : vector<14xf32> to vector<14x1xf32>
    %cst_85 = arith.constant 6.400000e+01 : f32
    %182 = vector.broadcast %cst_85 : f32 to vector<14x1xf32>
    %183 = arith.divf %181, %182 : vector<14x1xf32>
    %184 = vector.broadcast %176 : vector<14x1xf32> to vector<14x64xf32>
    %185 = arith.subf %172, %184 : vector<14x64xf32>
    %cst_86 = arith.constant 9.99999996E-13 : f32
    %186 = vector.broadcast %cst_86 : f32 to vector<14x1xf32>
    %187 = arith.addf %183, %186 : vector<14x1xf32>
    %188 = math.rsqrt %187 : vector<14x1xf32>
    %189 = vector.broadcast %188 : vector<14x1xf32> to vector<14x64xf32>
    %190 = arith.mulf %185, %189 : vector<14x64xf32>
    %c0_87 = arith.constant 0 : index
    %c0_88 = arith.constant 0 : index
    %191 = vector.load %arg11[%c0_87, %c0_88] : memref<1x64xf32, #tpu.memory_space<vmem>>, vector<1x64xf32>
    %192 = vector.broadcast %191 : vector<1x64xf32> to vector<14x64xf32>
    %193 = arith.mulf %190, %192 : vector<14x64xf32>
    %c0_89 = arith.constant 0 : index
    %c0_90 = arith.constant 0 : index
    %194 = vector.load %arg12[%c0_89, %c0_90] : memref<1x64xf32, #tpu.memory_space<vmem>>, vector<1x64xf32>
    %195 = vector.broadcast %194 : vector<1x64xf32> to vector<14x64xf32>
    %196 = arith.addf %193, %195 : vector<14x64xf32>
    %c0_91 = arith.constant 0 : index
    %c0_92 = arith.constant 0 : index
    %197 = vector.load %arg13[%c0_91, %c0_92] : memref<14x64xf32, #tpu.memory_space<vmem>>, vector<14x64xf32>
    tpu.vector_store %arg13[%c0_91, %c0_92], %196 {strides = array<i32>} : memref<14x64xf32, #tpu.memory_space<vmem>>, vector<14x64xf32>,
    return
  }
  func.func @transform_0(%arg0: i32) -> (i32, i32) {
    %c0_i32 = arith.constant 0 : i32
    %c0_i32_0 = arith.constant 0 : i32
    return %arg0, %c0_i32 : i32, i32
  }
  func.func @transform_1(%arg0: i32) -> (i32, i32) {
    %c0_i32 = arith.constant 0 : i32
    %c0_i32_0 = arith.constant 0 : i32
    return %arg0, %c0_i32 : i32, i32
  }
  func.func @transform_2(%arg0: i32) -> (i32, i32) {
    %c0_i32 = arith.constant 0 : i32
    %c0_i32_0 = arith.constant 0 : i32
    %c0_i32_1 = arith.constant 0 : i32
    return %c0_i32, %c0_i32_0 : i32, i32
  }
  func.func @transform_3(%arg0: i32) -> (i32, i32) {
    %c0_i32 = arith.constant 0 : i32
    %c0_i32_0 = arith.constant 0 : i32
    %c0_i32_1 = arith.constant 0 : i32
    return %c0_i32, %c0_i32_0 : i32, i32
  }
  func.func @transform_4(%arg0: i32) -> (i32, i32) {
    %c0_i32 = arith.constant 0 : i32
    %c0_i32_0 = arith.constant 0 : i32
    %c0_i32_1 = arith.constant 0 : i32
    return %c0_i32, %c0_i32_0 : i32, i32
  }
  func.func @transform_5(%arg0: i32) -> (i32, i32) {
    %c0_i32 = arith.constant 0 : i32
    %c0_i32_0 = arith.constant 0 : i32
    %c0_i32_1 = arith.constant 0 : i32
    return %c0_i32, %c0_i32_0 : i32, i32
  }
  func.func @transform_6(%arg0: i32) -> (i32, i32, i32) {
    %c0_i32 = arith.constant 0 : i32
    %c0_i32_0 = arith.constant 0 : i32
    %c0_i32_1 = arith.constant 0 : i32
    %c0_i32_2 = arith.constant 0 : i32
    return %c0_i32, %c0_i32_0, %c0_i32_1 : i32, i32, i32
  }
  func.func @transform_7(%arg0: i32) -> (i32, i32, i32) {
    %c0_i32 = arith.constant 0 : i32
    %c0_i32_0 = arith.constant 0 : i32
    %c0_i32_1 = arith.constant 0 : i32
    %c0_i32_2 = arith.constant 0 : i32
    return %c0_i32, %c0_i32_0, %c0_i32_1 : i32, i32, i32
  }
  func.func @transform_8(%arg0: i32) -> (i32, i32, i32) {
    %c0_i32 = arith.constant 0 : i32
    %c0_i32_0 = arith.constant 0 : i32
    %c0_i32_1 = arith.constant 0 : i32
    %c0_i32_2 = arith.constant 0 : i32
    return %c0_i32, %c0_i32_0, %c0_i32_1 : i32, i32, i32
  }
  func.func @transform_9(%arg0: i32) -> (i32, i32, i32) {
    %c0_i32 = arith.constant 0 : i32
    %c0_i32_0 = arith.constant 0 : i32
    %c0_i32_1 = arith.constant 0 : i32
    %c0_i32_2 = arith.constant 0 : i32
    return %c0_i32, %c0_i32_0, %c0_i32_1 : i32, i32, i32
  }
  func.func @transform_10(%arg0: i32) -> (i32, i32) {
    %c0_i32 = arith.constant 0 : i32
    %c0_i32_0 = arith.constant 0 : i32
    %c0_i32_1 = arith.constant 0 : i32
    return %c0_i32, %c0_i32_0 : i32, i32
  }
  func.func @transform_11(%arg0: i32) -> (i32, i32) {
    %c0_i32 = arith.constant 0 : i32
    %c0_i32_0 = arith.constant 0 : i32
    %c0_i32_1 = arith.constant 0 : i32
    return %c0_i32, %c0_i32_0 : i32, i32
  }
  func.func @transform_12(%arg0: i32) -> (i32, i32) {
    %c0_i32 = arith.constant 0 : i32
    %c0_i32_0 = arith.constant 0 : i32
    return %arg0, %c0_i32 : i32, i32
  }
}

module attributes {stable_mosaic.version = 11 : i64} {
  func.func @_ln_glu_kernel(%arg0: i32, %arg1: memref<14x64xf32, #tpu.memory_space<vmem>>, %arg2: memref<1x64xf32, #tpu.memory_space<vmem>>, %arg3: memref<1x64xf32, #tpu.memory_space<vmem>>, %arg4: memref<64x64xbf16, #tpu.memory_space<vmem>>, %arg5: memref<1x64xf32, #tpu.memory_space<vmem>>, %arg6: memref<64x64xbf16, #tpu.memory_space<vmem>>, %arg7: memref<1x64xf32, #tpu.memory_space<vmem>>, %arg8: memref<14x64xf32, #tpu.memory_space<vmem>>) attributes {dimension_semantics = [#tpu.dimension_semantics<parallel>], iteration_bounds = array<i64: 1>, scalar_prefetch = 0 : i64, scratch_operands = 0 : i64, tpu.core_type = #tpu.core_type<tc>, window_params = [{transform_indices = @transform_0, window_bounds = array<i64: 14, 64>}, {pipeline_mode = #tpu.pipeline_mode<synchronous>, transform_indices = @transform_1, window_bounds = array<i64: 1, 64>}, {pipeline_mode = #tpu.pipeline_mode<synchronous>, transform_indices = @transform_2, window_bounds = array<i64: 1, 64>}, {pipeline_mode = #tpu.pipeline_mode<synchronous>, transform_indices = @transform_3, window_bounds = array<i64: 64, 64>}, {pipeline_mode = #tpu.pipeline_mode<synchronous>, transform_indices = @transform_4, window_bounds = array<i64: 1, 64>}, {pipeline_mode = #tpu.pipeline_mode<synchronous>, transform_indices = @transform_5, window_bounds = array<i64: 64, 64>}, {pipeline_mode = #tpu.pipeline_mode<synchronous>, transform_indices = @transform_6, window_bounds = array<i64: 1, 64>}, {transform_indices = @transform_7, window_bounds = array<i64: 14, 64>}]} {
    %c0 = arith.constant 0 : index
    %c0_0 = arith.constant 0 : index
    %0 = vector.load %arg1[%c0, %c0_0] : memref<14x64xf32, #tpu.memory_space<vmem>>, vector<14x64xf32>
    %cst = arith.constant dense<0.000000e+00> : vector<14xf32>
    %1 = vector.multi_reduction <add>, %0, %cst [1] : vector<14x64xf32> to vector<14xf32>
    %2 = vector.shape_cast %1 : vector<14xf32> to vector<14x1xf32>
    %cst_1 = arith.constant 6.400000e+01 : f32
    %3 = vector.broadcast %cst_1 : f32 to vector<14x1xf32>
    %4 = arith.divf %2, %3 : vector<14x1xf32>
    %5 = vector.broadcast %4 : vector<14x1xf32> to vector<14x64xf32>
    %6 = arith.subf %0, %5 : vector<14x64xf32>
    %7 = arith.mulf %6, %6 : vector<14x64xf32>
    %cst_2 = arith.constant dense<0.000000e+00> : vector<14xf32>
    %8 = vector.multi_reduction <add>, %7, %cst_2 [1] : vector<14x64xf32> to vector<14xf32>
    %9 = vector.shape_cast %8 : vector<14xf32> to vector<14x1xf32>
    %cst_3 = arith.constant 6.400000e+01 : f32
    %10 = vector.broadcast %cst_3 : f32 to vector<14x1xf32>
    %11 = arith.divf %9, %10 : vector<14x1xf32>
    %12 = vector.broadcast %4 : vector<14x1xf32> to vector<14x64xf32>
    %13 = arith.subf %0, %12 : vector<14x64xf32>
    %cst_4 = arith.constant 9.99999996E-13 : f32
    %14 = vector.broadcast %cst_4 : f32 to vector<14x1xf32>
    %15 = arith.addf %11, %14 : vector<14x1xf32>
    %16 = math.rsqrt %15 : vector<14x1xf32>
    %17 = vector.broadcast %16 : vector<14x1xf32> to vector<14x64xf32>
    %18 = arith.mulf %13, %17 : vector<14x64xf32>
    %c0_5 = arith.constant 0 : index
    %c0_6 = arith.constant 0 : index
    %19 = vector.load %arg2[%c0_5, %c0_6] : memref<1x64xf32, #tpu.memory_space<vmem>>, vector<1x64xf32>
    %20 = vector.broadcast %19 : vector<1x64xf32> to vector<14x64xf32>
    %21 = arith.mulf %18, %20 : vector<14x64xf32>
    %c0_7 = arith.constant 0 : index
    %c0_8 = arith.constant 0 : index
    %22 = vector.load %arg3[%c0_7, %c0_8] : memref<1x64xf32, #tpu.memory_space<vmem>>, vector<1x64xf32>
    %23 = vector.broadcast %22 : vector<1x64xf32> to vector<14x64xf32>
    %24 = arith.addf %21, %23 : vector<14x64xf32>
    %25 = arith.truncf %24 : vector<14x64xf32> to vector<14x64xbf16>
    %c0_9 = arith.constant 0 : index
    %c0_10 = arith.constant 0 : index
    %26 = vector.load %arg4[%c0_9, %c0_10] : memref<64x64xbf16, #tpu.memory_space<vmem>>, vector<64x64xbf16>
    %cst_11 = arith.constant dense<0.000000e+00> : vector<14x64xf32>
    %27 = tpu.matmul %25, %26, %cst_11 {dimension_numbers = #tpu.dot_dimension_numbers<[1], [0], [0], [1], [0, 0, 1, 1], [], []>} : vector<14x64xbf16>, vector<64x64xbf16>, vector<14x64xf32> -> vector<14x64xf32>
    %c0_12 = arith.constant 0 : index
    %c0_13 = arith.constant 0 : index
    %28 = vector.load %arg5[%c0_12, %c0_13] : memref<1x64xf32, #tpu.memory_space<vmem>>, vector<1x64xf32>
    %29 = vector.broadcast %28 : vector<1x64xf32> to vector<14x64xf32>
    %30 = arith.addf %27, %29 : vector<14x64xf32>
    %c0_14 = arith.constant 0 : index
    %c0_15 = arith.constant 0 : index
    %31 = vector.load %arg6[%c0_14, %c0_15] : memref<64x64xbf16, #tpu.memory_space<vmem>>, vector<64x64xbf16>
    %cst_16 = arith.constant dense<0.000000e+00> : vector<14x64xf32>
    %32 = tpu.matmul %25, %31, %cst_16 {dimension_numbers = #tpu.dot_dimension_numbers<[1], [0], [0], [1], [0, 0, 1, 1], [], []>} : vector<14x64xbf16>, vector<64x64xbf16>, vector<14x64xf32> -> vector<14x64xf32>
    %c0_17 = arith.constant 0 : index
    %c0_18 = arith.constant 0 : index
    %33 = vector.load %arg7[%c0_17, %c0_18] : memref<1x64xf32, #tpu.memory_space<vmem>>, vector<1x64xf32>
    %34 = vector.broadcast %33 : vector<1x64xf32> to vector<14x64xf32>
    %35 = arith.addf %32, %34 : vector<14x64xf32>
    %36 = arith.negf %35 : vector<14x64xf32>
    %37 = math.exp %36 : vector<14x64xf32>
    %cst_19 = arith.constant 1.000000e+00 : f32
    %38 = vector.broadcast %cst_19 : f32 to vector<14x64xf32>
    %39 = arith.addf %38, %37 : vector<14x64xf32>
    %40 = arith.divf %38, %39 : vector<14x64xf32>
    %41 = arith.mulf %30, %40 : vector<14x64xf32>
    %c0_20 = arith.constant 0 : index
    %c0_21 = arith.constant 0 : index
    %42 = vector.load %arg8[%c0_20, %c0_21] : memref<14x64xf32, #tpu.memory_space<vmem>>, vector<14x64xf32>
    tpu.vector_store %arg8[%c0_20, %c0_21], %41 {strides = array<i32>} : memref<14x64xf32, #tpu.memory_space<vmem>>, vector<14x64xf32>,
    return
  }
  func.func @transform_0(%arg0: i32) -> (i32, i32) {
    %c0_i32 = arith.constant 0 : i32
    %c0_i32_0 = arith.constant 0 : i32
    return %arg0, %c0_i32 : i32, i32
  }
  func.func @transform_1(%arg0: i32) -> (i32, i32) {
    %c0_i32 = arith.constant 0 : i32
    %c0_i32_0 = arith.constant 0 : i32
    %c0_i32_1 = arith.constant 0 : i32
    return %c0_i32, %c0_i32_0 : i32, i32
  }
  func.func @transform_2(%arg0: i32) -> (i32, i32) {
    %c0_i32 = arith.constant 0 : i32
    %c0_i32_0 = arith.constant 0 : i32
    %c0_i32_1 = arith.constant 0 : i32
    return %c0_i32, %c0_i32_0 : i32, i32
  }
  func.func @transform_3(%arg0: i32) -> (i32, i32) {
    %c0_i32 = arith.constant 0 : i32
    %c0_i32_0 = arith.constant 0 : i32
    %c0_i32_1 = arith.constant 0 : i32
    return %c0_i32, %c0_i32_0 : i32, i32
  }
  func.func @transform_4(%arg0: i32) -> (i32, i32) {
    %c0_i32 = arith.constant 0 : i32
    %c0_i32_0 = arith.constant 0 : i32
    %c0_i32_1 = arith.constant 0 : i32
    return %c0_i32, %c0_i32_0 : i32, i32
  }
  func.func @transform_5(%arg0: i32) -> (i32, i32) {
    %c0_i32 = arith.constant 0 : i32
    %c0_i32_0 = arith.constant 0 : i32
    %c0_i32_1 = arith.constant 0 : i32
    return %c0_i32, %c0_i32_0 : i32, i32
  }
  func.func @transform_6(%arg0: i32) -> (i32, i32) {
    %c0_i32 = arith.constant 0 : i32
    %c0_i32_0 = arith.constant 0 : i32
    %c0_i32_1 = arith.constant 0 : i32
    return %c0_i32, %c0_i32_0 : i32, i32
  }
  func.func @transform_7(%arg0: i32) -> (i32, i32) {
    %c0_i32 = arith.constant 0 : i32
    %c0_i32_0 = arith.constant 0 : i32
    return %arg0, %c0_i32 : i32, i32
  }
}

module attributes {stable_mosaic.version = 11 : i64} {
  func.func @_conv_tail_kernel(%arg0: i32, %arg1: memref<1x21x64xbf16, #tpu.memory_space<vmem>>, %arg2: memref<15x64xf32, #tpu.memory_space<vmem>>, %arg3: memref<1x64xf32, #tpu.memory_space<vmem>>, %arg4: memref<1x64xf32, #tpu.memory_space<vmem>>, %arg5: memref<1x64xf32, #tpu.memory_space<vmem>>, %arg6: memref<64x64xbf16, #tpu.memory_space<vmem>>, %arg7: memref<1x64xf32, #tpu.memory_space<vmem>>, %arg8: memref<1x7x64xf32, #tpu.memory_space<vmem>>, %arg9: memref<1x7x64xf32, #tpu.memory_space<vmem>>) attributes {dimension_semantics = [#tpu.dimension_semantics<parallel>], iteration_bounds = array<i64: 2>, scalar_prefetch = 0 : i64, scratch_operands = 0 : i64, tpu.core_type = #tpu.core_type<tc>, window_params = [{transform_indices = @transform_0, window_bounds = array<i64: 1, 21, 64>}, {pipeline_mode = #tpu.pipeline_mode<synchronous>, transform_indices = @transform_1, window_bounds = array<i64: 15, 64>}, {pipeline_mode = #tpu.pipeline_mode<synchronous>, transform_indices = @transform_2, window_bounds = array<i64: 1, 64>}, {pipeline_mode = #tpu.pipeline_mode<synchronous>, transform_indices = @transform_3, window_bounds = array<i64: 1, 64>}, {pipeline_mode = #tpu.pipeline_mode<synchronous>, transform_indices = @transform_4, window_bounds = array<i64: 1, 64>}, {pipeline_mode = #tpu.pipeline_mode<synchronous>, transform_indices = @transform_5, window_bounds = array<i64: 64, 64>}, {pipeline_mode = #tpu.pipeline_mode<synchronous>, transform_indices = @transform_6, window_bounds = array<i64: 1, 64>}, {transform_indices = @transform_7, window_bounds = array<i64: 1, 7, 64>}, {transform_indices = @transform_8, window_bounds = array<i64: 1, 7, 64>}]} {
    %c0 = arith.constant 0 : index
    %c0_0 = arith.constant 0 : index
    %c0_1 = arith.constant 0 : index
    %0 = vector.load %arg1[%c0, %c0_0, %c0_1] : memref<1x21x64xbf16, #tpu.memory_space<vmem>>, vector<1x21x64xbf16>
    %1 = vector.shape_cast %0 : vector<1x21x64xbf16> to vector<21x64xbf16>
    %2 = arith.extf %1 : vector<21x64xbf16> to vector<21x64xf32>
    %3 = vector.extract_strided_slice %2 {offsets = [0, 0], sizes = [7, 64], strides = [1, 1]} : vector<21x64xf32> to vector<7x64xf32>
    %c0_2 = arith.constant 0 : index
    %c0_3 = arith.constant 0 : index
    %4 = vector.load %arg2[%c0_2, %c0_3] : memref<15x64xf32, #tpu.memory_space<vmem>>, vector<1x64xf32>
    %5 = vector.broadcast %4 : vector<1x64xf32> to vector<7x64xf32>
    %6 = arith.mulf %3, %5 : vector<7x64xf32>
    %7 = vector.extract_strided_slice %2 {offsets = [1, 0], sizes = [7, 64], strides = [1, 1]} : vector<21x64xf32> to vector<7x64xf32>
    %c1 = arith.constant 1 : index
    %c0_4 = arith.constant 0 : index
    %8 = vector.load %arg2[%c1, %c0_4] : memref<15x64xf32, #tpu.memory_space<vmem>>, vector<1x64xf32>
    %9 = vector.broadcast %8 : vector<1x64xf32> to vector<7x64xf32>
    %10 = arith.mulf %7, %9 : vector<7x64xf32>
    %11 = arith.addf %6, %10 : vector<7x64xf32>
    %12 = vector.extract_strided_slice %2 {offsets = [2, 0], sizes = [7, 64], strides = [1, 1]} : vector<21x64xf32> to vector<7x64xf32>
    %c2 = arith.constant 2 : index
    %c0_5 = arith.constant 0 : index
    %13 = vector.load %arg2[%c2, %c0_5] : memref<15x64xf32, #tpu.memory_space<vmem>>, vector<1x64xf32>
    %14 = vector.broadcast %13 : vector<1x64xf32> to vector<7x64xf32>
    %15 = arith.mulf %12, %14 : vector<7x64xf32>
    %16 = arith.addf %11, %15 : vector<7x64xf32>
    %17 = vector.extract_strided_slice %2 {offsets = [3, 0], sizes = [7, 64], strides = [1, 1]} : vector<21x64xf32> to vector<7x64xf32>
    %c3 = arith.constant 3 : index
    %c0_6 = arith.constant 0 : index
    %18 = vector.load %arg2[%c3, %c0_6] : memref<15x64xf32, #tpu.memory_space<vmem>>, vector<1x64xf32>
    %19 = vector.broadcast %18 : vector<1x64xf32> to vector<7x64xf32>
    %20 = arith.mulf %17, %19 : vector<7x64xf32>
    %21 = arith.addf %16, %20 : vector<7x64xf32>
    %22 = vector.extract_strided_slice %2 {offsets = [4, 0], sizes = [7, 64], strides = [1, 1]} : vector<21x64xf32> to vector<7x64xf32>
    %c4 = arith.constant 4 : index
    %c0_7 = arith.constant 0 : index
    %23 = vector.load %arg2[%c4, %c0_7] : memref<15x64xf32, #tpu.memory_space<vmem>>, vector<1x64xf32>
    %24 = vector.broadcast %23 : vector<1x64xf32> to vector<7x64xf32>
    %25 = arith.mulf %22, %24 : vector<7x64xf32>
    %26 = arith.addf %21, %25 : vector<7x64xf32>
    %27 = vector.extract_strided_slice %2 {offsets = [5, 0], sizes = [7, 64], strides = [1, 1]} : vector<21x64xf32> to vector<7x64xf32>
    %c5 = arith.constant 5 : index
    %c0_8 = arith.constant 0 : index
    %28 = vector.load %arg2[%c5, %c0_8] : memref<15x64xf32, #tpu.memory_space<vmem>>, vector<1x64xf32>
    %29 = vector.broadcast %28 : vector<1x64xf32> to vector<7x64xf32>
    %30 = arith.mulf %27, %29 : vector<7x64xf32>
    %31 = arith.addf %26, %30 : vector<7x64xf32>
    %32 = vector.extract_strided_slice %2 {offsets = [6, 0], sizes = [7, 64], strides = [1, 1]} : vector<21x64xf32> to vector<7x64xf32>
    %c6 = arith.constant 6 : index
    %c0_9 = arith.constant 0 : index
    %33 = vector.load %arg2[%c6, %c0_9] : memref<15x64xf32, #tpu.memory_space<vmem>>, vector<1x64xf32>
    %34 = vector.broadcast %33 : vector<1x64xf32> to vector<7x64xf32>
    %35 = arith.mulf %32, %34 : vector<7x64xf32>
    %36 = arith.addf %31, %35 : vector<7x64xf32>
    %37 = vector.extract_strided_slice %2 {offsets = [7, 0], sizes = [7, 64], strides = [1, 1]} : vector<21x64xf32> to vector<7x64xf32>
    %c7 = arith.constant 7 : index
    %c0_10 = arith.constant 0 : index
    %38 = vector.load %arg2[%c7, %c0_10] : memref<15x64xf32, #tpu.memory_space<vmem>>, vector<1x64xf32>
    %39 = vector.broadcast %38 : vector<1x64xf32> to vector<7x64xf32>
    %40 = arith.mulf %37, %39 : vector<7x64xf32>
    %41 = arith.addf %36, %40 : vector<7x64xf32>
    %42 = vector.extract_strided_slice %2 {offsets = [8, 0], sizes = [7, 64], strides = [1, 1]} : vector<21x64xf32> to vector<7x64xf32>
    %c8 = arith.constant 8 : index
    %c0_11 = arith.constant 0 : index
    %43 = vector.load %arg2[%c8, %c0_11] : memref<15x64xf32, #tpu.memory_space<vmem>>, vector<1x64xf32>
    %44 = vector.broadcast %43 : vector<1x64xf32> to vector<7x64xf32>
    %45 = arith.mulf %42, %44 : vector<7x64xf32>
    %46 = arith.addf %41, %45 : vector<7x64xf32>
    %47 = vector.extract_strided_slice %2 {offsets = [9, 0], sizes = [7, 64], strides = [1, 1]} : vector<21x64xf32> to vector<7x64xf32>
    %c9 = arith.constant 9 : index
    %c0_12 = arith.constant 0 : index
    %48 = vector.load %arg2[%c9, %c0_12] : memref<15x64xf32, #tpu.memory_space<vmem>>, vector<1x64xf32>
    %49 = vector.broadcast %48 : vector<1x64xf32> to vector<7x64xf32>
    %50 = arith.mulf %47, %49 : vector<7x64xf32>
    %51 = arith.addf %46, %50 : vector<7x64xf32>
    %52 = vector.extract_strided_slice %2 {offsets = [10, 0], sizes = [7, 64], strides = [1, 1]} : vector<21x64xf32> to vector<7x64xf32>
    %c10 = arith.constant 10 : index
    %c0_13 = arith.constant 0 : index
    %53 = vector.load %arg2[%c10, %c0_13] : memref<15x64xf32, #tpu.memory_space<vmem>>, vector<1x64xf32>
    %54 = vector.broadcast %53 : vector<1x64xf32> to vector<7x64xf32>
    %55 = arith.mulf %52, %54 : vector<7x64xf32>
    %56 = arith.addf %51, %55 : vector<7x64xf32>
    %57 = vector.extract_strided_slice %2 {offsets = [11, 0], sizes = [7, 64], strides = [1, 1]} : vector<21x64xf32> to vector<7x64xf32>
    %c11 = arith.constant 11 : index
    %c0_14 = arith.constant 0 : index
    %58 = vector.load %arg2[%c11, %c0_14] : memref<15x64xf32, #tpu.memory_space<vmem>>, vector<1x64xf32>
    %59 = vector.broadcast %58 : vector<1x64xf32> to vector<7x64xf32>
    %60 = arith.mulf %57, %59 : vector<7x64xf32>
    %61 = arith.addf %56, %60 : vector<7x64xf32>
    %62 = vector.extract_strided_slice %2 {offsets = [12, 0], sizes = [7, 64], strides = [1, 1]} : vector<21x64xf32> to vector<7x64xf32>
    %c12 = arith.constant 12 : index
    %c0_15 = arith.constant 0 : index
    %63 = vector.load %arg2[%c12, %c0_15] : memref<15x64xf32, #tpu.memory_space<vmem>>, vector<1x64xf32>
    %64 = vector.broadcast %63 : vector<1x64xf32> to vector<7x64xf32>
    %65 = arith.mulf %62, %64 : vector<7x64xf32>
    %66 = arith.addf %61, %65 : vector<7x64xf32>
    %67 = vector.extract_strided_slice %2 {offsets = [13, 0], sizes = [7, 64], strides = [1, 1]} : vector<21x64xf32> to vector<7x64xf32>
    %c13 = arith.constant 13 : index
    %c0_16 = arith.constant 0 : index
    %68 = vector.load %arg2[%c13, %c0_16] : memref<15x64xf32, #tpu.memory_space<vmem>>, vector<1x64xf32>
    %69 = vector.broadcast %68 : vector<1x64xf32> to vector<7x64xf32>
    %70 = arith.mulf %67, %69 : vector<7x64xf32>
    %71 = arith.addf %66, %70 : vector<7x64xf32>
    %72 = vector.extract_strided_slice %2 {offsets = [14, 0], sizes = [7, 64], strides = [1, 1]} : vector<21x64xf32> to vector<7x64xf32>
    %c14 = arith.constant 14 : index
    %c0_17 = arith.constant 0 : index
    %73 = vector.load %arg2[%c14, %c0_17] : memref<15x64xf32, #tpu.memory_space<vmem>>, vector<1x64xf32>
    %74 = vector.broadcast %73 : vector<1x64xf32> to vector<7x64xf32>
    %75 = arith.mulf %72, %74 : vector<7x64xf32>
    %76 = arith.addf %71, %75 : vector<7x64xf32>
    %c0_18 = arith.constant 0 : index
    %c0_19 = arith.constant 0 : index
    %77 = vector.load %arg3[%c0_18, %c0_19] : memref<1x64xf32, #tpu.memory_space<vmem>>, vector<1x64xf32>
    %78 = vector.broadcast %77 : vector<1x64xf32> to vector<7x64xf32>
    %79 = arith.addf %76, %78 : vector<7x64xf32>
    %c0_20 = arith.constant 0 : index
    %c0_21 = arith.constant 0 : index
    %80 = vector.load %arg4[%c0_20, %c0_21] : memref<1x64xf32, #tpu.memory_space<vmem>>, vector<1x64xf32>
    %81 = vector.broadcast %80 : vector<1x64xf32> to vector<7x64xf32>
    %82 = arith.mulf %79, %81 : vector<7x64xf32>
    %c0_22 = arith.constant 0 : index
    %c0_23 = arith.constant 0 : index
    %83 = vector.load %arg5[%c0_22, %c0_23] : memref<1x64xf32, #tpu.memory_space<vmem>>, vector<1x64xf32>
    %84 = vector.broadcast %83 : vector<1x64xf32> to vector<7x64xf32>
    %85 = arith.addf %82, %84 : vector<7x64xf32>
    %86 = arith.negf %85 : vector<7x64xf32>
    %87 = math.exp %86 : vector<7x64xf32>
    %cst = arith.constant 1.000000e+00 : f32
    %88 = vector.broadcast %cst : f32 to vector<7x64xf32>
    %89 = arith.addf %88, %87 : vector<7x64xf32>
    %90 = arith.divf %88, %89 : vector<7x64xf32>
    %91 = arith.mulf %85, %90 : vector<7x64xf32>
    %92 = arith.truncf %91 : vector<7x64xf32> to vector<7x64xbf16>
    %c0_24 = arith.constant 0 : index
    %c0_25 = arith.constant 0 : index
    %93 = vector.load %arg6[%c0_24, %c0_25] : memref<64x64xbf16, #tpu.memory_space<vmem>>, vector<64x64xbf16>
    %cst_26 = arith.constant dense<0.000000e+00> : vector<7x64xf32>
    %94 = tpu.matmul %92, %93, %cst_26 {dimension_numbers = #tpu.dot_dimension_numbers<[1], [0], [0], [1], [0, 0, 1, 1], [], []>} : vector<7x64xbf16>, vector<64x64xbf16>, vector<7x64xf32> -> vector<7x64xf32>
    %c0_27 = arith.constant 0 : index
    %c0_28 = arith.constant 0 : index
    %95 = vector.load %arg7[%c0_27, %c0_28] : memref<1x64xf32, #tpu.memory_space<vmem>>, vector<1x64xf32>
    %96 = vector.broadcast %95 : vector<1x64xf32> to vector<7x64xf32>
    %97 = arith.addf %94, %96 : vector<7x64xf32>
    %c0_29 = arith.constant 0 : index
    %c0_30 = arith.constant 0 : index
    %c0_31 = arith.constant 0 : index
    %98 = vector.load %arg8[%c0_29, %c0_30, %c0_31] : memref<1x7x64xf32, #tpu.memory_space<vmem>>, vector<1x7x64xf32>
    %99 = vector.shape_cast %98 : vector<1x7x64xf32> to vector<7x64xf32>
    %100 = arith.addf %99, %97 : vector<7x64xf32>
    %c0_32 = arith.constant 0 : index
    %c0_33 = arith.constant 0 : index
    %c0_34 = arith.constant 0 : index
    %101 = vector.load %arg9[%c0_32, %c0_33, %c0_34] : memref<1x7x64xf32, #tpu.memory_space<vmem>>, vector<1x7x64xf32>
    %102 = vector.shape_cast %101 : vector<1x7x64xf32> to vector<7x64xf32>
    %103 = vector.shape_cast %100 : vector<7x64xf32> to vector<1x7x64xf32>
    tpu.vector_store %arg9[%c0_32, %c0_33, %c0_34], %103 {strides = array<i32>} : memref<1x7x64xf32, #tpu.memory_space<vmem>>, vector<1x7x64xf32>,
    return
  }
  func.func @transform_0(%arg0: i32) -> (i32, i32, i32) {
    %c0_i32 = arith.constant 0 : i32
    %c0_i32_0 = arith.constant 0 : i32
    %c0_i32_1 = arith.constant 0 : i32
    return %arg0, %c0_i32, %c0_i32_0 : i32, i32, i32
  }
  func.func @transform_1(%arg0: i32) -> (i32, i32) {
    %c0_i32 = arith.constant 0 : i32
    %c0_i32_0 = arith.constant 0 : i32
    %c0_i32_1 = arith.constant 0 : i32
    return %c0_i32, %c0_i32_0 : i32, i32
  }
  func.func @transform_2(%arg0: i32) -> (i32, i32) {
    %c0_i32 = arith.constant 0 : i32
    %c0_i32_0 = arith.constant 0 : i32
    %c0_i32_1 = arith.constant 0 : i32
    return %c0_i32, %c0_i32_0 : i32, i32
  }
  func.func @transform_3(%arg0: i32) -> (i32, i32) {
    %c0_i32 = arith.constant 0 : i32
    %c0_i32_0 = arith.constant 0 : i32
    %c0_i32_1 = arith.constant 0 : i32
    return %c0_i32, %c0_i32_0 : i32, i32
  }
  func.func @transform_4(%arg0: i32) -> (i32, i32) {
    %c0_i32 = arith.constant 0 : i32
    %c0_i32_0 = arith.constant 0 : i32
    %c0_i32_1 = arith.constant 0 : i32
    return %c0_i32, %c0_i32_0 : i32, i32
  }
  func.func @transform_5(%arg0: i32) -> (i32, i32) {
    %c0_i32 = arith.constant 0 : i32
    %c0_i32_0 = arith.constant 0 : i32
    %c0_i32_1 = arith.constant 0 : i32
    return %c0_i32, %c0_i32_0 : i32, i32
  }
  func.func @transform_6(%arg0: i32) -> (i32, i32) {
    %c0_i32 = arith.constant 0 : i32
    %c0_i32_0 = arith.constant 0 : i32
    %c0_i32_1 = arith.constant 0 : i32
    return %c0_i32, %c0_i32_0 : i32, i32
  }
  func.func @transform_7(%arg0: i32) -> (i32, i32, i32) {
    %c0_i32 = arith.constant 0 : i32
    %c0_i32_0 = arith.constant 0 : i32
    %c0_i32_1 = arith.constant 0 : i32
    return %arg0, %c0_i32, %c0_i32_0 : i32, i32, i32
  }
  func.func @transform_8(%arg0: i32) -> (i32, i32, i32) {
    %c0_i32 = arith.constant 0 : i32
    %c0_i32_0 = arith.constant 0 : i32
    %c0_i32_1 = arith.constant 0 : i32
    return %arg0, %c0_i32, %c0_i32_0 : i32, i32, i32
  }
}

module attributes {stable_mosaic.version = 11 : i64} {
  func.func @_ln_linear_kernel(%arg0: i32, %arg1: memref<14x64xf32, #tpu.memory_space<vmem>>, %arg2: memref<1x64xf32, #tpu.memory_space<vmem>>, %arg3: memref<1x64xf32, #tpu.memory_space<vmem>>, %arg4: memref<64x128xbf16, #tpu.memory_space<vmem>>, %arg5: memref<1x128xf32, #tpu.memory_space<vmem>>, %arg6: memref<14x128xf32, #tpu.memory_space<vmem>>) attributes {dimension_semantics = [#tpu.dimension_semantics<parallel>], iteration_bounds = array<i64: 1>, scalar_prefetch = 0 : i64, scratch_operands = 0 : i64, tpu.core_type = #tpu.core_type<tc>, window_params = [{transform_indices = @transform_0, window_bounds = array<i64: 14, 64>}, {pipeline_mode = #tpu.pipeline_mode<synchronous>, transform_indices = @transform_1, window_bounds = array<i64: 1, 64>}, {pipeline_mode = #tpu.pipeline_mode<synchronous>, transform_indices = @transform_2, window_bounds = array<i64: 1, 64>}, {pipeline_mode = #tpu.pipeline_mode<synchronous>, transform_indices = @transform_3, window_bounds = array<i64: 64, 128>}, {pipeline_mode = #tpu.pipeline_mode<synchronous>, transform_indices = @transform_4, window_bounds = array<i64: 1, 128>}, {transform_indices = @transform_5, window_bounds = array<i64: 14, 128>}]} {
    %c0 = arith.constant 0 : index
    %c0_0 = arith.constant 0 : index
    %0 = vector.load %arg1[%c0, %c0_0] : memref<14x64xf32, #tpu.memory_space<vmem>>, vector<14x64xf32>
    %cst = arith.constant dense<0.000000e+00> : vector<14xf32>
    %1 = vector.multi_reduction <add>, %0, %cst [1] : vector<14x64xf32> to vector<14xf32>
    %2 = vector.shape_cast %1 : vector<14xf32> to vector<14x1xf32>
    %cst_1 = arith.constant 6.400000e+01 : f32
    %3 = vector.broadcast %cst_1 : f32 to vector<14x1xf32>
    %4 = arith.divf %2, %3 : vector<14x1xf32>
    %5 = vector.broadcast %4 : vector<14x1xf32> to vector<14x64xf32>
    %6 = arith.subf %0, %5 : vector<14x64xf32>
    %7 = arith.mulf %6, %6 : vector<14x64xf32>
    %cst_2 = arith.constant dense<0.000000e+00> : vector<14xf32>
    %8 = vector.multi_reduction <add>, %7, %cst_2 [1] : vector<14x64xf32> to vector<14xf32>
    %9 = vector.shape_cast %8 : vector<14xf32> to vector<14x1xf32>
    %cst_3 = arith.constant 6.400000e+01 : f32
    %10 = vector.broadcast %cst_3 : f32 to vector<14x1xf32>
    %11 = arith.divf %9, %10 : vector<14x1xf32>
    %12 = vector.broadcast %4 : vector<14x1xf32> to vector<14x64xf32>
    %13 = arith.subf %0, %12 : vector<14x64xf32>
    %cst_4 = arith.constant 9.99999996E-13 : f32
    %14 = vector.broadcast %cst_4 : f32 to vector<14x1xf32>
    %15 = arith.addf %11, %14 : vector<14x1xf32>
    %16 = math.rsqrt %15 : vector<14x1xf32>
    %17 = vector.broadcast %16 : vector<14x1xf32> to vector<14x64xf32>
    %18 = arith.mulf %13, %17 : vector<14x64xf32>
    %c0_5 = arith.constant 0 : index
    %c0_6 = arith.constant 0 : index
    %19 = vector.load %arg2[%c0_5, %c0_6] : memref<1x64xf32, #tpu.memory_space<vmem>>, vector<1x64xf32>
    %20 = vector.broadcast %19 : vector<1x64xf32> to vector<14x64xf32>
    %21 = arith.mulf %18, %20 : vector<14x64xf32>
    %c0_7 = arith.constant 0 : index
    %c0_8 = arith.constant 0 : index
    %22 = vector.load %arg3[%c0_7, %c0_8] : memref<1x64xf32, #tpu.memory_space<vmem>>, vector<1x64xf32>
    %23 = vector.broadcast %22 : vector<1x64xf32> to vector<14x64xf32>
    %24 = arith.addf %21, %23 : vector<14x64xf32>
    %25 = arith.truncf %24 : vector<14x64xf32> to vector<14x64xbf16>
    %c0_9 = arith.constant 0 : index
    %c0_10 = arith.constant 0 : index
    %26 = vector.load %arg4[%c0_9, %c0_10] : memref<64x128xbf16, #tpu.memory_space<vmem>>, vector<64x128xbf16>
    %cst_11 = arith.constant dense<0.000000e+00> : vector<14x128xf32>
    %27 = tpu.matmul %25, %26, %cst_11 {dimension_numbers = #tpu.dot_dimension_numbers<[1], [0], [0], [1], [0, 0, 1, 1], [], []>} : vector<14x64xbf16>, vector<64x128xbf16>, vector<14x128xf32> -> vector<14x128xf32>
    %c0_12 = arith.constant 0 : index
    %c0_13 = arith.constant 0 : index
    %28 = vector.load %arg5[%c0_12, %c0_13] : memref<1x128xf32, #tpu.memory_space<vmem>>, vector<1x128xf32>
    %29 = vector.broadcast %28 : vector<1x128xf32> to vector<14x128xf32>
    %30 = arith.addf %27, %29 : vector<14x128xf32>
    %c0_14 = arith.constant 0 : index
    %c0_15 = arith.constant 0 : index
    %31 = vector.load %arg6[%c0_14, %c0_15] : memref<14x128xf32, #tpu.memory_space<vmem>>, vector<14x128xf32>
    tpu.vector_store %arg6[%c0_14, %c0_15], %30 {strides = array<i32>} : memref<14x128xf32, #tpu.memory_space<vmem>>, vector<14x128xf32>,
    return
  }
  func.func @transform_0(%arg0: i32) -> (i32, i32) {
    %c0_i32 = arith.constant 0 : i32
    %c0_i32_0 = arith.constant 0 : i32
    return %arg0, %c0_i32 : i32, i32
  }
  func.func @transform_1(%arg0: i32) -> (i32, i32) {
    %c0_i32 = arith.constant 0 : i32
    %c0_i32_0 = arith.constant 0 : i32
    %c0_i32_1 = arith.constant 0 : i32
    return %c0_i32, %c0_i32_0 : i32, i32
  }
  func.func @transform_2(%arg0: i32) -> (i32, i32) {
    %c0_i32 = arith.constant 0 : i32
    %c0_i32_0 = arith.constant 0 : i32
    %c0_i32_1 = arith.constant 0 : i32
    return %c0_i32, %c0_i32_0 : i32, i32
  }
  func.func @transform_3(%arg0: i32) -> (i32, i32) {
    %c0_i32 = arith.constant 0 : i32
    %c0_i32_0 = arith.constant 0 : i32
    %c0_i32_1 = arith.constant 0 : i32
    return %c0_i32, %c0_i32_0 : i32, i32
  }
  func.func @transform_4(%arg0: i32) -> (i32, i32) {
    %c0_i32 = arith.constant 0 : i32
    %c0_i32_0 = arith.constant 0 : i32
    %c0_i32_1 = arith.constant 0 : i32
    return %c0_i32, %c0_i32_0 : i32, i32
  }
  func.func @transform_5(%arg0: i32) -> (i32, i32) {
    %c0_i32 = arith.constant 0 : i32
    %c0_i32_0 = arith.constant 0 : i32
    return %arg0, %c0_i32 : i32, i32
  }
}

module attributes {stable_mosaic.version = 11 : i64} {
  func.func @_linear_kernel(%arg0: i32, %arg1: memref<2x64xbf16, #tpu.memory_space<vmem>>, %arg2: memref<64x128xbf16, #tpu.memory_space<vmem>>, %arg3: memref<1x128xf32, #tpu.memory_space<vmem>>, %arg4: memref<2x128xf32, #tpu.memory_space<vmem>>) attributes {dimension_semantics = [#tpu.dimension_semantics<parallel>], iteration_bounds = array<i64: 1>, scalar_prefetch = 0 : i64, scratch_operands = 0 : i64, tpu.core_type = #tpu.core_type<tc>, window_params = [{transform_indices = @transform_0, window_bounds = array<i64: 2, 64>}, {pipeline_mode = #tpu.pipeline_mode<synchronous>, transform_indices = @transform_1, window_bounds = array<i64: 64, 128>}, {pipeline_mode = #tpu.pipeline_mode<synchronous>, transform_indices = @transform_2, window_bounds = array<i64: 1, 128>}, {transform_indices = @transform_3, window_bounds = array<i64: 2, 128>}]} {
    %c0 = arith.constant 0 : index
    %c0_0 = arith.constant 0 : index
    %0 = vector.load %arg1[%c0, %c0_0] : memref<2x64xbf16, #tpu.memory_space<vmem>>, vector<2x64xbf16>
    %c0_1 = arith.constant 0 : index
    %c0_2 = arith.constant 0 : index
    %1 = vector.load %arg2[%c0_1, %c0_2] : memref<64x128xbf16, #tpu.memory_space<vmem>>, vector<64x128xbf16>
    %cst = arith.constant dense<0.000000e+00> : vector<2x128xf32>
    %2 = tpu.matmul %0, %1, %cst {dimension_numbers = #tpu.dot_dimension_numbers<[1], [0], [0], [1], [0, 0, 1, 1], [], []>} : vector<2x64xbf16>, vector<64x128xbf16>, vector<2x128xf32> -> vector<2x128xf32>
    %c0_3 = arith.constant 0 : index
    %c0_4 = arith.constant 0 : index
    %3 = vector.load %arg3[%c0_3, %c0_4] : memref<1x128xf32, #tpu.memory_space<vmem>>, vector<1x128xf32>
    %4 = vector.broadcast %3 : vector<1x128xf32> to vector<2x128xf32>
    %5 = arith.addf %2, %4 : vector<2x128xf32>
    %c0_5 = arith.constant 0 : index
    %c0_6 = arith.constant 0 : index
    %6 = vector.load %arg4[%c0_5, %c0_6] : memref<2x128xf32, #tpu.memory_space<vmem>>, vector<2x128xf32>
    tpu.vector_store %arg4[%c0_5, %c0_6], %5 {strides = array<i32>} : memref<2x128xf32, #tpu.memory_space<vmem>>, vector<2x128xf32>,
    return
  }
  func.func @transform_0(%arg0: i32) -> (i32, i32) {
    %c0_i32 = arith.constant 0 : i32
    %c0_i32_0 = arith.constant 0 : i32
    return %arg0, %c0_i32 : i32, i32
  }
  func.func @transform_1(%arg0: i32) -> (i32, i32) {
    %c0_i32 = arith.constant 0 : i32
    %c0_i32_0 = arith.constant 0 : i32
    %c0_i32_1 = arith.constant 0 : i32
    return %c0_i32, %c0_i32_0 : i32, i32
  }
  func.func @transform_2(%arg0: i32) -> (i32, i32) {
    %c0_i32 = arith.constant 0 : i32
    %c0_i32_0 = arith.constant 0 : i32
    %c0_i32_1 = arith.constant 0 : i32
    return %c0_i32, %c0_i32_0 : i32, i32
  }
  func.func @transform_3(%arg0: i32) -> (i32, i32) {
    %c0_i32 = arith.constant 0 : i32
    %c0_i32_0 = arith.constant 0 : i32
    return %arg0, %c0_i32 : i32, i32
  }
}

</mosaic_0001>

<llo_original>
// kernel: net_forward.24
$region0: #{net_forward.24}
  #allocation0 [shape = 'u32[]', space=smem, size = 0x4, offset = 0x4, fixed_abs, tag = 'smem constant byte address 0x4 - core index']
  #allocation1 [shape = 'u32[144,128]{1,0:T(1,128)}', space=vmem, size = 0x12000, scoped, tag = 'internal scratch']
  %s0 = inlined_call_operand.hbm [shape: bf16[42,576], index: 0, kind: input, shape index: {}]
  %s1 = inlined_call_operand.hbm [shape: bf16[576,128], index: 1, kind: input, shape index: {}]
  %s2 = inlined_call_operand.hbm [shape: f32[1,128], index: 2, kind: input, shape index: {}]
  %s3 = inlined_call_operand.hbm [shape: f32[42,128], index: 3, kind: output, shape index: {}]
  %s4 = sld [smem:[#allocation0]]
  $region34: #{net_forward.24} parent=0
    _
  %s6 = ssub.s32 1, %s4
  %s7 = scalar_select 0, %s6, %s4
  $region1: #{net_forward.24} parent=0
    #allocation2 [shape = 'u8[61440]{0}', space=vmem, size = 0xf000, scoped, tag = 'input window, operand 0, single buffered']
    #allocation3 [shape = 's32[1]{0}', space=sflag, size = 0x4, scoped, tag = 'scoped memory for net_forward.24']
    #allocation4 [shape = 's32[1]{0}', space=sflag, size = 0x4, scoped, tag = 'scoped memory for net_forward.24']
    #allocation5 [shape = 'u8[147456]{0}', space=vmem, size = 0x24000, scoped, tag = 'input window, operand 1, single buffered']
    #allocation6 [shape = 's32[1]{0}', space=sflag, size = 0x4, scoped, tag = 'scoped memory for net_forward.24']
    #allocation7 [shape = 'u8[512]{0}', space=vmem, size = 0x400, scoped, tag = 'input window, operand 2, single buffered']
    #allocation8 [shape = 'u8[24576]{0}', space=vmem, size = 0x6000, scoped, tag = 'output window, operand 0, single buffered']
    %8 = vsyncpa [#allocation3], 0
    %9 = vsyncpa [#allocation6], 0
    %10 = vsyncpa [#allocation4], 0
    // Predicated region
    $region2: #{net_forward.24} parent=1 // pred_check
      _
    $region3: #{net_forward.24} parent=1 // pred_check_branch
      %12 = sbr.rel (0) target = $region5
    $region4: #{net_forward.24} parent=1 // pred_region
      %s14 = ssub.s32 1920, 1920
      %15 = vsyncadd [#allocation3], %s14
      %s16 = sshll.u32 [#allocation2], 4
      %s17 = int_to_ptr.vmem [resolvable:$true] %s16
      %22 = dma.hbm_to_vmem [thread:$0]  %s0, 1920, %s17, [#allocation3], 320, 320, 20
    $region5: #{net_forward.24} parent=1 // pred_fallthru
      _
    // Predicated region
    $region6: #{net_forward.24} parent=1 // pred_check
      _
    $region7: #{net_forward.24} parent=1 // pred_check_branch
      %24 = sbr.rel (0) target = $region9
    $region8: #{net_forward.24} parent=1 // pred_region
      %s26 = ssub.s32 4608, 4608
      %27 = vsyncadd [#allocation6], %s26
      %s28 = sshll.u32 [#allocation5], 4
      %s29 = int_to_ptr.vmem [resolvable:$true] %s28
      %34 = dma.hbm_to_vmem [thread:$0]  %s1, 4608, %s29, [#allocation6], 64, 64, 4
    $region9: #{net_forward.24} parent=1 // pred_fallthru
      _
    // Predicated region
    $region10: #{net_forward.24} parent=1 // pred_check
      _
    $region11: #{net_forward.24} parent=1 // pred_check_branch
      %36 = sbr.rel (0) target = $region13
    $region12: #{net_forward.24} parent=1 // pred_region
      %s38 = ssub.s32 16, 16
      %39 = vsyncadd [#allocation6], %s38
      %s41 = sshll.u32 [#allocation7], 4
      %s42 = int_to_ptr.vmem [resolvable:$true] %s41
      %44 = dma.hbm_to_vmem [thread:$0]  %s2, 16, %s42, [#allocation6]
    $region13: #{net_forward.24} parent=1 // pred_fallthru
      _
    // Predicated region
    $region14: #{net_forward.24} parent=1 // pred_check
      _
    $region15: #{net_forward.24} parent=1 // pred_check_branch
      %46 = sbr.rel (0) target = $region17
    $region16: #{net_forward.24} parent=1 // pred_region
      %47 = dma.done [#allocation3], 1920
    $region17: #{net_forward.24} parent=1 // pred_fallthru
      _
    // Predicated region
    $region18: #{net_forward.24} parent=1 // pred_check
      _
    $region19: #{net_forward.24} parent=1 // pred_check_branch
      %49 = sbr.rel (0) target = $region21
    $region20: #{net_forward.24} parent=1 // pred_region
      %50 = dma.done [#allocation6], 4608
    $region21: #{net_forward.24} parent=1 // pred_fallthru
      _
    // Predicated region
    $region22: #{net_forward.24} parent=1 // pred_check
      _
    $region23: #{net_forward.24} parent=1 // pred_check_branch
      %52 = sbr.rel (0) target = $region25
    $region24: #{net_forward.24} parent=1 // pred_region
      %53 = dma.done [#allocation6], 16
    $region25: #{net_forward.24} parent=1 // pred_fallthru
      _
    %v55 = vld [vmem:[#allocation2] sm:$0xff]
    %v56 = vld [vmem:[#allocation2 + $0x8] sm:$0xff]
    %v57 = vld [vmem:[#allocation2 + $0x10] sm:$0xf]
    %v58 = vld [vmem:[#allocation2 + $0x14] sm:$0xff]
    %v59 = vld [vmem:[#allocation2 + $0x1c] sm:$0xff]
    %v60 = vld [vmem:[#allocation2 + $0x24] sm:$0xf]
    %v61 = vld [vmem:[#allocation2 + $0x28] sm:$0xff]
    %v62 = vld [vmem:[#allocation2 + $0x30] sm:$0xff]
    %v63 = vld [vmem:[#allocation2 + $0x38] sm:$0xf]
    %v64 = vld [vmem:[#allocation2 + $0x3c] sm:$0xff]
    %v65 = vld [vmem:[#allocation2 + $0x44] sm:$0xff]
    %v66 = vld [vmem:[#allocation2 + $0x4c] sm:$0xf]
    %v67 = vld [vmem:[#allocation2 + $0x50] sm:$0xff]
    %v68 = vld [vmem:[#allocation2 + $0x58] sm:$0xff]
    %v69 = vld [vmem:[#allocation2 + $0x60] sm:$0xf]
    %v70 = vld [vmem:[#allocation2 + $0x64] sm:$0x11]
    %v71 = vld [vmem:[#allocation2 + $0x6c] sm:$0x11]
    %v72 = vld [vmem:[#allocation2 + $0x74] sm:$0x1]
    %v73 = vld [vmem:[#allocation5] sm:$0xf]
    %v74 = vld [vmem:[#allocation5 + $0x4] sm:$0xf]
    %v75 = vld [vmem:[#allocation5 + $0x8] sm:$0xf]
    %v76 = vld [vmem:[#allocation5 + $0xc] sm:$0xf]
    %v77 = vld [vmem:[#allocation5 + $0x10] sm:$0xf]
    %v78 = vld [vmem:[#allocation5 + $0x14] sm:$0xf]
    %v79 = vld [vmem:[#allocation5 + $0x18] sm:$0xf]
    %v80 = vld [vmem:[#allocation5 + $0x1c] sm:$0xf]
    %v81 = vld [vmem:[#allocation5 + $0x20] sm:$0xf]
    %v82 = vld [vmem:[#allocation5 + $0x24] sm:$0xf]
    %v83 = vld [vmem:[#allocation5 + $0x28] sm:$0xf]
    %v84 = vld [vmem:[#allocation5 + $0x2c] sm:$0xf]
    %v85 = vld [vmem:[#allocation5 + $0x30] sm:$0xf]
    %v86 = vld [vmem:[#allocation5 + $0x34] sm:$0xf]
    %v87 = vld [vmem:[#allocation5 + $0x38] sm:$0xf]
    %v88 = vld [vmem:[#allocation5 + $0x3c] sm:$0xf]
    %v89 = vld [vmem:[#allocation5 + $0x40] sm:$0xf]
    %v90 = vld [vmem:[#allocation5 + $0x44] sm:$0xf]
    %v91 = vld [vmem:[#allocation5 + $0x48] sm:$0xf]
    %v92 = vld [vmem:[#allocation5 + $0x4c] sm:$0xf]
    %v93 = vld [vmem:[#allocation5 + $0x50] sm:$0xf]
    %v94 = vld [vmem:[#allocation5 + $0x54] sm:$0xf]
    %v95 = vld [vmem:[#allocation5 + $0x58] sm:$0xf]
    %v96 = vld [vmem:[#allocation5 + $0x5c] sm:$0xf]
    %v97 = vld [vmem:[#allocation5 + $0x60] sm:$0xf]
    %v98 = vld [vmem:[#allocation5 + $0x64] sm:$0xf]
    %v99 = vld [vmem:[#allocation5 + $0x68] sm:$0xf]
    %v100 = vld [vmem:[#allocation5 + $0x6c] sm:$0xf]
    %v101 = vld [vmem:[#allocation5 + $0x70] sm:$0xf]
    %v102 = vld [vmem:[#allocation5 + $0x74] sm:$0xf]
    %v103 = vld [vmem:[#allocation5 + $0x78] sm:$0xf]
    %v104 = vld [vmem:[#allocation5 + $0x7c] sm:$0xf]
    %v105 = vld [vmem:[#allocation5 + $0x80] sm:$0xf]
    %v106 = vld [vmem:[#allocation5 + $0x84] sm:$0xf]
    %v107 = vld [vmem:[#allocation5 + $0x88] sm:$0xf]
    %v108 = vld [vmem:[#allocation5 + $0x8c] sm:$0xf]
    %v109 = vld [vmem:[#allocation5 + $0x90] sm:$0xf]
    %v110 = vld [vmem:[#allocation5 + $0x94] sm:$0xf]
    %v111 = vld [vmem:[#allocation5 + $0x98] sm:$0xf]
    %v112 = vld [vmem:[#allocation5 + $0x9c] sm:$0xf]
    %v113 = vld [vmem:[#allocation5 + $0xa0] sm:$0xf]
    %v114 = vld [vmem:[#allocation5 + $0xa4] sm:$0xf]
    %v115 = vld [vmem:[#allocation5 + $0xa8] sm:$0xf]
    %v116 = vld [vmem:[#allocation5 + $0xac] sm:$0xf]
    %v117 = vld [vmem:[#allocation5 + $0xb0] sm:$0xf]
    %v118 = vld [vmem:[#allocation5 + $0xb4] sm:$0xf]
    %v119 = vld [vmem:[#allocation5 + $0xb8] sm:$0xf]
    %v120 = vld [vmem:[#allocation5 + $0xbc] sm:$0xf]
    %v121 = vld [vmem:[#allocation5 + $0xc0] sm:$0xf]
    %v122 = vld [vmem:[#allocation5 + $0xc4] sm:$0xf]
    %v123 = vld [vmem:[#allocation5 + $0xc8] sm:$0xf]
    %v124 = vld [vmem:[#allocation5 + $0xcc] sm:$0xf]
    %v125 = vld [vmem:[#allocation5 + $0xd0] sm:$0xf]
    %v126 = vld [vmem:[#allocation5 + $0xd4] sm:$0xf]
    %v127 = vld [vmem:[#allocation5 + $0xd8] sm:$0xf]
    %v128 = vld [vmem:[#allocation5 + $0xdc] sm:$0xf]
    %v129 = vld [vmem:[#allocation5 + $0xe0] sm:$0xf]
    %v130 = vld [vmem:[#allocation5 + $0xe4] sm:$0xf]
    %v131 = vld [vmem:[#allocation5 + $0xe8] sm:$0xf]
    %v132 = vld [vmem:[#allocation5 + $0xec] sm:$0xf]
    %v133 = vld [vmem:[#allocation5 + $0xf0] sm:$0xf]
    %v134 = vld [vmem:[#allocation5 + $0xf4] sm:$0xf]
    %v135 = vld [vmem:[#allocation5 + $0xf8] sm:$0xf]
    %v136 = vld [vmem:[#allocation5 + $0xfc] sm:$0xf]
    %v137 = vld [vmem:[#allocation5 + $0x100] sm:$0xf]
    %v138 = vld [vmem:[#allocation5 + $0x104] sm:$0xf]
    %v139 = vld [vmem:[#allocation5 + $0x108] sm:$0xf]
    %v140 = vld [vmem:[#allocation5 + $0x10c] sm:$0xf]
    %v141 = vld [vmem:[#allocation5 + $0x110] sm:$0xf]
    %v142 = vld [vmem:[#allocation5 + $0x114] sm:$0xf]
    %v143 = vld [vmem:[#allocation5 + $0x118] sm:$0xf]
    %v144 = vld [vmem:[#allocation5 + $0x11c] sm:$0xf]
    %v145 = vld [vmem:[#allocation7] sm:$0x1]
    %v147 = vlaneseq
    %v148 = vshrl.u32 %v147, 7
    %v149 = vsub.s32 0, %v148
    %v150 = vrot.slane %v145, %v149
    %v170 = vunpack.c.l.b16 %v55
    %v171 = vunpack.c.h.b16 %v55
    %v172 = vunpack.c.l.b16 %v56
    %v173 = vunpack.c.h.b16 %v56
    %v174 = vunpack.c.l.b16 %v57
    %v175 = vunpack.c.l.b16 %v58
    %v176 = vunpack.c.h.b16 %v58
    %v177 = vunpack.c.l.b16 %v59
    %v178 = vunpack.c.h.b16 %v59
    %v179 = vunpack.c.l.b16 %v60
    %v180 = vunpack.c.l.b16 %v61
    %v181 = vunpack.c.h.b16 %v61
    %v182 = vunpack.c.l.b16 %v62
    %v183 = vunpack.c.h.b16 %v62
    %v184 = vunpack.c.l.b16 %v63
    %v185 = vunpack.c.l.b16 %v64
    %v186 = vunpack.c.h.b16 %v64
    %v187 = vunpack.c.l.b16 %v65
    %v188 = vunpack.c.h.b16 %v65
    %v189 = vunpack.c.l.b16 %v66
    %v190 = vunpack.c.l.b16 %v67
    %v191 = vunpack.c.h.b16 %v67
    %v192 = vunpack.c.l.b16 %v68
    %v193 = vunpack.c.h.b16 %v68
    %v194 = vunpack.c.l.b16 %v69
    %v195 = vunpack.c.l.b16 %v70
    %v196 = vunpack.c.h.b16 %v70
    %v197 = vunpack.c.l.b16 %v71
    %v198 = vunpack.c.h.b16 %v71
    %v199 = vunpack.c.l.b16 %v72
    %v200 = vpack.c.b16 %v175, %v170
    %v201 = vpack.c.b16 %v176, %v171
    %v202 = vpack.c.b16 %v177, %v172
    %v203 = vpack.c.b16 %v178, %v173
    %v204 = vpack.c.b16 %v179, %v174
    %v205 = vpack.c.b16 %v185, %v180
    %v206 = vpack.c.b16 %v186, %v181
    %v207 = vpack.c.b16 %v187, %v182
    %v208 = vpack.c.b16 %v188, %v183
    %v209 = vpack.c.b16 %v189, %v184
    %v210 = vpack.c.b16 %v195, %v190
    %v211 = vpack.c.b16 %v196, %v191
    %v212 = vpack.c.b16 %v197, %v192
    %v213 = vpack.c.b16 %v198, %v193
    %v214 = vpack.c.b16 %v199, %v194
    %v299 = vunpack.c.l.b16 %v73
    %v300 = vunpack.c.l.b16 %v74
    %v301 = vunpack.c.l.b16 %v75
    %v302 = vunpack.c.l.b16 %v76
    %v303 = vunpack.c.l.b16 %v77
    %v304 = vunpack.c.l.b16 %v78
    %v305 = vunpack.c.l.b16 %v79
    %v306 = vunpack.c.l.b16 %v80
    %v307 = vunpack.c.l.b16 %v81
    %v308 = vunpack.c.l.b16 %v82
    %v309 = vunpack.c.l.b16 %v83
    %v310 = vunpack.c.l.b16 %v84
    %v311 = vunpack.c.l.b16 %v85
    %v312 = vunpack.c.l.b16 %v86
    %v313 = vunpack.c.l.b16 %v87
    %v314 = vunpack.c.l.b16 %v88
    %v315 = vunpack.c.l.b16 %v89
    %v316 = vunpack.c.l.b16 %v90
    %v317 = vunpack.c.l.b16 %v91
    %v318 = vunpack.c.l.b16 %v92
    %v319 = vunpack.c.l.b16 %v93
    %v320 = vunpack.c.l.b16 %v94
    %v321 = vunpack.c.l.b16 %v95
    %v322 = vunpack.c.l.b16 %v96
    %v323 = vunpack.c.l.b16 %v97
    %v324 = vunpack.c.l.b16 %v98
    %v325 = vunpack.c.l.b16 %v99
    %v326 = vunpack.c.l.b16 %v100
    %v327 = vunpack.c.l.b16 %v101
    %v328 = vunpack.c.l.b16 %v102
    %v329 = vunpack.c.l.b16 %v103
    %v330 = vunpack.c.l.b16 %v104
    %v331 = vunpack.c.l.b16 %v105
    %v332 = vunpack.c.l.b16 %v106
    %v333 = vunpack.c.l.b16 %v107
    %v334 = vunpack.c.l.b16 %v108
    %v335 = vunpack.c.l.b16 %v109
    %v336 = vunpack.c.l.b16 %v110
    %v337 = vunpack.c.l.b16 %v111
    %v338 = vunpack.c.l.b16 %v112
    %v339 = vunpack.c.l.b16 %v113
    %v340 = vunpack.c.l.b16 %v114
    %v341 = vunpack.c.l.b16 %v115
    %v342 = vunpack.c.l.b16 %v116
    %v343 = vunpack.c.l.b16 %v117
    %v344 = vunpack.c.l.b16 %v118
    %v345 = vunpack.c.l.b16 %v119
    %v346 = vunpack.c.l.b16 %v120
    %v347 = vunpack.c.l.b16 %v121
    %v348 = vunpack.c.l.b16 %v122
    %v349 = vunpack.c.l.b16 %v123
    %v350 = vunpack.c.l.b16 %v124
    %v351 = vunpack.c.l.b16 %v125
    %v352 = vunpack.c.l.b16 %v126
    %v353 = vunpack.c.l.b16 %v127
    %v354 = vunpack.c.l.b16 %v128
    %v355 = vunpack.c.l.b16 %v129
    %v356 = vunpack.c.l.b16 %v130
    %v357 = vunpack.c.l.b16 %v131
    %v358 = vunpack.c.l.b16 %v132
    %v359 = vunpack.c.l.b16 %v133
    %v360 = vunpack.c.l.b16 %v134
    %v361 = vunpack.c.l.b16 %v135
    %v362 = vunpack.c.l.b16 %v136
    %v363 = vunpack.c.l.b16 %v137
    %v364 = vunpack.c.l.b16 %v138
    %v365 = vunpack.c.l.b16 %v139
    %v366 = vunpack.c.l.b16 %v140
    %v367 = vunpack.c.l.b16 %v141
    %v368 = vunpack.c.l.b16 %v142
    %v369 = vunpack.c.l.b16 %v143
    %v370 = vunpack.c.l.b16 %v144
    %v371 = vpack.c.b16 %v300, %v299
    %v372 = vpack.c.b16 %v302, %v301
    %v373 = vpack.c.b16 %v304, %v303
    %v374 = vpack.c.b16 %v306, %v305
    %v375 = vpack.c.b16 %v308, %v307
    %v376 = vpack.c.b16 %v310, %v309
    %v377 = vpack.c.b16 %v312, %v311
    %v378 = vpack.c.b16 %v314, %v313
    %v379 = vpack.c.b16 %v316, %v315
    %v380 = vpack.c.b16 %v318, %v317
    %v381 = vpack.c.b16 %v320, %v319
    %v382 = vpack.c.b16 %v322, %v321
    %v383 = vpack.c.b16 %v324, %v323
    %v384 = vpack.c.b16 %v326, %v325
    %v385 = vpack.c.b16 %v328, %v327
    %v386 = vpack.c.b16 %v330, %v329
    %v387 = vpack.c.b16 %v332, %v331
    %v388 = vpack.c.b16 %v334, %v333
    %v389 = vpack.c.b16 %v336, %v335
    %v390 = vpack.c.b16 %v338, %v337
    %v391 = vpack.c.b16 %v340, %v339
    %v392 = vpack.c.b16 %v342, %v341
    %v393 = vpack.c.b16 %v344, %v343
    %v394 = vpack.c.b16 %v346, %v345
    %v395 = vpack.c.b16 %v348, %v347
    %v396 = vpack.c.b16 %v350, %v349
    %v397 = vpack.c.b16 %v352, %v351
    %v398 = vpack.c.b16 %v354, %v353
    %v399 = vpack.c.b16 %v356, %v355
    %v400 = vpack.c.b16 %v358, %v357
    %v401 = vpack.c.b16 %v360, %v359
    %v402 = vpack.c.b16 %v362, %v361
    %v403 = vpack.c.b16 %v364, %v363
    %v404 = vpack.c.b16 %v366, %v365
    %v405 = vpack.c.b16 %v368, %v367
    %v406 = vpack.c.b16 %v370, %v369
    %vm443 = vcmask 523264
    %v445 = vsel %vm443, %v204, 0
    %v448 = vsel %vm443, %v209, 0
    %v451 = vsel %vm443, %v214, 0
    %453 = vmatprep.subr.bf16.mxu0 0
    %454 = vmatpush1.bf16.msra.mxu0 %v371
    %455 = vmatprep.subr.bf16.mxu0 0
    %456 = vmatpush1.bf16.msra.mxu0 %v372
    %457 = vmatprep.subr.bf16.mxu0 0
    %458 = vmatpush1.bf16.msra.mxu0 %v373
    %459 = vmatprep.subr.bf16.mxu0 0
    %460 = vmatpush1.bf16.msra.mxu0 %v374
    %461 = vmatprep.subr.bf16.mxu0 0
    %462 = vmatpush1.bf16.msra.mxu0 %v375
    %463 = vmatprep.subr.bf16.mxu0 0
    %464 = vmatpush1.bf16.msra.mxu0 %v376
    %465 = vmatprep.subr.bf16.mxu0 0
    %466 = vmatpush1.bf16.msra.mxu0 %v377
    %467 = vmatprep.subr.bf16.mxu0 0
    %468 = vmatpush1.bf16.msra.mxu0 %v378
    %469 = vmatprep.subr.bf16.mxu0 0
    %470 = vmatpush1.bf16.msra.mxu0 %v379
    %471 = vmatprep.subr.bf16.mxu0 0
    %472 = vmatpush1.bf16.msra.mxu0 %v380
    %473 = vmatprep.subr.bf16.mxu0 0
    %474 = vmatpush1.bf16.msra.mxu0 %v381
    %475 = vmatprep.subr.bf16.mxu0 0
    %476 = vmatpush1.bf16.msra.mxu0 %v382
    %477 = vmatprep.subr.bf16.mxu0 0
    %478 = vmatpush1.bf16.msra.mxu0 %v383
    %479 = vmatprep.subr.bf16.mxu0 0
    %480 = vmatpush1.bf16.msra.mxu0 %v384
    %481 = vmatprep.subr.bf16.mxu0 0
    %482 = vmatpush1.bf16.msra.mxu0 %v385
    %483 = vmatprep.subr.bf16.mxu0 0
    %484 = vmatpush1.bf16.msra.mxu0 %v386
    %485 = vmatprep.mubr.bf16.mxu0 %v201
    %486 = vmatmul.mubr.bf16.gmra.mrb[0].mxu0 %v200
    %v487 = vpop.f32.mrb[0].mxu0
    %v488 = vadd.f32 %v150, %v487
    %v489 = vpop.f32.mrb[0].mxu0
    %v490 = vpop.f32.mrb[0].mxu0
    %v491 = vadd.f32 %v150, %v490
    %v492 = vpop.f32.mrb[0].mxu0
    %493 = vmatprep.mubr.bf16.mxu0 %v206
    %494 = vmatmul.mubr.bf16.gmra.mrb[0].mxu0 %v205
    %v495 = vpop.f32.mrb[0].mxu0
    %v496 = vadd.f32 %v150, %v495
    %v497 = vpop.f32.mrb[0].mxu0
    %v498 = vpop.f32.mrb[0].mxu0
    %v499 = vadd.f32 %v150, %v498
    %v500 = vpop.f32.mrb[0].mxu0
    %501 = vmatprep.mubr.bf16.mxu0 %v211
    %502 = vmatmul.mubr.bf16.gmra.mrb[0].mxu0 %v210
    %v503 = vpop.f32.mrb[0].mxu0
    %v504 = vadd.f32 %v150, %v503
    %v505 = vpop.f32.mrb[0].mxu0
    %v506 = vpop.f32.mrb[0].mxu0
    %v507 = vadd.f32 %v150, %v506
    %v508 = vpop.f32.mrb[0].mxu0
    %509 = vdwg.mxu0
    %510 = vmatprep.subr.bf16.mxu0 0
    %511 = vmatpush1.bf16.msra.mxu0 %v387
    %512 = vmatprep.subr.bf16.mxu0 0
    %513 = vmatpush1.bf16.msra.mxu0 %v388
    %514 = vmatprep.subr.bf16.mxu0 0
    %515 = vmatpush1.bf16.msra.mxu0 %v389
    %516 = vmatprep.subr.bf16.mxu0 0
    %517 = vmatpush1.bf16.msra.mxu0 %v390
    %518 = vmatprep.subr.bf16.mxu0 0
    %519 = vmatpush1.bf16.msra.mxu0 %v391
    %520 = vmatprep.subr.bf16.mxu0 0
    %521 = vmatpush1.bf16.msra.mxu0 %v392
    %522 = vmatprep.subr.bf16.mxu0 0
    %523 = vmatpush1.bf16.msra.mxu0 %v393
    %524 = vmatprep.subr.bf16.mxu0 0
    %525 = vmatpush1.bf16.msra.mxu0 %v394
    %526 = vmatprep.subr.bf16.mxu0 0
    %527 = vmatpush1.bf16.msra.mxu0 %v395
    %528 = vmatprep.subr.bf16.mxu0 0
    %529 = vmatpush1.bf16.msra.mxu0 %v396
    %530 = vmatprep.subr.bf16.mxu0 0
    %531 = vmatpush1.bf16.msra.mxu0 %v397
    %532 = vmatprep.subr.bf16.mxu0 0
    %533 = vmatpush1.bf16.msra.mxu0 %v398
    %534 = vmatprep.subr.bf16.mxu0 0
    %535 = vmatpush1.bf16.msra.mxu0 %v399
    %536 = vmatprep.subr.bf16.mxu0 0
    %537 = vmatpush1.bf16.msra.mxu0 %v400
    %538 = vmatprep.subr.bf16.mxu0 0
    %539 = vmatpush1.bf16.msra.mxu0 %v401
    %540 = vmatprep.subr.bf16.mxu0 0
    %541 = vmatpush1.bf16.msra.mxu0 %v402
    %542 = vmatprep.mubr.bf16.mxu0 %v203
    %543 = vmatmul.mubr.bf16.gmra.mrb[0].mxu0 %v202
    %v544 = vpop.f32.mrb[0].mxu0
    %v545 = vadd.f32 %v488, %v544
    %v546 = vpop.f32.mrb[0].mxu0
    %v547 = vpop.f32.mrb[0].mxu0
    %v548 = vadd.f32 %v491, %v547
    %v549 = vpop.f32.mrb[0].mxu0
    %550 = vmatprep.mubr.bf16.mxu0 %v208
    %551 = vmatmul.mubr.bf16.gmra.mrb[0].mxu0 %v207
    %v552 = vpop.f32.mrb[0].mxu0
    %v553 = vadd.f32 %v496, %v552
    %v554 = vpop.f32.mrb[0].mxu0
    %v555 = vpop.f32.mrb[0].mxu0
    %v556 = vadd.f32 %v499, %v555
    %v557 = vpop.f32.mrb[0].mxu0
    %558 = vmatprep.mubr.bf16.mxu0 %v213
    %559 = vmatmul.mubr.bf16.gmra.mrb[0].mxu0 %v212
    %v560 = vpop.f32.mrb[0].mxu0
    %v561 = vadd.f32 %v504, %v560
    %v562 = vpop.f32.mrb[0].mxu0
    %v563 = vpop.f32.mrb[0].mxu0
    %v564 = vadd.f32 %v507, %v563
    %v565 = vpop.f32.mrb[0].mxu0
    %566 = vdwg.mxu0
    %567 = vmatprep.subr.bf16.mxu0 0
    %568 = vmatpush1.bf16.msra.mxu0 %v403
    %569 = vmatprep.subr.bf16.mxu0 0
    %570 = vmatpush1.bf16.msra.mxu0 %v404
    %571 = vmatprep.subr.bf16.mxu0 0
    %572 = vmatpush1.bf16.msra.mxu0 %v405
    %573 = vmatprep.subr.bf16.mxu0 0
    %574 = vmatpush1.bf16.msra.mxu0 %v406
    %575 = vmatprep.subr.bf16.mxu0 0
    %576 = vmatpush1.bf16.msra.mxu0 0
    %577 = vmatprep.subr.bf16.mxu0 0
    %578 = vmatpush1.bf16.msra.mxu0 0
    %579 = vmatprep.subr.bf16.mxu0 0
    %580 = vmatpush1.bf16.msra.mxu0 0
    %581 = vmatprep.subr.bf16.mxu0 0
    %582 = vmatpush1.bf16.msra.mxu0 0
    %583 = vmatprep.subr.bf16.mxu0 0
    %584 = vmatpush1.bf16.msra.mxu0 0
    %585 = vmatprep.subr.bf16.mxu0 0
    %586 = vmatpush1.bf16.msra.mxu0 0
    %587 = vmatprep.subr.bf16.mxu0 0
    %588 = vmatpush1.bf16.msra.mxu0 0
    %589 = vmatprep.subr.bf16.mxu0 0
    %590 = vmatpush1.bf16.msra.mxu0 0
    %591 = vmatprep.subr.bf16.mxu0 0
    %592 = vmatpush1.bf16.msra.mxu0 0
    %593 = vmatprep.subr.bf16.mxu0 0
    %594 = vmatpush1.bf16.msra.mxu0 0
    %595 = vmatprep.subr.bf16.mxu0 0
    %596 = vmatpush1.bf16.msra.mxu0 0
    %597 = vmatprep.subr.bf16.mxu0 0
    %598 = vmatpush1.bf16.msra.mxu0 0
    %599 = vmatprep.mubr.bf16.mxu0 0
    %600 = vmatmul.mubr.bf16.gmra.mrb[0].mxu0 %v445
    %v601 = vpop.f32.mrb[0].mxu0
    %v602 = vadd.f32 %v545, %v601
    %v603 = vpop.f32.mrb[0].mxu0
    %v604 = vpop.f32.mrb[0].mxu0
    %v605 = vadd.f32 %v548, %v604
    %v606 = vpop.f32.mrb[0].mxu0
    %607 = vmatprep.mubr.bf16.mxu0 0
    %608 = vmatmul.mubr.bf16.gmra.mrb[0].mxu0 %v448
    %v609 = vpop.f32.mrb[0].mxu0
    %v610 = vadd.f32 %v553, %v609
    %v611 = vpop.f32.mrb[0].mxu0
    %v612 = vpop.f32.mrb[0].mxu0
    %v613 = vadd.f32 %v556, %v612
    %v614 = vpop.f32.mrb[0].mxu0
    %615 = vmatprep.mubr.bf16.mxu0 0
    %616 = vmatmul.mubr.bf16.gmra.mrb[0].mxu0 %v451
    %v617 = vpop.f32.mrb[0].mxu0
    %v618 = vadd.f32 %v561, %v617
    %v619 = vpop.f32.mrb[0].mxu0
    %v620 = vpop.f32.mrb[0].mxu0
    %v621 = vadd.f32 %v564, %v620
    %v622 = vpop.f32.mrb[0].mxu0
    %623 = vdwg.mxu0
    %v624 = vmax.f32 %v602, 0.0
    %v625 = vmax.f32 %v605, 0.0
    %v626 = vmax.f32 %v610, 0.0
    %v627 = vmax.f32 %v613, 0.0
    %v628 = vmax.f32 %v618, 0.0
    %v629 = vmax.f32 %v621, 0.0
    %630 = vst [vmem:[#allocation8] sm:$0xff] %v624
    %631 = vst [vmem:[#allocation8 + $0x8] sm:$0xff] %v625
    %632 = vst [vmem:[#allocation8 + $0x10] sm:$0xff] %v626
    %633 = vst [vmem:[#allocation8 + $0x18] sm:$0xff] %v627
    %634 = vst [vmem:[#allocation8 + $0x20] sm:$0xff] %v628
    %635 = vst [vmem:[#allocation8 + $0x28] sm:$0x3] %v629
    // Predicated region
    $region26: #{net_forward.24} parent=1 // pred_check
      _
    $region27: #{net_forward.24} parent=1 // pred_check_branch
      %637 = sbr.rel (0) target = $region29
    $region28: #{net_forward.24} parent=1 // pred_region
      %s639 = ssub.s32 768, 768
      %640 = vsyncadd [#allocation4], %s639
      %s641 = sshll.u32 [#allocation8], 4
      %s642 = int_to_ptr.vmem [resolvable:$true] %s641
      %647 = dma.vmem_to_hbm [thread:$0]  %s642, 768, %s3, [#allocation4], 128, 128, 8
    $region29: #{net_forward.24} parent=1 // pred_fallthru
      _
    // Predicated region
    $region30: #{net_forward.24} parent=1 // pred_check
      _
    $region31: #{net_forward.24} parent=1 // pred_check_branch
      %649 = sbr.rel (0) target = $region33
    $region32: #{net_forward.24} parent=1 // pred_region
      %650 = dma.done [#allocation4], 768
    $region33: #{net_forward.24} parent=1 // pred_fallthru
      _
    %651 = vsyncpa [#allocation3], 1
    %652 = vsyncpa [#allocation6], 1
    %653 = vsyncpa [#allocation4], 1

// kernel: net_forward.23
$region0: #{net_forward.23}
  #allocation0 [shape = 'u32[]', space=smem, size = 0x4, offset = 0x4, fixed_abs, tag = 'smem constant byte address 0x4 - core index']
  #allocation1 [shape = 'u32[144,128]{1,0:T(1,128)}', space=vmem, size = 0x12000, scoped, tag = 'internal scratch']
  %s0 = inlined_call_operand.hbm [shape: bf16[210,9], index: 0, kind: input, shape index: {}]
  %s1 = inlined_call_operand.hbm [shape: bf16[9,128], index: 1, kind: input, shape index: {}]
  %s2 = inlined_call_operand.hbm [shape: f32[1,128], index: 2, kind: input, shape index: {}]
  %s3 = inlined_call_operand.hbm [shape: f32[210,128], index: 3, kind: output, shape index: {}]
  %s4 = sld [smem:[#allocation0]]
  $region34: #{net_forward.23} parent=0
    _
  %s6 = ssub.s32 1, %s4
  %s7 = scalar_select 0, %s6, %s4
  $region1: #{net_forward.23} parent=0
    #allocation2 [shape = 'u8[55296]{0}', space=vmem, size = 0xd800, scoped, tag = 'input window, operand 0, single buffered']
    #allocation3 [shape = 's32[1]{0}', space=sflag, size = 0x4, scoped, tag = 'scoped memory for net_forward.23']
    #allocation4 [shape = 's32[1]{0}', space=sflag, size = 0x4, scoped, tag = 'scoped memory for net_forward.23']
    #allocation5 [shape = 'u8[4096]{0}', space=vmem, size = 0x1000, scoped, tag = 'input window, operand 1, single buffered']
    #allocation6 [shape = 's32[1]{0}', space=sflag, size = 0x4, scoped, tag = 'scoped memory for net_forward.23']
    #allocation7 [shape = 'u8[512]{0}', space=vmem, size = 0x400, scoped, tag = 'input window, operand 2, single buffered']
    #allocation8 [shape = 'u8[110592]{0}', space=vmem, size = 0x1b000, scoped, tag = 'output window, operand 0, single buffered']
    %8 = vsyncpa [#allocation3], 0
    %9 = vsyncpa [#allocation6], 0
    %10 = vsyncpa [#allocation4], 0
    // Predicated region
    $region2: #{net_forward.23} parent=1 // pred_check
      _
    $region3: #{net_forward.23} parent=1 // pred_check_branch
      %12 = sbr.rel (0) target = $region5
    $region4: #{net_forward.23} parent=1 // pred_region
      %s14 = ssub.s32 1728, 1728
      %15 = vsyncadd [#allocation3], %s14
      %s16 = sshll.u32 [#allocation2], 4
      %s17 = int_to_ptr.vmem [resolvable:$true] %s16
      %22 = dma.hbm_to_vmem [thread:$0]  %s0, 1728, %s17, [#allocation3], 64, 64, 4
    $region5: #{net_forward.23} parent=1 // pred_fallthru
      _
    // Predicated region
    $region6: #{net_forward.23} parent=1 // pred_check
      _
    $region7: #{net_forward.23} parent=1 // pred_check_branch
      %24 = sbr.rel (0) target = $region9
    $region8: #{net_forward.23} parent=1 // pred_region
      %s26 = ssub.s32 128, 128
      %27 = vsyncadd [#allocation6], %s26
      %s28 = sshll.u32 [#allocation5], 4
      %s29 = int_to_ptr.vmem [resolvable:$true] %s28
      %34 = dma.hbm_to_vmem [thread:$0]  %s1, 128, %s29, [#allocation6], 64, 64, 4
    $region9: #{net_forward.23} parent=1 // pred_fallthru
      _
    // Predicated region
    $region10: #{net_forward.23} parent=1 // pred_check
      _
    $region11: #{net_forward.23} parent=1 // pred_check_branch
      %36 = sbr.rel (0) target = $region13
    $region12: #{net_forward.23} parent=1 // pred_region
      %s38 = ssub.s32 16, 16
      %39 = vsyncadd [#allocation6], %s38
      %s41 = sshll.u32 [#allocation7], 4
      %s42 = int_to_ptr.vmem [resolvable:$true] %s41
      %44 = dma.hbm_to_vmem [thread:$0]  %s2, 16, %s42, [#allocation6]
    $region13: #{net_forward.23} parent=1 // pred_fallthru
      _
    // Predicated region
    $region14: #{net_forward.23} parent=1 // pred_check
      _
    $region15: #{net_forward.23} parent=1 // pred_check_branch
      %46 = sbr.rel (0) target = $region17
    $region16: #{net_forward.23} parent=1 // pred_region
      %47 = dma.done [#allocation3], 1728
    $region17: #{net_forward.23} parent=1 // pred_fallthru
      _
    // Predicated region
    $region18: #{net_forward.23} parent=1 // pred_check
      _
    $region19: #{net_forward.23} parent=1 // pred_check_branch
      %49 = sbr.rel (0) target = $region21
    $region20: #{net_forward.23} parent=1 // pred_region
      %50 = dma.done [#allocation6], 128
    $region21: #{net_forward.23} parent=1 // pred_fallthru
      _
    // Predicated region
    $region22: #{net_forward.23} parent=1 // pred_check
      _
    $region23: #{net_forward.23} parent=1 // pred_check_branch
      %52 = sbr.rel (0) target = $region25
    $region24: #{net_forward.23} parent=1 // pred_region
      %53 = dma.done [#allocation6], 16
    $region25: #{net_forward.23} parent=1 // pred_fallthru
      _
    %v55 = vld [vmem:[#allocation2] sm:$0xf]
    %v56 = vld [vmem:[#allocation2 + $0x4] sm:$0xf]
    %v57 = vld [vmem:[#allocation2 + $0x8] sm:$0xf]
    %v58 = vld [vmem:[#allocation2 + $0xc] sm:$0xf]
    %v59 = vld [vmem:[#allocation2 + $0x10] sm:$0xf]
    %v60 = vld [vmem:[#allocation2 + $0x14] sm:$0xf]
    %v61 = vld [vmem:[#allocation2 + $0x18] sm:$0xf]
    %v62 = vld [vmem:[#allocation2 + $0x1c] sm:$0xf]
    %v63 = vld [vmem:[#allocation2 + $0x20] sm:$0xf]
    %v64 = vld [vmem:[#allocation2 + $0x24] sm:$0xf]
    %v65 = vld [vmem:[#allocation2 + $0x28] sm:$0xf]
    %v66 = vld [vmem:[#allocation2 + $0x2c] sm:$0xf]
    %v67 = vld [vmem:[#allocation2 + $0x30] sm:$0xf]
    %v68 = vld [vmem:[#allocation2 + $0x34] sm:$0xf]
    %v69 = vld [vmem:[#allocation2 + $0x38] sm:$0xf]
    %v70 = vld [vmem:[#allocation2 + $0x3c] sm:$0xf]
    %v71 = vld [vmem:[#allocation2 + $0x40] sm:$0xf]
    %v72 = vld [vmem:[#allocation2 + $0x44] sm:$0xf]
    %v73 = vld [vmem:[#allocation2 + $0x48] sm:$0xf]
    %v74 = vld [vmem:[#allocation2 + $0x4c] sm:$0xf]
    %v75 = vld [vmem:[#allocation2 + $0x50] sm:$0xf]
    %v76 = vld [vmem:[#allocation2 + $0x54] sm:$0xf]
    %v77 = vld [vmem:[#allocation2 + $0x58] sm:$0xf]
    %v78 = vld [vmem:[#allocation2 + $0x5c] sm:$0xf]
    %v79 = vld [vmem:[#allocation2 + $0x60] sm:$0xf]
    %v80 = vld [vmem:[#allocation2 + $0x64] sm:$0xf]
    %v81 = vld [vmem:[#allocation2 + $0x68] sm:$0x1]
    %v82 = vld [vmem:[#allocation5] sm:$0xf]
    %v83 = vld [vmem:[#allocation5 + $0x4] sm:$0x1]
    %v84 = vld [vmem:[#allocation7] sm:$0x1]
    %v86 = vlaneseq
    %v87 = vshrl.u32 %v86, 7
    %v88 = vsub.s32 0, %v87
    %v89 = vrot.slane %v84, %v88
    %v118 = vunpack.c.l.b16 %v55
    %v119 = vunpack.c.l.b16 %v56
    %v120 = vunpack.c.l.b16 %v57
    %v121 = vunpack.c.l.b16 %v58
    %v122 = vunpack.c.l.b16 %v59
    %v123 = vunpack.c.l.b16 %v60
    %v124 = vunpack.c.l.b16 %v61
    %v125 = vunpack.c.l.b16 %v62
    %v126 = vunpack.c.l.b16 %v63
    %v127 = vunpack.c.l.b16 %v64
    %v128 = vunpack.c.l.b16 %v65
    %v129 = vunpack.c.l.b16 %v66
    %v130 = vunpack.c.l.b16 %v67
    %v131 = vunpack.c.l.b16 %v68
    %v132 = vunpack.c.l.b16 %v69
    %v133 = vunpack.c.l.b16 %v70
    %v134 = vunpack.c.l.b16 %v71
    %v135 = vunpack.c.l.b16 %v72
    %v136 = vunpack.c.l.b16 %v73
    %v137 = vunpack.c.l.b16 %v74
    %v138 = vunpack.c.l.b16 %v75
    %v139 = vunpack.c.l.b16 %v76
    %v140 = vunpack.c.l.b16 %v77
    %v141 = vunpack.c.l.b16 %v78
    %v142 = vunpack.c.l.b16 %v79
    %v143 = vunpack.c.l.b16 %v80
    %v144 = vunpack.c.l.b16 %v81
    %v145 = vpack.c.b16 %v119, %v118
    %v146 = vpack.c.b16 %v121, %v120
    %v147 = vpack.c.b16 %v123, %v122
    %v148 = vpack.c.b16 %v125, %v124
    %v149 = vpack.c.b16 %v127, %v126
    %v150 = vpack.c.b16 %v129, %v128
    %v151 = vpack.c.b16 %v131, %v130
    %v152 = vpack.c.b16 %v133, %v132
    %v153 = vpack.c.b16 %v135, %v134
    %v154 = vpack.c.b16 %v137, %v136
    %v155 = vpack.c.b16 %v139, %v138
    %v156 = vpack.c.b16 %v141, %v140
    %v157 = vpack.c.b16 %v143, %v142
    %v158 = vpack.c.b16 %v144, %v144
    %v161 = vunpack.c.l.b16 %v82
    %v162 = vunpack.c.l.b16 %v83
    %v163 = vpack.c.b16 %v162, %v161
    %vm164 = vcmask 72704
    %v166 = vsel %vm164, %v145, 0
    %v169 = vsel %vm164, %v146, 0
    %v172 = vsel %vm164, %v147, 0
    %v175 = vsel %vm164, %v148, 0
    %v178 = vsel %vm164, %v149, 0
    %v181 = vsel %vm164, %v150, 0
    %v184 = vsel %vm164, %v151, 0
    %v187 = vsel %vm164, %v152, 0
    %v190 = vsel %vm164, %v153, 0
    %v193 = vsel %vm164, %v154, 0
    %v196 = vsel %vm164, %v155, 0
    %v199 = vsel %vm164, %v156, 0
    %v202 = vsel %vm164, %v157, 0
    %v205 = vsel %vm164, %v158, 0
    %vm207 = vcmask 1043456
    %vm208 = vcmask 1044480
    %v209 = vsel %vm207, 4294967295, 65535
    %v210 = vsel %vm208, %v209, 0
    %v212 = vand.u32 %v163, %v210
    %214 = vmatprep.subr.bf16.mxu0 0
    %215 = vmatpush1.bf16.msra.mxu0 %v212
    %216 = vmatprep.subr.bf16.mxu0 0
    %217 = vmatpush1.bf16.msra.mxu0 0
    %218 = vmatprep.subr.bf16.mxu0 0
    %219 = vmatpush1.bf16.msra.mxu0 0
    %220 = vmatprep.subr.bf16.mxu0 0
    %221 = vmatpush1.bf16.msra.mxu0 0
    %222 = vmatprep.subr.bf16.mxu0 0
    %223 = vmatpush1.bf16.msra.mxu0 0
    %224 = vmatprep.subr.bf16.mxu0 0
    %225 = vmatpush1.bf16.msra.mxu0 0
    %226 = vmatprep.subr.bf16.mxu0 0
    %227 = vmatpush1.bf16.msra.mxu0 0
    %228 = vmatprep.subr.bf16.mxu0 0
    %229 = vmatpush1.bf16.msra.mxu0 0
    %230 = vmatprep.subr.bf16.mxu0 0
    %231 = vmatpush1.bf16.msra.mxu0 0
    %232 = vmatprep.subr.bf16.mxu0 0
    %233 = vmatpush1.bf16.msra.mxu0 0
    %234 = vmatprep.subr.bf16.mxu0 0
    %235 = vmatpush1.bf16.msra.mxu0 0
    %236 = vmatprep.subr.bf16.mxu0 0
    %237 = vmatpush1.bf16.msra.mxu0 0
    %238 = vmatprep.subr.bf16.mxu0 0
    %239 = vmatpush1.bf16.msra.mxu0 0
    %240 = vmatprep.subr.bf16.mxu0 0
    %241 = vmatpush1.bf16.msra.mxu0 0
    %242 = vmatprep.subr.bf16.mxu0 0
    %243 = vmatpush1.bf16.msra.mxu0 0
    %244 = vmatprep.subr.bf16.mxu0 0
    %245 = vmatpush1.bf16.msra.mxu0 0
    %246 = vmatprep.mubr.bf16.mxu0 0
    %247 = vmatmul.mubr.bf16.gmra.mrb[0].mxu0 %v166
    %v248 = vpop.f32.mrb[0].mxu0
    %v249 = vadd.f32 %v89, %v248
    %v250 = vpop.f32.mrb[0].mxu0
    %v251 = vpop.f32.mrb[0].mxu0
    %v252 = vadd.f32 %v89, %v251
    %v253 = vpop.f32.mrb[0].mxu0
    %254 = vmatprep.mubr.bf16.mxu0 0
    %255 = vmatmul.mubr.bf16.gmra.mrb[0].mxu0 %v169
    %v256 = vpop.f32.mrb[0].mxu0
    %v257 = vadd.f32 %v89, %v256
    %v258 = vpop.f32.mrb[0].mxu0
    %v259 = vpop.f32.mrb[0].mxu0
    %v260 = vadd.f32 %v89, %v259
    %v261 = vpop.f32.mrb[0].mxu0
    %262 = vmatprep.mubr.bf16.mxu0 0
    %263 = vmatmul.mubr.bf16.gmra.mrb[0].mxu0 %v172
    %v264 = vpop.f32.mrb[0].mxu0
    %v265 = vadd.f32 %v89, %v264
    %v266 = vpop.f32.mrb[0].mxu0
    %v267 = vpop.f32.mrb[0].mxu0
    %v268 = vadd.f32 %v89, %v267
    %v269 = vpop.f32.mrb[0].mxu0
    %270 = vmatprep.mubr.bf16.mxu0 0
    %271 = vmatmul.mubr.bf16.gmra.mrb[0].mxu0 %v175
    %v272 = vpop.f32.mrb[0].mxu0
    %v273 = vadd.f32 %v89, %v272
    %v274 = vpop.f32.mrb[0].mxu0
    %v275 = vpop.f32.mrb[0].mxu0
    %v276 = vadd.f32 %v89, %v275
    %v277 = vpop.f32.mrb[0].mxu0
    %278 = vmatprep.mubr.bf16.mxu0 0
    %279 = vmatmul.mubr.bf16.gmra.mrb[0].mxu0 %v178
    %v280 = vpop.f32.mrb[0].mxu0
    %v281 = vadd.f32 %v89, %v280
    %v282 = vpop.f32.mrb[0].mxu0
    %v283 = vpop.f32.mrb[0].mxu0
    %v284 = vadd.f32 %v89, %v283
    %v285 = vpop.f32.mrb[0].mxu0
    %286 = vmatprep.mubr.bf16.mxu0 0
    %287 = vmatmul.mubr.bf16.gmra.mrb[0].mxu0 %v181
    %v288 = vpop.f32.mrb[0].mxu0
    %v289 = vadd.f32 %v89, %v288
    %v290 = vpop.f32.mrb[0].mxu0
    %v291 = vpop.f32.mrb[0].mxu0
    %v292 = vadd.f32 %v89, %v291
    %v293 = vpop.f32.mrb[0].mxu0
    %294 = vmatprep.mubr.bf16.mxu0 0
    %295 = vmatmul.mubr.bf16.gmra.mrb[0].mxu0 %v184
    %v296 = vpop.f32.mrb[0].mxu0
    %v297 = vadd.f32 %v89, %v296
    %v298 = vpop.f32.mrb[0].mxu0
    %v299 = vpop.f32.mrb[0].mxu0
    %v300 = vadd.f32 %v89, %v299
    %v301 = vpop.f32.mrb[0].mxu0
    %302 = vmatprep.mubr.bf16.mxu0 0
    %303 = vmatmul.mubr.bf16.gmra.mrb[0].mxu0 %v187
    %v304 = vpop.f32.mrb[0].mxu0
    %v305 = vadd.f32 %v89, %v304
    %v306 = vpop.f32.mrb[0].mxu0
    %v307 = vpop.f32.mrb[0].mxu0
    %v308 = vadd.f32 %v89, %v307
    %v309 = vpop.f32.mrb[0].mxu0
    %310 = vmatprep.mubr.bf16.mxu0 0
    %311 = vmatmul.mubr.bf16.gmra.mrb[0].mxu0 %v190
    %v312 = vpop.f32.mrb[0].mxu0
    %v313 = vadd.f32 %v89, %v312
    %v314 = vpop.f32.mrb[0].mxu0
    %v315 = vpop.f32.mrb[0].mxu0
    %v316 = vadd.f32 %v89, %v315
    %v317 = vpop.f32.mrb[0].mxu0
    %318 = vmatprep.mubr.bf16.mxu0 0
    %319 = vmatmul.mubr.bf16.gmra.mrb[0].mxu0 %v193
    %v320 = vpop.f32.mrb[0].mxu0
    %v321 = vadd.f32 %v89, %v320
    %v322 = vpop.f32.mrb[0].mxu0
    %v323 = vpop.f32.mrb[0].mxu0
    %v324 = vadd.f32 %v89, %v323
    %v325 = vpop.f32.mrb[0].mxu0
    %326 = vmatprep.mubr.bf16.mxu0 0
    %327 = vmatmul.mubr.bf16.gmra.mrb[0].mxu0 %v196
    %v328 = vpop.f32.mrb[0].mxu0
    %v329 = vadd.f32 %v89, %v328
    %v330 = vpop.f32.mrb[0].mxu0
    %v331 = vpop.f32.mrb[0].mxu0
    %v332 = vadd.f32 %v89, %v331
    %v333 = vpop.f32.mrb[0].mxu0
    %334 = vmatprep.mubr.bf16.mxu0 0
    %335 = vmatmul.mubr.bf16.gmra.mrb[0].mxu0 %v199
    %v336 = vpop.f32.mrb[0].mxu0
    %v337 = vadd.f32 %v89, %v336
    %v338 = vpop.f32.mrb[0].mxu0
    %v339 = vpop.f32.mrb[0].mxu0
    %v340 = vadd.f32 %v89, %v339
    %v341 = vpop.f32.mrb[0].mxu0
    %342 = vmatprep.mubr.bf16.mxu0 0
    %343 = vmatmul.mubr.bf16.gmra.mrb[0].mxu0 %v202
    %v344 = vpop.f32.mrb[0].mxu0
    %v345 = vadd.f32 %v89, %v344
    %v346 = vpop.f32.mrb[0].mxu0
    %v347 = vpop.f32.mrb[0].mxu0
    %v348 = vadd.f32 %v89, %v347
    %v349 = vpop.f32.mrb[0].mxu0
    %350 = vmatprep.mubr.bf16.mxu0 0
    %351 = vmatmul.mubr.bf16.gmra.mrb[0].mxu0 %v205
    %v352 = vpop.f32.mrb[0].mxu0
    %v353 = vadd.f32 %v89, %v352
    %v354 = vpop.f32.mrb[0].mxu0
    %v355 = vpop.f32.mrb[0].mxu0
    %v356 = vpop.f32.mrb[0].mxu0
    %357 = vdwg.mxu0
    %v358 = vmax.f32 %v249, 0.0
    %v359 = vmax.f32 %v252, 0.0
    %v360 = vmax.f32 %v257, 0.0
    %v361 = vmax.f32 %v260, 0.0
    %v362 = vmax.f32 %v265, 0.0
    %v363 = vmax.f32 %v268, 0.0
    %v364 = vmax.f32 %v273, 0.0
    %v365 = vmax.f32 %v276, 0.0
    %v366 = vmax.f32 %v281, 0.0
    %v367 = vmax.f32 %v284, 0.0
    %v368 = vmax.f32 %v289, 0.0
    %v369 = vmax.f32 %v292, 0.0
    %v370 = vmax.f32 %v297, 0.0
    %v371 = vmax.f32 %v300, 0.0
    %v372 = vmax.f32 %v305, 0.0
    %v373 = vmax.f32 %v308, 0.0
    %v374 = vmax.f32 %v313, 0.0
    %v375 = vmax.f32 %v316, 0.0
    %v376 = vmax.f32 %v321, 0.0
    %v377 = vmax.f32 %v324, 0.0
    %v378 = vmax.f32 %v329, 0.0
    %v379 = vmax.f32 %v332, 0.0
    %v380 = vmax.f32 %v337, 0.0
    %v381 = vmax.f32 %v340, 0.0
    %v382 = vmax.f32 %v345, 0.0
    %v383 = vmax.f32 %v348, 0.0
    %v384 = vmax.f32 %v353, 0.0
    %385 = vst [vmem:[#allocation8] sm:$0xff] %v358
    %386 = vst [vmem:[#allocation8 + $0x8] sm:$0xff] %v359
    %387 = vst [vmem:[#allocation8 + $0x10] sm:$0xff] %v360
    %388 = vst [vmem:[#allocation8 + $0x18] sm:$0xff] %v361
    %389 = vst [vmem:[#allocation8 + $0x20] sm:$0xff] %v362
    %390 = vst [vmem:[#allocation8 + $0x28] sm:$0xff] %v363
    %391 = vst [vmem:[#allocation8 + $0x30] sm:$0xff] %v364
    %392 = vst [vmem:[#allocation8 + $0x38] sm:$0xff] %v365
    %393 = vst [vmem:[#allocation8 + $0x40] sm:$0xff] %v366
    %394 = vst [vmem:[#allocation8 + $0x48] sm:$0xff] %v367
    %395 = vst [vmem:[#allocation8 + $0x50] sm:$0xff] %v368
    %396 = vst [vmem:[#allocation8 + $0x58] sm:$0xff] %v369
    %397 = vst [vmem:[#allocation8 + $0x60] sm:$0xff] %v370
    %398 = vst [vmem:[#allocation8 + $0x68] sm:$0xff] %v371
    %399 = vst [vmem:[#allocation8 + $0x70] sm:$0xff] %v372
    %400 = vst [vmem:[#allocation8 + $0x78] sm:$0xff] %v373
    %401 = vst [vmem:[#allocation8 + $0x80] sm:$0xff] %v374
    %402 = vst [vmem:[#allocation8 + $0x88] sm:$0xff] %v375
    %403 = vst [vmem:[#allocation8 + $0x90] sm:$0xff] %v376
    %404 = vst [vmem:[#allocation8 + $0x98] sm:$0xff] %v377
    %405 = vst [vmem:[#allocation8 + $0xa0] sm:$0xff] %v378
    %406 = vst [vmem:[#allocation8 + $0xa8] sm:$0xff] %v379
    %407 = vst [vmem:[#allocation8 + $0xb0] sm:$0xff] %v380
    %408 = vst [vmem:[#allocation8 + $0xb8] sm:$0xff] %v381
    %409 = vst [vmem:[#allocation8 + $0xc0] sm:$0xff] %v382
    %410 = vst [vmem:[#allocation8 + $0xc8] sm:$0xff] %v383
    %411 = vst [vmem:[#allocation8 + $0xd0] sm:$0x3] %v384
    // Predicated region
    $region26: #{net_forward.23} parent=1 // pred_check
      _
    $region27: #{net_forward.23} parent=1 // pred_check_branch
      %413 = sbr.rel (0) target = $region29
    $region28: #{net_forward.23} parent=1 // pred_region
      %s415 = ssub.s32 3456, 3456
      %416 = vsyncadd [#allocation4], %s415
      %s417 = sshll.u32 [#allocation8], 4
      %s418 = int_to_ptr.vmem [resolvable:$true] %s417
      %423 = dma.vmem_to_hbm [thread:$0]  %s418, 3456, %s3, [#allocation4], 128, 128, 8
    $region29: #{net_forward.23} parent=1 // pred_fallthru
      _
    // Predicated region
    $region30: #{net_forward.23} parent=1 // pred_check
      _
    $region31: #{net_forward.23} parent=1 // pred_check_branch
      %425 = sbr.rel (0) target = $region33
    $region32: #{net_forward.23} parent=1 // pred_region
      %426 = dma.done [#allocation4], 3456
    $region33: #{net_forward.23} parent=1 // pred_fallthru
      _
    %427 = vsyncpa [#allocation3], 1
    %428 = vsyncpa [#allocation6], 1
    %429 = vsyncpa [#allocation4], 1

// kernel: net_forward.32
$region0: #{net_forward.32}
  #allocation0 [shape = 'u32[]', space=smem, size = 0x4, offset = 0x4, fixed_abs, tag = 'smem constant byte address 0x4 - core index']
  #allocation1 [shape = 'u32[144,128]{1,0:T(1,128)}', space=vmem, size = 0x12000, scoped, tag = 'internal scratch']
  %s0 = inlined_call_operand.hbm [shape: f32[14,64], index: 0, kind: input, shape index: {}]
  %s1 = inlined_call_operand.hbm [shape: f32[1,64], index: 1, kind: input, shape index: {}]
  %s2 = inlined_call_operand.hbm [shape: f32[1,64], index: 2, kind: input, shape index: {}]
  %s3 = inlined_call_operand.hbm [shape: bf16[64,256], index: 3, kind: input, shape index: {}]
  %s4 = inlined_call_operand.hbm [shape: f32[1,256], index: 4, kind: input, shape index: {}]
  %s5 = inlined_call_operand.hbm [shape: f32[14,256], index: 5, kind: output, shape index: {}]
  %s6 = sld [smem:[#allocation0]]
  $region50: #{net_forward.32} parent=0
    _
  %s8 = ssub.s32 1, %s6
  %s9 = scalar_select 0, %s8, %s6
  $region1: #{net_forward.32} parent=0
    #allocation2 [shape = 'u8[8192]{0}', space=vmem, size = 0x2000, scoped, tag = 'input window, operand 0, single buffered']
    #allocation3 [shape = 's32[1]{0}', space=sflag, size = 0x4, scoped, tag = 'scoped memory for net_forward.32']
    #allocation4 [shape = 's32[1]{0}', space=sflag, size = 0x4, scoped, tag = 'scoped memory for net_forward.32']
    #allocation5 [shape = 'u8[512]{0}', space=vmem, size = 0x400, scoped, tag = 'input window, operand 1, single buffered']
    #allocation6 [shape = 's32[1]{0}', space=sflag, size = 0x4, scoped, tag = 'scoped memory for net_forward.32']
    #allocation7 [shape = 'u8[512]{0}', space=vmem, size = 0x400, scoped, tag = 'input window, operand 2, single buffered']
    #allocation8 [shape = 'u8[32768]{0}', space=vmem, size = 0x8000, scoped, tag = 'input window, operand 3, single buffered']
    #allocation9 [shape = 's32[1]{0}', space=sflag, size = 0x4, scoped, tag = 'scoped memory for net_forward.32']
    #allocation10 [shape = 'u8[1024]{0}', space=vmem, size = 0x400, scoped, tag = 'input window, operand 4, single buffered']
    #allocation11 [shape = 'u8[16384]{0}', space=vmem, size = 0x4000, scoped, tag = 'output window, operand 0, single buffered']
    %10 = vsyncpa [#allocation3], 0
    %11 = vsyncpa [#allocation6], 0
    %12 = vsyncpa [#allocation9], 0
    %13 = vsyncpa [#allocation4], 0
    // Predicated region
    $region2: #{net_forward.32} parent=1 // pred_check
      _
    $region3: #{net_forward.32} parent=1 // pred_check_branch
      %15 = sbr.rel (0) target = $region5
    $region4: #{net_forward.32} parent=1 // pred_region
      %s17 = ssub.s32 256, 256
      %18 = vsyncadd [#allocation3], %s17
      %s19 = sshll.u32 [#allocation2], 4
      %s20 = int_to_ptr.vmem [resolvable:$true] %s19
      %25 = dma.hbm_to_vmem [thread:$0]  %s0, 256, %s20, [#allocation3], 128, 128, 8
    $region5: #{net_forward.32} parent=1 // pred_fallthru
      _
    // Predicated region
    $region6: #{net_forward.32} parent=1 // pred_check
      _
    $region7: #{net_forward.32} parent=1 // pred_check_branch
      %27 = sbr.rel (0) target = $region9
    $region8: #{net_forward.32} parent=1 // pred_region
      %s29 = ssub.s32 16, 16
      %30 = vsyncadd [#allocation6], %s29
      %s32 = sshll.u32 [#allocation5], 4
      %s33 = int_to_ptr.vmem [resolvable:$true] %s32
      %35 = dma.hbm_to_vmem [thread:$0]  %s1, 16, %s33, [#allocation6]
    $region9: #{net_forward.32} parent=1 // pred_fallthru
      _
    // Predicated region
    $region10: #{net_forward.32} parent=1 // pred_check
      _
    $region11: #{net_forward.32} parent=1 // pred_check_branch
      %37 = sbr.rel (0) target = $region13
    $region12: #{net_forward.32} parent=1 // pred_region
      %s39 = ssub.s32 16, 16
      %40 = vsyncadd [#allocation6], %s39
      %s42 = sshll.u32 [#allocation7], 4
      %s43 = int_to_ptr.vmem [resolvable:$true] %s42
      %45 = dma.hbm_to_vmem [thread:$0]  %s2, 16, %s43, [#allocation6]
    $region13: #{net_forward.32} parent=1 // pred_fallthru
      _
    // Predicated region
    $region14: #{net_forward.32} parent=1 // pred_check
      _
    $region15: #{net_forward.32} parent=1 // pred_check_branch
      %47 = sbr.rel (0) target = $region17
    $region16: #{net_forward.32} parent=1 // pred_region
      %s49 = ssub.s32 1024, 1024
      %50 = vsyncadd [#allocation9], %s49
      %s51 = sshll.u32 [#allocation8], 4
      %s52 = int_to_ptr.vmem [resolvable:$true] %s51
      %57 = dma.hbm_to_vmem [thread:$0]  %s3, 1024, %s52, [#allocation9], 128, 128, 8
    $region17: #{net_forward.32} parent=1 // pred_fallthru
      _
    // Predicated region
    $region18: #{net_forward.32} parent=1 // pred_check
      _
    $region19: #{net_forward.32} parent=1 // pred_check_branch
      %59 = sbr.rel (0) target = $region21
    $region20: #{net_forward.32} parent=1 // pred_region
      %s61 = ssub.s32 32, 32
      %62 = vsyncadd [#allocation9], %s61
      %s64 = sshll.u32 [#allocation10], 4
      %s65 = int_to_ptr.vmem [resolvable:$true] %s64
      %67 = dma.hbm_to_vmem [thread:$0]  %s4, 32, %s65, [#allocation9]
    $region21: #{net_forward.32} parent=1 // pred_fallthru
      _
    // Predicated region
    $region22: #{net_forward.32} parent=1 // pred_check
      _
    $region23: #{net_forward.32} parent=1 // pred_check_branch
      %69 = sbr.rel (0) target = $region25
    $region24: #{net_forward.32} parent=1 // pred_region
      %70 = dma.done [#allocation3], 256
    $region25: #{net_forward.32} parent=1 // pred_fallthru
      _
    // Predicated region
    $region26: #{net_forward.32} parent=1 // pred_check
      _
    $region27: #{net_forward.32} parent=1 // pred_check_branch
      %72 = sbr.rel (0) target = $region29
    $region28: #{net_forward.32} parent=1 // pred_region
      %73 = dma.done [#allocation6], 16
    $region29: #{net_forward.32} parent=1 // pred_fallthru
      _
    // Predicated region
    $region30: #{net_forward.32} parent=1 // pred_check
      _
    $region31: #{net_forward.32} parent=1 // pred_check_branch
      %75 = sbr.rel (0) target = $region33
    $region32: #{net_forward.32} parent=1 // pred_region
      %76 = dma.done [#allocation6], 16
    $region33: #{net_forward.32} parent=1 // pred_fallthru
      _
    // Predicated region
    $region34: #{net_forward.32} parent=1 // pred_check
      _
    $region35: #{net_forward.32} parent=1 // pred_check_branch
      %78 = sbr.rel (0) target = $region37
    $region36: #{net_forward.32} parent=1 // pred_region
      %79 = dma.done [#allocation9], 1024
    $region37: #{net_forward.32} parent=1 // pred_fallthru
      _
    // Predicated region
    $region38: #{net_forward.32} parent=1 // pred_check
      _
    $region39: #{net_forward.32} parent=1 // pred_check_branch
      %81 = sbr.rel (0) target = $region41
    $region40: #{net_forward.32} parent=1 // pred_region
      %82 = dma.done [#allocation9], 32
    $region41: #{net_forward.32} parent=1 // pred_fallthru
      _
    %v84 = vld [vmem:[#allocation2] sm:$0xff]
    %v85 = vld [vmem:[#allocation2 + $0x8] sm:$0x3f]
    %vm86 = vcmask 523264
    %v87 = vsel %vm86, %v84, 0.0
    %88 = vadd.xlane.f32.xlu0 %v87
    %v89 = vpop.xlane.xlu0 %88
    %vm90 = vcmask 521216
    %v91 = vsel %vm90, %v85, 0.0
    %92 = vadd.xlane.f32.xlu0 %v91
    %v93 = vpop.xlane.xlu0 %92
    %v94 = vrcp.pop 64.0
    %v95 = vmul.f32 %v89, %v94
    %v96 = vmul.f32 %v93, %v94
    %v97 = vsub.f32 %v84, %v95
    %v98 = vsub.f32 %v85, %v96
    %v99 = vmul.f32 %v97, %v97
    %v100 = vmul.f32 %v98, %v98
    %v101 = vsel %vm86, %v99, 0.0
    %102 = vadd.xlane.f32.xlu0 %v101
    %v103 = vpop.xlane.xlu0 %102
    %v104 = vsel %vm90, %v100, 0.0
    %105 = vadd.xlane.f32.xlu0 %v104
    %v106 = vpop.xlane.xlu0 %105
    %v107 = vmul.f32 %v103, %v94
    %v108 = vmul.f32 %v106, %v94
    %v109 = vadd.f32 %v107, 1e-12
    %v110 = vadd.f32 %v108, 1e-12
    %v111 = vrsqrt.pop %v109
    %v112 = vrsqrt.pop %v110
    %v113 = vmul.f32 %v97, %v111
    %v114 = vmul.f32 %v98, %v112
    %v115 = vld [vmem:[#allocation5] sm:$0x1]
    %v117 = vlaneseq
    %v118 = vshrl.u32 %v117, 7
    %v119 = vsub.s32 0, %v118
    %v120 = vrot.slane %v115, %v119
    %v122 = vmul.f32 %v113, %v120
    %v123 = vmul.f32 %v114, %v120
    %v124 = vld [vmem:[#allocation7] sm:$0x1]
    %v126 = vlaneseq
    %v127 = vshrl.u32 %v126, 7
    %v128 = vsub.s32 0, %v127
    %v129 = vrot.slane %v124, %v128
    %v131 = vadd.f32 %v122, %v129
    %v132 = vadd.f32 %v123, %v129
    %v133 = vpack.c.bf16 %v132, %v131
    %v134 = vld [vmem:[#allocation8] sm:$0xff]
    %v135 = vld [vmem:[#allocation8 + $0x8] sm:$0xff]
    %v136 = vld [vmem:[#allocation8 + $0x10] sm:$0xff]
    %v137 = vld [vmem:[#allocation8 + $0x18] sm:$0xff]
    %v138 = vld [vmem:[#allocation8 + $0x20] sm:$0xff]
    %v139 = vld [vmem:[#allocation8 + $0x28] sm:$0xff]
    %v140 = vld [vmem:[#allocation8 + $0x30] sm:$0xff]
    %v141 = vld [vmem:[#allocation8 + $0x38] sm:$0xff]
    %v142 = vld [vmem:[#allocation10] sm:$0x3]
    %v144 = vlaneseq
    %v145 = vshrl.u32 %v144, 7
    %v146 = vsub.s32 0, %v145
    %v147 = vrot.slane %v142, %v146
    %v148 = vlaneseq
    %v149 = vshrl.u32 %v148, 7
    %v150 = vsub.s32 1, %v149
    %v151 = vrot.slane %v142, %v150
    %v162 = vunpack.c.l.b16 %v134
    %v163 = vunpack.c.h.b16 %v134
    %v164 = vunpack.c.l.b16 %v135
    %v165 = vunpack.c.h.b16 %v135
    %v166 = vunpack.c.l.b16 %v136
    %v167 = vunpack.c.h.b16 %v136
    %v168 = vunpack.c.l.b16 %v137
    %v169 = vunpack.c.h.b16 %v137
    %v170 = vunpack.c.l.b16 %v138
    %v171 = vunpack.c.h.b16 %v138
    %v172 = vunpack.c.l.b16 %v139
    %v173 = vunpack.c.h.b16 %v139
    %v174 = vunpack.c.l.b16 %v140
    %v175 = vunpack.c.h.b16 %v140
    %v176 = vunpack.c.l.b16 %v141
    %v177 = vunpack.c.h.b16 %v141
    %v178 = vpack.c.b16 %v164, %v162
    %v179 = vpack.c.b16 %v165, %v163
    %v180 = vpack.c.b16 %v168, %v166
    %v181 = vpack.c.b16 %v169, %v167
    %v182 = vpack.c.b16 %v172, %v170
    %v183 = vpack.c.b16 %v173, %v171
    %v184 = vpack.c.b16 %v176, %v174
    %v185 = vpack.c.b16 %v177, %v175
    %v195 = vsel %vm86, %v133, 0
    %197 = vmatprep.subr.bf16.mxu0 %v179
    %198 = vmatpush1.bf16.msra.mxu0 %v178
    %199 = vmatprep.subr.bf16.mxu0 %v181
    %200 = vmatpush1.bf16.msra.mxu0 %v180
    %201 = vmatprep.subr.bf16.mxu0 %v183
    %202 = vmatpush1.bf16.msra.mxu0 %v182
    %203 = vmatprep.subr.bf16.mxu0 %v185
    %204 = vmatpush1.bf16.msra.mxu0 %v184
    %205 = vmatprep.subr.bf16.mxu0 0
    %206 = vmatpush1.bf16.msra.mxu0 0
    %207 = vmatprep.subr.bf16.mxu0 0
    %208 = vmatpush1.bf16.msra.mxu0 0
    %209 = vmatprep.subr.bf16.mxu0 0
    %210 = vmatpush1.bf16.msra.mxu0 0
    %211 = vmatprep.subr.bf16.mxu0 0
    %212 = vmatpush1.bf16.msra.mxu0 0
    %213 = vmatprep.subr.bf16.mxu0 0
    %214 = vmatpush1.bf16.msra.mxu0 0
    %215 = vmatprep.subr.bf16.mxu0 0
    %216 = vmatpush1.bf16.msra.mxu0 0
    %217 = vmatprep.subr.bf16.mxu0 0
    %218 = vmatpush1.bf16.msra.mxu0 0
    %219 = vmatprep.subr.bf16.mxu0 0
    %220 = vmatpush1.bf16.msra.mxu0 0
    %221 = vmatprep.subr.bf16.mxu0 0
    %222 = vmatpush1.bf16.msra.mxu0 0
    %223 = vmatprep.subr.bf16.mxu0 0
    %224 = vmatpush1.bf16.msra.mxu0 0
    %225 = vmatprep.subr.bf16.mxu0 0
    %226 = vmatpush1.bf16.msra.mxu0 0
    %227 = vmatprep.subr.bf16.mxu0 0
    %228 = vmatpush1.bf16.msra.mxu0 0
    %229 = vmatprep.mubr.bf16.mxu0 0
    %230 = vmatmul.mubr.bf16.gmra.mrb[0].mxu0 %v195
    %v231 = vpop.f32.mrb[0].mxu0
    %v232 = vadd.f32 %v147, %v231
    %v233 = vpop.f32.mrb[0].mxu0
    %v234 = vadd.f32 %v151, %v233
    %v235 = vpop.f32.mrb[0].mxu0
    %v236 = vadd.f32 %v147, %v235
    %v237 = vpop.f32.mrb[0].mxu0
    %v238 = vadd.f32 %v151, %v237
    %239 = vdwg.mxu0
    %240 = vst [vmem:[#allocation11] sm:$0xff] %v232
    %241 = vst [vmem:[#allocation11 + $0x8] sm:$0xff] %v234
    %242 = vst [vmem:[#allocation11 + $0x10] sm:$0x3f] %v236
    %243 = vst [vmem:[#allocation11 + $0x18] sm:$0x3f] %v238
    // Predicated region
    $region42: #{net_forward.32} parent=1 // pred_check
      _
    $region43: #{net_forward.32} parent=1 // pred_check_branch
      %245 = sbr.rel (0) target = $region45
    $region44: #{net_forward.32} parent=1 // pred_region
      %s247 = ssub.s32 512, 512
      %248 = vsyncadd [#allocation4], %s247
      %s249 = sshll.u32 [#allocation11], 4
      %s250 = int_to_ptr.vmem [resolvable:$true] %s249
      %255 = dma.vmem_to_hbm [thread:$0]  %s250, 512, %s5, [#allocation4], 256, 256, 16
    $region45: #{net_forward.32} parent=1 // pred_fallthru
      _
    // Predicated region
    $region46: #{net_forward.32} parent=1 // pred_check
      _
    $region47: #{net_forward.32} parent=1 // pred_check_branch
      %257 = sbr.rel (0) target = $region49
    $region48: #{net_forward.32} parent=1 // pred_region
      %258 = dma.done [#allocation4], 512
    $region49: #{net_forward.32} parent=1 // pred_fallthru
      _
    %259 = vsyncpa [#allocation3], 1
    %260 = vsyncpa [#allocation6], 1
    %261 = vsyncpa [#allocation9], 1
    %262 = vsyncpa [#allocation4], 1

// kernel: net_forward.25
$region0: #{net_forward.25}
  #allocation0 [shape = 'u32[]', space=smem, size = 0x4, offset = 0x4, fixed_abs, tag = 'smem constant byte address 0x4 - core index']
  #allocation1 [shape = 'u32[144,128]{1,0:T(1,128)}', space=vmem, size = 0x12000, scoped, tag = 'internal scratch']
  %s0 = inlined_call_operand.hbm [shape: bf16[14,192], index: 0, kind: input, shape index: {}]
  %s1 = inlined_call_operand.hbm [shape: bf16[192,128], index: 1, kind: input, shape index: {}]
  %s2 = inlined_call_operand.hbm [shape: f32[1,128], index: 2, kind: input, shape index: {}]
  %s3 = inlined_call_operand.hbm [shape: f32[14,128], index: 3, kind: output, shape index: {}]
  %s4 = sld [smem:[#allocation0]]
  $region34: #{net_forward.25} parent=0
    _
  %s6 = ssub.s32 1, %s4
  %s7 = scalar_select 0, %s6, %s4
  $region1: #{net_forward.25} parent=0
    #allocation2 [shape = 'u8[8192]{0}', space=vmem, size = 0x2000, scoped, tag = 'input window, operand 0, single buffered']
    #allocation3 [shape = 's32[1]{0}', space=sflag, size = 0x4, scoped, tag = 'scoped memory for net_forward.25']
    #allocation4 [shape = 's32[1]{0}', space=sflag, size = 0x4, scoped, tag = 'scoped memory for net_forward.25']
    #allocation5 [shape = 'u8[49152]{0}', space=vmem, size = 0xc000, scoped, tag = 'input window, operand 1, single buffered']
    #allocation6 [shape = 's32[1]{0}', space=sflag, size = 0x4, scoped, tag = 'scoped memory for net_forward.25']
    #allocation7 [shape = 'u8[512]{0}', space=vmem, size = 0x400, scoped, tag = 'input window, operand 2, single buffered']
    #allocation8 [shape = 'u8[8192]{0}', space=vmem, size = 0x2000, scoped, tag = 'output window, operand 0, single buffered']
    %8 = vsyncpa [#allocation3], 0
    %9 = vsyncpa [#allocation6], 0
    %10 = vsyncpa [#allocation4], 0
    // Predicated region
    $region2: #{net_forward.25} parent=1 // pred_check
      _
    $region3: #{net_forward.25} parent=1 // pred_check_branch
      %12 = sbr.rel (0) target = $region5
    $region4: #{net_forward.25} parent=1 // pred_region
      %s14 = ssub.s32 256, 256
      %15 = vsyncadd [#allocation3], %s14
      %s16 = sshll.u32 [#allocation2], 4
      %s17 = int_to_ptr.vmem [resolvable:$true] %s16
      %22 = dma.hbm_to_vmem [thread:$0]  %s0, 256, %s17, [#allocation3], 128, 128, 8
    $region5: #{net_forward.25} parent=1 // pred_fallthru
      _
    // Predicated region
    $region6: #{net_forward.25} parent=1 // pred_check
      _
    $region7: #{net_forward.25} parent=1 // pred_check_branch
      %24 = sbr.rel (0) target = $region9
    $region8: #{net_forward.25} parent=1 // pred_region
      %s26 = ssub.s32 1536, 1536
      %27 = vsyncadd [#allocation6], %s26
      %s28 = sshll.u32 [#allocation5], 4
      %s29 = int_to_ptr.vmem [resolvable:$true] %s28
      %34 = dma.hbm_to_vmem [thread:$0]  %s1, 1536, %s29, [#allocation6], 64, 64, 4
    $region9: #{net_forward.25} parent=1 // pred_fallthru
      _
    // Predicated region
    $region10: #{net_forward.25} parent=1 // pred_check
      _
    $region11: #{net_forward.25} parent=1 // pred_check_branch
      %36 = sbr.rel (0) target = $region13
    $region12: #{net_forward.25} parent=1 // pred_region
      %s38 = ssub.s32 16, 16
      %39 = vsyncadd [#allocation6], %s38
      %s41 = sshll.u32 [#allocation7], 4
      %s42 = int_to_ptr.vmem [resolvable:$true] %s41
      %44 = dma.hbm_to_vmem [thread:$0]  %s2, 16, %s42, [#allocation6]
    $region13: #{net_forward.25} parent=1 // pred_fallthru
      _
    // Predicated region
    $region14: #{net_forward.25} parent=1 // pred_check
      _
    $region15: #{net_forward.25} parent=1 // pred_check_branch
      %46 = sbr.rel (0) target = $region17
    $region16: #{net_forward.25} parent=1 // pred_region
      %47 = dma.done [#allocation3], 256
    $region17: #{net_forward.25} parent=1 // pred_fallthru
      _
    // Predicated region
    $region18: #{net_forward.25} parent=1 // pred_check
      _
    $region19: #{net_forward.25} parent=1 // pred_check_branch
      %49 = sbr.rel (0) target = $region21
    $region20: #{net_forward.25} parent=1 // pred_region
      %50 = dma.done [#allocation6], 1536
    $region21: #{net_forward.25} parent=1 // pred_fallthru
      _
    // Predicated region
    $region22: #{net_forward.25} parent=1 // pred_check
      _
    $region23: #{net_forward.25} parent=1 // pred_check_branch
      %52 = sbr.rel (0) target = $region25
    $region24: #{net_forward.25} parent=1 // pred_region
      %53 = dma.done [#allocation6], 16
    $region25: #{net_forward.25} parent=1 // pred_fallthru
      _
    %v55 = vld [vmem:[#allocation2] sm:$0xff]
    %v56 = vld [vmem:[#allocation2 + $0x8] sm:$0x77]
    %v57 = vld [vmem:[#allocation5] sm:$0xf]
    %v58 = vld [vmem:[#allocation5 + $0x4] sm:$0xf]
    %v59 = vld [vmem:[#allocation5 + $0x8] sm:$0xf]
    %v60 = vld [vmem:[#allocation5 + $0xc] sm:$0xf]
    %v61 = vld [vmem:[#allocation5 + $0x10] sm:$0xf]
    %v62 = vld [vmem:[#allocation5 + $0x14] sm:$0xf]
    %v63 = vld [vmem:[#allocation5 + $0x18] sm:$0xf]
    %v64 = vld [vmem:[#allocation5 + $0x1c] sm:$0xf]
    %v65 = vld [vmem:[#allocation5 + $0x20] sm:$0xf]
    %v66 = vld [vmem:[#allocation5 + $0x24] sm:$0xf]
    %v67 = vld [vmem:[#allocation5 + $0x28] sm:$0xf]
    %v68 = vld [vmem:[#allocation5 + $0x2c] sm:$0xf]
    %v69 = vld [vmem:[#allocation5 + $0x30] sm:$0xf]
    %v70 = vld [vmem:[#allocation5 + $0x34] sm:$0xf]
    %v71 = vld [vmem:[#allocation5 + $0x38] sm:$0xf]
    %v72 = vld [vmem:[#allocation5 + $0x3c] sm:$0xf]
    %v73 = vld [vmem:[#allocation5 + $0x40] sm:$0xf]
    %v74 = vld [vmem:[#allocation5 + $0x44] sm:$0xf]
    %v75 = vld [vmem:[#allocation5 + $0x48] sm:$0xf]
    %v76 = vld [vmem:[#allocation5 + $0x4c] sm:$0xf]
    %v77 = vld [vmem:[#allocation5 + $0x50] sm:$0xf]
    %v78 = vld [vmem:[#allocation5 + $0x54] sm:$0xf]
    %v79 = vld [vmem:[#allocation5 + $0x58] sm:$0xf]
    %v80 = vld [vmem:[#allocation5 + $0x5c] sm:$0xf]
    %v81 = vld [vmem:[#allocation7] sm:$0x1]
    %v83 = vlaneseq
    %v84 = vshrl.u32 %v83, 7
    %v85 = vsub.s32 0, %v84
    %v86 = vrot.slane %v81, %v85
    %v90 = vunpack.c.l.b16 %v55
    %v91 = vunpack.c.h.b16 %v55
    %v92 = vunpack.c.l.b16 %v56
    %v93 = vunpack.c.h.b16 %v56
    %v94 = vpack.c.b16 %v92, %v90
    %v95 = vpack.c.b16 %v93, %v91
    %v121 = vunpack.c.l.b16 %v57
    %v122 = vunpack.c.l.b16 %v58
    %v123 = vunpack.c.l.b16 %v59
    %v124 = vunpack.c.l.b16 %v60
    %v125 = vunpack.c.l.b16 %v61
    %v126 = vunpack.c.l.b16 %v62
    %v127 = vunpack.c.l.b16 %v63
    %v128 = vunpack.c.l.b16 %v64
    %v129 = vunpack.c.l.b16 %v65
    %v130 = vunpack.c.l.b16 %v66
    %v131 = vunpack.c.l.b16 %v67
    %v132 = vunpack.c.l.b16 %v68
    %v133 = vunpack.c.l.b16 %v69
    %v134 = vunpack.c.l.b16 %v70
    %v135 = vunpack.c.l.b16 %v71
    %v136 = vunpack.c.l.b16 %v72
    %v137 = vunpack.c.l.b16 %v73
    %v138 = vunpack.c.l.b16 %v74
    %v139 = vunpack.c.l.b16 %v75
    %v140 = vunpack.c.l.b16 %v76
    %v141 = vunpack.c.l.b16 %v77
    %v142 = vunpack.c.l.b16 %v78
    %v143 = vunpack.c.l.b16 %v79
    %v144 = vunpack.c.l.b16 %v80
    %v145 = vpack.c.b16 %v122, %v121
    %v146 = vpack.c.b16 %v124, %v123
    %v147 = vpack.c.b16 %v126, %v125
    %v148 = vpack.c.b16 %v128, %v127
    %v149 = vpack.c.b16 %v130, %v129
    %v150 = vpack.c.b16 %v132, %v131
    %v151 = vpack.c.b16 %v134, %v133
    %v152 = vpack.c.b16 %v136, %v135
    %v153 = vpack.c.b16 %v138, %v137
    %v154 = vpack.c.b16 %v140, %v139
    %v155 = vpack.c.b16 %v142, %v141
    %v156 = vpack.c.b16 %v144, %v143
    %vm169 = vcmask 523264
    %v171 = vsel %vm169, %v95, 0
    %173 = vmatprep.subr.bf16.mxu0 0
    %174 = vmatpush1.bf16.msra.mxu0 %v145
    %175 = vmatprep.subr.bf16.mxu0 0
    %176 = vmatpush1.bf16.msra.mxu0 %v146
    %177 = vmatprep.subr.bf16.mxu0 0
    %178 = vmatpush1.bf16.msra.mxu0 %v147
    %179 = vmatprep.subr.bf16.mxu0 0
    %180 = vmatpush1.bf16.msra.mxu0 %v148
    %181 = vmatprep.subr.bf16.mxu0 0
    %182 = vmatpush1.bf16.msra.mxu0 %v149
    %183 = vmatprep.subr.bf16.mxu0 0
    %184 = vmatpush1.bf16.msra.mxu0 %v150
    %185 = vmatprep.subr.bf16.mxu0 0
    %186 = vmatpush1.bf16.msra.mxu0 %v151
    %187 = vmatprep.subr.bf16.mxu0 0
    %188 = vmatpush1.bf16.msra.mxu0 %v152
    %189 = vmatprep.subr.bf16.mxu0 0
    %190 = vmatpush1.bf16.msra.mxu0 %v153
    %191 = vmatprep.subr.bf16.mxu0 0
    %192 = vmatpush1.bf16.msra.mxu0 %v154
    %193 = vmatprep.subr.bf16.mxu0 0
    %194 = vmatpush1.bf16.msra.mxu0 %v155
    %195 = vmatprep.subr.bf16.mxu0 0
    %196 = vmatpush1.bf16.msra.mxu0 %v156
    %197 = vmatprep.subr.bf16.mxu0 0
    %198 = vmatpush1.bf16.msra.mxu0 0
    %199 = vmatprep.subr.bf16.mxu0 0
    %200 = vmatpush1.bf16.msra.mxu0 0
    %201 = vmatprep.subr.bf16.mxu0 0
    %202 = vmatpush1.bf16.msra.mxu0 0
    %203 = vmatprep.subr.bf16.mxu0 0
    %204 = vmatpush1.bf16.msra.mxu0 0
    %205 = vmatprep.mubr.bf16.mxu0 %v171
    %206 = vmatmul.mubr.bf16.gmra.mrb[0].mxu0 %v94
    %v207 = vpop.f32.mrb[0].mxu0
    %v208 = vadd.f32 %v86, %v207
    %v209 = vpop.f32.mrb[0].mxu0
    %v210 = vpop.f32.mrb[0].mxu0
    %v211 = vadd.f32 %v86, %v210
    %v212 = vpop.f32.mrb[0].mxu0
    %213 = vdwg.mxu0
    %214 = vst [vmem:[#allocation8] sm:$0xff] %v208
    %215 = vst [vmem:[#allocation8 + $0x8] sm:$0x3f] %v211
    // Predicated region
    $region26: #{net_forward.25} parent=1 // pred_check
      _
    $region27: #{net_forward.25} parent=1 // pred_check_branch
      %217 = sbr.rel (0) target = $region29
    $region28: #{net_forward.25} parent=1 // pred_region
      %s219 = ssub.s32 256, 256
      %220 = vsyncadd [#allocation4], %s219
      %s221 = sshll.u32 [#allocation8], 4
      %s222 = int_to_ptr.vmem [resolvable:$true] %s221
      %227 = dma.vmem_to_hbm [thread:$0]  %s222, 256, %s3, [#allocation4], 128, 128, 8
    $region29: #{net_forward.25} parent=1 // pred_fallthru
      _
    // Predicated region
    $region30: #{net_forward.25} parent=1 // pred_check
      _
    $region31: #{net_forward.25} parent=1 // pred_check_branch
      %229 = sbr.rel (0) target = $region33
    $region32: #{net_forward.25} parent=1 // pred_region
      %230 = dma.done [#allocation4], 256
    $region33: #{net_forward.25} parent=1 // pred_fallthru
      _
    %231 = vsyncpa [#allocation3], 1
    %232 = vsyncpa [#allocation6], 1
    %233 = vsyncpa [#allocation4], 1

// kernel: net_forward.31
$region0: #{net_forward.31}
  #allocation0 [shape = 'u32[]', space=smem, size = 0x4, offset = 0x4, fixed_abs, tag = 'smem constant byte address 0x4 - core index']
  #allocation1 [shape = 'u32[144,128]{1,0:T(1,128)}', space=vmem, size = 0x12000, scoped, tag = 'internal scratch']
  %s0 = inlined_call_operand.hbm [shape: f32[14,64], index: 0, kind: input, shape index: {}]
  %s1 = inlined_call_operand.hbm [shape: f32[1,64], index: 1, kind: input, shape index: {}]
  %s2 = inlined_call_operand.hbm [shape: f32[1,64], index: 2, kind: input, shape index: {}]
  %s3 = inlined_call_operand.hbm [shape: bf16[64,128], index: 3, kind: input, shape index: {}]
  %s4 = inlined_call_operand.hbm [shape: f32[1,128], index: 4, kind: input, shape index: {}]
  %s5 = inlined_call_operand.hbm [shape: bf16[128,64], index: 5, kind: input, shape index: {}]
  %s6 = inlined_call_operand.hbm [shape: f32[1,64], index: 6, kind: input, shape index: {}]
  %s7 = inlined_call_operand.hbm [shape: f32[14,64], index: 7, kind: output, shape index: {}]
  %s8 = sld [smem:[#allocation0]]
  $region66: #{net_forward.31} parent=0
    _
  %s10 = ssub.s32 1, %s8
  %s11 = scalar_select 0, %s10, %s8
  $region1: #{net_forward.31} parent=0
    #allocation2 [shape = 'u8[8192]{0}', space=vmem, size = 0x2000, scoped, tag = 'input window, operand 0, single buffered']
    #allocation3 [shape = 's32[1]{0}', space=sflag, size = 0x4, scoped, tag = 'scoped memory for net_forward.31']
    #allocation4 [shape = 's32[1]{0}', space=sflag, size = 0x4, scoped, tag = 'scoped memory for net_forward.31']
    #allocation5 [shape = 'u8[512]{0}', space=vmem, size = 0x400, scoped, tag = 'input window, operand 1, single buffered']
    #allocation6 [shape = 's32[1]{0}', space=sflag, size = 0x4, scoped, tag = 'scoped memory for net_forward.31']
    #allocation7 [shape = 'u8[512]{0}', space=vmem, size = 0x400, scoped, tag = 'input window, operand 2, single buffered']
    #allocation8 [shape = 'u8[16384]{0}', space=vmem, size = 0x4000, scoped, tag = 'input window, operand 3, single buffered']
    #allocation9 [shape = 's32[1]{0}', space=sflag, size = 0x4, scoped, tag = 'scoped memory for net_forward.31']
    #allocation10 [shape = 'u8[512]{0}', space=vmem, size = 0x400, scoped, tag = 'input window, operand 4, single buffered']
    #allocation11 [shape = 'u8[32768]{0}', space=vmem, size = 0x8000, scoped, tag = 'input window, operand 5, single buffered']
    #allocation12 [shape = 's32[1]{0}', space=sflag, size = 0x4, scoped, tag = 'scoped memory for net_forward.31']
    #allocation13 [shape = 'u8[512]{0}', space=vmem, size = 0x400, scoped, tag = 'input window, operand 6, single buffered']
    #allocation14 [shape = 'u8[8192]{0}', space=vmem, size = 0x2000, scoped, tag = 'output window, operand 0, single buffered']
    %12 = vsyncpa [#allocation3], 0
    %13 = vsyncpa [#allocation6], 0
    %14 = vsyncpa [#allocation9], 0
    %15 = vsyncpa [#allocation12], 0
    %16 = vsyncpa [#allocation4], 0
    // Predicated region
    $region2: #{net_forward.31} parent=1 // pred_check
      _
    $region3: #{net_forward.31} parent=1 // pred_check_branch
      %18 = sbr.rel (0) target = $region5
    $region4: #{net_forward.31} parent=1 // pred_region
      %s20 = ssub.s32 256, 256
      %21 = vsyncadd [#allocation3], %s20
      %s22 = sshll.u32 [#allocation2], 4
      %s23 = int_to_ptr.vmem [resolvable:$true] %s22
      %28 = dma.hbm_to_vmem [thread:$0]  %s0, 256, %s23, [#allocation3], 128, 128, 8
    $region5: #{net_forward.31} parent=1 // pred_fallthru
      _
    // Predicated region
    $region6: #{net_forward.31} parent=1 // pred_check
      _
    $region7: #{net_forward.31} parent=1 // pred_check_branch
      %30 = sbr.rel (0) target = $region9
    $region8: #{net_forward.31} parent=1 // pred_region
      %s32 = ssub.s32 16, 16
      %33 = vsyncadd [#allocation6], %s32
      %s35 = sshll.u32 [#allocation5], 4
      %s36 = int_to_ptr.vmem [resolvable:$true] %s35
      %38 = dma.hbm_to_vmem [thread:$0]  %s1, 16, %s36, [#allocation6]
    $region9: #{net_forward.31} parent=1 // pred_fallthru
      _
    // Predicated region
    $region10: #{net_forward.31} parent=1 // pred_check
      _
    $region11: #{net_forward.31} parent=1 // pred_check_branch
      %40 = sbr.rel (0) target = $region13
    $region12: #{net_forward.31} parent=1 // pred_region
      %s42 = ssub.s32 16, 16
      %43 = vsyncadd [#allocation6], %s42
      %s45 = sshll.u32 [#allocation7], 4
      %s46 = int_to_ptr.vmem [resolvable:$true] %s45
      %48 = dma.hbm_to_vmem [thread:$0]  %s2, 16, %s46, [#allocation6]
    $region13: #{net_forward.31} parent=1 // pred_fallthru
      _
    // Predicated region
    $region14: #{net_forward.31} parent=1 // pred_check
      _
    $region15: #{net_forward.31} parent=1 // pred_check_branch
      %50 = sbr.rel (0) target = $region17
    $region16: #{net_forward.31} parent=1 // pred_region
      %s52 = ssub.s32 512, 512
      %53 = vsyncadd [#allocation9], %s52
      %s54 = sshll.u32 [#allocation8], 4
      %s55 = int_to_ptr.vmem [resolvable:$true] %s54
      %60 = dma.hbm_to_vmem [thread:$0]  %s3, 512, %s55, [#allocation9], 64, 64, 4
    $region17: #{net_forward.31} parent=1 // pred_fallthru
      _
    // Predicated region
    $region18: #{net_forward.31} parent=1 // pred_check
      _
    $region19: #{net_forward.31} parent=1 // pred_check_branch
      %62 = sbr.rel (0) target = $region21
    $region20: #{net_forward.31} parent=1 // pred_region
      %s64 = ssub.s32 16, 16
      %65 = vsyncadd [#allocation9], %s64
      %s67 = sshll.u32 [#allocation10], 4
      %s68 = int_to_ptr.vmem [resolvable:$true] %s67
      %70 = dma.hbm_to_vmem [thread:$0]  %s4, 16, %s68, [#allocation9]
    $region21: #{net_forward.31} parent=1 // pred_fallthru
      _
    // Predicated region
    $region22: #{net_forward.31} parent=1 // pred_check
      _
    $region23: #{net_forward.31} parent=1 // pred_check_branch
      %72 = sbr.rel (0) target = $region25
    $region24: #{net_forward.31} parent=1 // pred_region
      %s74 = ssub.s32 1024, 1024
      %75 = vsyncadd [#allocation12], %s74
      %s76 = sshll.u32 [#allocation11], 4
      %s77 = int_to_ptr.vmem [resolvable:$true] %s76
      %82 = dma.hbm_to_vmem [thread:$0]  %s5, 1024, %s77, [#allocation12], 64, 64, 4
    $region25: #{net_forward.31} parent=1 // pred_fallthru
      _
    // Predicated region
    $region26: #{net_forward.31} parent=1 // pred_check
      _
    $region27: #{net_forward.31} parent=1 // pred_check_branch
      %84 = sbr.rel (0) target = $region29
    $region28: #{net_forward.31} parent=1 // pred_region
      %s86 = ssub.s32 16, 16
      %87 = vsyncadd [#allocation12], %s86
      %s89 = sshll.u32 [#allocation13], 4
      %s90 = int_to_ptr.vmem [resolvable:$true] %s89
      %92 = dma.hbm_to_vmem [thread:$0]  %s6, 16, %s90, [#allocation12]
    $region29: #{net_forward.31} parent=1 // pred_fallthru
      _
    // Predicated region
    $region30: #{net_forward.31} parent=1 // pred_check
      _
    $region31: #{net_forward.31} parent=1 // pred_check_branch
      %94 = sbr.rel (0) target = $region33
    $region32: #{net_forward.31} parent=1 // pred_region
      %95 = dma.done [#allocation3], 256
    $region33: #{net_forward.31} parent=1 // pred_fallthru
      _
    // Predicated region
    $region34: #{net_forward.31} parent=1 // pred_check
      _
    $region35: #{net_forward.31} parent=1 // pred_check_branch
      %97 = sbr.rel (0) target = $region37
    $region36: #{net_forward.31} parent=1 // pred_region
      %98 = dma.done [#allocation6], 16
    $region37: #{net_forward.31} parent=1 // pred_fallthru
      _
    // Predicated region
    $region38: #{net_forward.31} parent=1 // pred_check
      _
    $region39: #{net_forward.31} parent=1 // pred_check_branch
      %100 = sbr.rel (0) target = $region41
    $region40: #{net_forward.31} parent=1 // pred_region
      %101 = dma.done [#allocation6], 16
    $region41: #{net_forward.31} parent=1 // pred_fallthru
      _
    // Predicated region
    $region42: #{net_forward.31} parent=1 // pred_check
      _
    $region43: #{net_forward.31} parent=1 // pred_check_branch
      %103 = sbr.rel (0) target = $region45
    $region44: #{net_forward.31} parent=1 // pred_region
      %104 = dma.done [#allocation9], 512
    $region45: #{net_forward.31} parent=1 // pred_fallthru
      _
    // Predicated region
    $region46: #{net_forward.31} parent=1 // pred_check
      _
    $region47: #{net_forward.31} parent=1 // pred_check_branch
      %106 = sbr.rel (0) target = $region49
    $region48: #{net_forward.31} parent=1 // pred_region
      %107 = dma.done [#allocation9], 16
    $region49: #{net_forward.31} parent=1 // pred_fallthru
      _
    // Predicated region
    $region50: #{net_forward.31} parent=1 // pred_check
      _
    $region51: #{net_forward.31} parent=1 // pred_check_branch
      %109 = sbr.rel (0) target = $region53
    $region52: #{net_forward.31} parent=1 // pred_region
      %110 = dma.done [#allocation12], 1024
    $region53: #{net_forward.31} parent=1 // pred_fallthru
      _
    // Predicated region
    $region54: #{net_forward.31} parent=1 // pred_check
      _
    $region55: #{net_forward.31} parent=1 // pred_check_branch
      %112 = sbr.rel (0) target = $region57
    $region56: #{net_forward.31} parent=1 // pred_region
      %113 = dma.done [#allocation12], 16
    $region57: #{net_forward.31} parent=1 // pred_fallthru
      _
    %v115 = vld [vmem:[#allocation2] sm:$0xff]
    %v116 = vld [vmem:[#allocation2 + $0x8] sm:$0x3f]
    %vm117 = vcmask 523264
    %v118 = vsel %vm117, %v115, 0.0
    %119 = vadd.xlane.f32.xlu0 %v118
    %v120 = vpop.xlane.xlu0 %119
    %vm121 = vcmask 521216
    %v122 = vsel %vm121, %v116, 0.0
    %123 = vadd.xlane.f32.xlu0 %v122
    %v124 = vpop.xlane.xlu0 %123
    %v125 = vrcp.pop 64.0
    %v126 = vmul.f32 %v120, %v125
    %v127 = vmul.f32 %v124, %v125
    %v128 = vsub.f32 %v115, %v126
    %v129 = vsub.f32 %v116, %v127
    %v130 = vmul.f32 %v128, %v128
    %v131 = vmul.f32 %v129, %v129
    %v132 = vsel %vm117, %v130, 0.0
    %133 = vadd.xlane.f32.xlu0 %v132
    %v134 = vpop.xlane.xlu0 %133
    %v135 = vsel %vm121, %v131, 0.0
    %136 = vadd.xlane.f32.xlu0 %v135
    %v137 = vpop.xlane.xlu0 %136
    %v138 = vmul.f32 %v134, %v125
    %v139 = vmul.f32 %v137, %v125
    %v140 = vadd.f32 %v138, 1e-12
    %v141 = vadd.f32 %v139, 1e-12
    %v142 = vrsqrt.pop %v140
    %v143 = vrsqrt.pop %v141
    %v144 = vmul.f32 %v128, %v142
    %v145 = vmul.f32 %v129, %v143
    %v146 = vld [vmem:[#allocation5] sm:$0x1]
    %v148 = vlaneseq
    %v149 = vshrl.u32 %v148, 7
    %v150 = vsub.s32 0, %v149
    %v151 = vrot.slane %v146, %v150
    %v153 = vmul.f32 %v144, %v151
    %v154 = vmul.f32 %v145, %v151
    %v155 = vld [vmem:[#allocation7] sm:$0x1]
    %v157 = vlaneseq
    %v158 = vshrl.u32 %v157, 7
    %v159 = vsub.s32 0, %v158
    %v160 = vrot.slane %v155, %v159
    %v162 = vadd.f32 %v153, %v160
    %v163 = vadd.f32 %v154, %v160
    %v164 = vpack.c.bf16 %v163, %v162
    %v165 = vld [vmem:[#allocation8] sm:$0xf]
    %v166 = vld [vmem:[#allocation8 + $0x4] sm:$0xf]
    %v167 = vld [vmem:[#allocation8 + $0x8] sm:$0xf]
    %v168 = vld [vmem:[#allocation8 + $0xc] sm:$0xf]
    %v169 = vld [vmem:[#allocation8 + $0x10] sm:$0xf]
    %v170 = vld [vmem:[#allocation8 + $0x14] sm:$0xf]
    %v171 = vld [vmem:[#allocation8 + $0x18] sm:$0xf]
    %v172 = vld [vmem:[#allocation8 + $0x1c] sm:$0xf]
    %v173 = vld [vmem:[#allocation10] sm:$0x1]
    %v175 = vlaneseq
    %v176 = vshrl.u32 %v175, 7
    %v177 = vsub.s32 0, %v176
    %v178 = vrot.slane %v173, %v177
    %v188 = vunpack.c.l.b16 %v165
    %v189 = vunpack.c.l.b16 %v166
    %v190 = vunpack.c.l.b16 %v167
    %v191 = vunpack.c.l.b16 %v168
    %v192 = vunpack.c.l.b16 %v169
    %v193 = vunpack.c.l.b16 %v170
    %v194 = vunpack.c.l.b16 %v171
    %v195 = vunpack.c.l.b16 %v172
    %v196 = vpack.c.b16 %v189, %v188
    %v197 = vpack.c.b16 %v191, %v190
    %v198 = vpack.c.b16 %v193, %v192
    %v199 = vpack.c.b16 %v195, %v194
    %v205 = vsel %vm117, %v164, 0
    %207 = vmatprep.subr.bf16.mxu0 0
    %208 = vmatpush1.bf16.msra.mxu0 %v196
    %209 = vmatprep.subr.bf16.mxu0 0
    %210 = vmatpush1.bf16.msra.mxu0 %v197
    %211 = vmatprep.subr.bf16.mxu0 0
    %212 = vmatpush1.bf16.msra.mxu0 %v198
    %213 = vmatprep.subr.bf16.mxu0 0
    %214 = vmatpush1.bf16.msra.mxu0 %v199
    %215 = vmatprep.subr.bf16.mxu0 0
    %216 = vmatpush1.bf16.msra.mxu0 0
    %217 = vmatprep.subr.bf16.mxu0 0
    %218 = vmatpush1.bf16.msra.mxu0 0
    %219 = vmatprep.subr.bf16.mxu0 0
    %220 = vmatpush1.bf16.msra.mxu0 0
    %221 = vmatprep.subr.bf16.mxu0 0
    %222 = vmatpush1.bf16.msra.mxu0 0
    %223 = vmatprep.subr.bf16.mxu0 0
    %224 = vmatpush1.bf16.msra.mxu0 0
    %225 = vmatprep.subr.bf16.mxu0 0
    %226 = vmatpush1.bf16.msra.mxu0 0
    %227 = vmatprep.subr.bf16.mxu0 0
    %228 = vmatpush1.bf16.msra.mxu0 0
    %229 = vmatprep.subr.bf16.mxu0 0
    %230 = vmatpush1.bf16.msra.mxu0 0
    %231 = vmatprep.subr.bf16.mxu0 0
    %232 = vmatpush1.bf16.msra.mxu0 0
    %233 = vmatprep.subr.bf16.mxu0 0
    %234 = vmatpush1.bf16.msra.mxu0 0
    %235 = vmatprep.subr.bf16.mxu0 0
    %236 = vmatpush1.bf16.msra.mxu0 0
    %237 = vmatprep.subr.bf16.mxu0 0
    %238 = vmatpush1.bf16.msra.mxu0 0
    %239 = vmatprep.mubr.bf16.mxu0 0
    %240 = vmatmul.mubr.bf16.gmra.mrb[0].mxu0 %v205
    %v241 = vpop.f32.mrb[0].mxu0
    %v242 = vadd.f32 %v178, %v241
    %v243 = vpop.f32.mrb[0].mxu0
    %v244 = vpop.f32.mrb[0].mxu0
    %v245 = vadd.f32 %v178, %v244
    %v246 = vpop.f32.mrb[0].mxu0
    %247 = vdwg.mxu0
    %v248 = vxor.u32 %v242, 2147483648
    %v249 = vxor.u32 %v245, 2147483648
    %v250 = vmul.f32 %v248, 1.442695
    %v251 = vpow.pop %v250
    %v252 = vmul.f32 %v249, 1.442695
    %v253 = vpow.pop %v252
    %v254 = vadd.f32 %v251, 1.0
    %v255 = vadd.f32 %v253, 1.0
    %v256 = vrcp.pop %v254
    %v257 = vmul.f32 1.0, %v256
    %v258 = vrcp.pop %v255
    %v259 = vmul.f32 1.0, %v258
    %v260 = vmul.f32 %v242, %v257
    %v261 = vmul.f32 %v245, %v259
    %v262 = vpack.c.bf16 %v261, %v260
    %v263 = vld [vmem:[#allocation11] sm:$0xf]
    %v264 = vld [vmem:[#allocation11 + $0x4] sm:$0xf]
    %v265 = vld [vmem:[#allocation11 + $0x8] sm:$0xf]
    %v266 = vld [vmem:[#allocation11 + $0xc] sm:$0xf]
    %v267 = vld [vmem:[#allocation11 + $0x10] sm:$0xf]
    %v268 = vld [vmem:[#allocation11 + $0x14] sm:$0xf]
    %v269 = vld [vmem:[#allocation11 + $0x18] sm:$0xf]
    %v270 = vld [vmem:[#allocation11 + $0x1c] sm:$0xf]
    %v271 = vld [vmem:[#allocation11 + $0x20] sm:$0xf]
    %v272 = vld [vmem:[#allocation11 + $0x24] sm:$0xf]
    %v273 = vld [vmem:[#allocation11 + $0x28] sm:$0xf]
    %v274 = vld [vmem:[#allocation11 + $0x2c] sm:$0xf]
    %v275 = vld [vmem:[#allocation11 + $0x30] sm:$0xf]
    %v276 = vld [vmem:[#allocation11 + $0x34] sm:$0xf]
    %v277 = vld [vmem:[#allocation11 + $0x38] sm:$0xf]
    %v278 = vld [vmem:[#allocation11 + $0x3c] sm:$0xf]
    %v279 = vld [vmem:[#allocation13] sm:$0x1]
    %v281 = vlaneseq
    %v282 = vshrl.u32 %v281, 7
    %v283 = vsub.s32 0, %v282
    %v284 = vrot.slane %v279, %v283
    %v302 = vunpack.c.l.b16 %v263
    %v303 = vunpack.c.l.b16 %v264
    %v304 = vunpack.c.l.b16 %v265
    %v305 = vunpack.c.l.b16 %v266
    %v306 = vunpack.c.l.b16 %v267
    %v307 = vunpack.c.l.b16 %v268
    %v308 = vunpack.c.l.b16 %v269
    %v309 = vunpack.c.l.b16 %v270
    %v310 = vunpack.c.l.b16 %v271
    %v311 = vunpack.c.l.b16 %v272
    %v312 = vunpack.c.l.b16 %v273
    %v313 = vunpack.c.l.b16 %v274
    %v314 = vunpack.c.l.b16 %v275
    %v315 = vunpack.c.l.b16 %v276
    %v316 = vunpack.c.l.b16 %v277
    %v317 = vunpack.c.l.b16 %v278
    %v318 = vpack.c.b16 %v303, %v302
    %v319 = vpack.c.b16 %v305, %v304
    %v320 = vpack.c.b16 %v307, %v306
    %v321 = vpack.c.b16 %v309, %v308
    %v322 = vpack.c.b16 %v311, %v310
    %v323 = vpack.c.b16 %v313, %v312
    %v324 = vpack.c.b16 %v315, %v314
    %v325 = vpack.c.b16 %v317, %v316
    %334 = vmatprep.subr.bf16.mxu0 0
    %335 = vmatpush1.bf16.msra.mxu0 %v318
    %336 = vmatprep.subr.bf16.mxu0 0
    %337 = vmatpush1.bf16.msra.mxu0 %v319
    %338 = vmatprep.subr.bf16.mxu0 0
    %339 = vmatpush1.bf16.msra.mxu0 %v320
    %340 = vmatprep.subr.bf16.mxu0 0
    %341 = vmatpush1.bf16.msra.mxu0 %v321
    %342 = vmatprep.subr.bf16.mxu0 0
    %343 = vmatpush1.bf16.msra.mxu0 %v322
    %344 = vmatprep.subr.bf16.mxu0 0
    %345 = vmatpush1.bf16.msra.mxu0 %v323
    %346 = vmatprep.subr.bf16.mxu0 0
    %347 = vmatpush1.bf16.msra.mxu0 %v324
    %348 = vmatprep.subr.bf16.mxu0 0
    %349 = vmatpush1.bf16.msra.mxu0 %v325
    %350 = vmatprep.subr.bf16.mxu0 0
    %351 = vmatpush1.bf16.msra.mxu0 0
    %352 = vmatprep.subr.bf16.mxu0 0
    %353 = vmatpush1.bf16.msra.mxu0 0
    %354 = vmatprep.subr.bf16.mxu0 0
    %355 = vmatpush1.bf16.msra.mxu0 0
    %356 = vmatprep.subr.bf16.mxu0 0
    %357 = vmatpush1.bf16.msra.mxu0 0
    %358 = vmatprep.subr.bf16.mxu0 0
    %359 = vmatpush1.bf16.msra.mxu0 0
    %360 = vmatprep.subr.bf16.mxu0 0
    %361 = vmatpush1.bf16.msra.mxu0 0
    %362 = vmatprep.subr.bf16.mxu0 0
    %363 = vmatpush1.bf16.msra.mxu0 0
    %364 = vmatprep.subr.bf16.mxu0 0
    %365 = vmatpush1.bf16.msra.mxu0 0
    %366 = vmatprep.mubr.bf16.mxu0 0
    %367 = vmatmul.mubr.bf16.gmra.mrb[0].mxu0 %v262
    %v368 = vpop.f32.mrb[0].mxu0
    %v369 = vadd.f32 %v284, %v368
    %v370 = vpop.f32.mrb[0].mxu0
    %v371 = vpop.f32.mrb[0].mxu0
    %v372 = vadd.f32 %v284, %v371
    %v373 = vpop.f32.mrb[0].mxu0
    %374 = vdwg.mxu0
    %v375 = vmul.f32 %v369, 0.5
    %v376 = vmul.f32 %v372, 0.5
    %v377 = vadd.f32 %v115, %v375
    %v378 = vadd.f32 %v116, %v376
    %379 = vst.msk [vmem:[#allocation14] sm:$0xff] %vm117, %v377
    %380 = vst.msk [vmem:[#allocation14 + $0x8] sm:$0x3f] %vm121, %v378
    // Predicated region
    $region58: #{net_forward.31} parent=1 // pred_check
      _
    $region59: #{net_forward.31} parent=1 // pred_check_branch
      %382 = sbr.rel (0) target = $region61
    $region60: #{net_forward.31} parent=1 // pred_region
      %s384 = ssub.s32 256, 256
      %385 = vsyncadd [#allocation4], %s384
      %s386 = sshll.u32 [#allocation14], 4
      %s387 = int_to_ptr.vmem [resolvable:$true] %s386
      %392 = dma.vmem_to_hbm [thread:$0]  %s387, 256, %s7, [#allocation4], 128, 128, 8
    $region61: #{net_forward.31} parent=1 // pred_fallthru
      _
    // Predicated region
    $region62: #{net_forward.31} parent=1 // pred_check
      _
    $region63: #{net_forward.31} parent=1 // pred_check_branch
      %394 = sbr.rel (0) target = $region65
    $region64: #{net_forward.31} parent=1 // pred_region
      %395 = dma.done [#allocation4], 256
    $region65: #{net_forward.31} parent=1 // pred_fallthru
      _
    %396 = vsyncpa [#allocation3], 1
    %397 = vsyncpa [#allocation6], 1
    %398 = vsyncpa [#allocation9], 1
    %399 = vsyncpa [#allocation12], 1
    %400 = vsyncpa [#allocation4], 1

// kernel: net_forward.33
$region0: #{net_forward.33}
  #allocation0 [shape = 'u32[]', space=smem, size = 0x4, offset = 0x4, fixed_abs, tag = 'smem constant byte address 0x4 - core index']
  #allocation1 [shape = 'u32[144,128]{1,0:T(1,128)}', space=vmem, size = 0x12000, scoped, tag = 'internal scratch']
  %s0 = inlined_call_operand.hbm [shape: bf16[7,64], index: 0, kind: input, shape index: {}]
  %s1 = inlined_call_operand.hbm [shape: bf16[64,128], index: 1, kind: input, shape index: {}]
  %s2 = inlined_call_operand.hbm [shape: f32[7,128], index: 2, kind: output, shape index: {}]
  %s3 = sld [smem:[#allocation0]]
  $region26: #{net_forward.33} parent=0
    _
  %s5 = ssub.s32 1, %s3
  %s6 = scalar_select 0, %s5, %s3
  $region1: #{net_forward.33} parent=0
    #allocation2 [shape = 'u8[2048]{0}', space=vmem, size = 0x800, scoped, tag = 'input window, operand 0, single buffered']
    #allocation3 [shape = 's32[1]{0}', space=sflag, size = 0x4, scoped, tag = 'scoped memory for net_forward.33']
    #allocation4 [shape = 's32[1]{0}', space=sflag, size = 0x4, scoped, tag = 'scoped memory for net_forward.33']
    #allocation5 [shape = 'u8[16384]{0}', space=vmem, size = 0x4000, scoped, tag = 'input window, operand 1, single buffered']
    #allocation6 [shape = 's32[1]{0}', space=sflag, size = 0x4, scoped, tag = 'scoped memory for net_forward.33']
    #allocation7 [shape = 'u8[4096]{0}', space=vmem, size = 0x1000, scoped, tag = 'output window, operand 0, single buffered']
    %7 = vsyncpa [#allocation3], 0
    %8 = vsyncpa [#allocation6], 0
    %9 = vsyncpa [#allocation4], 0
    // Predicated region
    $region2: #{net_forward.33} parent=1 // pred_check
      _
    $region3: #{net_forward.33} parent=1 // pred_check_branch
      %11 = sbr.rel (0) target = $region5
    $region4: #{net_forward.33} parent=1 // pred_region
      %s13 = ssub.s32 64, 64
      %14 = vsyncadd [#allocation3], %s13
      %s16 = sshll.u32 [#allocation2], 4
      %s17 = int_to_ptr.vmem [resolvable:$true] %s16
      %19 = dma.hbm_to_vmem [thread:$0]  %s0, 64, %s17, [#allocation3]
    $region5: #{net_forward.33} parent=1 // pred_fallthru
      _
    // Predicated region
    $region6: #{net_forward.33} parent=1 // pred_check
      _
    $region7: #{net_forward.33} parent=1 // pred_check_branch
      %21 = sbr.rel (0) target = $region9
    $region8: #{net_forward.33} parent=1 // pred_region
      %s23 = ssub.s32 512, 512
      %24 = vsyncadd [#allocation6], %s23
      %s25 = sshll.u32 [#allocation5], 4
      %s26 = int_to_ptr.vmem [resolvable:$true] %s25
      %31 = dma.hbm_to_vmem [thread:$0]  %s1, 512, %s26, [#allocation6], 64, 64, 4
    $region9: #{net_forward.33} parent=1 // pred_fallthru
      _
    // Predicated region
    $region10: #{net_forward.33} parent=1 // pred_check
      _
    $region11: #{net_forward.33} parent=1 // pred_check_branch
      %33 = sbr.rel (0) target = $region13
    $region12: #{net_forward.33} parent=1 // pred_region
      %34 = dma.done [#allocation3], 64
    $region13: #{net_forward.33} parent=1 // pred_fallthru
      _
    // Predicated region
    $region14: #{net_forward.33} parent=1 // pred_check
      _
    $region15: #{net_forward.33} parent=1 // pred_check_branch
      %36 = sbr.rel (0) target = $region17
    $region16: #{net_forward.33} parent=1 // pred_region
      %37 = dma.done [#allocation6], 512
    $region17: #{net_forward.33} parent=1 // pred_fallthru
      _
    %v39 = vld [vmem:[#allocation2] sm:$0xf]
    %v40 = vld [vmem:[#allocation5] sm:$0xf]
    %v41 = vld [vmem:[#allocation5 + $0x4] sm:$0xf]
    %v42 = vld [vmem:[#allocation5 + $0x8] sm:$0xf]
    %v43 = vld [vmem:[#allocation5 + $0xc] sm:$0xf]
    %v44 = vld [vmem:[#allocation5 + $0x10] sm:$0xf]
    %v45 = vld [vmem:[#allocation5 + $0x14] sm:$0xf]
    %v46 = vld [vmem:[#allocation5 + $0x18] sm:$0xf]
    %v47 = vld [vmem:[#allocation5 + $0x1c] sm:$0xf]
    %v56 = vunpack.c.l.b16 %v40
    %v57 = vunpack.c.l.b16 %v41
    %v58 = vunpack.c.l.b16 %v42
    %v59 = vunpack.c.l.b16 %v43
    %v60 = vunpack.c.l.b16 %v44
    %v61 = vunpack.c.l.b16 %v45
    %v62 = vunpack.c.l.b16 %v46
    %v63 = vunpack.c.l.b16 %v47
    %v64 = vpack.c.b16 %v57, %v56
    %v65 = vpack.c.b16 %v59, %v58
    %v66 = vpack.c.b16 %v61, %v60
    %v67 = vpack.c.b16 %v63, %v62
    %vm72 = vcmask 523264
    %v74 = vsel %vm72, %v39, 0
    %76 = vmatprep.subr.bf16.mxu0 0
    %77 = vmatpush1.bf16.msra.mxu0 %v64
    %78 = vmatprep.subr.bf16.mxu0 0
    %79 = vmatpush1.bf16.msra.mxu0 %v65
    %80 = vmatprep.subr.bf16.mxu0 0
    %81 = vmatpush1.bf16.msra.mxu0 %v66
    %82 = vmatprep.subr.bf16.mxu0 0
    %83 = vmatpush1.bf16.msra.mxu0 %v67
    %84 = vmatprep.subr.bf16.mxu0 0
    %85 = vmatpush1.bf16.msra.mxu0 0
    %86 = vmatprep.subr.bf16.mxu0 0
    %87 = vmatpush1.bf16.msra.mxu0 0
    %88 = vmatprep.subr.bf16.mxu0 0
    %89 = vmatpush1.bf16.msra.mxu0 0
    %90 = vmatprep.subr.bf16.mxu0 0
    %91 = vmatpush1.bf16.msra.mxu0 0
    %92 = vmatprep.subr.bf16.mxu0 0
    %93 = vmatpush1.bf16.msra.mxu0 0
    %94 = vmatprep.subr.bf16.mxu0 0
    %95 = vmatpush1.bf16.msra.mxu0 0
    %96 = vmatprep.subr.bf16.mxu0 0
    %97 = vmatpush1.bf16.msra.mxu0 0
    %98 = vmatprep.subr.bf16.mxu0 0
    %99 = vmatpush1.bf16.msra.mxu0 0
    %100 = vmatprep.subr.bf16.mxu0 0
    %101 = vmatpush1.bf16.msra.mxu0 0
    %102 = vmatprep.subr.bf16.mxu0 0
    %103 = vmatpush1.bf16.msra.mxu0 0
    %104 = vmatprep.subr.bf16.mxu0 0
    %105 = vmatpush1.bf16.msra.mxu0 0
    %106 = vmatprep.subr.bf16.mxu0 0
    %107 = vmatpush1.bf16.msra.mxu0 0
    %108 = vmatprep.mubr.bf16.mxu0 0
    %109 = vmatmul.mubr.bf16.gmra.mrb[0].mxu0 %v74
    %v110 = vpop.f32.mrb[0].mxu0
    %v111 = vadd.f32 0.0, %v110
    %v112 = vpop.f32.mrb[0].mxu0
    %v113 = vpop.f32.mrb[0].mxu0
    %v114 = vpop.f32.mrb[0].mxu0
    %115 = vdwg.mxu0
    %116 = vst [vmem:[#allocation7] sm:$0x7f] %v111
    // Predicated region
    $region18: #{net_forward.33} parent=1 // pred_check
      _
    $region19: #{net_forward.33} parent=1 // pred_check_branch
      %118 = sbr.rel (0) target = $region21
    $region20: #{net_forward.33} parent=1 // pred_region
      %s120 = ssub.s32 128, 128
      %121 = vsyncadd [#allocation4], %s120
      %s123 = sshll.u32 [#allocation7], 4
      %s124 = int_to_ptr.vmem [resolvable:$true] %s123
      %126 = dma.vmem_to_hbm [thread:$0]  %s124, 128, %s2, [#allocation4]
    $region21: #{net_forward.33} parent=1 // pred_fallthru
      _
    // Predicated region
    $region22: #{net_forward.33} parent=1 // pred_check
      _
    $region23: #{net_forward.33} parent=1 // pred_check_branch
      %128 = sbr.rel (0) target = $region25
    $region24: #{net_forward.33} parent=1 // pred_region
      %129 = dma.done [#allocation4], 128
    $region25: #{net_forward.33} parent=1 // pred_fallthru
      _
    %130 = vsyncpa [#allocation3], 1
    %131 = vsyncpa [#allocation6], 1
    %132 = vsyncpa [#allocation4], 1

// kernel: net_forward.35
$region0: #{net_forward.35}
  #allocation0 [shape = 'u32[]', space=smem, size = 0x4, offset = 0x4, fixed_abs, tag = 'smem constant byte address 0x4 - core index']
  #allocation1 [shape = 'u32[144,128]{1,0:T(1,128)}', space=vmem, size = 0x12000, scoped, tag = 'internal scratch']
  %s0 = inlined_call_operand.hbm [shape: f32[14,64], index: 0, kind: input, shape index: {}]
  %s1 = inlined_call_operand.hbm [shape: f32[1,64], index: 1, kind: input, shape index: {}]
  %s2 = inlined_call_operand.hbm [shape: f32[1,64], index: 2, kind: input, shape index: {}]
  %s3 = inlined_call_operand.hbm [shape: bf16[64,64], index: 3, kind: input, shape index: {}]
  %s4 = inlined_call_operand.hbm [shape: f32[1,64], index: 4, kind: input, shape index: {}]
  %s5 = inlined_call_operand.hbm [shape: bf16[64,64], index: 5, kind: input, shape index: {}]
  %s6 = inlined_call_operand.hbm [shape: f32[1,64], index: 6, kind: input, shape index: {}]
  %s7 = inlined_call_operand.hbm [shape: f32[14,64], index: 7, kind: output, shape index: {}]
  %s8 = sld [smem:[#allocation0]]
  $region66: #{net_forward.35} parent=0
    _
  %s10 = ssub.s32 1, %s8
  %s11 = scalar_select 0, %s10, %s8
  $region1: #{net_forward.35} parent=0
    #allocation2 [shape = 'u8[8192]{0}', space=vmem, size = 0x2000, scoped, tag = 'input window, operand 0, single buffered']
    #allocation3 [shape = 's32[1]{0}', space=sflag, size = 0x4, scoped, tag = 'scoped memory for net_forward.35']
    #allocation4 [shape = 's32[1]{0}', space=sflag, size = 0x4, scoped, tag = 'scoped memory for net_forward.35']
    #allocation5 [shape = 'u8[512]{0}', space=vmem, size = 0x400, scoped, tag = 'input window, operand 1, single buffered']
    #allocation6 [shape = 's32[1]{0}', space=sflag, size = 0x4, scoped, tag = 'scoped memory for net_forward.35']
    #allocation7 [shape = 'u8[512]{0}', space=vmem, size = 0x400, scoped, tag = 'input window, operand 2, single buffered']
    #allocation8 [shape = 'u8[16384]{0}', space=vmem, size = 0x4000, scoped, tag = 'input window, operand 3, single buffered']
    #allocation9 [shape = 's32[1]{0}', space=sflag, size = 0x4, scoped, tag = 'scoped memory for net_forward.35']
    #allocation10 [shape = 'u8[512]{0}', space=vmem, size = 0x400, scoped, tag = 'input window, operand 4, single buffered']
    #allocation11 [shape = 'u8[16384]{0}', space=vmem, size = 0x4000, scoped, tag = 'input window, operand 5, single buffered']
    #allocation12 [shape = 's32[1]{0}', space=sflag, size = 0x4, scoped, tag = 'scoped memory for net_forward.35']
    #allocation13 [shape = 'u8[512]{0}', space=vmem, size = 0x400, scoped, tag = 'input window, operand 6, single buffered']
    #allocation14 [shape = 'u8[8192]{0}', space=vmem, size = 0x2000, scoped, tag = 'output window, operand 0, single buffered']
    %12 = vsyncpa [#allocation3], 0
    %13 = vsyncpa [#allocation6], 0
    %14 = vsyncpa [#allocation9], 0
    %15 = vsyncpa [#allocation12], 0
    %16 = vsyncpa [#allocation4], 0
    // Predicated region
    $region2: #{net_forward.35} parent=1 // pred_check
      _
    $region3: #{net_forward.35} parent=1 // pred_check_branch
      %18 = sbr.rel (0) target = $region5
    $region4: #{net_forward.35} parent=1 // pred_region
      %s20 = ssub.s32 256, 256
      %21 = vsyncadd [#allocation3], %s20
      %s22 = sshll.u32 [#allocation2], 4
      %s23 = int_to_ptr.vmem [resolvable:$true] %s22
      %28 = dma.hbm_to_vmem [thread:$0]  %s0, 256, %s23, [#allocation3], 128, 128, 8
    $region5: #{net_forward.35} parent=1 // pred_fallthru
      _
    // Predicated region
    $region6: #{net_forward.35} parent=1 // pred_check
      _
    $region7: #{net_forward.35} parent=1 // pred_check_branch
      %30 = sbr.rel (0) target = $region9
    $region8: #{net_forward.35} parent=1 // pred_region
      %s32 = ssub.s32 16, 16
      %33 = vsyncadd [#allocation6], %s32
      %s35 = sshll.u32 [#allocation5], 4
      %s36 = int_to_ptr.vmem [resolvable:$true] %s35
      %38 = dma.hbm_to_vmem [thread:$0]  %s1, 16, %s36, [#allocation6]
    $region9: #{net_forward.35} parent=1 // pred_fallthru
      _
    // Predicated region
    $region10: #{net_forward.35} parent=1 // pred_check
      _
    $region11: #{net_forward.35} parent=1 // pred_check_branch
      %40 = sbr.rel (0) target = $region13
    $region12: #{net_forward.35} parent=1 // pred_region
      %s42 = ssub.s32 16, 16
      %43 = vsyncadd [#allocation6], %s42
      %s45 = sshll.u32 [#allocation7], 4
      %s46 = int_to_ptr.vmem [resolvable:$true] %s45
      %48 = dma.hbm_to_vmem [thread:$0]  %s2, 16, %s46, [#allocation6]
    $region13: #{net_forward.35} parent=1 // pred_fallthru
      _
    // Predicated region
    $region14: #{net_forward.35} parent=1 // pred_check
      _
    $region15: #{net_forward.35} parent=1 // pred_check_branch
      %50 = sbr.rel (0) target = $region17
    $region16: #{net_forward.35} parent=1 // pred_region
      %s52 = ssub.s32 512, 512
      %53 = vsyncadd [#allocation9], %s52
      %s54 = sshll.u32 [#allocation8], 4
      %s55 = int_to_ptr.vmem [resolvable:$true] %s54
      %60 = dma.hbm_to_vmem [thread:$0]  %s3, 512, %s55, [#allocation9], 64, 64, 4
    $region17: #{net_forward.35} parent=1 // pred_fallthru
      _
    // Predicated region
    $region18: #{net_forward.35} parent=1 // pred_check
      _
    $region19: #{net_forward.35} parent=1 // pred_check_branch
      %62 = sbr.rel (0) target = $region21
    $region20: #{net_forward.35} parent=1 // pred_region
      %s64 = ssub.s32 16, 16
      %65 = vsyncadd [#allocation9], %s64
      %s67 = sshll.u32 [#allocation10], 4
      %s68 = int_to_ptr.vmem [resolvable:$true] %s67
      %70 = dma.hbm_to_vmem [thread:$0]  %s4, 16, %s68, [#allocation9]
    $region21: #{net_forward.35} parent=1 // pred_fallthru
      _
    // Predicated region
    $region22: #{net_forward.35} parent=1 // pred_check
      _
    $region23: #{net_forward.35} parent=1 // pred_check_branch
      %72 = sbr.rel (0) target = $region25
    $region24: #{net_forward.35} parent=1 // pred_region
      %s74 = ssub.s32 512, 512
      %75 = vsyncadd [#allocation12], %s74
      %s76 = sshll.u32 [#allocation11], 4
      %s77 = int_to_ptr.vmem [resolvable:$true] %s76
      %82 = dma.hbm_to_vmem [thread:$0]  %s5, 512, %s77, [#allocation12], 64, 64, 4
    $region25: #{net_forward.35} parent=1 // pred_fallthru
      _
    // Predicated region
    $region26: #{net_forward.35} parent=1 // pred_check
      _
    $region27: #{net_forward.35} parent=1 // pred_check_branch
      %84 = sbr.rel (0) target = $region29
    $region28: #{net_forward.35} parent=1 // pred_region
      %s86 = ssub.s32 16, 16
      %87 = vsyncadd [#allocation12], %s86
      %s89 = sshll.u32 [#allocation13], 4
      %s90 = int_to_ptr.vmem [resolvable:$true] %s89
      %92 = dma.hbm_to_vmem [thread:$0]  %s6, 16, %s90, [#allocation12]
    $region29: #{net_forward.35} parent=1 // pred_fallthru
      _
    // Predicated region
    $region30: #{net_forward.35} parent=1 // pred_check
      _
    $region31: #{net_forward.35} parent=1 // pred_check_branch
      %94 = sbr.rel (0) target = $region33
    $region32: #{net_forward.35} parent=1 // pred_region
      %95 = dma.done [#allocation3], 256
    $region33: #{net_forward.35} parent=1 // pred_fallthru
      _
    // Predicated region
    $region34: #{net_forward.35} parent=1 // pred_check
      _
    $region35: #{net_forward.35} parent=1 // pred_check_branch
      %97 = sbr.rel (0) target = $region37
    $region36: #{net_forward.35} parent=1 // pred_region
      %98 = dma.done [#allocation6], 16
    $region37: #{net_forward.35} parent=1 // pred_fallthru
      _
    // Predicated region
    $region38: #{net_forward.35} parent=1 // pred_check
      _
    $region39: #{net_forward.35} parent=1 // pred_check_branch
      %100 = sbr.rel (0) target = $region41
    $region40: #{net_forward.35} parent=1 // pred_region
      %101 = dma.done [#allocation6], 16
    $region41: #{net_forward.35} parent=1 // pred_fallthru
      _
    // Predicated region
    $region42: #{net_forward.35} parent=1 // pred_check
      _
    $region43: #{net_forward.35} parent=1 // pred_check_branch
      %103 = sbr.rel (0) target = $region45
    $region44: #{net_forward.35} parent=1 // pred_region
      %104 = dma.done [#allocation9], 512
    $region45: #{net_forward.35} parent=1 // pred_fallthru
      _
    // Predicated region
    $region46: #{net_forward.35} parent=1 // pred_check
      _
    $region47: #{net_forward.35} parent=1 // pred_check_branch
      %106 = sbr.rel (0) target = $region49
    $region48: #{net_forward.35} parent=1 // pred_region
      %107 = dma.done [#allocation9], 16
    $region49: #{net_forward.35} parent=1 // pred_fallthru
      _
    // Predicated region
    $region50: #{net_forward.35} parent=1 // pred_check
      _
    $region51: #{net_forward.35} parent=1 // pred_check_branch
      %109 = sbr.rel (0) target = $region53
    $region52: #{net_forward.35} parent=1 // pred_region
      %110 = dma.done [#allocation12], 512
    $region53: #{net_forward.35} parent=1 // pred_fallthru
      _
    // Predicated region
    $region54: #{net_forward.35} parent=1 // pred_check
      _
    $region55: #{net_forward.35} parent=1 // pred_check_branch
      %112 = sbr.rel (0) target = $region57
    $region56: #{net_forward.35} parent=1 // pred_region
      %113 = dma.done [#allocation12], 16
    $region57: #{net_forward.35} parent=1 // pred_fallthru
      _
    %v115 = vld [vmem:[#allocation2] sm:$0xff]
    %v116 = vld [vmem:[#allocation2 + $0x8] sm:$0x3f]
    %vm117 = vcmask 523264
    %v118 = vsel %vm117, %v115, 0.0
    %119 = vadd.xlane.f32.xlu0 %v118
    %v120 = vpop.xlane.xlu0 %119
    %vm121 = vcmask 521216
    %v122 = vsel %vm121, %v116, 0.0
    %123 = vadd.xlane.f32.xlu0 %v122
    %v124 = vpop.xlane.xlu0 %123
    %v125 = vrcp.pop 64.0
    %v126 = vmul.f32 %v120, %v125
    %v127 = vmul.f32 %v124, %v125
    %v128 = vsub.f32 %v115, %v126
    %v129 = vsub.f32 %v116, %v127
    %v130 = vmul.f32 %v128, %v128
    %v131 = vmul.f32 %v129, %v129
    %v132 = vsel %vm117, %v130, 0.0
    %133 = vadd.xlane.f32.xlu0 %v132
    %v134 = vpop.xlane.xlu0 %133
    %v135 = vsel %vm121, %v131, 0.0
    %136 = vadd.xlane.f32.xlu0 %v135
    %v137 = vpop.xlane.xlu0 %136
    %v138 = vmul.f32 %v134, %v125
    %v139 = vmul.f32 %v137, %v125
    %v140 = vadd.f32 %v138, 1e-12
    %v141 = vadd.f32 %v139, 1e-12
    %v142 = vrsqrt.pop %v140
    %v143 = vrsqrt.pop %v141
    %v144 = vmul.f32 %v128, %v142
    %v145 = vmul.f32 %v129, %v143
    %v146 = vld [vmem:[#allocation5] sm:$0x1]
    %v148 = vlaneseq
    %v149 = vshrl.u32 %v148, 7
    %v150 = vsub.s32 0, %v149
    %v151 = vrot.slane %v146, %v150
    %v153 = vmul.f32 %v144, %v151
    %v154 = vmul.f32 %v145, %v151
    %v155 = vld [vmem:[#allocation7] sm:$0x1]
    %v157 = vlaneseq
    %v158 = vshrl.u32 %v157, 7
    %v159 = vsub.s32 0, %v158
    %v160 = vrot.slane %v155, %v159
    %v162 = vadd.f32 %v153, %v160
    %v163 = vadd.f32 %v154, %v160
    %v164 = vpack.c.bf16 %v163, %v162
    %v165 = vld [vmem:[#allocation8] sm:$0xf]
    %v166 = vld [vmem:[#allocation8 + $0x4] sm:$0xf]
    %v167 = vld [vmem:[#allocation8 + $0x8] sm:$0xf]
    %v168 = vld [vmem:[#allocation8 + $0xc] sm:$0xf]
    %v169 = vld [vmem:[#allocation8 + $0x10] sm:$0xf]
    %v170 = vld [vmem:[#allocation8 + $0x14] sm:$0xf]
    %v171 = vld [vmem:[#allocation8 + $0x18] sm:$0xf]
    %v172 = vld [vmem:[#allocation8 + $0x1c] sm:$0xf]
    %v173 = vld [vmem:[#allocation10] sm:$0x1]
    %v175 = vlaneseq
    %v176 = vshrl.u32 %v175, 7
    %v177 = vsub.s32 0, %v176
    %v178 = vrot.slane %v173, %v177
    %v188 = vunpack.c.l.b16 %v165
    %v189 = vunpack.c.l.b16 %v166
    %v190 = vunpack.c.l.b16 %v167
    %v191 = vunpack.c.l.b16 %v168
    %v192 = vunpack.c.l.b16 %v169
    %v193 = vunpack.c.l.b16 %v170
    %v194 = vunpack.c.l.b16 %v171
    %v195 = vunpack.c.l.b16 %v172
    %v196 = vpack.c.b16 %v189, %v188
    %v197 = vpack.c.b16 %v191, %v190
    %v198 = vpack.c.b16 %v193, %v192
    %v199 = vpack.c.b16 %v195, %v194
    %v205 = vsel %vm117, %v164, 0
    %207 = vmatprep.subr.bf16.mxu0 0
    %208 = vmatpush1.bf16.msra.mxu0 %v196
    %209 = vmatprep.subr.bf16.mxu0 0
    %210 = vmatpush1.bf16.msra.mxu0 %v197
    %211 = vmatprep.subr.bf16.mxu0 0
    %212 = vmatpush1.bf16.msra.mxu0 %v198
    %213 = vmatprep.subr.bf16.mxu0 0
    %214 = vmatpush1.bf16.msra.mxu0 %v199
    %215 = vmatprep.subr.bf16.mxu0 0
    %216 = vmatpush1.bf16.msra.mxu0 0
    %217 = vmatprep.subr.bf16.mxu0 0
    %218 = vmatpush1.bf16.msra.mxu0 0
    %219 = vmatprep.subr.bf16.mxu0 0
    %220 = vmatpush1.bf16.msra.mxu0 0
    %221 = vmatprep.subr.bf16.mxu0 0
    %222 = vmatpush1.bf16.msra.mxu0 0
    %223 = vmatprep.subr.bf16.mxu0 0
    %224 = vmatpush1.bf16.msra.mxu0 0
    %225 = vmatprep.subr.bf16.mxu0 0
    %226 = vmatpush1.bf16.msra.mxu0 0
    %227 = vmatprep.subr.bf16.mxu0 0
    %228 = vmatpush1.bf16.msra.mxu0 0
    %229 = vmatprep.subr.bf16.mxu0 0
    %230 = vmatpush1.bf16.msra.mxu0 0
    %231 = vmatprep.subr.bf16.mxu0 0
    %232 = vmatpush1.bf16.msra.mxu0 0
    %233 = vmatprep.subr.bf16.mxu0 0
    %234 = vmatpush1.bf16.msra.mxu0 0
    %235 = vmatprep.subr.bf16.mxu0 0
    %236 = vmatpush1.bf16.msra.mxu0 0
    %237 = vmatprep.subr.bf16.mxu0 0
    %238 = vmatpush1.bf16.msra.mxu0 0
    %239 = vmatprep.mubr.bf16.mxu0 0
    %240 = vmatmul.mubr.bf16.gmra.mrb[0].mxu0 %v205
    %v241 = vpop.f32.mrb[0].mxu0
    %v242 = vadd.f32 %v178, %v241
    %v243 = vpop.f32.mrb[0].mxu0
    %v244 = vpop.f32.mrb[0].mxu0
    %v245 = vadd.f32 %v178, %v244
    %v246 = vpop.f32.mrb[0].mxu0
    %247 = vdwg.mxu0
    %v248 = vld [vmem:[#allocation11] sm:$0xf]
    %v249 = vld [vmem:[#allocation11 + $0x4] sm:$0xf]
    %v250 = vld [vmem:[#allocation11 + $0x8] sm:$0xf]
    %v251 = vld [vmem:[#allocation11 + $0xc] sm:$0xf]
    %v252 = vld [vmem:[#allocation11 + $0x10] sm:$0xf]
    %v253 = vld [vmem:[#allocation11 + $0x14] sm:$0xf]
    %v254 = vld [vmem:[#allocation11 + $0x18] sm:$0xf]
    %v255 = vld [vmem:[#allocation11 + $0x1c] sm:$0xf]
    %v256 = vld [vmem:[#allocation13] sm:$0x1]
    %v258 = vlaneseq
    %v259 = vshrl.u32 %v258, 7
    %v260 = vsub.s32 0, %v259
    %v261 = vrot.slane %v256, %v260
    %v271 = vunpack.c.l.b16 %v248
    %v272 = vunpack.c.l.b16 %v249
    %v273 = vunpack.c.l.b16 %v250
    %v274 = vunpack.c.l.b16 %v251
    %v275 = vunpack.c.l.b16 %v252
    %v276 = vunpack.c.l.b16 %v253
    %v277 = vunpack.c.l.b16 %v254
    %v278 = vunpack.c.l.b16 %v255
    %v279 = vpack.c.b16 %v272, %v271
    %v280 = vpack.c.b16 %v274, %v273
    %v281 = vpack.c.b16 %v276, %v275
    %v282 = vpack.c.b16 %v278, %v277
    %287 = vmatprep.subr.bf16.mxu0 0
    %288 = vmatpush1.bf16.msra.mxu0 %v279
    %289 = vmatprep.subr.bf16.mxu0 0
    %290 = vmatpush1.bf16.msra.mxu0 %v280
    %291 = vmatprep.subr.bf16.mxu0 0
    %292 = vmatpush1.bf16.msra.mxu0 %v281
    %293 = vmatprep.subr.bf16.mxu0 0
    %294 = vmatpush1.bf16.msra.mxu0 %v282
    %295 = vmatprep.subr.bf16.mxu0 0
    %296 = vmatpush1.bf16.msra.mxu0 0
    %297 = vmatprep.subr.bf16.mxu0 0
    %298 = vmatpush1.bf16.msra.mxu0 0
    %299 = vmatprep.subr.bf16.mxu0 0
    %300 = vmatpush1.bf16.msra.mxu0 0
    %301 = vmatprep.subr.bf16.mxu0 0
    %302 = vmatpush1.bf16.msra.mxu0 0
    %303 = vmatprep.subr.bf16.mxu0 0
    %304 = vmatpush1.bf16.msra.mxu0 0
    %305 = vmatprep.subr.bf16.mxu0 0
    %306 = vmatpush1.bf16.msra.mxu0 0
    %307 = vmatprep.subr.bf16.mxu0 0
    %308 = vmatpush1.bf16.msra.mxu0 0
    %309 = vmatprep.subr.bf16.mxu0 0
    %310 = vmatpush1.bf16.msra.mxu0 0
    %311 = vmatprep.subr.bf16.mxu0 0
    %312 = vmatpush1.bf16.msra.mxu0 0
    %313 = vmatprep.subr.bf16.mxu0 0
    %314 = vmatpush1.bf16.msra.mxu0 0
    %315 = vmatprep.subr.bf16.mxu0 0
    %316 = vmatpush1.bf16.msra.mxu0 0
    %317 = vmatprep.subr.bf16.mxu0 0
    %318 = vmatpush1.bf16.msra.mxu0 0
    %319 = vmatprep.mubr.bf16.mxu0 0
    %320 = vmatmul.mubr.bf16.gmra.mrb[0].mxu0 %v205
    %v321 = vpop.f32.mrb[0].mxu0
    %v322 = vadd.f32 %v261, %v321
    %v323 = vpop.f32.mrb[0].mxu0
    %v324 = vpop.f32.mrb[0].mxu0
    %v325 = vadd.f32 %v261, %v324
    %v326 = vpop.f32.mrb[0].mxu0
    %327 = vdwg.mxu0
    %v328 = vxor.u32 %v322, 2147483648
    %v329 = vxor.u32 %v325, 2147483648
    %v330 = vmul.f32 %v328, 1.442695
    %v331 = vpow.pop %v330
    %v332 = vmul.f32 %v329, 1.442695
    %v333 = vpow.pop %v332
    %v334 = vadd.f32 %v331, 1.0
    %v335 = vadd.f32 %v333, 1.0
    %v336 = vrcp.pop %v334
    %v337 = vmul.f32 1.0, %v336
    %v338 = vrcp.pop %v335
    %v339 = vmul.f32 1.0, %v338
    %v340 = vmul.f32 %v242, %v337
    %v341 = vmul.f32 %v245, %v339
    %342 = vst.msk [vmem:[#allocation14] sm:$0xff] %vm117, %v340
    %343 = vst.msk [vmem:[#allocation14 + $0x8] sm:$0x3f] %vm121, %v341
    // Predicated region
    $region58: #{net_forward.35} parent=1 // pred_check
      _
    $region59: #{net_forward.35} parent=1 // pred_check_branch
      %345 = sbr.rel (0) target = $region61
    $region60: #{net_forward.35} parent=1 // pred_region
      %s347 = ssub.s32 256, 256
      %348 = vsyncadd [#allocation4], %s347
      %s349 = sshll.u32 [#allocation14], 4
      %s350 = int_to_ptr.vmem [resolvable:$true] %s349
      %355 = dma.vmem_to_hbm [thread:$0]  %s350, 256, %s7, [#allocation4], 128, 128, 8
    $region61: #{net_forward.35} parent=1 // pred_fallthru
      _
    // Predicated region
    $region62: #{net_forward.35} parent=1 // pred_check
      _
    $region63: #{net_forward.35} parent=1 // pred_check_branch
      %357 = sbr.rel (0) target = $region65
    $region64: #{net_forward.35} parent=1 // pred_region
      %358 = dma.done [#allocation4], 256
    $region65: #{net_forward.35} parent=1 // pred_fallthru
      _
    %359 = vsyncpa [#allocation3], 1
    %360 = vsyncpa [#allocation6], 1
    %361 = vsyncpa [#allocation9], 1
    %362 = vsyncpa [#allocation12], 1
    %363 = vsyncpa [#allocation4], 1

// kernel: net_forward.36
$region0: #{net_forward.36}
  #allocation0 [shape = 'u32[]', space=smem, size = 0x4, offset = 0x4, fixed_abs, tag = 'smem constant byte address 0x4 - core index']
  #allocation1 [shape = 'u32[144,128]{1,0:T(1,128)}', space=vmem, size = 0x12000, scoped, tag = 'internal scratch']
  %s0 = inlined_call_operand.hbm [shape: bf16[2,21,64], index: 0, kind: input, shape index: {}]
  %s1 = inlined_call_operand.hbm [shape: f32[15,64], index: 1, kind: input, shape index: {}]
  %s2 = inlined_call_operand.hbm [shape: f32[1,64], index: 2, kind: input, shape index: {}]
  %s3 = inlined_call_operand.hbm [shape: f32[1,64], index: 3, kind: input, shape index: {}]
  %s4 = inlined_call_operand.hbm [shape: f32[1,64], index: 4, kind: input, shape index: {}]
  %s5 = inlined_call_operand.hbm [shape: bf16[64,64], index: 5, kind: input, shape index: {}]
  %s6 = inlined_call_operand.hbm [shape: f32[1,64], index: 6, kind: input, shape index: {}]
  %s7 = inlined_call_operand.hbm [shape: f32[2,7,64], index: 7, kind: input, shape index: {}]
  %s8 = inlined_call_operand.hbm [shape: f32[2,7,64], index: 8, kind: output, shape index: {}]
  %s9 = sld [smem:[#allocation0]]
  $region97: #{net_forward.36} parent=0
    _
  %s11 = ssub.s32 1, %s9
  %s12 = scalar_select 0, %s11, %s9
  $region1: #{net_forward.36} parent=0
    #allocation2 [shape = 'u8[12288]{0}', space=vmem, size = 0x3000, scoped, tag = 'input window, operand 0']
    #allocation3 [shape = 's32[2]{0}', space=sflag, size = 0x8, scoped, tag = 'scoped memory for net_forward.36']
    #allocation4 [shape = 's32[2]{0}', space=sflag, size = 0x8, scoped, tag = 'scoped memory for net_forward.36']
    #allocation5 [shape = 'u8[8192]{0}', space=vmem, size = 0x2000, scoped, tag = 'input window, operand 1, single buffered']
    #allocation6 [shape = 's32[1]{0}', space=sflag, size = 0x4, scoped, tag = 'scoped memory for net_forward.36']
    #allocation7 [shape = 'u8[512]{0}', space=vmem, size = 0x400, scoped, tag = 'input window, operand 2, single buffered']
    #allocation8 [shape = 'u8[512]{0}', space=vmem, size = 0x400, scoped, tag = 'input window, operand 3, single buffered']
    #allocation9 [shape = 's32[1]{0}', space=sflag, size = 0x4, scoped, tag = 'scoped memory for net_forward.36']
    #allocation10 [shape = 'u8[512]{0}', space=vmem, size = 0x400, scoped, tag = 'input window, operand 4, single buffered']
    #allocation11 [shape = 'u8[16384]{0}', space=vmem, size = 0x4000, scoped, tag = 'input window, operand 5, single buffered']
    #allocation12 [shape = 's32[1]{0}', space=sflag, size = 0x4, scoped, tag = 'scoped memory for net_forward.36']
    #allocation13 [shape = 'u8[512]{0}', space=vmem, size = 0x400, scoped, tag = 'input window, operand 6, single buffered']
    #allocation14 [shape = 'u8[8192]{0}', space=vmem, size = 0x2000, scoped, tag = 'input window, operand 7']
    #allocation15 [shape = 's32[2]{0}', space=sflag, size = 0x8, scoped, tag = 'scoped memory for net_forward.36']
    #allocation16 [shape = 'u8[8192]{0}', space=vmem, size = 0x2000, scoped, tag = 'output window, operand 0']
    %13 = vsyncpa [#allocation3], 0
    %s14 = scalar_lea.sflag [#allocation3], 1
    %15 = vsyncpa %s14, 0
    %16 = vsyncpa [#allocation6], 0
    %17 = vsyncpa [#allocation9], 0
    %18 = vsyncpa [#allocation12], 0
    %19 = vsyncpa [#allocation15], 0
    %s20 = scalar_lea.sflag [#allocation15], 1
    %21 = vsyncpa %s20, 0
    %22 = vsyncpa [#allocation4], 0
    %s23 = scalar_lea.sflag [#allocation4], 1
    %24 = vsyncpa %s23, 0
    loop: start=0, step=1, limit=4
    $region2: #{net_forward.36} parent=1 // loop_pre_header
      _
    $region3: #{net_forward.36} parent=1 // loop_header
      %s26 = sphi 0, %s30
      %p27 = scmp.ge.s32.totalorder %s26, 4
      %s36 = sphi 0, %s38
      %s39 = sphi 0, %s36
      %s40 = sphi 0, %s39
      %s56 = sphi 0, %s40
      %s60 = sphi 0, %s60
      %s62 = sphi 0, %s60
      %s63 = sphi 0, %s62
      %s77 = sphi 0, %s63
      %s81 = sphi 0, %s81
      %s83 = sphi 0, %s81
      %s84 = sphi 0, %s83
      %s98 = sphi 0, %s84
      %s102 = sphi 0, %s102
      %s104 = sphi 0, %s102
      %s105 = sphi 0, %s104
      %s119 = sphi 0, %s105
      %s123 = sphi 0, %s123
      %s125 = sphi 0, %s123
      %s126 = sphi 0, %s125
      %s140 = sphi 0, %s126
      %s144 = sphi 0, %s144
      %s146 = sphi 0, %s144
      %s147 = sphi 0, %s146
      %s161 = sphi 0, %s147
      %s165 = sphi 0, %s165
      %s167 = sphi 0, %s165
      %s168 = sphi 0, %s167
      %s182 = sphi 0, %s168
      %s188 = sphi 0, %s190
      %s191 = sphi 0, %s188
      %s192 = sphi 0, %s191
      %s208 = sphi 0, %s192
      %s214 = sphi 0, %s216
      %s217 = sphi 0, %s214
      %s218 = sphi 0, %s217
      %s234 = sphi 0, %s218
    $region4: #{net_forward.36} parent=1 // loop_header_branch
      %29 = sbr.rel (%p27) target = $region8
    $region5: #{net_forward.36} parent=1 // loop_body
      %s31 = ssub.s32 %s26, 1
      %s32 = ssub.s32 %s26, 2
      %s33 = sadd.s32 %s26, 1
      %s34 = ssub.s32 %s26, %s33
      %p35 = scmp.eq.s32.totalorder %s34, 0
      %s37 = sadd.s32 %s36, 1
      %s38 = scalar_select %p35, %s36, %s37
      %p41 = pneg %p35
      %p42 = scmp.eq.s32.totalorder %s26, 1
      %p43 = por %p41, %p42
      %p44 = scmp.ne.s32.totalorder %s36, %s39
      %p45 = scmp.eq.s32.totalorder %s26, 0
      %p46 = por %p44, %p45
      %p47 = scmp.ne.s32.totalorder %s36, %s39
      %p48 = scmp.eq.s32.totalorder %s31, 1
      %p49 = por %p47, %p48
      %p50 = scmp.ne.s32.totalorder %s39, %s40
      %p51 = scmp.eq.s32.totalorder %s31, 0
      %p52 = por %p50, %p51
      %p53 = scmp.ne.s32.totalorder %s39, %s40
      %p54 = scmp.eq.s32.totalorder %s32, 1
      %p55 = por %p53, %p54
      %p57 = scmp.ne.s32.totalorder %s40, %s56
      %p58 = scmp.eq.s32.totalorder %s32, 0
      %p59 = por %p57, %p58
      %s61 = sadd.s32 %s60, 1
      %p64 = scmp.eq.s32.totalorder %s26, 1
      %p65 = scmp.ne.s32.totalorder %s60, %s62
      %p66 = scmp.eq.s32.totalorder %s26, 0
      %p67 = por %p65, %p66
      %p68 = scmp.ne.s32.totalorder %s60, %s62
      %p69 = scmp.eq.s32.totalorder %s31, 1
      %p70 = por %p68, %p69
      %p71 = scmp.ne.s32.totalorder %s62, %s63
      %p72 = scmp.eq.s32.totalorder %s31, 0
      %p73 = por %p71, %p72
      %p74 = scmp.ne.s32.totalorder %s62, %s63
      %p75 = scmp.eq.s32.totalorder %s32, 1
      %p76 = por %p74, %p75
      %p78 = scmp.ne.s32.totalorder %s63, %s77
      %p79 = scmp.eq.s32.totalorder %s32, 0
      %p80 = por %p78, %p79
      %s82 = sadd.s32 %s81, 1
      %p85 = scmp.eq.s32.totalorder %s26, 1
      %p86 = scmp.ne.s32.totalorder %s81, %s83
      %p87 = scmp.eq.s32.totalorder %s26, 0
      %p88 = por %p86, %p87
      %p89 = scmp.ne.s32.totalorder %s81, %s83
      %p90 = scmp.eq.s32.totalorder %s31, 1
      %p91 = por %p89, %p90
      %p92 = scmp.ne.s32.totalorder %s83, %s84
      %p93 = scmp.eq.s32.totalorder %s31, 0
      %p94 = por %p92, %p93
      %p95 = scmp.ne.s32.totalorder %s83, %s84
      %p96 = scmp.eq.s32.totalorder %s32, 1
      %p97 = por %p95, %p96
      %p99 = scmp.ne.s32.totalorder %s84, %s98
      %p100 = scmp.eq.s32.totalorder %s32, 0
      %p101 = por %p99, %p100
      %s103 = sadd.s32 %s102, 1
      %p106 = scmp.eq.s32.totalorder %s26, 1
      %p107 = scmp.ne.s32.totalorder %s102, %s104
      %p108 = scmp.eq.s32.totalorder %s26, 0
      %p109 = por %p107, %p108
      %p110 = scmp.ne.s32.totalorder %s102, %s104
      %p111 = scmp.eq.s32.totalorder %s31, 1
      %p112 = por %p110, %p111
      %p113 = scmp.ne.s32.totalorder %s104, %s105
      %p114 = scmp.eq.s32.totalorder %s31, 0
      %p115 = por %p113, %p114
      %p116 = scmp.ne.s32.totalorder %s104, %s105
      %p117 = scmp.eq.s32.totalorder %s32, 1
      %p118 = por %p116, %p117
      %p120 = scmp.ne.s32.totalorder %s105, %s119
      %p121 = scmp.eq.s32.totalorder %s32, 0
      %p122 = por %p120, %p121
      %s124 = sadd.s32 %s123, 1
      %p127 = scmp.eq.s32.totalorder %s26, 1
      %p128 = scmp.ne.s32.totalorder %s123, %s125
      %p129 = scmp.eq.s32.totalorder %s26, 0
      %p130 = por %p128, %p129
      %p131 = scmp.ne.s32.totalorder %s123, %s125
      %p132 = scmp.eq.s32.totalorder %s31, 1
      %p133 = por %p131, %p132
      %p134 = scmp.ne.s32.totalorder %s125, %s126
      %p135 = scmp.eq.s32.totalorder %s31, 0
      %p136 = por %p134, %p135
      %p137 = scmp.ne.s32.totalorder %s125, %s126
      %p138 = scmp.eq.s32.totalorder %s32, 1
      %p139 = por %p137, %p138
      %p141 = scmp.ne.s32.totalorder %s126, %s140
      %p142 = scmp.eq.s32.totalorder %s32, 0
      %p143 = por %p141, %p142
      %s145 = sadd.s32 %s144, 1
      %p148 = scmp.eq.s32.totalorder %s26, 1
      %p149 = scmp.ne.s32.totalorder %s144, %s146
      %p150 = scmp.eq.s32.totalorder %s26, 0
      %p151 = por %p149, %p150
      %p152 = scmp.ne.s32.totalorder %s144, %s146
      %p153 = scmp.eq.s32.totalorder %s31, 1
      %p154 = por %p152, %p153
      %p155 = scmp.ne.s32.totalorder %s146, %s147
      %p156 = scmp.eq.s32.totalorder %s31, 0
      %p157 = por %p155, %p156
      %p158 = scmp.ne.s32.totalorder %s146, %s147
      %p159 = scmp.eq.s32.totalorder %s32, 1
      %p160 = por %p158, %p159
      %p162 = scmp.ne.s32.totalorder %s147, %s161
      %p163 = scmp.eq.s32.totalorder %s32, 0
      %p164 = por %p162, %p163
      %s166 = sadd.s32 %s165, 1
      %p169 = scmp.eq.s32.totalorder %s26, 1
      %p170 = scmp.ne.s32.totalorder %s165, %s167
      %p171 = scmp.eq.s32.totalorder %s26, 0
      %p172 = por %p170, %p171
      %p173 = scmp.ne.s32.totalorder %s165, %s167
      %p174 = scmp.eq.s32.totalorder %s31, 1
      %p175 = por %p173, %p174
      %p176 = scmp.ne.s32.totalorder %s167, %s168
      %p177 = scmp.eq.s32.totalorder %s31, 0
      %p178 = por %p176, %p177
      %p179 = scmp.ne.s32.totalorder %s167, %s168
      %p180 = scmp.eq.s32.totalorder %s32, 1
      %p181 = por %p179, %p180
      %p183 = scmp.ne.s32.totalorder %s168, %s182
      %p184 = scmp.eq.s32.totalorder %s32, 0
      %p185 = por %p183, %p184
      %s186 = ssub.s32 %s26, %s33
      %p187 = scmp.eq.s32.totalorder %s186, 0
      %s189 = sadd.s32 %s188, 1
      %s190 = scalar_select %p187, %s188, %s189
      %p193 = pneg %p187
      %p194 = scmp.eq.s32.totalorder %s26, 1
      %p195 = por %p193, %p194
      %p196 = scmp.ne.s32.totalorder %s188, %s191
      %p197 = scmp.eq.s32.totalorder %s26, 0
      %p198 = por %p196, %p197
      %p199 = scmp.ne.s32.totalorder %s188, %s191
      %p200 = scmp.eq.s32.totalorder %s31, 1
      %p201 = por %p199, %p200
      %p202 = scmp.ne.s32.totalorder %s191, %s192
      %p203 = scmp.eq.s32.totalorder %s31, 0
      %p204 = por %p202, %p203
      %p205 = scmp.ne.s32.totalorder %s191, %s192
      %p206 = scmp.eq.s32.totalorder %s32, 1
      %p207 = por %p205, %p206
      %p209 = scmp.ne.s32.totalorder %s192, %s208
      %p210 = scmp.eq.s32.totalorder %s32, 0
      %p211 = por %p209, %p210
      %s212 = ssub.s32 %s26, %s33
      %p213 = scmp.eq.s32.totalorder %s212, 0
      %s215 = sadd.s32 %s214, 1
      %s216 = scalar_select %p213, %s214, %s215
      %p219 = pneg %p213
      %p220 = scmp.eq.s32.totalorder %s26, 1
      %p221 = por %p219, %p220
      %p222 = scmp.ne.s32.totalorder %s214, %s217
      %p223 = scmp.eq.s32.totalorder %s26, 0
      %p224 = por %p222, %p223
      %p225 = scmp.ne.s32.totalorder %s214, %s217
      %p226 = scmp.eq.s32.totalorder %s31, 1
      %p227 = por %p225, %p226
      %p228 = scmp.ne.s32.totalorder %s217, %s218
      %p229 = scmp.eq.s32.totalorder %s31, 0
      %p230 = por %p228, %p229
      %p231 = scmp.ne.s32.totalorder %s217, %s218
      %p232 = scmp.eq.s32.totalorder %s32, 1
      %p233 = por %p231, %p232
      %p235 = scmp.ne.s32.totalorder %s218, %s234
      %p236 = scmp.eq.s32.totalorder %s32, 0
      %p237 = por %p235, %p236
      %p238 = scmp.le.s32.totalorder 1, %s26
      %p239 = scmp.lt.s32.totalorder %s26, 3
      %p240 = pnand %p238, %p239
      %p241 = pneg %p240
      // Predicated region
      $region9: #{net_forward.36} parent=5 // pred_check
        _
      $region10: #{net_forward.36} parent=5 // pred_check_branch
        %243 = sbr.rel (%p240) target = $region12
      $region11: #{net_forward.36} parent=5 // pred_region
        %s244 = ssub.s32 %s26, 1
        // Predicated region
        $region13: #{net_forward.36} parent=11 // pred_check
          %p245 = pneg %p73
        $region14: #{net_forward.36} parent=11 // pred_check_branch
          %247 = sbr.rel (%p245) target = $region16
        $region15: #{net_forward.36} parent=11 // pred_region
          %s249 = ssub.s32 256, 256
          %250 = vsyncadd [#allocation6], %s249
          %s251 = sshll.u32 [#allocation5], 4
          %s252 = int_to_ptr.vmem [resolvable:$true] %s251
          %257 = dma.hbm_to_vmem [thread:$0]  %s1, 256, %s252, [#allocation6], 128, 128, 8
        $region16: #{net_forward.36} parent=11 // pred_fallthru
          _
        // Predicated region
        $region17: #{net_forward.36} parent=11 // pred_check
          %p258 = pneg %p94
        $region18: #{net_forward.36} parent=11 // pred_check_branch
          %260 = sbr.rel (%p258) target = $region20
        $region19: #{net_forward.36} parent=11 // pred_region
          %s262 = ssub.s32 16, 16
          %263 = vsyncadd [#allocation6], %s262
          %s265 = sshll.u32 [#allocation7], 4
          %s266 = int_to_ptr.vmem [resolvable:$true] %s265
          %268 = dma.hbm_to_vmem [thread:$0]  %s2, 16, %s266, [#allocation6]
        $region20: #{net_forward.36} parent=11 // pred_fallthru
          _
        // Predicated region
        $region21: #{net_forward.36} parent=11 // pred_check
          %p269 = pneg %p115
        $region22: #{net_forward.36} parent=11 // pred_check_branch
          %271 = sbr.rel (%p269) target = $region24
        $region23: #{net_forward.36} parent=11 // pred_region
          %s273 = ssub.s32 16, 16
          %274 = vsyncadd [#allocation9], %s273
          %s276 = sshll.u32 [#allocation8], 4
          %s277 = int_to_ptr.vmem [resolvable:$true] %s276
          %279 = dma.hbm_to_vmem [thread:$0]  %s3, 16, %s277, [#allocation9]
        $region24: #{net_forward.36} parent=11 // pred_fallthru
          _
        // Predicated region
        $region25: #{net_forward.36} parent=11 // pred_check
          %p280 = pneg %p136
        $region26: #{net_forward.36} parent=11 // pred_check_branch
          %282 = sbr.rel (%p280) target = $region28
        $region27: #{net_forward.36} parent=11 // pred_region
          %s284 = ssub.s32 16, 16
          %285 = vsyncadd [#allocation9], %s284
          %s287 = sshll.u32 [#allocation10], 4
          %s288 = int_to_ptr.vmem [resolvable:$true] %s287
          %290 = dma.hbm_to_vmem [thread:$0]  %s4, 16, %s288, [#allocation9]
        $region28: #{net_forward.36} parent=11 // pred_fallthru
          _
        // Predicated region
        $region29: #{net_forward.36} parent=11 // pred_check
          %p291 = pneg %p157
        $region30: #{net_forward.36} parent=11 // pred_check_branch
          %293 = sbr.rel (%p291) target = $region32
        $region31: #{net_forward.36} parent=11 // pred_region
          %s295 = ssub.s32 512, 512
          %296 = vsyncadd [#allocation12], %s295
          %s297 = sshll.u32 [#allocation11], 4
          %s298 = int_to_ptr.vmem [resolvable:$true] %s297
          %303 = dma.hbm_to_vmem [thread:$0]  %s5, 512, %s298, [#allocation12], 64, 64, 4
        $region32: #{net_forward.36} parent=11 // pred_fallthru
          _
        // Predicated region
        $region33: #{net_forward.36} parent=11 // pred_check
          %p304 = pneg %p178
        $region34: #{net_forward.36} parent=11 // pred_check_branch
          %306 = sbr.rel (%p304) target = $region36
        $region35: #{net_forward.36} parent=11 // pred_region
          %s308 = ssub.s32 16, 16
          %309 = vsyncadd [#allocation12], %s308
          %s311 = sshll.u32 [#allocation13], 4
          %s312 = int_to_ptr.vmem [resolvable:$true] %s311
          %314 = dma.hbm_to_vmem [thread:$0]  %s6, 16, %s312, [#allocation12]
        $region36: #{net_forward.36} parent=11 // pred_fallthru
          _
      $region12: #{net_forward.36} parent=5 // pred_fallthru
        _
      %p315 = scmp.lt.s32.totalorder %s26, 2
      // Predicated region
      $region37: #{net_forward.36} parent=5 // pred_check
        %p316 = pneg %p315
      $region38: #{net_forward.36} parent=5 // pred_check_branch
        %318 = sbr.rel (%p316) target = $region40
      $region39: #{net_forward.36} parent=5 // pred_region
        // Predicated region
        $region41: #{net_forward.36} parent=39 // pred_check
          %p319 = pneg %p46
        $region42: #{net_forward.36} parent=39 // pred_check_branch
          %321 = sbr.rel (%p319) target = $region44
        $region43: #{net_forward.36} parent=39 // pred_region
          %s322 = sand.u32 %s36, 1
          %s323 = scalar_lea.sflag [#allocation3], %s322
          %s324 = sand.u32 %s36, 1
          %s325 = smul.addr %s324, 12
          %s326 = scalar_lea.vmem [#allocation2], %s325
          %s328 = ssub.s32 192, 192
          %329 = vsyncadd %s323, %s328
          %s330 = smul.addr %s26, 3
          %s331 = smul.addr %s330, 64
          %s332 = scalar_lea.hbm %s0, %s331
          %s333 = sshll.u32 %s326, 4
          %s334 = int_to_ptr.vmem [resolvable:$true] %s333
          %339 = dma.hbm_to_vmem [thread:$0]  %s332, 192, %s334, %s323, 64, 64, 4
        $region44: #{net_forward.36} parent=39 // pred_fallthru
          _
        // Predicated region
        $region45: #{net_forward.36} parent=39 // pred_check
          %p340 = pneg %p198
        $region46: #{net_forward.36} parent=39 // pred_check_branch
          %342 = sbr.rel (%p340) target = $region48
        $region47: #{net_forward.36} parent=39 // pred_region
          %s343 = sand.u32 %s188, 1
          %s344 = scalar_lea.sflag [#allocation15], %s343
          %s345 = sand.u32 %s188, 1
          %s346 = smul.addr %s345, 8
          %s347 = scalar_lea.vmem [#allocation14], %s346
          %s349 = ssub.s32 128, 128
          %350 = vsyncadd %s344, %s349
          %s351 = smul.addr %s26, 128
          %s352 = scalar_lea.hbm %s7, %s351
          %s354 = sshll.u32 %s347, 4
          %s355 = int_to_ptr.vmem [resolvable:$true] %s354
          %357 = dma.hbm_to_vmem [thread:$0]  %s352, 128, %s355, %s344
        $region48: #{net_forward.36} parent=39 // pred_fallthru
          _
      $region40: #{net_forward.36} parent=5 // pred_fallthru
        _
      %p358 = scmp.le.s32.totalorder 1, %s26
      %p359 = scmp.lt.s32.totalorder %s26, 3
      %p360 = pnand %p358, %p359
      %p361 = pneg %p360
      // Predicated region
      $region49: #{net_forward.36} parent=5 // pred_check
        _
      $region50: #{net_forward.36} parent=5 // pred_check_branch
        %363 = sbr.rel (%p360) target = $region52
      $region51: #{net_forward.36} parent=5 // pred_region
        %s364 = ssub.s32 %s26, 1
        %s365 = sand.u32 %s39, 1
        %s366 = scalar_lea.sflag [#allocation3], %s365
        %s367 = sand.u32 %s39, 1
        %s368 = smul.addr %s367, 12
        %s369 = scalar_lea.vmem [#allocation2], %s368
        // Predicated region
        $region53: #{net_forward.36} parent=51 // pred_check
          %p370 = pneg %p52
        $region54: #{net_forward.36} parent=51 // pred_check_branch
          %372 = sbr.rel (%p370) target = $region56
        $region55: #{net_forward.36} parent=51 // pred_region
          %373 = dma.done %s366, 192
        $region56: #{net_forward.36} parent=51 // pred_fallthru
          _
        // Predicated region
        $region57: #{net_forward.36} parent=51 // pred_check
          %p374 = pneg %p73
        $region58: #{net_forward.36} parent=51 // pred_check_branch
          %376 = sbr.rel (%p374) target = $region60
        $region59: #{net_forward.36} parent=51 // pred_region
          %377 = dma.done [#allocation6], 256
        $region60: #{net_forward.36} parent=51 // pred_fallthru
          _
        // Predicated region
        $region61: #{net_forward.36} parent=51 // pred_check
          %p378 = pneg %p94
        $region62: #{net_forward.36} parent=51 // pred_check_branch
          %380 = sbr.rel (%p378) target = $region64
        $region63: #{net_forward.36} parent=51 // pred_region
          %381 = dma.done [#allocation6], 16
        $region64: #{net_forward.36} parent=51 // pred_fallthru
          _
        // Predicated region
        $region65: #{net_forward.36} parent=51 // pred_check
          %p382 = pneg %p115
        $region66: #{net_forward.36} parent=51 // pred_check_branch
          %384 = sbr.rel (%p382) target = $region68
        $region67: #{net_forward.36} parent=51 // pred_region
          %385 = dma.done [#allocation9], 16
        $region68: #{net_forward.36} parent=51 // pred_fallthru
          _
        // Predicated region
        $region69: #{net_forward.36} parent=51 // pred_check
          %p386 = pneg %p136
        $region70: #{net_forward.36} parent=51 // pred_check_branch
          %388 = sbr.rel (%p386) target = $region72
        $region71: #{net_forward.36} parent=51 // pred_region
          %389 = dma.done [#allocation9], 16
        $region72: #{net_forward.36} parent=51 // pred_fallthru
          _
        // Predicated region
        $region73: #{net_forward.36} parent=51 // pred_check
          %p390 = pneg %p157
        $region74: #{net_forward.36} parent=51 // pred_check_branch
          %392 = sbr.rel (%p390) target = $region76
        $region75: #{net_forward.36} parent=51 // pred_region
          %393 = dma.done [#allocation12], 512
        $region76: #{net_forward.36} parent=51 // pred_fallthru
          _
        // Predicated region
        $region77: #{net_forward.36} parent=51 // pred_check
          %p394 = pneg %p178
        $region78: #{net_forward.36} parent=51 // pred_check_branch
          %396 = sbr.rel (%p394) target = $region80
        $region79: #{net_forward.36} parent=51 // pred_region
          %397 = dma.done [#allocation12], 16
        $region80: #{net_forward.36} parent=51 // pred_fallthru
          _
        %s398 = sand.u32 %s191, 1
        %s399 = scalar_lea.sflag [#allocation15], %s398
        %s400 = sand.u32 %s191, 1
        %s401 = smul.addr %s400, 8
        %s402 = scalar_lea.vmem [#allocation14], %s401
        // Predicated region
        $region81: #{net_forward.36} parent=51 // pred_check
          %p403 = pneg %p204
        $region82: #{net_forward.36} parent=51 // pred_check_branch
          %405 = sbr.rel (%p403) target = $region84
        $region83: #{net_forward.36} parent=51 // pred_region
          %406 = dma.done %s399, 128
        $region84: #{net_forward.36} parent=51 // pred_fallthru
          _
        %s407 = sand.u32 %s39, 1
        %s408 = scalar_lea.sflag [#allocation3], %s407
        %s409 = sand.u32 %s39, 1
        %s410 = smul.addr %s409, 12
        %s411 = scalar_lea.vmem [#allocation2], %s410
        %p412 = pneg %p52
        %p413 = pneg %p49
        %p414 = pneg %p73
        %p415 = pneg %p70
        %p416 = pneg %p94
        %p417 = pneg %p91
        %p418 = pneg %p115
        %p419 = pneg %p112
        %p420 = pneg %p136
        %p421 = pneg %p133
        %p422 = pneg %p157
        %p423 = pneg %p154
        %p424 = pneg %p178
        %p425 = pneg %p175
        %s426 = sand.u32 %s191, 1
        %s427 = scalar_lea.sflag [#allocation15], %s426
        %s428 = sand.u32 %s191, 1
        %s429 = smul.addr %s428, 8
        %s430 = scalar_lea.vmem [#allocation14], %s429
        %p431 = pneg %p204
        %p432 = pneg %p201
        %p433 = pneg %p230
        %p434 = pneg %p227
        %s435 = sand.u32 %s217, 1
        %s436 = scalar_lea.sflag [#allocation4], %s435
        %s437 = sand.u32 %s217, 1
        %s438 = smul.addr %s437, 8
        %s439 = scalar_lea.vmem [#allocation16], %s438
        %v441 = vld [vmem:[%s369] sm:$0xf]
        %v442 = vld [vmem:[%s369 + $0x4] sm:$0xf]
        %v443 = vld [vmem:[%s369 + $0x8] sm:$0x7]
        %v444 = vunpack.c.l.bf16 %v441
        %v445 = vunpack.c.l.bf16 %v442
        %v446 = vunpack.c.l.bf16 %v443
        %v447 = vld [vmem:[#allocation5] sm:$0x1]
        %v448 = vlaneseq
        %v449 = vshrl.u32 %v448, 7
        %v450 = vsub.s32 0, %v449
        %v451 = vrot.slane %v447, %v450
        %v452 = vmul.f32 %v444, %v451
        %v453 = vld [vmem:[#allocation5 + $0x1] sm:$0x1]
        %v454 = vlaneseq
        %v455 = vshrl.u32 %v454, 7
        %v456 = vsub.s32 0, %v455
        %v457 = vrot.slane %v453, %v456
        %v458 = vmul.f32 %v444, %v457
        %v460 = vrot.slane %v458, 1
        %v462 = vadd.f32 %v452, %v460
        %v463 = vld [vmem:[#allocation5 + $0x2] sm:$0x1]
        %v464 = vlaneseq
        %v465 = vshrl.u32 %v464, 7
        %v466 = vsub.s32 0, %v465
        %v467 = vrot.slane %v463, %v466
        %v468 = vmul.f32 %v444, %v467
        %v469 = vmul.f32 %v445, %v467
        %vm472 = vcmask 1045504
        %v473 = vrot.slane %v468, 2
        %v474 = vrot.slane %v469, 2
        %v475 = vsel %vm472, %v473, %v474
        %v477 = vadd.f32 %v462, %v475
        %v478 = vld [vmem:[#allocation5 + $0x3] sm:$0x1]
        %v479 = vlaneseq
        %v480 = vshrl.u32 %v479, 7
        %v481 = vsub.s32 0, %v480
        %v482 = vrot.slane %v478, %v481
        %v483 = vmul.f32 %v444, %v482
        %v484 = vmul.f32 %v445, %v482
        %vm487 = vcmask 1044480
        %v488 = vrot.slane %v483, 3
        %v489 = vrot.slane %v484, 3
        %v490 = vsel %vm487, %v488, %v489
        %v492 = vadd.f32 %v477, %v490
        %v493 = vld [vmem:[#allocation5 + $0x4] sm:$0x1]
        %v494 = vlaneseq
        %v495 = vshrl.u32 %v494, 7
        %v496 = vsub.s32 0, %v495
        %v497 = vrot.slane %v493, %v496
        %v498 = vmul.f32 %v444, %v497
        %v499 = vmul.f32 %v445, %v497
        %vm502 = vcmask 1043456
        %v503 = vrot.slane %v498, 4
        %v504 = vrot.slane %v499, 4
        %v505 = vsel %vm502, %v503, %v504
        %v507 = vadd.f32 %v492, %v505
        %v508 = vld [vmem:[#allocation5 + $0x5] sm:$0x1]
        %v509 = vlaneseq
        %v510 = vshrl.u32 %v509, 7
        %v511 = vsub.s32 0, %v510
        %v512 = vrot.slane %v508, %v511
        %v513 = vmul.f32 %v444, %v512
        %v514 = vmul.f32 %v445, %v512
        %vm517 = vcmask 1042432
        %v518 = vrot.slane %v513, 5
        %v519 = vrot.slane %v514, 5
        %v520 = vsel %vm517, %v518, %v519
        %v522 = vadd.f32 %v507, %v520
        %v523 = vld [vmem:[#allocation5 + $0x6] sm:$0x1]
        %v524 = vlaneseq
        %v525 = vshrl.u32 %v524, 7
        %v526 = vsub.s32 0, %v525
        %v527 = vrot.slane %v523, %v526
        %v528 = vmul.f32 %v444, %v527
        %v529 = vmul.f32 %v445, %v527
        %vm532 = vcmask 1041408
        %v533 = vrot.slane %v528, 6
        %v534 = vrot.slane %v529, 6
        %v535 = vsel %vm532, %v533, %v534
        %v537 = vadd.f32 %v522, %v535
        %v538 = vld [vmem:[#allocation5 + $0x7] sm:$0x1]
        %v539 = vlaneseq
        %v540 = vshrl.u32 %v539, 7
        %v541 = vsub.s32 0, %v540
        %v542 = vrot.slane %v538, %v541
        %v543 = vmul.f32 %v444, %v542
        %v544 = vmul.f32 %v445, %v542
        %vm547 = vcmask 1040384
        %v548 = vrot.slane %v543, 7
        %v549 = vrot.slane %v544, 7
        %v550 = vsel %vm547, %v548, %v549
        %v552 = vadd.f32 %v537, %v550
        %v553 = vld [vmem:[#allocation5 + $0x8] sm:$0x1]
        %v554 = vlaneseq
        %v555 = vshrl.u32 %v554, 7
        %v556 = vsub.s32 0, %v555
        %v557 = vrot.slane %v553, %v556
        %v558 = vmul.f32 %v445, %v557
        %v559 = vadd.f32 %v552, %v558
        %v560 = vld [vmem:[#allocation5 + $0x9] sm:$0x1]
        %v561 = vlaneseq
        %v562 = vshrl.u32 %v561, 7
        %v563 = vsub.s32 0, %v562
        %v564 = vrot.slane %v560, %v563
        %v565 = vmul.f32 %v445, %v564
        %v567 = vrot.slane %v565, 1
        %v569 = vadd.f32 %v559, %v567
        %v570 = vld [vmem:[#allocation5 + $0xa] sm:$0x1]
        %v571 = vlaneseq
        %v572 = vshrl.u32 %v571, 7
        %v573 = vsub.s32 0, %v572
        %v574 = vrot.slane %v570, %v573
        %v575 = vmul.f32 %v445, %v574
        %v576 = vmul.f32 %v446, %v574
        %v579 = vrot.slane %v575, 2
        %v580 = vrot.slane %v576, 2
        %v581 = vsel %vm472, %v579, %v580
        %v583 = vadd.f32 %v569, %v581
        %v584 = vld [vmem:[#allocation5 + $0xb] sm:$0x1]
        %v585 = vlaneseq
        %v586 = vshrl.u32 %v585, 7
        %v587 = vsub.s32 0, %v586
        %v588 = vrot.slane %v584, %v587
        %v589 = vmul.f32 %v445, %v588
        %v590 = vmul.f32 %v446, %v588
        %v593 = vrot.slane %v589, 3
        %v594 = vrot.slane %v590, 3
        %v595 = vsel %vm487, %v593, %v594
        %v597 = vadd.f32 %v583, %v595
        %v598 = vld [vmem:[#allocation5 + $0xc] sm:$0x1]
        %v599 = vlaneseq
        %v600 = vshrl.u32 %v599, 7
        %v601 = vsub.s32 0, %v600
        %v602 = vrot.slane %v598, %v601
        %v603 = vmul.f32 %v445, %v602
        %v604 = vmul.f32 %v446, %v602
        %v607 = vrot.slane %v603, 4
        %v608 = vrot.slane %v604, 4
        %v609 = vsel %vm502, %v607, %v608
        %v611 = vadd.f32 %v597, %v609
        %v612 = vld [vmem:[#allocation5 + $0xd] sm:$0x1]
        %v613 = vlaneseq
        %v614 = vshrl.u32 %v613, 7
        %v615 = vsub.s32 0, %v614
        %v616 = vrot.slane %v612, %v615
        %v617 = vmul.f32 %v445, %v616
        %v618 = vmul.f32 %v446, %v616
        %v621 = vrot.slane %v617, 5
        %v622 = vrot.slane %v618, 5
        %v623 = vsel %vm517, %v621, %v622
        %v625 = vadd.f32 %v611, %v623
        %v626 = vld [vmem:[#allocation5 + $0xe] sm:$0x1]
        %v627 = vlaneseq
        %v628 = vshrl.u32 %v627, 7
        %v629 = vsub.s32 0, %v628
        %v630 = vrot.slane %v626, %v629
        %v631 = vmul.f32 %v445, %v630
        %v632 = vmul.f32 %v446, %v630
        %v635 = vrot.slane %v631, 6
        %v636 = vrot.slane %v632, 6
        %v637 = vsel %vm532, %v635, %v636
        %v639 = vadd.f32 %v625, %v637
        %v640 = vld [vmem:[#allocation7] sm:$0x1]
        %v642 = vlaneseq
        %v643 = vshrl.u32 %v642, 7
        %v644 = vsub.s32 0, %v643
        %v645 = vrot.slane %v640, %v644
        %v647 = vadd.f32 %v639, %v645
        %v648 = vld [vmem:[#allocation8] sm:$0x1]
        %v650 = vlaneseq
        %v651 = vshrl.u32 %v650, 7
        %v652 = vsub.s32 0, %v651
        %v653 = vrot.slane %v648, %v652
        %v655 = vmul.f32 %v647, %v653
        %v656 = vld [vmem:[#allocation10] sm:$0x1]
        %v658 = vlaneseq
        %v659 = vshrl.u32 %v658, 7
        %v660 = vsub.s32 0, %v659
        %v661 = vrot.slane %v656, %v660
        %v663 = vadd.f32 %v655, %v661
        %v664 = vxor.u32 %v663, 2147483648
        %v665 = vmul.f32 %v664, 1.442695
        %v666 = vpow.pop %v665
        %v667 = vadd.f32 %v666, 1.0
        %v668 = vrcp.pop %v667
        %v669 = vmul.f32 1.0, %v668
        %v670 = vmul.f32 %v663, %v669
        %v671 = vpack.c.bf16 %v670, %v670
        %v672 = vld [vmem:[#allocation11] sm:$0xf]
        %v673 = vld [vmem:[#allocation11 + $0x4] sm:$0xf]
        %v674 = vld [vmem:[#allocation11 + $0x8] sm:$0xf]
        %v675 = vld [vmem:[#allocation11 + $0xc] sm:$0xf]
        %v676 = vld [vmem:[#allocation11 + $0x10] sm:$0xf]
        %v677 = vld [vmem:[#allocation11 + $0x14] sm:$0xf]
        %v678 = vld [vmem:[#allocation11 + $0x18] sm:$0xf]
        %v679 = vld [vmem:[#allocation11 + $0x1c] sm:$0xf]
        %v680 = vld [vmem:[#allocation13] sm:$0x1]
        %v682 = vlaneseq
        %v683 = vshrl.u32 %v682, 7
        %v684 = vsub.s32 0, %v683
        %v685 = vrot.slane %v680, %v684
        %v695 = vunpack.c.l.b16 %v672
        %v696 = vunpack.c.l.b16 %v673
        %v697 = vunpack.c.l.b16 %v674
        %v698 = vunpack.c.l.b16 %v675
        %v699 = vunpack.c.l.b16 %v676
        %v700 = vunpack.c.l.b16 %v677
        %v701 = vunpack.c.l.b16 %v678
        %v702 = vunpack.c.l.b16 %v679
        %v703 = vpack.c.b16 %v696, %v695
        %v704 = vpack.c.b16 %v698, %v697
        %v705 = vpack.c.b16 %v700, %v699
        %v706 = vpack.c.b16 %v702, %v701
        %vm711 = vcmask 523264
        %v713 = vsel %vm711, %v671, 0
        %715 = vmatprep.subr.bf16.mxu0 0
        %716 = vmatpush1.bf16.msra.mxu0 %v703
        %717 = vmatprep.subr.bf16.mxu0 0
        %718 = vmatpush1.bf16.msra.mxu0 %v704
        %719 = vmatprep.subr.bf16.mxu0 0
        %720 = vmatpush1.bf16.msra.mxu0 %v705
        %721 = vmatprep.subr.bf16.mxu0 0
        %722 = vmatpush1.bf16.msra.mxu0 %v706
        %723 = vmatprep.subr.bf16.mxu0 0
        %724 = vmatpush1.bf16.msra.mxu0 0
        %725 = vmatprep.subr.bf16.mxu0 0
        %726 = vmatpush1.bf16.msra.mxu0 0
        %727 = vmatprep.subr.bf16.mxu0 0
        %728 = vmatpush1.bf16.msra.mxu0 0
        %729 = vmatprep.subr.bf16.mxu0 0
        %730 = vmatpush1.bf16.msra.mxu0 0
        %731 = vmatprep.subr.bf16.mxu0 0
        %732 = vmatpush1.bf16.msra.mxu0 0
        %733 = vmatprep.subr.bf16.mxu0 0
        %734 = vmatpush1.bf16.msra.mxu0 0
        %735 = vmatprep.subr.bf16.mxu0 0
        %736 = vmatpush1.bf16.msra.mxu0 0
        %737 = vmatprep.subr.bf16.mxu0 0
        %738 = vmatpush1.bf16.msra.mxu0 0
        %739 = vmatprep.subr.bf16.mxu0 0
        %740 = vmatpush1.bf16.msra.mxu0 0
        %741 = vmatprep.subr.bf16.mxu0 0
        %742 = vmatpush1.bf16.msra.mxu0 0
        %743 = vmatprep.subr.bf16.mxu0 0
        %744 = vmatpush1.bf16.msra.mxu0 0
        %745 = vmatprep.subr.bf16.mxu0 0
        %746 = vmatpush1.bf16.msra.mxu0 0
        %747 = vmatprep.mubr.bf16.mxu0 0
        %748 = vmatmul.mubr.bf16.gmra.mrb[0].mxu0 %v713
        %v749 = vpop.f32.mrb[0].mxu0
        %v750 = vadd.f32 %v685, %v749
        %v751 = vpop.f32.mrb[0].mxu0
        %v752 = vpop.f32.mrb[0].mxu0
        %v753 = vpop.f32.mrb[0].mxu0
        %754 = vdwg.mxu0
        %v755 = vld [vmem:[%s402] sm:$0x7f]
        %v756 = vadd.f32 %v755, %v750
        %vm757 = vcmask 522240
        %758 = vst.msk [vmem:[%s439] sm:$0x7f] %vm757, %v756
        %s759 = sand.u32 %s217, 1
        %s760 = scalar_lea.sflag [#allocation4], %s759
        %s761 = sand.u32 %s217, 1
        %s762 = smul.addr %s761, 8
        %s763 = scalar_lea.vmem [#allocation16], %s762
        // Predicated region
        $region85: #{net_forward.36} parent=51 // pred_check
          %p764 = pneg %p227
        $region86: #{net_forward.36} parent=51 // pred_check_branch
          %766 = sbr.rel (%p764) target = $region88
        $region87: #{net_forward.36} parent=51 // pred_region
          %s768 = ssub.s32 128, 128
          %769 = vsyncadd %s760, %s768
          %s770 = smul.addr %s31, 128
          %s771 = scalar_lea.hbm %s8, %s770
          %s773 = sshll.u32 %s763, 4
          %s774 = int_to_ptr.vmem [resolvable:$true] %s773
          %776 = dma.vmem_to_hbm [thread:$0]  %s774, 128, %s771, %s760
        $region88: #{net_forward.36} parent=51 // pred_fallthru
          _
      $region52: #{net_forward.36} parent=5 // pred_fallthru
        _
      %p777 = scmp.le.s32.totalorder 2, %s26
      // Predicated region
      $region89: #{net_forward.36} parent=5 // pred_check
        %p778 = pneg %p777
      $region90: #{net_forward.36} parent=5 // pred_check_branch
        %780 = sbr.rel (%p778) target = $region92
      $region91: #{net_forward.36} parent=5 // pred_region
        %s781 = ssub.s32 %s26, 2
        // Predicated region
        $region93: #{net_forward.36} parent=91 // pred_check
          %p782 = pneg %p233
        $region94: #{net_forward.36} parent=91 // pred_check_branch
          %784 = sbr.rel (%p782) target = $region96
        $region95: #{net_forward.36} parent=91 // pred_region
          %s785 = sand.u32 %s218, 1
          %s786 = scalar_lea.sflag [#allocation4], %s785
          %s787 = sand.u32 %s218, 1
          %s788 = smul.addr %s787, 8
          %s789 = scalar_lea.vmem [#allocation16], %s788
          %790 = dma.done %s786, 128
        $region96: #{net_forward.36} parent=91 // pred_fallthru
          _
      $region92: #{net_forward.36} parent=5 // pred_fallthru
        _
    $region6: #{net_forward.36} parent=1 // loop_footer
      %s30 = sadd.s32 1, %s26
    $region7: #{net_forward.36} parent=1 // loop_footer_branch
      %25 = sbr.rel target = $region3
    $region8: #{net_forward.36} parent=1 // loop_exit
      _
    %791 = vsyncpa [#allocation3], 1
    %s792 = scalar_lea.sflag [#allocation3], 1
    %793 = vsyncpa %s792, 1
    %794 = vsyncpa [#allocation6], 1
    %795 = vsyncpa [#allocation9], 1
    %796 = vsyncpa [#allocation12], 1
    %797 = vsyncpa [#allocation15], 1
    %s798 = scalar_lea.sflag [#allocation15], 1
    %799 = vsyncpa %s798, 1
    %800 = vsyncpa [#allocation4], 1
    %s801 = scalar_lea.sflag [#allocation4], 1
    %802 = vsyncpa %s801, 1

// kernel: net_forward.34
$region0: #{net_forward.34}
  #allocation0 [shape = 'u32[]', space=smem, size = 0x4, offset = 0x4, fixed_abs, tag = 'smem constant byte address 0x4 - core index']
  #allocation1 [shape = 'u32[144,128]{1,0:T(1,128)}', space=vmem, size = 0x12000, scoped, tag = 'internal scratch']
  %s0 = inlined_call_operand.hbm [shape: bf16[2,12,7,16], index: 0, kind: input, shape index: {}]
  %s1 = inlined_call_operand.hbm [shape: bf16[4,7,16], index: 1, kind: input, shape index: {}]
  %s2 = inlined_call_operand.hbm [shape: f32[4,1,16], index: 2, kind: input, shape index: {}]
  %s3 = inlined_call_operand.hbm [shape: f32[4,1,16], index: 3, kind: input, shape index: {}]
  %s4 = inlined_call_operand.hbm [shape: bf16[64,64], index: 4, kind: input, shape index: {}]
  %s5 = inlined_call_operand.hbm [shape: f32[1,64], index: 5, kind: input, shape index: {}]
  %s6 = inlined_call_operand.hbm [shape: f32[2,7,64], index: 6, kind: input, shape index: {}]
  %s7 = inlined_call_operand.hbm [shape: f32[2,7,64], index: 7, kind: output, shape index: {}]
  %s8 = sld [smem:[#allocation0]]
  $region89: #{net_forward.34} parent=0
    _
  %s10 = ssub.s32 1, %s8
  %s11 = scalar_select 0, %s10, %s8
  $region1: #{net_forward.34} parent=0
    #allocation2 [shape = 'u8[49152]{0}', space=vmem, size = 0xc000, scoped, tag = 'input window, operand 0']
    #allocation3 [shape = 's32[2]{0}', space=sflag, size = 0x8, scoped, tag = 'scoped memory for net_forward.34']
    #allocation4 [shape = 's32[2]{0}', space=sflag, size = 0x8, scoped, tag = 'scoped memory for net_forward.34']
    #allocation5 [shape = 'u8[8192]{0}', space=vmem, size = 0x2000, scoped, tag = 'input window, operand 1, single buffered']
    #allocation6 [shape = 's32[1]{0}', space=sflag, size = 0x4, scoped, tag = 'scoped memory for net_forward.34']
    #allocation7 [shape = 'u8[2048]{0}', space=vmem, size = 0x800, scoped, tag = 'input window, operand 2, single buffered']
    #allocation8 [shape = 'u8[2048]{0}', space=vmem, size = 0x800, scoped, tag = 'input window, operand 3, single buffered']
    #allocation9 [shape = 's32[1]{0}', space=sflag, size = 0x4, scoped, tag = 'scoped memory for net_forward.34']
    #allocation10 [shape = 'u8[16384]{0}', space=vmem, size = 0x4000, scoped, tag = 'input window, operand 4, single buffered']
    #allocation11 [shape = 'u8[512]{0}', space=vmem, size = 0x400, scoped, tag = 'input window, operand 5, single buffered']
    #allocation12 [shape = 's32[1]{0}', space=sflag, size = 0x4, scoped, tag = 'scoped memory for net_forward.34']
    #allocation13 [shape = 'u8[8192]{0}', space=vmem, size = 0x2000, scoped, tag = 'input window, operand 6']
    #allocation14 [shape = 'u8[8192]{0}', space=vmem, size = 0x2000, scoped, tag = 'output window, operand 0']
    %12 = vsyncpa [#allocation3], 0
    %s13 = scalar_lea.sflag [#allocation3], 1
    %14 = vsyncpa %s13, 0
    %15 = vsyncpa [#allocation6], 0
    %16 = vsyncpa [#allocation9], 0
    %17 = vsyncpa [#allocation12], 0
    %18 = vsyncpa [#allocation4], 0
    %s19 = scalar_lea.sflag [#allocation4], 1
    %20 = vsyncpa %s19, 0
    loop: start=0, step=1, limit=4
    $region2: #{net_forward.34} parent=1 // loop_pre_header
      _
    $region3: #{net_forward.34} parent=1 // loop_header
      %s22 = sphi 0, %s26
      %p23 = scmp.ge.s32.totalorder %s22, 4
      %s32 = sphi 0, %s34
      %s35 = sphi 0, %s32
      %s36 = sphi 0, %s35
      %s52 = sphi 0, %s36
      %s56 = sphi 0, %s56
      %s58 = sphi 0, %s56
      %s59 = sphi 0, %s58
      %s73 = sphi 0, %s59
      %s77 = sphi 0, %s77
      %s79 = sphi 0, %s77
      %s80 = sphi 0, %s79
      %s94 = sphi 0, %s80
      %s98 = sphi 0, %s98
      %s100 = sphi 0, %s98
      %s101 = sphi 0, %s100
      %s115 = sphi 0, %s101
      %s119 = sphi 0, %s119
      %s121 = sphi 0, %s119
      %s122 = sphi 0, %s121
      %s136 = sphi 0, %s122
      %s140 = sphi 0, %s140
      %s142 = sphi 0, %s140
      %s143 = sphi 0, %s142
      %s157 = sphi 0, %s143
      %s163 = sphi 0, %s165
      %s166 = sphi 0, %s163
      %s167 = sphi 0, %s166
      %s183 = sphi 0, %s167
      %s189 = sphi 0, %s191
      %s192 = sphi 0, %s189
      %s193 = sphi 0, %s192
      %s209 = sphi 0, %s193
    $region4: #{net_forward.34} parent=1 // loop_header_branch
      %25 = sbr.rel (%p23) target = $region8
    $region5: #{net_forward.34} parent=1 // loop_body
      %s27 = ssub.s32 %s22, 1
      %s28 = ssub.s32 %s22, 2
      %s29 = sadd.s32 %s22, 1
      %s30 = ssub.s32 %s22, %s29
      %p31 = scmp.eq.s32.totalorder %s30, 0
      %s33 = sadd.s32 %s32, 1
      %s34 = scalar_select %p31, %s32, %s33
      %p37 = pneg %p31
      %p38 = scmp.eq.s32.totalorder %s22, 1
      %p39 = por %p37, %p38
      %p40 = scmp.ne.s32.totalorder %s32, %s35
      %p41 = scmp.eq.s32.totalorder %s22, 0
      %p42 = por %p40, %p41
      %p43 = scmp.ne.s32.totalorder %s32, %s35
      %p44 = scmp.eq.s32.totalorder %s27, 1
      %p45 = por %p43, %p44
      %p46 = scmp.ne.s32.totalorder %s35, %s36
      %p47 = scmp.eq.s32.totalorder %s27, 0
      %p48 = por %p46, %p47
      %p49 = scmp.ne.s32.totalorder %s35, %s36
      %p50 = scmp.eq.s32.totalorder %s28, 1
      %p51 = por %p49, %p50
      %p53 = scmp.ne.s32.totalorder %s36, %s52
      %p54 = scmp.eq.s32.totalorder %s28, 0
      %p55 = por %p53, %p54
      %s57 = sadd.s32 %s56, 1
      %p60 = scmp.eq.s32.totalorder %s22, 1
      %p61 = scmp.ne.s32.totalorder %s56, %s58
      %p62 = scmp.eq.s32.totalorder %s22, 0
      %p63 = por %p61, %p62
      %p64 = scmp.ne.s32.totalorder %s56, %s58
      %p65 = scmp.eq.s32.totalorder %s27, 1
      %p66 = por %p64, %p65
      %p67 = scmp.ne.s32.totalorder %s58, %s59
      %p68 = scmp.eq.s32.totalorder %s27, 0
      %p69 = por %p67, %p68
      %p70 = scmp.ne.s32.totalorder %s58, %s59
      %p71 = scmp.eq.s32.totalorder %s28, 1
      %p72 = por %p70, %p71
      %p74 = scmp.ne.s32.totalorder %s59, %s73
      %p75 = scmp.eq.s32.totalorder %s28, 0
      %p76 = por %p74, %p75
      %s78 = sadd.s32 %s77, 1
      %p81 = scmp.eq.s32.totalorder %s22, 1
      %p82 = scmp.ne.s32.totalorder %s77, %s79
      %p83 = scmp.eq.s32.totalorder %s22, 0
      %p84 = por %p82, %p83
      %p85 = scmp.ne.s32.totalorder %s77, %s79
      %p86 = scmp.eq.s32.totalorder %s27, 1
      %p87 = por %p85, %p86
      %p88 = scmp.ne.s32.totalorder %s79, %s80
      %p89 = scmp.eq.s32.totalorder %s27, 0
      %p90 = por %p88, %p89
      %p91 = scmp.ne.s32.totalorder %s79, %s80
      %p92 = scmp.eq.s32.totalorder %s28, 1
      %p93 = por %p91, %p92
      %p95 = scmp.ne.s32.totalorder %s80, %s94
      %p96 = scmp.eq.s32.totalorder %s28, 0
      %p97 = por %p95, %p96
      %s99 = sadd.s32 %s98, 1
      %p102 = scmp.eq.s32.totalorder %s22, 1
      %p103 = scmp.ne.s32.totalorder %s98, %s100
      %p104 = scmp.eq.s32.totalorder %s22, 0
      %p105 = por %p103, %p104
      %p106 = scmp.ne.s32.totalorder %s98, %s100
      %p107 = scmp.eq.s32.totalorder %s27, 1
      %p108 = por %p106, %p107
      %p109 = scmp.ne.s32.totalorder %s100, %s101
      %p110 = scmp.eq.s32.totalorder %s27, 0
      %p111 = por %p109, %p110
      %p112 = scmp.ne.s32.totalorder %s100, %s101
      %p113 = scmp.eq.s32.totalorder %s28, 1
      %p114 = por %p112, %p113
      %p116 = scmp.ne.s32.totalorder %s101, %s115
      %p117 = scmp.eq.s32.totalorder %s28, 0
      %p118 = por %p116, %p117
      %s120 = sadd.s32 %s119, 1
      %p123 = scmp.eq.s32.totalorder %s22, 1
      %p124 = scmp.ne.s32.totalorder %s119, %s121
      %p125 = scmp.eq.s32.totalorder %s22, 0
      %p126 = por %p124, %p125
      %p127 = scmp.ne.s32.totalorder %s119, %s121
      %p128 = scmp.eq.s32.totalorder %s27, 1
      %p129 = por %p127, %p128
      %p130 = scmp.ne.s32.totalorder %s121, %s122
      %p131 = scmp.eq.s32.totalorder %s27, 0
      %p132 = por %p130, %p131
      %p133 = scmp.ne.s32.totalorder %s121, %s122
      %p134 = scmp.eq.s32.totalorder %s28, 1
      %p135 = por %p133, %p134
      %p137 = scmp.ne.s32.totalorder %s122, %s136
      %p138 = scmp.eq.s32.totalorder %s28, 0
      %p139 = por %p137, %p138
      %s141 = sadd.s32 %s140, 1
      %p144 = scmp.eq.s32.totalorder %s22, 1
      %p145 = scmp.ne.s32.totalorder %s140, %s142
      %p146 = scmp.eq.s32.totalorder %s22, 0
      %p147 = por %p145, %p146
      %p148 = scmp.ne.s32.totalorder %s140, %s142
      %p149 = scmp.eq.s32.totalorder %s27, 1
      %p150 = por %p148, %p149
      %p151 = scmp.ne.s32.totalorder %s142, %s143
      %p152 = scmp.eq.s32.totalorder %s27, 0
      %p153 = por %p151, %p152
      %p154 = scmp.ne.s32.totalorder %s142, %s143
      %p155 = scmp.eq.s32.totalorder %s28, 1
      %p156 = por %p154, %p155
      %p158 = scmp.ne.s32.totalorder %s143, %s157
      %p159 = scmp.eq.s32.totalorder %s28, 0
      %p160 = por %p158, %p159
      %s161 = ssub.s32 %s22, %s29
      %p162 = scmp.eq.s32.totalorder %s161, 0
      %s164 = sadd.s32 %s163, 1
      %s165 = scalar_select %p162, %s163, %s164
      %p168 = pneg %p162
      %p169 = scmp.eq.s32.totalorder %s22, 1
      %p170 = por %p168, %p169
      %p171 = scmp.ne.s32.totalorder %s163, %s166
      %p172 = scmp.eq.s32.totalorder %s22, 0
      %p173 = por %p171, %p172
      %p174 = scmp.ne.s32.totalorder %s163, %s166
      %p175 = scmp.eq.s32.totalorder %s27, 1
      %p176 = por %p174, %p175
      %p177 = scmp.ne.s32.totalorder %s166, %s167
      %p178 = scmp.eq.s32.totalorder %s27, 0
      %p179 = por %p177, %p178
      %p180 = scmp.ne.s32.totalorder %s166, %s167
      %p181 = scmp.eq.s32.totalorder %s28, 1
      %p182 = por %p180, %p181
      %p184 = scmp.ne.s32.totalorder %s167, %s183
      %p185 = scmp.eq.s32.totalorder %s28, 0
      %p186 = por %p184, %p185
      %s187 = ssub.s32 %s22, %s29
      %p188 = scmp.eq.s32.totalorder %s187, 0
      %s190 = sadd.s32 %s189, 1
      %s191 = scalar_select %p188, %s189, %s190
      %p194 = pneg %p188
      %p195 = scmp.eq.s32.totalorder %s22, 1
      %p196 = por %p194, %p195
      %p197 = scmp.ne.s32.totalorder %s189, %s192
      %p198 = scmp.eq.s32.totalorder %s22, 0
      %p199 = por %p197, %p198
      %p200 = scmp.ne.s32.totalorder %s189, %s192
      %p201 = scmp.eq.s32.totalorder %s27, 1
      %p202 = por %p200, %p201
      %p203 = scmp.ne.s32.totalorder %s192, %s193
      %p204 = scmp.eq.s32.totalorder %s27, 0
      %p205 = por %p203, %p204
      %p206 = scmp.ne.s32.totalorder %s192, %s193
      %p207 = scmp.eq.s32.totalorder %s28, 1
      %p208 = por %p206, %p207
      %p210 = scmp.ne.s32.totalorder %s193, %s209
      %p211 = scmp.eq.s32.totalorder %s28, 0
      %p212 = por %p210, %p211
      %p213 = scmp.le.s32.totalorder 1, %s22
      %p214 = scmp.lt.s32.totalorder %s22, 3
      %p215 = pnand %p213, %p214
      %p216 = pneg %p215
      // Predicated region
      $region9: #{net_forward.34} parent=5 // pred_check
        _
      $region10: #{net_forward.34} parent=5 // pred_check_branch
        %218 = sbr.rel (%p215) target = $region12
      $region11: #{net_forward.34} parent=5 // pred_region
        %s219 = ssub.s32 %s22, 1
        // Predicated region
        $region13: #{net_forward.34} parent=11 // pred_check
          %p220 = pneg %p69
        $region14: #{net_forward.34} parent=11 // pred_check_branch
          %222 = sbr.rel (%p220) target = $region16
        $region15: #{net_forward.34} parent=11 // pred_region
          %s224 = ssub.s32 256, 256
          %225 = vsyncadd [#allocation6], %s224
          %s226 = sshll.u32 [#allocation5], 4
          %s227 = int_to_ptr.vmem [resolvable:$true] %s226
          %232 = dma.hbm_to_vmem [thread:$0]  %s1, 256, %s227, [#allocation6], 64, 64, 4
        $region16: #{net_forward.34} parent=11 // pred_fallthru
          _
        // Predicated region
        $region17: #{net_forward.34} parent=11 // pred_check
          %p233 = pneg %p90
        $region18: #{net_forward.34} parent=11 // pred_check_branch
          %235 = sbr.rel (%p233) target = $region20
        $region19: #{net_forward.34} parent=11 // pred_region
          %s237 = ssub.s32 64, 64
          %238 = vsyncadd [#allocation6], %s237
          %s239 = sshll.u32 [#allocation7], 4
          %s240 = int_to_ptr.vmem [resolvable:$true] %s239
          %245 = dma.hbm_to_vmem [thread:$0]  %s2, 64, %s240, [#allocation6], 16, 16, 1
        $region20: #{net_forward.34} parent=11 // pred_fallthru
          _
        // Predicated region
        $region21: #{net_forward.34} parent=11 // pred_check
          %p246 = pneg %p111
        $region22: #{net_forward.34} parent=11 // pred_check_branch
          %248 = sbr.rel (%p246) target = $region24
        $region23: #{net_forward.34} parent=11 // pred_region
          %s250 = ssub.s32 64, 64
          %251 = vsyncadd [#allocation9], %s250
          %s252 = sshll.u32 [#allocation8], 4
          %s253 = int_to_ptr.vmem [resolvable:$true] %s252
          %258 = dma.hbm_to_vmem [thread:$0]  %s3, 64, %s253, [#allocation9], 16, 16, 1
        $region24: #{net_forward.34} parent=11 // pred_fallthru
          _
        // Predicated region
        $region25: #{net_forward.34} parent=11 // pred_check
          %p259 = pneg %p132
        $region26: #{net_forward.34} parent=11 // pred_check_branch
          %261 = sbr.rel (%p259) target = $region28
        $region27: #{net_forward.34} parent=11 // pred_region
          %s263 = ssub.s32 512, 512
          %264 = vsyncadd [#allocation9], %s263
          %s265 = sshll.u32 [#allocation10], 4
          %s266 = int_to_ptr.vmem [resolvable:$true] %s265
          %271 = dma.hbm_to_vmem [thread:$0]  %s4, 512, %s266, [#allocation9], 64, 64, 4
        $region28: #{net_forward.34} parent=11 // pred_fallthru
          _
        // Predicated region
        $region29: #{net_forward.34} parent=11 // pred_check
          %p272 = pneg %p153
        $region30: #{net_forward.34} parent=11 // pred_check_branch
          %274 = sbr.rel (%p272) target = $region32
        $region31: #{net_forward.34} parent=11 // pred_region
          %s276 = ssub.s32 16, 16
          %277 = vsyncadd [#allocation12], %s276
          %s279 = sshll.u32 [#allocation11], 4
          %s280 = int_to_ptr.vmem [resolvable:$true] %s279
          %282 = dma.hbm_to_vmem [thread:$0]  %s5, 16, %s280, [#allocation12]
        $region32: #{net_forward.34} parent=11 // pred_fallthru
          _
      $region12: #{net_forward.34} parent=5 // pred_fallthru
        _
      %p283 = scmp.lt.s32.totalorder %s22, 2
      // Predicated region
      $region33: #{net_forward.34} parent=5 // pred_check
        %p284 = pneg %p283
      $region34: #{net_forward.34} parent=5 // pred_check_branch
        %286 = sbr.rel (%p284) target = $region36
      $region35: #{net_forward.34} parent=5 // pred_region
        // Predicated region
        $region37: #{net_forward.34} parent=35 // pred_check
          %p287 = pneg %p42
        $region38: #{net_forward.34} parent=35 // pred_check_branch
          %289 = sbr.rel (%p287) target = $region40
        $region39: #{net_forward.34} parent=35 // pred_region
          %s290 = sand.u32 %s22, 1
          %s291 = scalar_lea.sflag [#allocation3], %s290
          %s292 = sand.u32 %s32, 1
          %s293 = smul.addr %s292, 48
          %s294 = scalar_lea.vmem [#allocation2], %s293
          %s296 = ssub.s32 768, 768
          %297 = vsyncadd %s291, %s296
          %s298 = smul.addr %s22, 12
          %s299 = smul.addr %s298, 64
          %s300 = scalar_lea.hbm %s0, %s299
          %s301 = sshll.u32 %s294, 4
          %s302 = int_to_ptr.vmem [resolvable:$true] %s301
          %307 = dma.hbm_to_vmem [thread:$0]  %s300, 768, %s302, %s291, 64, 64, 4
        $region40: #{net_forward.34} parent=35 // pred_fallthru
          _
        // Predicated region
        $region41: #{net_forward.34} parent=35 // pred_check
          %p308 = pneg %p173
        $region42: #{net_forward.34} parent=35 // pred_check_branch
          %310 = sbr.rel (%p308) target = $region44
        $region43: #{net_forward.34} parent=35 // pred_region
          %s311 = sand.u32 %s22, 1
          %s312 = scalar_lea.sflag [#allocation3], %s311
          %s313 = sand.u32 %s163, 1
          %s314 = smul.addr %s313, 8
          %s315 = scalar_lea.vmem [#allocation13], %s314
          %s317 = ssub.s32 128, 128
          %318 = vsyncadd %s312, %s317
          %s319 = smul.addr %s22, 128
          %s320 = scalar_lea.hbm %s6, %s319
          %s322 = sshll.u32 %s315, 4
          %s323 = int_to_ptr.vmem [resolvable:$true] %s322
          %325 = dma.hbm_to_vmem [thread:$0]  %s320, 128, %s323, %s312
        $region44: #{net_forward.34} parent=35 // pred_fallthru
          _
      $region36: #{net_forward.34} parent=5 // pred_fallthru
        _
      %p326 = scmp.le.s32.totalorder 1, %s22
      %p327 = scmp.lt.s32.totalorder %s22, 3
      %p328 = pnand %p326, %p327
      %p329 = pneg %p328
      // Predicated region
      $region45: #{net_forward.34} parent=5 // pred_check
        _
      $region46: #{net_forward.34} parent=5 // pred_check_branch
        %331 = sbr.rel (%p328) target = $region48
      $region47: #{net_forward.34} parent=5 // pred_region
        %s332 = ssub.s32 %s22, 1
        %s333 = sand.u32 %s27, 1
        %s334 = scalar_lea.sflag [#allocation3], %s333
        %s335 = sand.u32 %s35, 1
        %s336 = smul.addr %s335, 48
        %s337 = scalar_lea.vmem [#allocation2], %s336
        // Predicated region
        $region49: #{net_forward.34} parent=47 // pred_check
          %p338 = pneg %p48
        $region50: #{net_forward.34} parent=47 // pred_check_branch
          %340 = sbr.rel (%p338) target = $region52
        $region51: #{net_forward.34} parent=47 // pred_region
          %341 = dma.done %s334, 768
        $region52: #{net_forward.34} parent=47 // pred_fallthru
          _
        // Predicated region
        $region53: #{net_forward.34} parent=47 // pred_check
          %p342 = pneg %p69
        $region54: #{net_forward.34} parent=47 // pred_check_branch
          %344 = sbr.rel (%p342) target = $region56
        $region55: #{net_forward.34} parent=47 // pred_region
          %345 = dma.done [#allocation6], 256
        $region56: #{net_forward.34} parent=47 // pred_fallthru
          _
        // Predicated region
        $region57: #{net_forward.34} parent=47 // pred_check
          %p346 = pneg %p90
        $region58: #{net_forward.34} parent=47 // pred_check_branch
          %348 = sbr.rel (%p346) target = $region60
        $region59: #{net_forward.34} parent=47 // pred_region
          %349 = dma.done [#allocation6], 64
        $region60: #{net_forward.34} parent=47 // pred_fallthru
          _
        // Predicated region
        $region61: #{net_forward.34} parent=47 // pred_check
          %p350 = pneg %p111
        $region62: #{net_forward.34} parent=47 // pred_check_branch
          %352 = sbr.rel (%p350) target = $region64
        $region63: #{net_forward.34} parent=47 // pred_region
          %353 = dma.done [#allocation9], 64
        $region64: #{net_forward.34} parent=47 // pred_fallthru
          _
        // Predicated region
        $region65: #{net_forward.34} parent=47 // pred_check
          %p354 = pneg %p132
        $region66: #{net_forward.34} parent=47 // pred_check_branch
          %356 = sbr.rel (%p354) target = $region68
        $region67: #{net_forward.34} parent=47 // pred_region
          %357 = dma.done [#allocation9], 512
        $region68: #{net_forward.34} parent=47 // pred_fallthru
          _
        // Predicated region
        $region69: #{net_forward.34} parent=47 // pred_check
          %p358 = pneg %p153
        $region70: #{net_forward.34} parent=47 // pred_check_branch
          %360 = sbr.rel (%p358) target = $region72
        $region71: #{net_forward.34} parent=47 // pred_region
          %361 = dma.done [#allocation12], 16
        $region72: #{net_forward.34} parent=47 // pred_fallthru
          _
        %s362 = sand.u32 %s27, 1
        %s363 = scalar_lea.sflag [#allocation3], %s362
        %s364 = sand.u32 %s166, 1
        %s365 = smul.addr %s364, 8
        %s366 = scalar_lea.vmem [#allocation13], %s365
        // Predicated region
        $region73: #{net_forward.34} parent=47 // pred_check
          %p367 = pneg %p179
        $region74: #{net_forward.34} parent=47 // pred_check_branch
          %369 = sbr.rel (%p367) target = $region76
        $region75: #{net_forward.34} parent=47 // pred_region
          %370 = dma.done %s363, 128
        $region76: #{net_forward.34} parent=47 // pred_fallthru
          _
        %s371 = sand.u32 %s27, 1
        %s372 = scalar_lea.sflag [#allocation3], %s371
        %s373 = sand.u32 %s35, 1
        %s374 = smul.addr %s373, 48
        %s375 = scalar_lea.vmem [#allocation2], %s374
        %p376 = pneg %p48
        %p377 = pneg %p45
        %p378 = pneg %p69
        %p379 = pneg %p66
        %p380 = pneg %p90
        %p381 = pneg %p87
        %p382 = pneg %p111
        %p383 = pneg %p108
        %p384 = pneg %p132
        %p385 = pneg %p129
        %p386 = pneg %p153
        %p387 = pneg %p150
        %s388 = sand.u32 %s27, 1
        %s389 = scalar_lea.sflag [#allocation3], %s388
        %s390 = sand.u32 %s166, 1
        %s391 = smul.addr %s390, 8
        %s392 = scalar_lea.vmem [#allocation13], %s391
        %p393 = pneg %p179
        %p394 = pneg %p176
        %p395 = pneg %p205
        %p396 = pneg %p202
        %s397 = sand.u32 %s192, 1
        %s398 = scalar_lea.sflag [#allocation4], %s397
        %s399 = sand.u32 %s192, 1
        %s400 = smul.addr %s399, 8
        %s401 = scalar_lea.vmem [#allocation14], %s400
        %v403 = vld [vmem:[%s337] sm:$0xf]
        %v404 = vld [vmem:[%s337 + $0x4] sm:$0xf]
        %v405 = vld [vmem:[%s337 + $0x8] sm:$0xf]
        %v406 = vld [vmem:[%s337 + $0xc] sm:$0xf]
        %v407 = vld [vmem:[%s337 + $0x10] sm:$0xf]
        %v408 = vld [vmem:[%s337 + $0x14] sm:$0xf]
        %v409 = vld [vmem:[%s337 + $0x18] sm:$0xf]
        %v410 = vld [vmem:[%s337 + $0x1c] sm:$0xf]
        %v411 = vld [vmem:[%s337 + $0x20] sm:$0xf]
        %v412 = vld [vmem:[%s337 + $0x24] sm:$0xf]
        %v413 = vld [vmem:[%s337 + $0x28] sm:$0xf]
        %v414 = vld [vmem:[%s337 + $0x2c] sm:$0xf]
        %v415 = vunpack.c.l.bf16 %v403
        %v416 = vunpack.c.l.bf16 %v404
        %v417 = vunpack.c.l.bf16 %v405
        %v418 = vunpack.c.l.bf16 %v406
        %v419 = vunpack.c.l.bf16 %v407
        %v420 = vunpack.c.l.bf16 %v408
        %v421 = vunpack.c.l.bf16 %v409
        %v422 = vunpack.c.l.bf16 %v410
        %v423 = vunpack.c.l.bf16 %v411
        %v424 = vunpack.c.l.bf16 %v412
        %v425 = vunpack.c.l.bf16 %v413
        %v426 = vunpack.c.l.bf16 %v414
        %v427 = vld [vmem:[#allocation5] sm:$0xf]
        %v428 = vld [vmem:[#allocation5 + $0x4] sm:$0xf]
        %v429 = vld [vmem:[#allocation5 + $0x8] sm:$0xf]
        %v430 = vld [vmem:[#allocation5 + $0xc] sm:$0xf]
        %v431 = vld [vmem:[#allocation7] sm:$0x1]
        %v432 = vld [vmem:[#allocation7 + $0x1] sm:$0x1]
        %v433 = vld [vmem:[#allocation7 + $0x2] sm:$0x1]
        %v434 = vld [vmem:[#allocation7 + $0x3] sm:$0x1]
        %v439 = vlaneseq
        %v440 = vshrl.u32 %v439, 7
        %v441 = vsub.s32 0, %v440
        %v442 = vrot.slane %v431, %v441
        %v443 = vlaneseq
        %v444 = vshrl.u32 %v443, 7
        %v445 = vsub.s32 0, %v444
        %v446 = vrot.slane %v432, %v445
        %v447 = vlaneseq
        %v448 = vshrl.u32 %v447, 7
        %v449 = vsub.s32 0, %v448
        %v450 = vrot.slane %v433, %v449
        %v451 = vlaneseq
        %v452 = vshrl.u32 %v451, 7
        %v453 = vsub.s32 0, %v452
        %v454 = vrot.slane %v434, %v453
        %v459 = vadd.f32 %v415, %v442
        %v460 = vadd.f32 %v416, %v446
        %v461 = vadd.f32 %v417, %v450
        %v462 = vadd.f32 %v418, %v454
        %v463 = vld [vmem:[#allocation8] sm:$0x1]
        %v464 = vld [vmem:[#allocation8 + $0x1] sm:$0x1]
        %v465 = vld [vmem:[#allocation8 + $0x2] sm:$0x1]
        %v466 = vld [vmem:[#allocation8 + $0x3] sm:$0x1]
        %v471 = vlaneseq
        %v472 = vshrl.u32 %v471, 7
        %v473 = vsub.s32 0, %v472
        %v474 = vrot.slane %v463, %v473
        %v475 = vlaneseq
        %v476 = vshrl.u32 %v475, 7
        %v477 = vsub.s32 0, %v476
        %v478 = vrot.slane %v464, %v477
        %v479 = vlaneseq
        %v480 = vshrl.u32 %v479, 7
        %v481 = vsub.s32 0, %v480
        %v482 = vrot.slane %v465, %v481
        %v483 = vlaneseq
        %v484 = vshrl.u32 %v483, 7
        %v485 = vsub.s32 0, %v484
        %v486 = vrot.slane %v466, %v485
        %v491 = vadd.f32 %v415, %v474
        %v492 = vadd.f32 %v416, %v478
        %v493 = vadd.f32 %v417, %v482
        %v494 = vadd.f32 %v418, %v486
        %v495 = vpack.c.bf16 %v459, %v459
        %v496 = vpack.c.bf16 %v460, %v460
        %v497 = vpack.c.bf16 %v461, %v461
        %v498 = vpack.c.bf16 %v462, %v462
        %v499 = vpack.c.bf16 %v419, %v419
        %v500 = vpack.c.bf16 %v420, %v420
        %v501 = vpack.c.bf16 %v421, %v421
        %v502 = vpack.c.bf16 %v422, %v422
        %v503 = vpack.c.bf16 %v491, %v491
        %v504 = vpack.c.bf16 %v492, %v492
        %v505 = vpack.c.bf16 %v493, %v493
        %v506 = vpack.c.bf16 %v494, %v494
        %vm507 = vcmask 130048
        %v509 = vsel %vm507, %v503, 0
        %v512 = vsel %vm507, %v427, 0
        %514 = vmatprep.subr.bf16.mxu0 0
        %515 = vmatpush1.bf16.xpose.msra.mxu0 %v512
        %516 = vmatprep.subr.bf16.mxu0 0
        %517 = vmatpush1.bf16.xpose.msra.mxu0 0
        %518 = vmatprep.subr.bf16.mxu0 0
        %519 = vmatpush1.bf16.xpose.msra.mxu0 0
        %520 = vmatprep.subr.bf16.mxu0 0
        %521 = vmatpush1.bf16.xpose.msra.mxu0 0
        %522 = vmatprep.subr.bf16.mxu0 0
        %523 = vmatpush1.bf16.xpose.msra.mxu0 0
        %524 = vmatprep.subr.bf16.mxu0 0
        %525 = vmatpush1.bf16.xpose.msra.mxu0 0
        %526 = vmatprep.subr.bf16.mxu0 0
        %527 = vmatpush1.bf16.xpose.msra.mxu0 0
        %528 = vmatprep.subr.bf16.mxu0 0
        %529 = vmatpush1.bf16.xpose.msra.mxu0 0
        %530 = vmatprep.subr.bf16.mxu0 0
        %531 = vmatpush1.bf16.xpose.msra.mxu0 0
        %532 = vmatprep.subr.bf16.mxu0 0
        %533 = vmatpush1.bf16.xpose.msra.mxu0 0
        %534 = vmatprep.subr.bf16.mxu0 0
        %535 = vmatpush1.bf16.xpose.msra.mxu0 0
        %536 = vmatprep.subr.bf16.mxu0 0
        %537 = vmatpush1.bf16.xpose.msra.mxu0 0
        %538 = vmatprep.subr.bf16.mxu0 0
        %539 = vmatpush1.bf16.xpose.msra.mxu0 0
        %540 = vmatprep.subr.bf16.mxu0 0
        %541 = vmatpush1.bf16.xpose.msra.mxu0 0
        %542 = vmatprep.subr.bf16.mxu0 0
        %543 = vmatpush1.bf16.xpose.msra.mxu0 0
        %544 = vmatprep.subr.bf16.mxu0 0
        %545 = vmatpush1.bf16.xpose.msra.mxu0 0
        %546 = vmatprep.mubr.bf16.mxu0 0
        %547 = vmatmul.mubr.bf16.gmra.mrb[0].mxu0 %v509
        %v548 = vpop.f32.mrb[0].mxu0
        %v549 = vadd.f32 0.0, %v548
        %v550 = vpop.f32.mrb[0].mxu0
        %v551 = vpop.f32.mrb[0].mxu0
        %v552 = vpop.f32.mrb[0].mxu0
        %553 = vdwg.mxu0
        %v555 = vsel %vm507, %v504, 0
        %v558 = vsel %vm507, %v428, 0
        %560 = vmatprep.subr.bf16.mxu0 0
        %561 = vmatpush1.bf16.xpose.msra.mxu0 %v558
        %562 = vmatprep.subr.bf16.mxu0 0
        %563 = vmatpush1.bf16.xpose.msra.mxu0 0
        %564 = vmatprep.subr.bf16.mxu0 0
        %565 = vmatpush1.bf16.xpose.msra.mxu0 0
        %566 = vmatprep.subr.bf16.mxu0 0
        %567 = vmatpush1.bf16.xpose.msra.mxu0 0
        %568 = vmatprep.subr.bf16.mxu0 0
        %569 = vmatpush1.bf16.xpose.msra.mxu0 0
        %570 = vmatprep.subr.bf16.mxu0 0
        %571 = vmatpush1.bf16.xpose.msra.mxu0 0
        %572 = vmatprep.subr.bf16.mxu0 0
        %573 = vmatpush1.bf16.xpose.msra.mxu0 0
        %574 = vmatprep.subr.bf16.mxu0 0
        %575 = vmatpush1.bf16.xpose.msra.mxu0 0
        %576 = vmatprep.subr.bf16.mxu0 0
        %577 = vmatpush1.bf16.xpose.msra.mxu0 0
        %578 = vmatprep.subr.bf16.mxu0 0
        %579 = vmatpush1.bf16.xpose.msra.mxu0 0
        %580 = vmatprep.subr.bf16.mxu0 0
        %581 = vmatpush1.bf16.xpose.msra.mxu0 0
        %582 = vmatprep.subr.bf16.mxu0 0
        %583 = vmatpush1.bf16.xpose.msra.mxu0 0
        %584 = vmatprep.subr.bf16.mxu0 0
        %585 = vmatpush1.bf16.xpose.msra.mxu0 0
        %586 = vmatprep.subr.bf16.mxu0 0
        %587 = vmatpush1.bf16.xpose.msra.mxu0 0
        %588 = vmatprep.subr.bf16.mxu0 0
        %589 = vmatpush1.bf16.xpose.msra.mxu0 0
        %590 = vmatprep.subr.bf16.mxu0 0
        %591 = vmatpush1.bf16.xpose.msra.mxu0 0
        %592 = vmatprep.mubr.bf16.mxu0 0
        %593 = vmatmul.mubr.bf16.gmra.mrb[0].mxu0 %v555
        %v594 = vpop.f32.mrb[0].mxu0
        %v595 = vadd.f32 0.0, %v594
        %v596 = vpop.f32.mrb[0].mxu0
        %v597 = vpop.f32.mrb[0].mxu0
        %v598 = vpop.f32.mrb[0].mxu0
        %599 = vdwg.mxu0
        %v601 = vsel %vm507, %v505, 0
        %v604 = vsel %vm507, %v429, 0
        %606 = vmatprep.subr.bf16.mxu0 0
        %607 = vmatpush1.bf16.xpose.msra.mxu0 %v604
        %608 = vmatprep.subr.bf16.mxu0 0
        %609 = vmatpush1.bf16.xpose.msra.mxu0 0
        %610 = vmatprep.subr.bf16.mxu0 0
        %611 = vmatpush1.bf16.xpose.msra.mxu0 0
        %612 = vmatprep.subr.bf16.mxu0 0
        %613 = vmatpush1.bf16.xpose.msra.mxu0 0
        %614 = vmatprep.subr.bf16.mxu0 0
        %615 = vmatpush1.bf16.xpose.msra.mxu0 0
        %616 = vmatprep.subr.bf16.mxu0 0
        %617 = vmatpush1.bf16.xpose.msra.mxu0 0
        %618 = vmatprep.subr.bf16.mxu0 0
        %619 = vmatpush1.bf16.xpose.msra.mxu0 0
        %620 = vmatprep.subr.bf16.mxu0 0
        %621 = vmatpush1.bf16.xpose.msra.mxu0 0
        %622 = vmatprep.subr.bf16.mxu0 0
        %623 = vmatpush1.bf16.xpose.msra.mxu0 0
        %624 = vmatprep.subr.bf16.mxu0 0
        %625 = vmatpush1.bf16.xpose.msra.mxu0 0
        %626 = vmatprep.subr.bf16.mxu0 0
        %627 = vmatpush1.bf16.xpose.msra.mxu0 0
        %628 = vmatprep.subr.bf16.mxu0 0
        %629 = vmatpush1.bf16.xpose.msra.mxu0 0
        %630 = vmatprep.subr.bf16.mxu0 0
        %631 = vmatpush1.bf16.xpose.msra.mxu0 0
        %632 = vmatprep.subr.bf16.mxu0 0
        %633 = vmatpush1.bf16.xpose.msra.mxu0 0
        %634 = vmatprep.subr.bf16.mxu0 0
        %635 = vmatpush1.bf16.xpose.msra.mxu0 0
        %636 = vmatprep.subr.bf16.mxu0 0
        %637 = vmatpush1.bf16.xpose.msra.mxu0 0
        %638 = vmatprep.mubr.bf16.mxu0 0
        %639 = vmatmul.mubr.bf16.gmra.mrb[0].mxu0 %v601
        %v640 = vpop.f32.mrb[0].mxu0
        %v641 = vadd.f32 0.0, %v640
        %v642 = vpop.f32.mrb[0].mxu0
        %v643 = vpop.f32.mrb[0].mxu0
        %v644 = vpop.f32.mrb[0].mxu0
        %645 = vdwg.mxu0
        %v647 = vsel %vm507, %v506, 0
        %v650 = vsel %vm507, %v430, 0
        %652 = vmatprep.subr.bf16.mxu0 0
        %653 = vmatpush1.bf16.xpose.msra.mxu0 %v650
        %654 = vmatprep.subr.bf16.mxu0 0
        %655 = vmatpush1.bf16.xpose.msra.mxu0 0
        %656 = vmatprep.subr.bf16.mxu0 0
        %657 = vmatpush1.bf16.xpose.msra.mxu0 0
        %658 = vmatprep.subr.bf16.mxu0 0
        %659 = vmatpush1.bf16.xpose.msra.mxu0 0
        %660 = vmatprep.subr.bf16.mxu0 0
        %661 = vmatpush1.bf16.xpose.msra.mxu0 0
        %662 = vmatprep.subr.bf16.mxu0 0
        %663 = vmatpush1.bf16.xpose.msra.mxu0 0
        %664 = vmatprep.subr.bf16.mxu0 0
        %665 = vmatpush1.bf16.xpose.msra.mxu0 0
        %666 = vmatprep.subr.bf16.mxu0 0
        %667 = vmatpush1.bf16.xpose.msra.mxu0 0
        %668 = vmatprep.subr.bf16.mxu0 0
        %669 = vmatpush1.bf16.xpose.msra.mxu0 0
        %670 = vmatprep.subr.bf16.mxu0 0
        %671 = vmatpush1.bf16.xpose.msra.mxu0 0
        %672 = vmatprep.subr.bf16.mxu0 0
        %673 = vmatpush1.bf16.xpose.msra.mxu0 0
        %674 = vmatprep.subr.bf16.mxu0 0
        %675 = vmatpush1.bf16.xpose.msra.mxu0 0
        %676 = vmatprep.subr.bf16.mxu0 0
        %677 = vmatpush1.bf16.xpose.msra.mxu0 0
        %678 = vmatprep.subr.bf16.mxu0 0
        %679 = vmatpush1.bf16.xpose.msra.mxu0 0
        %680 = vmatprep.subr.bf16.mxu0 0
        %681 = vmatpush1.bf16.xpose.msra.mxu0 0
        %682 = vmatprep.subr.bf16.mxu0 0
        %683 = vmatpush1.bf16.xpose.msra.mxu0 0
        %684 = vmatprep.mubr.bf16.mxu0 0
        %685 = vmatmul.mubr.bf16.gmra.mrb[0].mxu0 %v647
        %v686 = vpop.f32.mrb[0].mxu0
        %v687 = vadd.f32 0.0, %v686
        %v688 = vpop.f32.mrb[0].mxu0
        %v689 = vpop.f32.mrb[0].mxu0
        %v690 = vpop.f32.mrb[0].mxu0
        %691 = vdwg.mxu0
        %v693 = vsel %vm507, %v495, 0
        %v696 = vsel %vm507, %v499, 0
        %698 = vmatprep.subr.bf16.mxu0 0
        %699 = vmatpush1.bf16.xpose.msra.mxu0 %v696
        %700 = vmatprep.subr.bf16.mxu0 0
        %701 = vmatpush1.bf16.xpose.msra.mxu0 0
        %702 = vmatprep.subr.bf16.mxu0 0
        %703 = vmatpush1.bf16.xpose.msra.mxu0 0
        %704 = vmatprep.subr.bf16.mxu0 0
        %705 = vmatpush1.bf16.xpose.msra.mxu0 0
        %706 = vmatprep.subr.bf16.mxu0 0
        %707 = vmatpush1.bf16.xpose.msra.mxu0 0
        %708 = vmatprep.subr.bf16.mxu0 0
        %709 = vmatpush1.bf16.xpose.msra.mxu0 0
        %710 = vmatprep.subr.bf16.mxu0 0
        %711 = vmatpush1.bf16.xpose.msra.mxu0 0
        %712 = vmatprep.subr.bf16.mxu0 0
        %713 = vmatpush1.bf16.xpose.msra.mxu0 0
        %714 = vmatprep.subr.bf16.mxu0 0
        %715 = vmatpush1.bf16.xpose.msra.mxu0 0
        %716 = vmatprep.subr.bf16.mxu0 0
        %717 = vmatpush1.bf16.xpose.msra.mxu0 0
        %718 = vmatprep.subr.bf16.mxu0 0
        %719 = vmatpush1.bf16.xpose.msra.mxu0 0
        %720 = vmatprep.subr.bf16.mxu0 0
        %721 = vmatpush1.bf16.xpose.msra.mxu0 0
        %722 = vmatprep.subr.bf16.mxu0 0
        %723 = vmatpush1.bf16.xpose.msra.mxu0 0
        %724 = vmatprep.subr.bf16.mxu0 0
        %725 = vmatpush1.bf16.xpose.msra.mxu0 0
        %726 = vmatprep.subr.bf16.mxu0 0
        %727 = vmatpush1.bf16.xpose.msra.mxu0 0
        %728 = vmatprep.subr.bf16.mxu0 0
        %729 = vmatpush1.bf16.xpose.msra.mxu0 0
        %730 = vmatprep.mubr.bf16.mxu0 0
        %731 = vmatmul.mubr.bf16.gmra.mrb[0].mxu0 %v693
        %v732 = vpop.f32.mrb[0].mxu0
        %v733 = vadd.f32 %v549, %v732
        %v734 = vpop.f32.mrb[0].mxu0
        %v735 = vpop.f32.mrb[0].mxu0
        %v736 = vpop.f32.mrb[0].mxu0
        %737 = vdwg.mxu0
        %v739 = vsel %vm507, %v496, 0
        %v742 = vsel %vm507, %v500, 0
        %744 = vmatprep.subr.bf16.mxu0 0
        %745 = vmatpush1.bf16.xpose.msra.mxu0 %v742
        %746 = vmatprep.subr.bf16.mxu0 0
        %747 = vmatpush1.bf16.xpose.msra.mxu0 0
        %748 = vmatprep.subr.bf16.mxu0 0
        %749 = vmatpush1.bf16.xpose.msra.mxu0 0
        %750 = vmatprep.subr.bf16.mxu0 0
        %751 = vmatpush1.bf16.xpose.msra.mxu0 0
        %752 = vmatprep.subr.bf16.mxu0 0
        %753 = vmatpush1.bf16.xpose.msra.mxu0 0
        %754 = vmatprep.subr.bf16.mxu0 0
        %755 = vmatpush1.bf16.xpose.msra.mxu0 0
        %756 = vmatprep.subr.bf16.mxu0 0
        %757 = vmatpush1.bf16.xpose.msra.mxu0 0
        %758 = vmatprep.subr.bf16.mxu0 0
        %759 = vmatpush1.bf16.xpose.msra.mxu0 0
        %760 = vmatprep.subr.bf16.mxu0 0
        %761 = vmatpush1.bf16.xpose.msra.mxu0 0
        %762 = vmatprep.subr.bf16.mxu0 0
        %763 = vmatpush1.bf16.xpose.msra.mxu0 0
        %764 = vmatprep.subr.bf16.mxu0 0
        %765 = vmatpush1.bf16.xpose.msra.mxu0 0
        %766 = vmatprep.subr.bf16.mxu0 0
        %767 = vmatpush1.bf16.xpose.msra.mxu0 0
        %768 = vmatprep.subr.bf16.mxu0 0
        %769 = vmatpush1.bf16.xpose.msra.mxu0 0
        %770 = vmatprep.subr.bf16.mxu0 0
        %771 = vmatpush1.bf16.xpose.msra.mxu0 0
        %772 = vmatprep.subr.bf16.mxu0 0
        %773 = vmatpush1.bf16.xpose.msra.mxu0 0
        %774 = vmatprep.subr.bf16.mxu0 0
        %775 = vmatpush1.bf16.xpose.msra.mxu0 0
        %776 = vmatprep.mubr.bf16.mxu0 0
        %777 = vmatmul.mubr.bf16.gmra.mrb[0].mxu0 %v739
        %v778 = vpop.f32.mrb[0].mxu0
        %v779 = vadd.f32 %v595, %v778
        %v780 = vpop.f32.mrb[0].mxu0
        %v781 = vpop.f32.mrb[0].mxu0
        %v782 = vpop.f32.mrb[0].mxu0
        %783 = vdwg.mxu0
        %v785 = vsel %vm507, %v497, 0
        %v788 = vsel %vm507, %v501, 0
        %790 = vmatprep.subr.bf16.mxu0 0
        %791 = vmatpush1.bf16.xpose.msra.mxu0 %v788
        %792 = vmatprep.subr.bf16.mxu0 0
        %793 = vmatpush1.bf16.xpose.msra.mxu0 0
        %794 = vmatprep.subr.bf16.mxu0 0
        %795 = vmatpush1.bf16.xpose.msra.mxu0 0
        %796 = vmatprep.subr.bf16.mxu0 0
        %797 = vmatpush1.bf16.xpose.msra.mxu0 0
        %798 = vmatprep.subr.bf16.mxu0 0
        %799 = vmatpush1.bf16.xpose.msra.mxu0 0
        %800 = vmatprep.subr.bf16.mxu0 0
        %801 = vmatpush1.bf16.xpose.msra.mxu0 0
        %802 = vmatprep.subr.bf16.mxu0 0
        %803 = vmatpush1.bf16.xpose.msra.mxu0 0
        %804 = vmatprep.subr.bf16.mxu0 0
        %805 = vmatpush1.bf16.xpose.msra.mxu0 0
        %806 = vmatprep.subr.bf16.mxu0 0
        %807 = vmatpush1.bf16.xpose.msra.mxu0 0
        %808 = vmatprep.subr.bf16.mxu0 0
        %809 = vmatpush1.bf16.xpose.msra.mxu0 0
        %810 = vmatprep.subr.bf16.mxu0 0
        %811 = vmatpush1.bf16.xpose.msra.mxu0 0
        %812 = vmatprep.subr.bf16.mxu0 0
        %813 = vmatpush1.bf16.xpose.msra.mxu0 0
        %814 = vmatprep.subr.bf16.mxu0 0
        %815 = vmatpush1.bf16.xpose.msra.mxu0 0
        %816 = vmatprep.subr.bf16.mxu0 0
        %817 = vmatpush1.bf16.xpose.msra.mxu0 0
        %818 = vmatprep.subr.bf16.mxu0 0
        %819 = vmatpush1.bf16.xpose.msra.mxu0 0
        %820 = vmatprep.subr.bf16.mxu0 0
        %821 = vmatpush1.bf16.xpose.msra.mxu0 0
        %822 = vmatprep.mubr.bf16.mxu0 0
        %823 = vmatmul.mubr.bf16.gmra.mrb[0].mxu0 %v785
        %v824 = vpop.f32.mrb[0].mxu0
        %v825 = vadd.f32 %v641, %v824
        %v826 = vpop.f32.mrb[0].mxu0
        %v827 = vpop.f32.mrb[0].mxu0
        %v828 = vpop.f32.mrb[0].mxu0
        %829 = vdwg.mxu0
        %v831 = vsel %vm507, %v498, 0
        %v834 = vsel %vm507, %v502, 0
        %836 = vmatprep.subr.bf16.mxu0 0
        %837 = vmatpush1.bf16.xpose.msra.mxu0 %v834
        %838 = vmatprep.subr.bf16.mxu0 0
        %839 = vmatpush1.bf16.xpose.msra.mxu0 0
        %840 = vmatprep.subr.bf16.mxu0 0
        %841 = vmatpush1.bf16.xpose.msra.mxu0 0
        %842 = vmatprep.subr.bf16.mxu0 0
        %843 = vmatpush1.bf16.xpose.msra.mxu0 0
        %844 = vmatprep.subr.bf16.mxu0 0
        %845 = vmatpush1.bf16.xpose.msra.mxu0 0
        %846 = vmatprep.subr.bf16.mxu0 0
        %847 = vmatpush1.bf16.xpose.msra.mxu0 0
        %848 = vmatprep.subr.bf16.mxu0 0
        %849 = vmatpush1.bf16.xpose.msra.mxu0 0
        %850 = vmatprep.subr.bf16.mxu0 0
        %851 = vmatpush1.bf16.xpose.msra.mxu0 0
        %852 = vmatprep.subr.bf16.mxu0 0
        %853 = vmatpush1.bf16.xpose.msra.mxu0 0
        %854 = vmatprep.subr.bf16.mxu0 0
        %855 = vmatpush1.bf16.xpose.msra.mxu0 0
        %856 = vmatprep.subr.bf16.mxu0 0
        %857 = vmatpush1.bf16.xpose.msra.mxu0 0
        %858 = vmatprep.subr.bf16.mxu0 0
        %859 = vmatpush1.bf16.xpose.msra.mxu0 0
        %860 = vmatprep.subr.bf16.mxu0 0
        %861 = vmatpush1.bf16.xpose.msra.mxu0 0
        %862 = vmatprep.subr.bf16.mxu0 0
        %863 = vmatpush1.bf16.xpose.msra.mxu0 0
        %864 = vmatprep.subr.bf16.mxu0 0
        %865 = vmatpush1.bf16.xpose.msra.mxu0 0
        %866 = vmatprep.subr.bf16.mxu0 0
        %867 = vmatpush1.bf16.xpose.msra.mxu0 0
        %868 = vmatprep.mubr.bf16.mxu0 0
        %869 = vmatmul.mubr.bf16.gmra.mrb[0].mxu0 %v831
        %v870 = vpop.f32.mrb[0].mxu0
        %v871 = vadd.f32 %v687, %v870
        %v872 = vpop.f32.mrb[0].mxu0
        %v873 = vpop.f32.mrb[0].mxu0
        %v874 = vpop.f32.mrb[0].mxu0
        %875 = vdwg.mxu0
        %v876 = vmul.f32 %v733, 0.25
        %v877 = vmul.f32 %v779, 0.25
        %v878 = vmul.f32 %v825, 0.25
        %v879 = vmul.f32 %v871, 0.25
        %vm880 = vcmask 55296
        %v881 = vsel %vm880, %v876, -inf
        %882 = vmax.xlane.f32.xlu0 %v881
        %v883 = vpop.xlane.xlu0 %882
        %v884 = vsel %vm880, %v877, -inf
        %885 = vmax.xlane.f32.xlu0 %v884
        %v886 = vpop.xlane.xlu0 %885
        %v887 = vsel %vm880, %v878, -inf
        %888 = vmax.xlane.f32.xlu0 %v887
        %v889 = vpop.xlane.xlu0 %888
        %v890 = vsel %vm880, %v879, -inf
        %891 = vmax.xlane.f32.xlu0 %v890
        %v892 = vpop.xlane.xlu0 %891
        %v893 = vsub.f32 %v876, %v883
        %v894 = vsub.f32 %v877, %v886
        %v895 = vsub.f32 %v878, %v889
        %v896 = vsub.f32 %v879, %v892
        %v897 = vmul.f32 %v893, 1.442695
        %v898 = vpow.pop %v897
        %v899 = vmul.f32 %v894, 1.442695
        %v900 = vpow.pop %v899
        %v901 = vmul.f32 %v895, 1.442695
        %v902 = vpow.pop %v901
        %v903 = vmul.f32 %v896, 1.442695
        %v904 = vpow.pop %v903
        %v905 = vsel %vm880, %v898, 0.0
        %906 = vadd.xlane.f32.xlu0 %v905
        %v907 = vpop.xlane.xlu0 %906
        %v908 = vsel %vm880, %v900, 0.0
        %909 = vadd.xlane.f32.xlu0 %v908
        %v910 = vpop.xlane.xlu0 %909
        %v911 = vsel %vm880, %v902, 0.0
        %912 = vadd.xlane.f32.xlu0 %v911
        %v913 = vpop.xlane.xlu0 %912
        %v914 = vsel %vm880, %v904, 0.0
        %915 = vadd.xlane.f32.xlu0 %v914
        %v916 = vpop.xlane.xlu0 %915
        %v917 = vrcp.pop %v907
        %v918 = vrcp.pop %v910
        %v919 = vrcp.pop %v913
        %v920 = vrcp.pop %v916
        %v921 = vmul.f32 %v898, %v917
        %v922 = vmul.f32 %v900, %v918
        %v923 = vmul.f32 %v902, %v919
        %v924 = vmul.f32 %v904, %v920
        %v925 = vpack.c.bf16 %v921, %v921
        %v926 = vpack.c.bf16 %v922, %v922
        %v927 = vpack.c.bf16 %v923, %v923
        %v928 = vpack.c.bf16 %v924, %v924
        %v929 = vpack.c.bf16 %v423, %v423
        %v930 = vpack.c.bf16 %v424, %v424
        %v931 = vpack.c.bf16 %v425, %v425
        %v932 = vpack.c.bf16 %v426, %v426
        %vm933 = vcmask 56320
        %v935 = vsel %vm933, %v925, 0
        %vm937 = vcmask 1042432
        %vm938 = vcmask 1043456
        %v939 = vsel %vm937, 4294967295, 65535
        %v940 = vsel %vm938, %v939, 0
        %v942 = vand.u32 %v929, %v940
        %944 = vmatprep.subr.bf16.mxu0 0
        %945 = vmatpush1.bf16.msra.mxu0 %v942
        %946 = vmatprep.subr.bf16.mxu0 0
        %947 = vmatpush1.bf16.msra.mxu0 0
        %948 = vmatprep.subr.bf16.mxu0 0
        %949 = vmatpush1.bf16.msra.mxu0 0
        %950 = vmatprep.subr.bf16.mxu0 0
        %951 = vmatpush1.bf16.msra.mxu0 0
        %952 = vmatprep.subr.bf16.mxu0 0
        %953 = vmatpush1.bf16.msra.mxu0 0
        %954 = vmatprep.subr.bf16.mxu0 0
        %955 = vmatpush1.bf16.msra.mxu0 0
        %956 = vmatprep.subr.bf16.mxu0 0
        %957 = vmatpush1.bf16.msra.mxu0 0
        %958 = vmatprep.subr.bf16.mxu0 0
        %959 = vmatpush1.bf16.msra.mxu0 0
        %960 = vmatprep.subr.bf16.mxu0 0
        %961 = vmatpush1.bf16.msra.mxu0 0
        %962 = vmatprep.subr.bf16.mxu0 0
        %963 = vmatpush1.bf16.msra.mxu0 0
        %964 = vmatprep.subr.bf16.mxu0 0
        %965 = vmatpush1.bf16.msra.mxu0 0
        %966 = vmatprep.subr.bf16.mxu0 0
        %967 = vmatpush1.bf16.msra.mxu0 0
        %968 = vmatprep.subr.bf16.mxu0 0
        %969 = vmatpush1.bf16.msra.mxu0 0
        %970 = vmatprep.subr.bf16.mxu0 0
        %971 = vmatpush1.bf16.msra.mxu0 0
        %972 = vmatprep.subr.bf16.mxu0 0
        %973 = vmatpush1.bf16.msra.mxu0 0
        %974 = vmatprep.subr.bf16.mxu0 0
        %975 = vmatpush1.bf16.msra.mxu0 0
        %976 = vmatprep.mubr.bf16.mxu0 0
        %977 = vmatmul.mubr.bf16.gmra.mrb[0].mxu0 %v935
        %v978 = vpop.f32.mrb[0].mxu0
        %v979 = vadd.f32 0.0, %v978
        %v980 = vpop.f32.mrb[0].mxu0
        %v981 = vpop.f32.mrb[0].mxu0
        %v982 = vpop.f32.mrb[0].mxu0
        %983 = vdwg.mxu0
        %v985 = vsel %vm933, %v926, 0
        %v988 = vand.u32 %v930, %v940
        %990 = vmatprep.subr.bf16.mxu0 0
        %991 = vmatpush1.bf16.msra.mxu0 %v988
        %992 = vmatprep.subr.bf16.mxu0 0
        %993 = vmatpush1.bf16.msra.mxu0 0
        %994 = vmatprep.subr.bf16.mxu0 0
        %995 = vmatpush1.bf16.msra.mxu0 0
        %996 = vmatprep.subr.bf16.mxu0 0
        %997 = vmatpush1.bf16.msra.mxu0 0
        %998 = vmatprep.subr.bf16.mxu0 0
        %999 = vmatpush1.bf16.msra.mxu0 0
        %1000 = vmatprep.subr.bf16.mxu0 0
        %1001 = vmatpush1.bf16.msra.mxu0 0
        %1002 = vmatprep.subr.bf16.mxu0 0
        %1003 = vmatpush1.bf16.msra.mxu0 0
        %1004 = vmatprep.subr.bf16.mxu0 0
        %1005 = vmatpush1.bf16.msra.mxu0 0
        %1006 = vmatprep.subr.bf16.mxu0 0
        %1007 = vmatpush1.bf16.msra.mxu0 0
        %1008 = vmatprep.subr.bf16.mxu0 0
        %1009 = vmatpush1.bf16.msra.mxu0 0
        %1010 = vmatprep.subr.bf16.mxu0 0
        %1011 = vmatpush1.bf16.msra.mxu0 0
        %1012 = vmatprep.subr.bf16.mxu0 0
        %1013 = vmatpush1.bf16.msra.mxu0 0
        %1014 = vmatprep.subr.bf16.mxu0 0
        %1015 = vmatpush1.bf16.msra.mxu0 0
        %1016 = vmatprep.subr.bf16.mxu0 0
        %1017 = vmatpush1.bf16.msra.mxu0 0
        %1018 = vmatprep.subr.bf16.mxu0 0
        %1019 = vmatpush1.bf16.msra.mxu0 0
        %1020 = vmatprep.subr.bf16.mxu0 0
        %1021 = vmatpush1.bf16.msra.mxu0 0
        %1022 = vmatprep.mubr.bf16.mxu0 0
        %1023 = vmatmul.mubr.bf16.gmra.mrb[0].mxu0 %v985
        %v1024 = vpop.f32.mrb[0].mxu0
        %v1025 = vadd.f32 0.0, %v1024
        %v1026 = vpop.f32.mrb[0].mxu0
        %v1027 = vpop.f32.mrb[0].mxu0
        %v1028 = vpop.f32.mrb[0].mxu0
        %1029 = vdwg.mxu0
        %v1031 = vsel %vm933, %v927, 0
        %v1034 = vand.u32 %v931, %v940
        %1036 = vmatprep.subr.bf16.mxu0 0
        %1037 = vmatpush1.bf16.msra.mxu0 %v1034
        %1038 = vmatprep.subr.bf16.mxu0 0
        %1039 = vmatpush1.bf16.msra.mxu0 0
        %1040 = vmatprep.subr.bf16.mxu0 0
        %1041 = vmatpush1.bf16.msra.mxu0 0
        %1042 = vmatprep.subr.bf16.mxu0 0
        %1043 = vmatpush1.bf16.msra.mxu0 0
        %1044 = vmatprep.subr.bf16.mxu0 0
        %1045 = vmatpush1.bf16.msra.mxu0 0
        %1046 = vmatprep.subr.bf16.mxu0 0
        %1047 = vmatpush1.bf16.msra.mxu0 0
        %1048 = vmatprep.subr.bf16.mxu0 0
        %1049 = vmatpush1.bf16.msra.mxu0 0
        %1050 = vmatprep.subr.bf16.mxu0 0
        %1051 = vmatpush1.bf16.msra.mxu0 0
        %1052 = vmatprep.subr.bf16.mxu0 0
        %1053 = vmatpush1.bf16.msra.mxu0 0
        %1054 = vmatprep.subr.bf16.mxu0 0
        %1055 = vmatpush1.bf16.msra.mxu0 0
        %1056 = vmatprep.subr.bf16.mxu0 0
        %1057 = vmatpush1.bf16.msra.mxu0 0
        %1058 = vmatprep.subr.bf16.mxu0 0
        %1059 = vmatpush1.bf16.msra.mxu0 0
        %1060 = vmatprep.subr.bf16.mxu0 0
        %1061 = vmatpush1.bf16.msra.mxu0 0
        %1062 = vmatprep.subr.bf16.mxu0 0
        %1063 = vmatpush1.bf16.msra.mxu0 0
        %1064 = vmatprep.subr.bf16.mxu0 0
        %1065 = vmatpush1.bf16.msra.mxu0 0
        %1066 = vmatprep.subr.bf16.mxu0 0
        %1067 = vmatpush1.bf16.msra.mxu0 0
        %1068 = vmatprep.mubr.bf16.mxu0 0
        %1069 = vmatmul.mubr.bf16.gmra.mrb[0].mxu0 %v1031
        %v1070 = vpop.f32.mrb[0].mxu0
        %v1071 = vadd.f32 0.0, %v1070
        %v1072 = vpop.f32.mrb[0].mxu0
        %v1073 = vpop.f32.mrb[0].mxu0
        %v1074 = vpop.f32.mrb[0].mxu0
        %1075 = vdwg.mxu0
        %v1077 = vsel %vm933, %v928, 0
        %v1080 = vand.u32 %v932, %v940
        %1082 = vmatprep.subr.bf16.mxu0 0
        %1083 = vmatpush1.bf16.msra.mxu0 %v1080
        %1084 = vmatprep.subr.bf16.mxu0 0
        %1085 = vmatpush1.bf16.msra.mxu0 0
        %1086 = vmatprep.subr.bf16.mxu0 0
        %1087 = vmatpush1.bf16.msra.mxu0 0
        %1088 = vmatprep.subr.bf16.mxu0 0
        %1089 = vmatpush1.bf16.msra.mxu0 0
        %1090 = vmatprep.subr.bf16.mxu0 0
        %1091 = vmatpush1.bf16.msra.mxu0 0
        %1092 = vmatprep.subr.bf16.mxu0 0
        %1093 = vmatpush1.bf16.msra.mxu0 0
        %1094 = vmatprep.subr.bf16.mxu0 0
        %1095 = vmatpush1.bf16.msra.mxu0 0
        %1096 = vmatprep.subr.bf16.mxu0 0
        %1097 = vmatpush1.bf16.msra.mxu0 0
        %1098 = vmatprep.subr.bf16.mxu0 0
        %1099 = vmatpush1.bf16.msra.mxu0 0
        %1100 = vmatprep.subr.bf16.mxu0 0
        %1101 = vmatpush1.bf16.msra.mxu0 0
        %1102 = vmatprep.subr.bf16.mxu0 0
        %1103 = vmatpush1.bf16.msra.mxu0 0
        %1104 = vmatprep.subr.bf16.mxu0 0
        %1105 = vmatpush1.bf16.msra.mxu0 0
        %1106 = vmatprep.subr.bf16.mxu0 0
        %1107 = vmatpush1.bf16.msra.mxu0 0
        %1108 = vmatprep.subr.bf16.mxu0 0
        %1109 = vmatpush1.bf16.msra.mxu0 0
        %1110 = vmatprep.subr.bf16.mxu0 0
        %1111 = vmatpush1.bf16.msra.mxu0 0
        %1112 = vmatprep.subr.bf16.mxu0 0
        %1113 = vmatpush1.bf16.msra.mxu0 0
        %1114 = vmatprep.mubr.bf16.mxu0 0
        %1115 = vmatmul.mubr.bf16.gmra.mrb[0].mxu0 %v1077
        %v1116 = vpop.f32.mrb[0].mxu0
        %v1117 = vadd.f32 0.0, %v1116
        %v1118 = vpop.f32.mrb[0].mxu0
        %v1119 = vpop.f32.mrb[0].mxu0
        %v1120 = vpop.f32.mrb[0].mxu0
        %1121 = vdwg.mxu0
        %v1122 = vcombine.low %v979, %v1071
        %v1123 = vcombine.high %v979, %v1071
        %v1125 = vunpack.c.l.s4 1983009808
        %v1126 = vunpack.c.0.s8 %v1125
        %v1127 = vlaneseq
        %v1128 = vshrl.u32 %v1127, 7
        %v1129 = vsub.s32 %v1126, %v1128
        %v1130 = vrot.slane %v1122, %v1129
        %v1132 = vunpack.c.l.s4 1983009808
        %v1133 = vunpack.c.0.s8 %v1132
        %v1134 = vlaneseq
        %v1135 = vshrl.u32 %v1134, 7
        %v1136 = vsub.s32 %v1133, %v1135
        %v1137 = vrot.slane %v1123, %v1136
        %v1138 = vcombine.low %v1025, %v1117
        %v1139 = vcombine.high %v1025, %v1117
        %v1141 = vunpack.c.l.s4 1983009808
        %v1142 = vunpack.c.0.s8 %v1141
        %v1143 = vlaneseq
        %v1144 = vshrl.u32 %v1143, 7
        %v1145 = vsub.s32 %v1142, %v1144
        %v1146 = vrot.slane %v1138, %v1145
        %v1148 = vunpack.c.l.s4 1983009808
        %v1149 = vunpack.c.0.s8 %v1148
        %v1150 = vlaneseq
        %v1151 = vshrl.u32 %v1150, 7
        %v1152 = vsub.s32 %v1149, %v1151
        %v1153 = vrot.slane %v1139, %v1152
        %v1154 = vcombine.low %v1130, %v1146
        %v1155 = vcombine.high %v1130, %v1146
        %v1157 = vunpack.c.l.s4 1934713408
        %v1158 = vunpack.c.0.s8 %v1157
        %v1159 = vlaneseq
        %v1160 = vshrl.u32 %v1159, 7
        %v1161 = vsub.s32 %v1158, %v1160
        %v1162 = vrot.slane %v1154, %v1161
        %v1164 = vunpack.c.l.s4 1934713408
        %v1165 = vunpack.c.0.s8 %v1164
        %v1166 = vlaneseq
        %v1167 = vshrl.u32 %v1166, 7
        %v1168 = vsub.s32 %v1165, %v1167
        %v1169 = vrot.slane %v1155, %v1168
        %v1170 = vcombine.low %v1137, %v1153
        %v1171 = vcombine.high %v1137, %v1153
        %v1173 = vunpack.c.l.s4 1934713408
        %v1174 = vunpack.c.0.s8 %v1173
        %v1175 = vlaneseq
        %v1176 = vshrl.u32 %v1175, 7
        %v1177 = vsub.s32 %v1174, %v1176
        %v1178 = vrot.slane %v1170, %v1177
        %v1179 = vcombine.high %v1162, 0.0
        %v1180 = vcombine.high %v1169, 0.0
        %v1182 = vunpack.c.l.s4 1934713408
        %v1183 = vunpack.c.0.s8 %v1182
        %v1184 = vlaneseq
        %v1185 = vshrl.u32 %v1184, 7
        %v1186 = vsub.s32 %v1183, %v1185
        %v1187 = vrot.slane %v1171, %v1186
        %v1188 = vcombine.low %v1162, %v1169
        %v1190 = vunpack.c.l.s4 1983009808
        %v1191 = vunpack.c.0.s8 %v1190
        %v1192 = vlaneseq
        %v1193 = vshrl.u32 %v1192, 7
        %v1194 = vsub.s32 %v1191, %v1193
        %v1195 = vrot.slane %v1188, %v1194
        %v1196 = vcombine.low %v1179, %v1180
        %v1198 = vunpack.c.l.s4 1983009808
        %v1199 = vunpack.c.0.s8 %v1198
        %v1200 = vlaneseq
        %v1201 = vshrl.u32 %v1200, 7
        %v1202 = vsub.s32 %v1199, %v1201
        %v1203 = vrot.slane %v1196, %v1202
        %v1204 = vcombine.low %v1178, %v1187
        %v1206 = vunpack.c.l.s4 1983009808
        %v1207 = vunpack.c.0.s8 %v1206
        %v1208 = vlaneseq
        %v1209 = vshrl.u32 %v1208, 7
        %v1210 = vsub.s32 %v1207, %v1209
        %v1211 = vrot.slane %v1204, %v1210
        %v1212 = vcombine.high %v1178, 0.0
        %v1214 = vunpack.c.l.s4 1983009808
        %v1215 = vunpack.c.0.s8 %v1214
        %v1216 = vlaneseq
        %v1217 = vshrl.u32 %v1216, 7
        %v1218 = vsub.s32 %v1215, %v1217
        %v1219 = vrot.slane %v1212, %v1218
        %v1220 = vcombine.low %v1195, %v1203
        %v1221 = vcombine.high %v1195, %v1203
        %v1223 = vunpack.c.l.s4 1934713408
        %v1224 = vunpack.c.0.s8 %v1223
        %v1225 = vlaneseq
        %v1226 = vshrl.u32 %v1225, 7
        %v1227 = vsub.s32 %v1224, %v1226
        %v1228 = vrot.slane %v1220, %v1227
        %v1230 = vunpack.c.l.s4 1934713408
        %v1231 = vunpack.c.0.s8 %v1230
        %v1232 = vlaneseq
        %v1233 = vshrl.u32 %v1232, 7
        %v1234 = vsub.s32 %v1231, %v1233
        %v1235 = vrot.slane %v1221, %v1234
        %v1236 = vcombine.low %v1211, %v1219
        %v1237 = vcombine.high %v1211, %v1219
        %v1239 = vunpack.c.l.s4 1934713408
        %v1240 = vunpack.c.0.s8 %v1239
        %v1241 = vlaneseq
        %v1242 = vshrl.u32 %v1241, 7
        %v1243 = vsub.s32 %v1240, %v1242
        %v1244 = vrot.slane %v1236, %v1243
        %v1246 = vunpack.c.l.s4 1934713408
        %v1247 = vunpack.c.0.s8 %v1246
        %v1248 = vlaneseq
        %v1249 = vshrl.u32 %v1248, 7
        %v1250 = vsub.s32 %v1247, %v1249
        %v1251 = vrot.slane %v1237, %v1250
        %v1252 = vcombine.low %v1228, %v1244
        %v1253 = vcombine.high %v1228, %v1244
        %v1254 = vcombine.low %v1235, %v1251
        %v1255 = vcombine.high %v1235, %v1251
        %1257 = vrot.lane.b32.xlu0 %v1253, 16
        %v1258 = vpop.permute.xlu0 %1257
        %1261 = vrot.lane.b32.xlu0 %v1254, 32
        %v1262 = vpop.permute.xlu0 %1261
        %1265 = vrot.lane.b32.xlu0 %v1255, 48
        %v1266 = vpop.permute.xlu0 %1265
        %v1268 = vsel %vm507, %v1252, %v1258
        %vm1269 = vcmask 261120
        %v1270 = vsel %vm1269, %v1268, %v1262
        %vm1271 = vcmask 392192
        %v1272 = vsel %vm1271, %v1270, %v1266
        %v1273 = vpack.c.bf16 %v1272, %v1272
        %v1274 = vld [vmem:[#allocation10] sm:$0xf]
        %v1275 = vld [vmem:[#allocation10 + $0x4] sm:$0xf]
        %v1276 = vld [vmem:[#allocation10 + $0x8] sm:$0xf]
        %v1277 = vld [vmem:[#allocation10 + $0xc] sm:$0xf]
        %v1278 = vld [vmem:[#allocation10 + $0x10] sm:$0xf]
        %v1279 = vld [vmem:[#allocation10 + $0x14] sm:$0xf]
        %v1280 = vld [vmem:[#allocation10 + $0x18] sm:$0xf]
        %v1281 = vld [vmem:[#allocation10 + $0x1c] sm:$0xf]
        %v1282 = vld [vmem:[#allocation11] sm:$0x1]
        %v1284 = vlaneseq
        %v1285 = vshrl.u32 %v1284, 7
        %v1286 = vsub.s32 0, %v1285
        %v1287 = vrot.slane %v1282, %v1286
        %v1297 = vunpack.c.l.b16 %v1274
        %v1298 = vunpack.c.l.b16 %v1275
        %v1299 = vunpack.c.l.b16 %v1276
        %v1300 = vunpack.c.l.b16 %v1277
        %v1301 = vunpack.c.l.b16 %v1278
        %v1302 = vunpack.c.l.b16 %v1279
        %v1303 = vunpack.c.l.b16 %v1280
        %v1304 = vunpack.c.l.b16 %v1281
        %v1305 = vpack.c.b16 %v1298, %v1297
        %v1306 = vpack.c.b16 %v1300, %v1299
        %v1307 = vpack.c.b16 %v1302, %v1301
        %v1308 = vpack.c.b16 %v1304, %v1303
        %vm1313 = vcmask 523264
        %v1315 = vsel %vm1313, %v1273, 0
        %1317 = vmatprep.subr.bf16.mxu0 0
        %1318 = vmatpush1.bf16.msra.mxu0 %v1305
        %1319 = vmatprep.subr.bf16.mxu0 0
        %1320 = vmatpush1.bf16.msra.mxu0 %v1306
        %1321 = vmatprep.subr.bf16.mxu0 0
        %1322 = vmatpush1.bf16.msra.mxu0 %v1307
        %1323 = vmatprep.subr.bf16.mxu0 0
        %1324 = vmatpush1.bf16.msra.mxu0 %v1308
        %1325 = vmatprep.subr.bf16.mxu0 0
        %1326 = vmatpush1.bf16.msra.mxu0 0
        %1327 = vmatprep.subr.bf16.mxu0 0
        %1328 = vmatpush1.bf16.msra.mxu0 0
        %1329 = vmatprep.subr.bf16.mxu0 0
        %1330 = vmatpush1.bf16.msra.mxu0 0
        %1331 = vmatprep.subr.bf16.mxu0 0
        %1332 = vmatpush1.bf16.msra.mxu0 0
        %1333 = vmatprep.subr.bf16.mxu0 0
        %1334 = vmatpush1.bf16.msra.mxu0 0
        %1335 = vmatprep.subr.bf16.mxu0 0
        %1336 = vmatpush1.bf16.msra.mxu0 0
        %1337 = vmatprep.subr.bf16.mxu0 0
        %1338 = vmatpush1.bf16.msra.mxu0 0
        %1339 = vmatprep.subr.bf16.mxu0 0
        %1340 = vmatpush1.bf16.msra.mxu0 0
        %1341 = vmatprep.subr.bf16.mxu0 0
        %1342 = vmatpush1.bf16.msra.mxu0 0
        %1343 = vmatprep.subr.bf16.mxu0 0
        %1344 = vmatpush1.bf16.msra.mxu0 0
        %1345 = vmatprep.subr.bf16.mxu0 0
        %1346 = vmatpush1.bf16.msra.mxu0 0
        %1347 = vmatprep.subr.bf16.mxu0 0
        %1348 = vmatpush1.bf16.msra.mxu0 0
        %1349 = vmatprep.mubr.bf16.mxu0 0
        %1350 = vmatmul.mubr.bf16.gmra.mrb[0].mxu0 %v1315
        %v1351 = vpop.f32.mrb[0].mxu0
        %v1352 = vadd.f32 %v1287, %v1351
        %v1353 = vpop.f32.mrb[0].mxu0
        %v1354 = vpop.f32.mrb[0].mxu0
        %v1355 = vpop.f32.mrb[0].mxu0
        %1356 = vdwg.mxu0
        %v1357 = vld [vmem:[%s366] sm:$0x7f]
        %v1358 = vadd.f32 %v1357, %v1352
        %vm1359 = vcmask 522240
        %1360 = vst.msk [vmem:[%s401] sm:$0x7f] %vm1359, %v1358
        %s1361 = sand.u32 %s192, 1
        %s1362 = scalar_lea.sflag [#allocation4], %s1361
        %s1363 = sand.u32 %s192, 1
        %s1364 = smul.addr %s1363, 8
        %s1365 = scalar_lea.vmem [#allocation14], %s1364
        // Predicated region
        $region77: #{net_forward.34} parent=47 // pred_check
          %p1366 = pneg %p202
        $region78: #{net_forward.34} parent=47 // pred_check_branch
          %1368 = sbr.rel (%p1366) target = $region80
        $region79: #{net_forward.34} parent=47 // pred_region
          %s1370 = ssub.s32 128, 128
          %1371 = vsyncadd %s1362, %s1370
          %s1372 = smul.addr %s27, 128
          %s1373 = scalar_lea.hbm %s7, %s1372
          %s1375 = sshll.u32 %s1365, 4
          %s1376 = int_to_ptr.vmem [resolvable:$true] %s1375
          %1378 = dma.vmem_to_hbm [thread:$0]  %s1376, 128, %s1373, %s1362
        $region80: #{net_forward.34} parent=47 // pred_fallthru
          _
      $region48: #{net_forward.34} parent=5 // pred_fallthru
        _
      %p1379 = scmp.le.s32.totalorder 2, %s22
      // Predicated region
      $region81: #{net_forward.34} parent=5 // pred_check
        %p1380 = pneg %p1379
      $region82: #{net_forward.34} parent=5 // pred_check_branch
        %1382 = sbr.rel (%p1380) target = $region84
      $region83: #{net_forward.34} parent=5 // pred_region
        %s1383 = ssub.s32 %s22, 2
        // Predicated region
        $region85: #{net_forward.34} parent=83 // pred_check
          %p1384 = pneg %p208
        $region86: #{net_forward.34} parent=83 // pred_check_branch
          %1386 = sbr.rel (%p1384) target = $region88
        $region87: #{net_forward.34} parent=83 // pred_region
          %s1387 = sand.u32 %s193, 1
          %s1388 = scalar_lea.sflag [#allocation4], %s1387
          %s1389 = sand.u32 %s193, 1
          %s1390 = smul.addr %s1389, 8
          %s1391 = scalar_lea.vmem [#allocation14], %s1390
          %1392 = dma.done %s1388, 128
        $region88: #{net_forward.34} parent=83 // pred_fallthru
          _
      $region84: #{net_forward.34} parent=5 // pred_fallthru
        _
    $region6: #{net_forward.34} parent=1 // loop_footer
      %s26 = sadd.s32 1, %s22
    $region7: #{net_forward.34} parent=1 // loop_footer_branch
      %21 = sbr.rel target = $region3
    $region8: #{net_forward.34} parent=1 // loop_exit
      _
    %1393 = vsyncpa [#allocation3], 1
    %s1394 = scalar_lea.sflag [#allocation3], 1
    %1395 = vsyncpa %s1394, 1
    %1396 = vsyncpa [#allocation6], 1
    %1397 = vsyncpa [#allocation9], 1
    %1398 = vsyncpa [#allocation12], 1
    %1399 = vsyncpa [#allocation4], 1
    %s1400 = scalar_lea.sflag [#allocation4], 1
    %1401 = vsyncpa %s1400, 1

// kernel: net_forward.37
$region0: #{net_forward.37}
  #allocation0 [shape = 'u32[]', space=smem, size = 0x4, offset = 0x4, fixed_abs, tag = 'smem constant byte address 0x4 - core index']
  #allocation1 [shape = 'u32[144,128]{1,0:T(1,128)}', space=vmem, size = 0x12000, scoped, tag = 'internal scratch']
  %s0 = inlined_call_operand.hbm [shape: f32[14,64], index: 0, kind: input, shape index: {}]
  %s1 = inlined_call_operand.hbm [shape: bf16[14,64], index: 1, kind: input, shape index: {}]
  %s2 = inlined_call_operand.hbm [shape: f32[1,64], index: 2, kind: input, shape index: {}]
  %s3 = inlined_call_operand.hbm [shape: f32[1,64], index: 3, kind: input, shape index: {}]
  %s4 = inlined_call_operand.hbm [shape: bf16[64,4], index: 4, kind: input, shape index: {}]
  %s5 = inlined_call_operand.hbm [shape: bf16[64,4], index: 5, kind: input, shape index: {}]
  %s6 = inlined_call_operand.hbm [shape: bf16[4,64,128], index: 6, kind: input, shape index: {}]
  %s7 = inlined_call_operand.hbm [shape: f32[4,1,128], index: 7, kind: input, shape index: {}]
  %s8 = inlined_call_operand.hbm [shape: bf16[4,128,64], index: 8, kind: input, shape index: {}]
  %s9 = inlined_call_operand.hbm [shape: f32[4,1,64], index: 9, kind: input, shape index: {}]
  %s10 = inlined_call_operand.hbm [shape: f32[1,64], index: 10, kind: input, shape index: {}]
  %s11 = inlined_call_operand.hbm [shape: f32[1,64], index: 11, kind: input, shape index: {}]
  %s12 = inlined_call_operand.hbm [shape: f32[14,64], index: 12, kind: output, shape index: {}]
  %s13 = sld [smem:[#allocation0]]
  $region106: #{net_forward.37} parent=0
    _
  %s15 = ssub.s32 1, %s13
  %s16 = scalar_select 0, %s15, %s13
  $region1: #{net_forward.37} parent=0
    #allocation2 [shape = 'u8[8192]{0}', space=vmem, size = 0x2000, scoped, tag = 'input window, operand 0, single buffered']
    #allocation3 [shape = 's32[1]{0}', space=sflag, size = 0x4, scoped, tag = 'scoped memory for net_forward.37']
    #allocation4 [shape = 's32[1]{0}', space=sflag, size = 0x4, scoped, tag = 'scoped memory for net_forward.37']
    #allocation5 [shape = 'u8[4096]{0}', space=vmem, size = 0x1000, scoped, tag = 'input window, operand 1, single buffered']
    #allocation6 [shape = 's32[1]{0}', space=sflag, size = 0x4, scoped, tag = 'scoped memory for net_forward.37']
    #allocation7 [shape = 'u8[512]{0}', space=vmem, size = 0x400, scoped, tag = 'input window, operand 2, single buffered']
    #allocation8 [shape = 'u8[512]{0}', space=vmem, size = 0x400, scoped, tag = 'input window, operand 3, single buffered']
    #allocation9 [shape = 's32[1]{0}', space=sflag, size = 0x4, scoped, tag = 'scoped memory for net_forward.37']
    #allocation10 [shape = 'u8[16384]{0}', space=vmem, size = 0x4000, scoped, tag = 'input window, operand 4, single buffered']
    #allocation11 [shape = 'u8[16384]{0}', space=vmem, size = 0x4000, scoped, tag = 'input window, operand 5, single buffered']
    #allocation12 [shape = 's32[1]{0}', space=sflag, size = 0x4, scoped, tag = 'scoped memory for net_forward.37']
    #allocation13 [shape = 'u8[65536]{0}', space=vmem, size = 0x10000, scoped, tag = 'input window, operand 6, single buffered']
    #allocation14 [shape = 'u8[2048]{0}', space=vmem, size = 0x800, scoped, tag = 'input window, operand 7, single buffered']
    #allocation15 [shape = 's32[1]{0}', space=sflag, size = 0x4, scoped, tag = 'scoped memory for net_forward.37']
    #allocation16 [shape = 'u8[131072]{0}', space=vmem, size = 0x20000, scoped, tag = 'input window, operand 8, single buffered']
    #allocation17 [shape = 'u8[2048]{0}', space=vmem, size = 0x800, scoped, tag = 'input window, operand 9, single buffered']
    #allocation18 [shape = 's32[1]{0}', space=sflag, size = 0x4, scoped, tag = 'scoped memory for net_forward.37']
    #allocation19 [shape = 'u8[512]{0}', space=vmem, size = 0x400, scoped, tag = 'input window, operand 10, single buffered']
    #allocation20 [shape = 'u8[512]{0}', space=vmem, size = 0x400, scoped, tag = 'input window, operand 11, single buffered']
    #allocation21 [shape = 's32[1]{0}', space=sflag, size = 0x4, scoped, tag = 'scoped memory for net_forward.37']
    #allocation22 [shape = 'u8[8192]{0}', space=vmem, size = 0x2000, scoped, tag = 'output window, operand 0, single buffered']
    %17 = vsyncpa [#allocation3], 0
    %18 = vsyncpa [#allocation6], 0
    %19 = vsyncpa [#allocation9], 0
    %20 = vsyncpa [#allocation12], 0
    %21 = vsyncpa [#allocation15], 0
    %22 = vsyncpa [#allocation18], 0
    %23 = vsyncpa [#allocation21], 0
    %24 = vsyncpa [#allocation4], 0
    // Predicated region
    $region2: #{net_forward.37} parent=1 // pred_check
      _
    $region3: #{net_forward.37} parent=1 // pred_check_branch
      %26 = sbr.rel (0) target = $region5
    $region4: #{net_forward.37} parent=1 // pred_region
      %s28 = ssub.s32 256, 256
      %29 = vsyncadd [#allocation3], %s28
      %s30 = sshll.u32 [#allocation2], 4
      %s31 = int_to_ptr.vmem [resolvable:$true] %s30
      %36 = dma.hbm_to_vmem [thread:$0]  %s0, 256, %s31, [#allocation3], 128, 128, 8
    $region5: #{net_forward.37} parent=1 // pred_fallthru
      _
    // Predicated region
    $region6: #{net_forward.37} parent=1 // pred_check
      _
    $region7: #{net_forward.37} parent=1 // pred_check_branch
      %38 = sbr.rel (0) target = $region9
    $region8: #{net_forward.37} parent=1 // pred_region
      %s40 = ssub.s32 128, 128
      %41 = vsyncadd [#allocation6], %s40
      %s42 = sshll.u32 [#allocation5], 4
      %s43 = int_to_ptr.vmem [resolvable:$true] %s42
      %48 = dma.hbm_to_vmem [thread:$0]  %s1, 128, %s43, [#allocation6], 64, 64, 4
    $region9: #{net_forward.37} parent=1 // pred_fallthru
      _
    // Predicated region
    $region10: #{net_forward.37} parent=1 // pred_check
      _
    $region11: #{net_forward.37} parent=1 // pred_check_branch
      %50 = sbr.rel (0) target = $region13
    $region12: #{net_forward.37} parent=1 // pred_region
      %s52 = ssub.s32 16, 16
      %53 = vsyncadd [#allocation6], %s52
      %s55 = sshll.u32 [#allocation7], 4
      %s56 = int_to_ptr.vmem [resolvable:$true] %s55
      %58 = dma.hbm_to_vmem [thread:$0]  %s2, 16, %s56, [#allocation6]
    $region13: #{net_forward.37} parent=1 // pred_fallthru
      _
    // Predicated region
    $region14: #{net_forward.37} parent=1 // pred_check
      _
    $region15: #{net_forward.37} parent=1 // pred_check_branch
      %60 = sbr.rel (0) target = $region17
    $region16: #{net_forward.37} parent=1 // pred_region
      %s62 = ssub.s32 16, 16
      %63 = vsyncadd [#allocation9], %s62
      %s65 = sshll.u32 [#allocation8], 4
      %s66 = int_to_ptr.vmem [resolvable:$true] %s65
      %68 = dma.hbm_to_vmem [thread:$0]  %s3, 16, %s66, [#allocation9]
    $region17: #{net_forward.37} parent=1 // pred_fallthru
      _
    // Predicated region
    $region18: #{net_forward.37} parent=1 // pred_check
      _
    $region19: #{net_forward.37} parent=1 // pred_check_branch
      %70 = sbr.rel (0) target = $region21
    $region20: #{net_forward.37} parent=1 // pred_region
      %s72 = ssub.s32 512, 512
      %73 = vsyncadd [#allocation9], %s72
      %s74 = sshll.u32 [#allocation10], 4
      %s75 = int_to_ptr.vmem [resolvable:$true] %s74
      %80 = dma.hbm_to_vmem [thread:$0]  %s4, 512, %s75, [#allocation9], 64, 64, 4
    $region21: #{net_forward.37} parent=1 // pred_fallthru
      _
    // Predicated region
    $region22: #{net_forward.37} parent=1 // pred_check
      _
    $region23: #{net_forward.37} parent=1 // pred_check_branch
      %82 = sbr.rel (0) target = $region25
    $region24: #{net_forward.37} parent=1 // pred_region
      %s84 = ssub.s32 512, 512
      %85 = vsyncadd [#allocation12], %s84
      %s86 = sshll.u32 [#allocation11], 4
      %s87 = int_to_ptr.vmem [resolvable:$true] %s86
      %92 = dma.hbm_to_vmem [thread:$0]  %s5, 512, %s87, [#allocation12], 64, 64, 4
    $region25: #{net_forward.37} parent=1 // pred_fallthru
      _
    // Predicated region
    $region26: #{net_forward.37} parent=1 // pred_check
      _
    $region27: #{net_forward.37} parent=1 // pred_check_branch
      %94 = sbr.rel (0) target = $region29
    $region28: #{net_forward.37} parent=1 // pred_region
      %s96 = ssub.s32 2048, 2048
      %97 = vsyncadd [#allocation12], %s96
      %s98 = sshll.u32 [#allocation13], 4
      %s99 = int_to_ptr.vmem [resolvable:$true] %s98
      %104 = dma.hbm_to_vmem [thread:$0]  %s6, 2048, %s99, [#allocation12], 64, 64, 4
    $region29: #{net_forward.37} parent=1 // pred_fallthru
      _
    // Predicated region
    $region30: #{net_forward.37} parent=1 // pred_check
      _
    $region31: #{net_forward.37} parent=1 // pred_check_branch
      %106 = sbr.rel (0) target = $region33
    $region32: #{net_forward.37} parent=1 // pred_region
      %s108 = ssub.s32 64, 64
      %109 = vsyncadd [#allocation15], %s108
      %s110 = sshll.u32 [#allocation14], 4
      %s111 = int_to_ptr.vmem [resolvable:$true] %s110
      %116 = dma.hbm_to_vmem [thread:$0]  %s7, 64, %s111, [#allocation15], 16, 16, 1
    $region33: #{net_forward.37} parent=1 // pred_fallthru
      _
    // Predicated region
    $region34: #{net_forward.37} parent=1 // pred_check
      _
    $region35: #{net_forward.37} parent=1 // pred_check_branch
      %118 = sbr.rel (0) target = $region37
    $region36: #{net_forward.37} parent=1 // pred_region
      %s120 = ssub.s32 4096, 4096
      %121 = vsyncadd [#allocation15], %s120
      %s122 = sshll.u32 [#allocation16], 4
      %s123 = int_to_ptr.vmem [resolvable:$true] %s122
      %128 = dma.hbm_to_vmem [thread:$0]  %s8, 4096, %s123, [#allocation15], 64, 64, 4
    $region37: #{net_forward.37} parent=1 // pred_fallthru
      _
    // Predicated region
    $region38: #{net_forward.37} parent=1 // pred_check
      _
    $region39: #{net_forward.37} parent=1 // pred_check_branch
      %130 = sbr.rel (0) target = $region41
    $region40: #{net_forward.37} parent=1 // pred_region
      %s132 = ssub.s32 64, 64
      %133 = vsyncadd [#allocation18], %s132
      %s134 = sshll.u32 [#allocation17], 4
      %s135 = int_to_ptr.vmem [resolvable:$true] %s134
      %140 = dma.hbm_to_vmem [thread:$0]  %s9, 64, %s135, [#allocation18], 16, 16, 1
    $region41: #{net_forward.37} parent=1 // pred_fallthru
      _
    // Predicated region
    $region42: #{net_forward.37} parent=1 // pred_check
      _
    $region43: #{net_forward.37} parent=1 // pred_check_branch
      %142 = sbr.rel (0) target = $region45
    $region44: #{net_forward.37} parent=1 // pred_region
      %s144 = ssub.s32 16, 16
      %145 = vsyncadd [#allocation18], %s144
      %s147 = sshll.u32 [#allocation19], 4
      %s148 = int_to_ptr.vmem [resolvable:$true] %s147
      %150 = dma.hbm_to_vmem [thread:$0]  %s10, 16, %s148, [#allocation18]
    $region45: #{net_forward.37} parent=1 // pred_fallthru
      _
    // Predicated region
    $region46: #{net_forward.37} parent=1 // pred_check
      _
    $region47: #{net_forward.37} parent=1 // pred_check_branch
      %152 = sbr.rel (0) target = $region49
    $region48: #{net_forward.37} parent=1 // pred_region
      %s154 = ssub.s32 16, 16
      %155 = vsyncadd [#allocation21], %s154
      %s157 = sshll.u32 [#allocation20], 4
      %s158 = int_to_ptr.vmem [resolvable:$true] %s157
      %160 = dma.hbm_to_vmem [thread:$0]  %s11, 16, %s158, [#allocation21]
    $region49: #{net_forward.37} parent=1 // pred_fallthru
      _
    // Predicated region
    $region50: #{net_forward.37} parent=1 // pred_check
      _
    $region51: #{net_forward.37} parent=1 // pred_check_branch
      %162 = sbr.rel (0) target = $region53
    $region52: #{net_forward.37} parent=1 // pred_region
      %163 = dma.done [#allocation3], 256
    $region53: #{net_forward.37} parent=1 // pred_fallthru
      _
    // Predicated region
    $region54: #{net_forward.37} parent=1 // pred_check
      _
    $region55: #{net_forward.37} parent=1 // pred_check_branch
      %165 = sbr.rel (0) target = $region57
    $region56: #{net_forward.37} parent=1 // pred_region
      %166 = dma.done [#allocation6], 128
    $region57: #{net_forward.37} parent=1 // pred_fallthru
      _
    // Predicated region
    $region58: #{net_forward.37} parent=1 // pred_check
      _
    $region59: #{net_forward.37} parent=1 // pred_check_branch
      %168 = sbr.rel (0) target = $region61
    $region60: #{net_forward.37} parent=1 // pred_region
      %169 = dma.done [#allocation6], 16
    $region61: #{net_forward.37} parent=1 // pred_fallthru
      _
    // Predicated region
    $region62: #{net_forward.37} parent=1 // pred_check
      _
    $region63: #{net_forward.37} parent=1 // pred_check_branch
      %171 = sbr.rel (0) target = $region65
    $region64: #{net_forward.37} parent=1 // pred_region
      %172 = dma.done [#allocation9], 16
    $region65: #{net_forward.37} parent=1 // pred_fallthru
      _
    // Predicated region
    $region66: #{net_forward.37} parent=1 // pred_check
      _
    $region67: #{net_forward.37} parent=1 // pred_check_branch
      %174 = sbr.rel (0) target = $region69
    $region68: #{net_forward.37} parent=1 // pred_region
      %175 = dma.done [#allocation9], 512
    $region69: #{net_forward.37} parent=1 // pred_fallthru
      _
    // Predicated region
    $region70: #{net_forward.37} parent=1 // pred_check
      _
    $region71: #{net_forward.37} parent=1 // pred_check_branch
      %177 = sbr.rel (0) target = $region73
    $region72: #{net_forward.37} parent=1 // pred_region
      %178 = dma.done [#allocation12], 512
    $region73: #{net_forward.37} parent=1 // pred_fallthru
      _
    // Predicated region
    $region74: #{net_forward.37} parent=1 // pred_check
      _
    $region75: #{net_forward.37} parent=1 // pred_check_branch
      %180 = sbr.rel (0) target = $region77
    $region76: #{net_forward.37} parent=1 // pred_region
      %181 = dma.done [#allocation12], 2048
    $region77: #{net_forward.37} parent=1 // pred_fallthru
      _
    // Predicated region
    $region78: #{net_forward.37} parent=1 // pred_check
      _
    $region79: #{net_forward.37} parent=1 // pred_check_branch
      %183 = sbr.rel (0) target = $region81
    $region80: #{net_forward.37} parent=1 // pred_region
      %184 = dma.done [#allocation15], 64
    $region81: #{net_forward.37} parent=1 // pred_fallthru
      _
    // Predicated region
    $region82: #{net_forward.37} parent=1 // pred_check
      _
    $region83: #{net_forward.37} parent=1 // pred_check_branch
      %186 = sbr.rel (0) target = $region85
    $region84: #{net_forward.37} parent=1 // pred_region
      %187 = dma.done [#allocation15], 4096
    $region85: #{net_forward.37} parent=1 // pred_fallthru
      _
    // Predicated region
    $region86: #{net_forward.37} parent=1 // pred_check
      _
    $region87: #{net_forward.37} parent=1 // pred_check_branch
      %189 = sbr.rel (0) target = $region89
    $region88: #{net_forward.37} parent=1 // pred_region
      %190 = dma.done [#allocation18], 64
    $region89: #{net_forward.37} parent=1 // pred_fallthru
      _
    // Predicated region
    $region90: #{net_forward.37} parent=1 // pred_check
      _
    $region91: #{net_forward.37} parent=1 // pred_check_branch
      %192 = sbr.rel (0) target = $region93
    $region92: #{net_forward.37} parent=1 // pred_region
      %193 = dma.done [#allocation18], 16
    $region93: #{net_forward.37} parent=1 // pred_fallthru
      _
    // Predicated region
    $region94: #{net_forward.37} parent=1 // pred_check
      _
    $region95: #{net_forward.37} parent=1 // pred_check_branch
      %195 = sbr.rel (0) target = $region97
    $region96: #{net_forward.37} parent=1 // pred_region
      %196 = dma.done [#allocation21], 16
    $region97: #{net_forward.37} parent=1 // pred_fallthru
      _
    %v198 = vld [vmem:[#allocation2] sm:$0xff]
    %v199 = vld [vmem:[#allocation2 + $0x8] sm:$0x3f]
    %vm200 = vcmask 523264
    %v201 = vsel %vm200, %v198, 0.0
    %202 = vadd.xlane.f32.xlu0 %v201
    %v203 = vpop.xlane.xlu0 %202
    %vm204 = vcmask 521216
    %v205 = vsel %vm204, %v199, 0.0
    %206 = vadd.xlane.f32.xlu0 %v205
    %v207 = vpop.xlane.xlu0 %206
    %v208 = vrcp.pop 64.0
    %v209 = vmul.f32 %v203, %v208
    %v210 = vmul.f32 %v207, %v208
    %v211 = vsub.f32 %v198, %v209
    %v212 = vsub.f32 %v199, %v210
    %v213 = vmul.f32 %v211, %v211
    %v214 = vmul.f32 %v212, %v212
    %v215 = vsel %vm200, %v213, 0.0
    %216 = vadd.xlane.f32.xlu0 %v215
    %v217 = vpop.xlane.xlu0 %216
    %v218 = vsel %vm204, %v214, 0.0
    %219 = vadd.xlane.f32.xlu0 %v218
    %v220 = vpop.xlane.xlu0 %219
    %v221 = vmul.f32 %v217, %v208
    %v222 = vmul.f32 %v220, %v208
    %v223 = vadd.f32 %v221, 1e-12
    %v224 = vadd.f32 %v222, 1e-12
    %v225 = vrsqrt.pop %v223
    %v226 = vrsqrt.pop %v224
    %v227 = vmul.f32 %v211, %v225
    %v228 = vmul.f32 %v212, %v226
    %v229 = vld [vmem:[#allocation7] sm:$0x1]
    %v231 = vlaneseq
    %v232 = vshrl.u32 %v231, 7
    %v233 = vsub.s32 0, %v232
    %v234 = vrot.slane %v229, %v233
    %v236 = vmul.f32 %v227, %v234
    %v237 = vmul.f32 %v228, %v234
    %v238 = vld [vmem:[#allocation8] sm:$0x1]
    %v240 = vlaneseq
    %v241 = vshrl.u32 %v240, 7
    %v242 = vsub.s32 0, %v241
    %v243 = vrot.slane %v238, %v242
    %v245 = vadd.f32 %v236, %v243
    %v246 = vadd.f32 %v237, %v243
    %v247 = vpack.c.bf16 %v246, %v245
    %v248 = vld [vmem:[#allocation10] sm:$0xf]
    %v249 = vld [vmem:[#allocation10 + $0x4] sm:$0xf]
    %v250 = vld [vmem:[#allocation10 + $0x8] sm:$0xf]
    %v251 = vld [vmem:[#allocation10 + $0xc] sm:$0xf]
    %v252 = vld [vmem:[#allocation10 + $0x10] sm:$0xf]
    %v253 = vld [vmem:[#allocation10 + $0x14] sm:$0xf]
    %v254 = vld [vmem:[#allocation10 + $0x18] sm:$0xf]
    %v255 = vld [vmem:[#allocation10 + $0x1c] sm:$0xf]
    %v256 = vld [vmem:[#allocation5] sm:$0xf]
    %v257 = vld [vmem:[#allocation5 + $0x4] sm:$0x7]
    %v258 = vld [vmem:[#allocation11] sm:$0xf]
    %v259 = vld [vmem:[#allocation11 + $0x4] sm:$0xf]
    %v260 = vld [vmem:[#allocation11 + $0x8] sm:$0xf]
    %v261 = vld [vmem:[#allocation11 + $0xc] sm:$0xf]
    %v262 = vld [vmem:[#allocation11 + $0x10] sm:$0xf]
    %v263 = vld [vmem:[#allocation11 + $0x14] sm:$0xf]
    %v264 = vld [vmem:[#allocation11 + $0x18] sm:$0xf]
    %v265 = vld [vmem:[#allocation11 + $0x1c] sm:$0xf]
    %v268 = vunpack.c.l.b16 %v256
    %v269 = vunpack.c.l.b16 %v257
    %v270 = vpack.c.b16 %v269, %v268
    %v279 = vunpack.c.l.b16 %v258
    %v280 = vunpack.c.l.b16 %v259
    %v281 = vunpack.c.l.b16 %v260
    %v282 = vunpack.c.l.b16 %v261
    %v283 = vunpack.c.l.b16 %v262
    %v284 = vunpack.c.l.b16 %v263
    %v285 = vunpack.c.l.b16 %v264
    %v286 = vunpack.c.l.b16 %v265
    %v287 = vpack.c.b16 %v280, %v279
    %v288 = vpack.c.b16 %v282, %v281
    %v289 = vpack.c.b16 %v284, %v283
    %v290 = vpack.c.b16 %v286, %v285
    %v296 = vsel %vm200, %v270, 0
    %298 = vmatprep.subr.bf16.mxu0 0
    %299 = vmatpush1.bf16.msra.mxu0 %v287
    %300 = vmatprep.subr.bf16.mxu0 0
    %301 = vmatpush1.bf16.msra.mxu0 %v288
    %302 = vmatprep.subr.bf16.mxu0 0
    %303 = vmatpush1.bf16.msra.mxu0 %v289
    %304 = vmatprep.subr.bf16.mxu0 0
    %305 = vmatpush1.bf16.msra.mxu0 %v290
    %306 = vmatprep.subr.bf16.mxu0 0
    %307 = vmatpush1.bf16.msra.mxu0 0
    %308 = vmatprep.subr.bf16.mxu0 0
    %309 = vmatpush1.bf16.msra.mxu0 0
    %310 = vmatprep.subr.bf16.mxu0 0
    %311 = vmatpush1.bf16.msra.mxu0 0
    %312 = vmatprep.subr.bf16.mxu0 0
    %313 = vmatpush1.bf16.msra.mxu0 0
    %314 = vmatprep.subr.bf16.mxu0 0
    %315 = vmatpush1.bf16.msra.mxu0 0
    %316 = vmatprep.subr.bf16.mxu0 0
    %317 = vmatpush1.bf16.msra.mxu0 0
    %318 = vmatprep.subr.bf16.mxu0 0
    %319 = vmatpush1.bf16.msra.mxu0 0
    %320 = vmatprep.subr.bf16.mxu0 0
    %321 = vmatpush1.bf16.msra.mxu0 0
    %322 = vmatprep.subr.bf16.mxu0 0
    %323 = vmatpush1.bf16.msra.mxu0 0
    %324 = vmatprep.subr.bf16.mxu0 0
    %325 = vmatpush1.bf16.msra.mxu0 0
    %326 = vmatprep.subr.bf16.mxu0 0
    %327 = vmatpush1.bf16.msra.mxu0 0
    %328 = vmatprep.subr.bf16.mxu0 0
    %329 = vmatpush1.bf16.msra.mxu0 0
    %330 = vmatprep.mubr.bf16.mxu0 0
    %331 = vmatmul.mubr.bf16.gmra.mrb[0].mxu0 %v296
    %v332 = vpop.f32.mrb[0].mxu0
    %v333 = vadd.f32 0.0, %v332
    %v334 = vpop.f32.mrb[0].mxu0
    %v335 = vpop.f32.mrb[0].mxu0
    %v336 = vadd.f32 0.0, %v335
    %v337 = vpop.f32.mrb[0].mxu0
    %338 = vdwg.mxu0
    %v347 = vunpack.c.l.b16 %v248
    %v348 = vunpack.c.l.b16 %v249
    %v349 = vunpack.c.l.b16 %v250
    %v350 = vunpack.c.l.b16 %v251
    %v351 = vunpack.c.l.b16 %v252
    %v352 = vunpack.c.l.b16 %v253
    %v353 = vunpack.c.l.b16 %v254
    %v354 = vunpack.c.l.b16 %v255
    %v355 = vpack.c.b16 %v348, %v347
    %v356 = vpack.c.b16 %v350, %v349
    %v357 = vpack.c.b16 %v352, %v351
    %v358 = vpack.c.b16 %v354, %v353
    %v364 = vsel %vm200, %v247, 0
    %366 = vmatprep.subr.bf16.mxu0 0
    %367 = vmatpush1.bf16.msra.mxu0 %v355
    %368 = vmatprep.subr.bf16.mxu0 0
    %369 = vmatpush1.bf16.msra.mxu0 %v356
    %370 = vmatprep.subr.bf16.mxu0 0
    %371 = vmatpush1.bf16.msra.mxu0 %v357
    %372 = vmatprep.subr.bf16.mxu0 0
    %373 = vmatpush1.bf16.msra.mxu0 %v358
    %374 = vmatprep.subr.bf16.mxu0 0
    %375 = vmatpush1.bf16.msra.mxu0 0
    %376 = vmatprep.subr.bf16.mxu0 0
    %377 = vmatpush1.bf16.msra.mxu0 0
    %378 = vmatprep.subr.bf16.mxu0 0
    %379 = vmatpush1.bf16.msra.mxu0 0
    %380 = vmatprep.subr.bf16.mxu0 0
    %381 = vmatpush1.bf16.msra.mxu0 0
    %382 = vmatprep.subr.bf16.mxu0 0
    %383 = vmatpush1.bf16.msra.mxu0 0
    %384 = vmatprep.subr.bf16.mxu0 0
    %385 = vmatpush1.bf16.msra.mxu0 0
    %386 = vmatprep.subr.bf16.mxu0 0
    %387 = vmatpush1.bf16.msra.mxu0 0
    %388 = vmatprep.subr.bf16.mxu0 0
    %389 = vmatpush1.bf16.msra.mxu0 0
    %390 = vmatprep.subr.bf16.mxu0 0
    %391 = vmatpush1.bf16.msra.mxu0 0
    %392 = vmatprep.subr.bf16.mxu0 0
    %393 = vmatpush1.bf16.msra.mxu0 0
    %394 = vmatprep.subr.bf16.mxu0 0
    %395 = vmatpush1.bf16.msra.mxu0 0
    %396 = vmatprep.subr.bf16.mxu0 0
    %397 = vmatpush1.bf16.msra.mxu0 0
    %398 = vmatprep.mubr.bf16.mxu0 0
    %399 = vmatmul.mubr.bf16.gmra.mrb[0].mxu0 %v364
    %v400 = vpop.f32.mrb[0].mxu0
    %v401 = vadd.f32 %v333, %v400
    %v402 = vpop.f32.mrb[0].mxu0
    %v403 = vpop.f32.mrb[0].mxu0
    %v404 = vadd.f32 %v336, %v403
    %v405 = vpop.f32.mrb[0].mxu0
    %406 = vdwg.mxu0
    %vm407 = vcmask 31744
    %v408 = vsel %vm407, %v401, -inf
    %409 = vmax.xlane.f32.xlu0 %v408
    %v410 = vpop.xlane.xlu0 %409
    %vm411 = vcmask 29696
    %v412 = vsel %vm411, %v404, -inf
    %413 = vmax.xlane.f32.xlu0 %v412
    %v414 = vpop.xlane.xlu0 %413
    %v415 = vsub.f32 %v401, %v410
    %v416 = vsub.f32 %v404, %v414
    %v417 = vmul.f32 %v415, 1.442695
    %v418 = vpow.pop %v417
    %v419 = vmul.f32 %v416, 1.442695
    %v420 = vpow.pop %v419
    %v421 = vsel %vm407, %v418, 0.0
    %422 = vadd.xlane.f32.xlu0 %v421
    %v423 = vpop.xlane.xlu0 %422
    %v424 = vsel %vm411, %v420, 0.0
    %425 = vadd.xlane.f32.xlu0 %v424
    %v426 = vpop.xlane.xlu0 %425
    %v427 = vrcp.pop %v423
    %v428 = vmul.f32 %v418, %v427
    %v429 = vrcp.pop %v426
    %v430 = vmul.f32 %v420, %v429
    %v431 = vld [vmem:[#allocation13] sm:$0xf]
    %v432 = vld [vmem:[#allocation13 + $0x4] sm:$0xf]
    %v433 = vld [vmem:[#allocation13 + $0x8] sm:$0xf]
    %v434 = vld [vmem:[#allocation13 + $0xc] sm:$0xf]
    %v435 = vld [vmem:[#allocation13 + $0x10] sm:$0xf]
    %v436 = vld [vmem:[#allocation13 + $0x14] sm:$0xf]
    %v437 = vld [vmem:[#allocation13 + $0x18] sm:$0xf]
    %v438 = vld [vmem:[#allocation13 + $0x1c] sm:$0xf]
    %v439 = vld [vmem:[#allocation14] sm:$0x1]
    %v441 = vlaneseq
    %v442 = vshrl.u32 %v441, 7
    %v443 = vsub.s32 0, %v442
    %v444 = vrot.slane %v439, %v443
    %v454 = vunpack.c.l.b16 %v431
    %v455 = vunpack.c.l.b16 %v432
    %v456 = vunpack.c.l.b16 %v433
    %v457 = vunpack.c.l.b16 %v434
    %v458 = vunpack.c.l.b16 %v435
    %v459 = vunpack.c.l.b16 %v436
    %v460 = vunpack.c.l.b16 %v437
    %v461 = vunpack.c.l.b16 %v438
    %v462 = vpack.c.b16 %v455, %v454
    %v463 = vpack.c.b16 %v457, %v456
    %v464 = vpack.c.b16 %v459, %v458
    %v465 = vpack.c.b16 %v461, %v460
    %470 = vmatprep.subr.bf16.mxu0 0
    %471 = vmatpush1.bf16.msra.mxu0 %v462
    %472 = vmatprep.subr.bf16.mxu0 0
    %473 = vmatpush1.bf16.msra.mxu0 %v463
    %474 = vmatprep.subr.bf16.mxu0 0
    %475 = vmatpush1.bf16.msra.mxu0 %v464
    %476 = vmatprep.subr.bf16.mxu0 0
    %477 = vmatpush1.bf16.msra.mxu0 %v465
    %478 = vmatprep.subr.bf16.mxu0 0
    %479 = vmatpush1.bf16.msra.mxu0 0
    %480 = vmatprep.subr.bf16.mxu0 0
    %481 = vmatpush1.bf16.msra.mxu0 0
    %482 = vmatprep.subr.bf16.mxu0 0
    %483 = vmatpush1.bf16.msra.mxu0 0
    %484 = vmatprep.subr.bf16.mxu0 0
    %485 = vmatpush1.bf16.msra.mxu0 0
    %486 = vmatprep.subr.bf16.mxu0 0
    %487 = vmatpush1.bf16.msra.mxu0 0
    %488 = vmatprep.subr.bf16.mxu0 0
    %489 = vmatpush1.bf16.msra.mxu0 0
    %490 = vmatprep.subr.bf16.mxu0 0
    %491 = vmatpush1.bf16.msra.mxu0 0
    %492 = vmatprep.subr.bf16.mxu0 0
    %493 = vmatpush1.bf16.msra.mxu0 0
    %494 = vmatprep.subr.bf16.mxu0 0
    %495 = vmatpush1.bf16.msra.mxu0 0
    %496 = vmatprep.subr.bf16.mxu0 0
    %497 = vmatpush1.bf16.msra.mxu0 0
    %498 = vmatprep.subr.bf16.mxu0 0
    %499 = vmatpush1.bf16.msra.mxu0 0
    %500 = vmatprep.subr.bf16.mxu0 0
    %501 = vmatpush1.bf16.msra.mxu0 0
    %502 = vmatprep.mubr.bf16.mxu0 0
    %503 = vmatmul.mubr.bf16.gmra.mrb[0].mxu0 %v364
    %v504 = vpop.f32.mrb[0].mxu0
    %v505 = vadd.f32 %v444, %v504
    %v506 = vpop.f32.mrb[0].mxu0
    %v507 = vpop.f32.mrb[0].mxu0
    %v508 = vadd.f32 %v444, %v507
    %v509 = vpop.f32.mrb[0].mxu0
    %510 = vdwg.mxu0
    %v511 = vxor.u32 %v505, 2147483648
    %v512 = vxor.u32 %v508, 2147483648
    %v513 = vmul.f32 %v511, 1.442695
    %v514 = vpow.pop %v513
    %v515 = vmul.f32 %v512, 1.442695
    %v516 = vpow.pop %v515
    %v517 = vadd.f32 %v514, 1.0
    %v518 = vadd.f32 %v516, 1.0
    %v519 = vrcp.pop %v517
    %v520 = vmul.f32 1.0, %v519
    %v521 = vrcp.pop %v518
    %v522 = vmul.f32 1.0, %v521
    %v523 = vmul.f32 %v505, %v520
    %v524 = vmul.f32 %v508, %v522
    %v525 = vpack.c.bf16 %v524, %v523
    %v526 = vld [vmem:[#allocation16] sm:$0xf]
    %v527 = vld [vmem:[#allocation16 + $0x4] sm:$0xf]
    %v528 = vld [vmem:[#allocation16 + $0x8] sm:$0xf]
    %v529 = vld [vmem:[#allocation16 + $0xc] sm:$0xf]
    %v530 = vld [vmem:[#allocation16 + $0x10] sm:$0xf]
    %v531 = vld [vmem:[#allocation16 + $0x14] sm:$0xf]
    %v532 = vld [vmem:[#allocation16 + $0x18] sm:$0xf]
    %v533 = vld [vmem:[#allocation16 + $0x1c] sm:$0xf]
    %v534 = vld [vmem:[#allocation16 + $0x20] sm:$0xf]
    %v535 = vld [vmem:[#allocation16 + $0x24] sm:$0xf]
    %v536 = vld [vmem:[#allocation16 + $0x28] sm:$0xf]
    %v537 = vld [vmem:[#allocation16 + $0x2c] sm:$0xf]
    %v538 = vld [vmem:[#allocation16 + $0x30] sm:$0xf]
    %v539 = vld [vmem:[#allocation16 + $0x34] sm:$0xf]
    %v540 = vld [vmem:[#allocation16 + $0x38] sm:$0xf]
    %v541 = vld [vmem:[#allocation16 + $0x3c] sm:$0xf]
    %v542 = vld [vmem:[#allocation17] sm:$0x1]
    %v544 = vlaneseq
    %v545 = vshrl.u32 %v544, 7
    %v546 = vsub.s32 0, %v545
    %v547 = vrot.slane %v542, %v546
    %v565 = vunpack.c.l.b16 %v526
    %v566 = vunpack.c.l.b16 %v527
    %v567 = vunpack.c.l.b16 %v528
    %v568 = vunpack.c.l.b16 %v529
    %v569 = vunpack.c.l.b16 %v530
    %v570 = vunpack.c.l.b16 %v531
    %v571 = vunpack.c.l.b16 %v532
    %v572 = vunpack.c.l.b16 %v533
    %v573 = vunpack.c.l.b16 %v534
    %v574 = vunpack.c.l.b16 %v535
    %v575 = vunpack.c.l.b16 %v536
    %v576 = vunpack.c.l.b16 %v537
    %v577 = vunpack.c.l.b16 %v538
    %v578 = vunpack.c.l.b16 %v539
    %v579 = vunpack.c.l.b16 %v540
    %v580 = vunpack.c.l.b16 %v541
    %v581 = vpack.c.b16 %v566, %v565
    %v582 = vpack.c.b16 %v568, %v567
    %v583 = vpack.c.b16 %v570, %v569
    %v584 = vpack.c.b16 %v572, %v571
    %v585 = vpack.c.b16 %v574, %v573
    %v586 = vpack.c.b16 %v576, %v575
    %v587 = vpack.c.b16 %v578, %v577
    %v588 = vpack.c.b16 %v580, %v579
    %597 = vmatprep.subr.bf16.mxu0 0
    %598 = vmatpush1.bf16.msra.mxu0 %v581
    %599 = vmatprep.subr.bf16.mxu0 0
    %600 = vmatpush1.bf16.msra.mxu0 %v582
    %601 = vmatprep.subr.bf16.mxu0 0
    %602 = vmatpush1.bf16.msra.mxu0 %v583
    %603 = vmatprep.subr.bf16.mxu0 0
    %604 = vmatpush1.bf16.msra.mxu0 %v584
    %605 = vmatprep.subr.bf16.mxu0 0
    %606 = vmatpush1.bf16.msra.mxu0 %v585
    %607 = vmatprep.subr.bf16.mxu0 0
    %608 = vmatpush1.bf16.msra.mxu0 %v586
    %609 = vmatprep.subr.bf16.mxu0 0
    %610 = vmatpush1.bf16.msra.mxu0 %v587
    %611 = vmatprep.subr.bf16.mxu0 0
    %612 = vmatpush1.bf16.msra.mxu0 %v588
    %613 = vmatprep.subr.bf16.mxu0 0
    %614 = vmatpush1.bf16.msra.mxu0 0
    %615 = vmatprep.subr.bf16.mxu0 0
    %616 = vmatpush1.bf16.msra.mxu0 0
    %617 = vmatprep.subr.bf16.mxu0 0
    %618 = vmatpush1.bf16.msra.mxu0 0
    %619 = vmatprep.subr.bf16.mxu0 0
    %620 = vmatpush1.bf16.msra.mxu0 0
    %621 = vmatprep.subr.bf16.mxu0 0
    %622 = vmatpush1.bf16.msra.mxu0 0
    %623 = vmatprep.subr.bf16.mxu0 0
    %624 = vmatpush1.bf16.msra.mxu0 0
    %625 = vmatprep.subr.bf16.mxu0 0
    %626 = vmatpush1.bf16.msra.mxu0 0
    %627 = vmatprep.subr.bf16.mxu0 0
    %628 = vmatpush1.bf16.msra.mxu0 0
    %629 = vmatprep.mubr.bf16.mxu0 0
    %630 = vmatmul.mubr.bf16.gmra.mrb[0].mxu0 %v525
    %v631 = vpop.f32.mrb[0].mxu0
    %v632 = vadd.f32 %v547, %v631
    %v633 = vpop.f32.mrb[0].mxu0
    %v634 = vpop.f32.mrb[0].mxu0
    %v635 = vadd.f32 %v547, %v634
    %v636 = vpop.f32.mrb[0].mxu0
    %637 = vdwg.mxu0
    %v638 = vlaneseq
    %v639 = vand.u32 %v638, 127
    %vm640 = vcmp.eq.s32.totalorder %v639, 0
    %v641 = vsel %vm640, 1, 0
    %v642 = vcvt.s32.f32 %v641
    %v643 = vmul.f32 %v428, %v642
    %v644 = vmul.f32 %v430, %v642
    %v645 = vsel %vm407, %v643, 0.0
    %646 = vadd.xlane.f32.xlu0 %v645
    %v647 = vpop.xlane.xlu0 %646
    %v648 = vsel %vm411, %v644, 0.0
    %649 = vadd.xlane.f32.xlu0 %v648
    %v650 = vpop.xlane.xlu0 %649
    %v651 = vmul.f32 %v647, %v632
    %v652 = vmul.f32 %v650, %v635
    %v653 = vadd.f32 %v651, 0.0
    %v654 = vadd.f32 %v652, 0.0
    %s655 = scalar_lea.vmem [#allocation13], 32
    %v656 = vld [vmem:[%s655] sm:$0xf]
    %v657 = vld [vmem:[%s655 + $0x4] sm:$0xf]
    %v658 = vld [vmem:[%s655 + $0x8] sm:$0xf]
    %v659 = vld [vmem:[%s655 + $0xc] sm:$0xf]
    %v660 = vld [vmem:[%s655 + $0x10] sm:$0xf]
    %v661 = vld [vmem:[%s655 + $0x14] sm:$0xf]
    %v662 = vld [vmem:[%s655 + $0x18] sm:$0xf]
    %v663 = vld [vmem:[%s655 + $0x1c] sm:$0xf]
    %s664 = scalar_lea.vmem [#allocation14], 1
    %v665 = vld [vmem:[%s664] sm:$0x1]
    %v667 = vlaneseq
    %v668 = vshrl.u32 %v667, 7
    %v669 = vsub.s32 0, %v668
    %v670 = vrot.slane %v665, %v669
    %v680 = vunpack.c.l.b16 %v656
    %v681 = vunpack.c.l.b16 %v657
    %v682 = vunpack.c.l.b16 %v658
    %v683 = vunpack.c.l.b16 %v659
    %v684 = vunpack.c.l.b16 %v660
    %v685 = vunpack.c.l.b16 %v661
    %v686 = vunpack.c.l.b16 %v662
    %v687 = vunpack.c.l.b16 %v663
    %v688 = vpack.c.b16 %v681, %v680
    %v689 = vpack.c.b16 %v683, %v682
    %v690 = vpack.c.b16 %v685, %v684
    %v691 = vpack.c.b16 %v687, %v686
    %696 = vmatprep.subr.bf16.mxu0 0
    %697 = vmatpush1.bf16.msra.mxu0 %v688
    %698 = vmatprep.subr.bf16.mxu0 0
    %699 = vmatpush1.bf16.msra.mxu0 %v689
    %700 = vmatprep.subr.bf16.mxu0 0
    %701 = vmatpush1.bf16.msra.mxu0 %v690
    %702 = vmatprep.subr.bf16.mxu0 0
    %703 = vmatpush1.bf16.msra.mxu0 %v691
    %704 = vmatprep.subr.bf16.mxu0 0
    %705 = vmatpush1.bf16.msra.mxu0 0
    %706 = vmatprep.subr.bf16.mxu0 0
    %707 = vmatpush1.bf16.msra.mxu0 0
    %708 = vmatprep.subr.bf16.mxu0 0
    %709 = vmatpush1.bf16.msra.mxu0 0
    %710 = vmatprep.subr.bf16.mxu0 0
    %711 = vmatpush1.bf16.msra.mxu0 0
    %712 = vmatprep.subr.bf16.mxu0 0
    %713 = vmatpush1.bf16.msra.mxu0 0
    %714 = vmatprep.subr.bf16.mxu0 0
    %715 = vmatpush1.bf16.msra.mxu0 0
    %716 = vmatprep.subr.bf16.mxu0 0
    %717 = vmatpush1.bf16.msra.mxu0 0
    %718 = vmatprep.subr.bf16.mxu0 0
    %719 = vmatpush1.bf16.msra.mxu0 0
    %720 = vmatprep.subr.bf16.mxu0 0
    %721 = vmatpush1.bf16.msra.mxu0 0
    %722 = vmatprep.subr.bf16.mxu0 0
    %723 = vmatpush1.bf16.msra.mxu0 0
    %724 = vmatprep.subr.bf16.mxu0 0
    %725 = vmatpush1.bf16.msra.mxu0 0
    %726 = vmatprep.subr.bf16.mxu0 0
    %727 = vmatpush1.bf16.msra.mxu0 0
    %728 = vmatprep.mubr.bf16.mxu0 0
    %729 = vmatmul.mubr.bf16.gmra.mrb[0].mxu0 %v364
    %v730 = vpop.f32.mrb[0].mxu0
    %v731 = vadd.f32 %v670, %v730
    %v732 = vpop.f32.mrb[0].mxu0
    %v733 = vpop.f32.mrb[0].mxu0
    %v734 = vadd.f32 %v670, %v733
    %v735 = vpop.f32.mrb[0].mxu0
    %736 = vdwg.mxu0
    %v737 = vxor.u32 %v731, 2147483648
    %v738 = vxor.u32 %v734, 2147483648
    %v739 = vmul.f32 %v737, 1.442695
    %v740 = vpow.pop %v739
    %v741 = vmul.f32 %v738, 1.442695
    %v742 = vpow.pop %v741
    %v743 = vadd.f32 %v740, 1.0
    %v744 = vadd.f32 %v742, 1.0
    %v745 = vrcp.pop %v743
    %v746 = vmul.f32 1.0, %v745
    %v747 = vrcp.pop %v744
    %v748 = vmul.f32 1.0, %v747
    %v749 = vmul.f32 %v731, %v746
    %v750 = vmul.f32 %v734, %v748
    %v751 = vpack.c.bf16 %v750, %v749
    %s752 = scalar_lea.vmem [#allocation16], 64
    %v753 = vld [vmem:[%s752] sm:$0xf]
    %v754 = vld [vmem:[%s752 + $0x4] sm:$0xf]
    %v755 = vld [vmem:[%s752 + $0x8] sm:$0xf]
    %v756 = vld [vmem:[%s752 + $0xc] sm:$0xf]
    %v757 = vld [vmem:[%s752 + $0x10] sm:$0xf]
    %v758 = vld [vmem:[%s752 + $0x14] sm:$0xf]
    %v759 = vld [vmem:[%s752 + $0x18] sm:$0xf]
    %v760 = vld [vmem:[%s752 + $0x1c] sm:$0xf]
    %v761 = vld [vmem:[%s752 + $0x20] sm:$0xf]
    %v762 = vld [vmem:[%s752 + $0x24] sm:$0xf]
    %v763 = vld [vmem:[%s752 + $0x28] sm:$0xf]
    %v764 = vld [vmem:[%s752 + $0x2c] sm:$0xf]
    %v765 = vld [vmem:[%s752 + $0x30] sm:$0xf]
    %v766 = vld [vmem:[%s752 + $0x34] sm:$0xf]
    %v767 = vld [vmem:[%s752 + $0x38] sm:$0xf]
    %v768 = vld [vmem:[%s752 + $0x3c] sm:$0xf]
    %s769 = scalar_lea.vmem [#allocation17], 1
    %v770 = vld [vmem:[%s769] sm:$0x1]
    %v772 = vlaneseq
    %v773 = vshrl.u32 %v772, 7
    %v774 = vsub.s32 0, %v773
    %v775 = vrot.slane %v770, %v774
    %v793 = vunpack.c.l.b16 %v753
    %v794 = vunpack.c.l.b16 %v754
    %v795 = vunpack.c.l.b16 %v755
    %v796 = vunpack.c.l.b16 %v756
    %v797 = vunpack.c.l.b16 %v757
    %v798 = vunpack.c.l.b16 %v758
    %v799 = vunpack.c.l.b16 %v759
    %v800 = vunpack.c.l.b16 %v760
    %v801 = vunpack.c.l.b16 %v761
    %v802 = vunpack.c.l.b16 %v762
    %v803 = vunpack.c.l.b16 %v763
    %v804 = vunpack.c.l.b16 %v764
    %v805 = vunpack.c.l.b16 %v765
    %v806 = vunpack.c.l.b16 %v766
    %v807 = vunpack.c.l.b16 %v767
    %v808 = vunpack.c.l.b16 %v768
    %v809 = vpack.c.b16 %v794, %v793
    %v810 = vpack.c.b16 %v796, %v795
    %v811 = vpack.c.b16 %v798, %v797
    %v812 = vpack.c.b16 %v800, %v799
    %v813 = vpack.c.b16 %v802, %v801
    %v814 = vpack.c.b16 %v804, %v803
    %v815 = vpack.c.b16 %v806, %v805
    %v816 = vpack.c.b16 %v808, %v807
    %825 = vmatprep.subr.bf16.mxu0 0
    %826 = vmatpush1.bf16.msra.mxu0 %v809
    %827 = vmatprep.subr.bf16.mxu0 0
    %828 = vmatpush1.bf16.msra.mxu0 %v810
    %829 = vmatprep.subr.bf16.mxu0 0
    %830 = vmatpush1.bf16.msra.mxu0 %v811
    %831 = vmatprep.subr.bf16.mxu0 0
    %832 = vmatpush1.bf16.msra.mxu0 %v812
    %833 = vmatprep.subr.bf16.mxu0 0
    %834 = vmatpush1.bf16.msra.mxu0 %v813
    %835 = vmatprep.subr.bf16.mxu0 0
    %836 = vmatpush1.bf16.msra.mxu0 %v814
    %837 = vmatprep.subr.bf16.mxu0 0
    %838 = vmatpush1.bf16.msra.mxu0 %v815
    %839 = vmatprep.subr.bf16.mxu0 0
    %840 = vmatpush1.bf16.msra.mxu0 %v816
    %841 = vmatprep.subr.bf16.mxu0 0
    %842 = vmatpush1.bf16.msra.mxu0 0
    %843 = vmatprep.subr.bf16.mxu0 0
    %844 = vmatpush1.bf16.msra.mxu0 0
    %845 = vmatprep.subr.bf16.mxu0 0
    %846 = vmatpush1.bf16.msra.mxu0 0
    %847 = vmatprep.subr.bf16.mxu0 0
    %848 = vmatpush1.bf16.msra.mxu0 0
    %849 = vmatprep.subr.bf16.mxu0 0
    %850 = vmatpush1.bf16.msra.mxu0 0
    %851 = vmatprep.subr.bf16.mxu0 0
    %852 = vmatpush1.bf16.msra.mxu0 0
    %853 = vmatprep.subr.bf16.mxu0 0
    %854 = vmatpush1.bf16.msra.mxu0 0
    %855 = vmatprep.subr.bf16.mxu0 0
    %856 = vmatpush1.bf16.msra.mxu0 0
    %857 = vmatprep.mubr.bf16.mxu0 0
    %858 = vmatmul.mubr.bf16.gmra.mrb[0].mxu0 %v751
    %v859 = vpop.f32.mrb[0].mxu0
    %v860 = vadd.f32 %v775, %v859
    %v861 = vpop.f32.mrb[0].mxu0
    %v862 = vpop.f32.mrb[0].mxu0
    %v863 = vadd.f32 %v775, %v862
    %v864 = vpop.f32.mrb[0].mxu0
    %865 = vdwg.mxu0
    %vm866 = vcmp.eq.s32.totalorder %v639, 1
    %v867 = vsel %vm866, 1, 0
    %v868 = vcvt.s32.f32 %v867
    %v869 = vmul.f32 %v428, %v868
    %v870 = vmul.f32 %v430, %v868
    %v871 = vsel %vm407, %v869, 0.0
    %872 = vadd.xlane.f32.xlu0 %v871
    %v873 = vpop.xlane.xlu0 %872
    %v874 = vsel %vm411, %v870, 0.0
    %875 = vadd.xlane.f32.xlu0 %v874
    %v876 = vpop.xlane.xlu0 %875
    %v877 = vmul.f32 %v873, %v860
    %v878 = vmul.f32 %v876, %v863
    %v879 = vadd.f32 %v653, %v877
    %v880 = vadd.f32 %v654, %v878
    %s881 = scalar_lea.vmem [#allocation13], 64
    %v882 = vld [vmem:[%s881] sm:$0xf]
    %v883 = vld [vmem:[%s881 + $0x4] sm:$0xf]
    %v884 = vld [vmem:[%s881 + $0x8] sm:$0xf]
    %v885 = vld [vmem:[%s881 + $0xc] sm:$0xf]
    %v886 = vld [vmem:[%s881 + $0x10] sm:$0xf]
    %v887 = vld [vmem:[%s881 + $0x14] sm:$0xf]
    %v888 = vld [vmem:[%s881 + $0x18] sm:$0xf]
    %v889 = vld [vmem:[%s881 + $0x1c] sm:$0xf]
    %s890 = scalar_lea.vmem [#allocation14], 2
    %v891 = vld [vmem:[%s890] sm:$0x1]
    %v893 = vlaneseq
    %v894 = vshrl.u32 %v893, 7
    %v895 = vsub.s32 0, %v894
    %v896 = vrot.slane %v891, %v895
    %v906 = vunpack.c.l.b16 %v882
    %v907 = vunpack.c.l.b16 %v883
    %v908 = vunpack.c.l.b16 %v884
    %v909 = vunpack.c.l.b16 %v885
    %v910 = vunpack.c.l.b16 %v886
    %v911 = vunpack.c.l.b16 %v887
    %v912 = vunpack.c.l.b16 %v888
    %v913 = vunpack.c.l.b16 %v889
    %v914 = vpack.c.b16 %v907, %v906
    %v915 = vpack.c.b16 %v909, %v908
    %v916 = vpack.c.b16 %v911, %v910
    %v917 = vpack.c.b16 %v913, %v912
    %922 = vmatprep.subr.bf16.mxu0 0
    %923 = vmatpush1.bf16.msra.mxu0 %v914
    %924 = vmatprep.subr.bf16.mxu0 0
    %925 = vmatpush1.bf16.msra.mxu0 %v915
    %926 = vmatprep.subr.bf16.mxu0 0
    %927 = vmatpush1.bf16.msra.mxu0 %v916
    %928 = vmatprep.subr.bf16.mxu0 0
    %929 = vmatpush1.bf16.msra.mxu0 %v917
    %930 = vmatprep.subr.bf16.mxu0 0
    %931 = vmatpush1.bf16.msra.mxu0 0
    %932 = vmatprep.subr.bf16.mxu0 0
    %933 = vmatpush1.bf16.msra.mxu0 0
    %934 = vmatprep.subr.bf16.mxu0 0
    %935 = vmatpush1.bf16.msra.mxu0 0
    %936 = vmatprep.subr.bf16.mxu0 0
    %937 = vmatpush1.bf16.msra.mxu0 0
    %938 = vmatprep.subr.bf16.mxu0 0
    %939 = vmatpush1.bf16.msra.mxu0 0
    %940 = vmatprep.subr.bf16.mxu0 0
    %941 = vmatpush1.bf16.msra.mxu0 0
    %942 = vmatprep.subr.bf16.mxu0 0
    %943 = vmatpush1.bf16.msra.mxu0 0
    %944 = vmatprep.subr.bf16.mxu0 0
    %945 = vmatpush1.bf16.msra.mxu0 0
    %946 = vmatprep.subr.bf16.mxu0 0
    %947 = vmatpush1.bf16.msra.mxu0 0
    %948 = vmatprep.subr.bf16.mxu0 0
    %949 = vmatpush1.bf16.msra.mxu0 0
    %950 = vmatprep.subr.bf16.mxu0 0
    %951 = vmatpush1.bf16.msra.mxu0 0
    %952 = vmatprep.subr.bf16.mxu0 0
    %953 = vmatpush1.bf16.msra.mxu0 0
    %954 = vmatprep.mubr.bf16.mxu0 0
    %955 = vmatmul.mubr.bf16.gmra.mrb[0].mxu0 %v364
    %v956 = vpop.f32.mrb[0].mxu0
    %v957 = vadd.f32 %v896, %v956
    %v958 = vpop.f32.mrb[0].mxu0
    %v959 = vpop.f32.mrb[0].mxu0
    %v960 = vadd.f32 %v896, %v959
    %v961 = vpop.f32.mrb[0].mxu0
    %962 = vdwg.mxu0
    %v963 = vxor.u32 %v957, 2147483648
    %v964 = vxor.u32 %v960, 2147483648
    %v965 = vmul.f32 %v963, 1.442695
    %v966 = vpow.pop %v965
    %v967 = vmul.f32 %v964, 1.442695
    %v968 = vpow.pop %v967
    %v969 = vadd.f32 %v966, 1.0
    %v970 = vadd.f32 %v968, 1.0
    %v971 = vrcp.pop %v969
    %v972 = vmul.f32 1.0, %v971
    %v973 = vrcp.pop %v970
    %v974 = vmul.f32 1.0, %v973
    %v975 = vmul.f32 %v957, %v972
    %v976 = vmul.f32 %v960, %v974
    %v977 = vpack.c.bf16 %v976, %v975
    %s978 = scalar_lea.vmem [#allocation16], 128
    %v979 = vld [vmem:[%s978] sm:$0xf]
    %v980 = vld [vmem:[%s978 + $0x4] sm:$0xf]
    %v981 = vld [vmem:[%s978 + $0x8] sm:$0xf]
    %v982 = vld [vmem:[%s978 + $0xc] sm:$0xf]
    %v983 = vld [vmem:[%s978 + $0x10] sm:$0xf]
    %v984 = vld [vmem:[%s978 + $0x14] sm:$0xf]
    %v985 = vld [vmem:[%s978 + $0x18] sm:$0xf]
    %v986 = vld [vmem:[%s978 + $0x1c] sm:$0xf]
    %v987 = vld [vmem:[%s978 + $0x20] sm:$0xf]
    %v988 = vld [vmem:[%s978 + $0x24] sm:$0xf]
    %v989 = vld [vmem:[%s978 + $0x28] sm:$0xf]
    %v990 = vld [vmem:[%s978 + $0x2c] sm:$0xf]
    %v991 = vld [vmem:[%s978 + $0x30] sm:$0xf]
    %v992 = vld [vmem:[%s978 + $0x34] sm:$0xf]
    %v993 = vld [vmem:[%s978 + $0x38] sm:$0xf]
    %v994 = vld [vmem:[%s978 + $0x3c] sm:$0xf]
    %s995 = scalar_lea.vmem [#allocation17], 2
    %v996 = vld [vmem:[%s995] sm:$0x1]
    %v998 = vlaneseq
    %v999 = vshrl.u32 %v998, 7
    %v1000 = vsub.s32 0, %v999
    %v1001 = vrot.slane %v996, %v1000
    %v1019 = vunpack.c.l.b16 %v979
    %v1020 = vunpack.c.l.b16 %v980
    %v1021 = vunpack.c.l.b16 %v981
    %v1022 = vunpack.c.l.b16 %v982
    %v1023 = vunpack.c.l.b16 %v983
    %v1024 = vunpack.c.l.b16 %v984
    %v1025 = vunpack.c.l.b16 %v985
    %v1026 = vunpack.c.l.b16 %v986
    %v1027 = vunpack.c.l.b16 %v987
    %v1028 = vunpack.c.l.b16 %v988
    %v1029 = vunpack.c.l.b16 %v989
    %v1030 = vunpack.c.l.b16 %v990
    %v1031 = vunpack.c.l.b16 %v991
    %v1032 = vunpack.c.l.b16 %v992
    %v1033 = vunpack.c.l.b16 %v993
    %v1034 = vunpack.c.l.b16 %v994
    %v1035 = vpack.c.b16 %v1020, %v1019
    %v1036 = vpack.c.b16 %v1022, %v1021
    %v1037 = vpack.c.b16 %v1024, %v1023
    %v1038 = vpack.c.b16 %v1026, %v1025
    %v1039 = vpack.c.b16 %v1028, %v1027
    %v1040 = vpack.c.b16 %v1030, %v1029
    %v1041 = vpack.c.b16 %v1032, %v1031
    %v1042 = vpack.c.b16 %v1034, %v1033
    %1051 = vmatprep.subr.bf16.mxu0 0
    %1052 = vmatpush1.bf16.msra.mxu0 %v1035
    %1053 = vmatprep.subr.bf16.mxu0 0
    %1054 = vmatpush1.bf16.msra.mxu0 %v1036
    %1055 = vmatprep.subr.bf16.mxu0 0
    %1056 = vmatpush1.bf16.msra.mxu0 %v1037
    %1057 = vmatprep.subr.bf16.mxu0 0
    %1058 = vmatpush1.bf16.msra.mxu0 %v1038
    %1059 = vmatprep.subr.bf16.mxu0 0
    %1060 = vmatpush1.bf16.msra.mxu0 %v1039
    %1061 = vmatprep.subr.bf16.mxu0 0
    %1062 = vmatpush1.bf16.msra.mxu0 %v1040
    %1063 = vmatprep.subr.bf16.mxu0 0
    %1064 = vmatpush1.bf16.msra.mxu0 %v1041
    %1065 = vmatprep.subr.bf16.mxu0 0
    %1066 = vmatpush1.bf16.msra.mxu0 %v1042
    %1067 = vmatprep.subr.bf16.mxu0 0
    %1068 = vmatpush1.bf16.msra.mxu0 0
    %1069 = vmatprep.subr.bf16.mxu0 0
    %1070 = vmatpush1.bf16.msra.mxu0 0
    %1071 = vmatprep.subr.bf16.mxu0 0
    %1072 = vmatpush1.bf16.msra.mxu0 0
    %1073 = vmatprep.subr.bf16.mxu0 0
    %1074 = vmatpush1.bf16.msra.mxu0 0
    %1075 = vmatprep.subr.bf16.mxu0 0
    %1076 = vmatpush1.bf16.msra.mxu0 0
    %1077 = vmatprep.subr.bf16.mxu0 0
    %1078 = vmatpush1.bf16.msra.mxu0 0
    %1079 = vmatprep.subr.bf16.mxu0 0
    %1080 = vmatpush1.bf16.msra.mxu0 0
    %1081 = vmatprep.subr.bf16.mxu0 0
    %1082 = vmatpush1.bf16.msra.mxu0 0
    %1083 = vmatprep.mubr.bf16.mxu0 0
    %1084 = vmatmul.mubr.bf16.gmra.mrb[0].mxu0 %v977
    %v1085 = vpop.f32.mrb[0].mxu0
    %v1086 = vadd.f32 %v1001, %v1085
    %v1087 = vpop.f32.mrb[0].mxu0
    %v1088 = vpop.f32.mrb[0].mxu0
    %v1089 = vadd.f32 %v1001, %v1088
    %v1090 = vpop.f32.mrb[0].mxu0
    %1091 = vdwg.mxu0
    %vm1092 = vcmp.eq.s32.totalorder %v639, 2
    %v1093 = vsel %vm1092, 1, 0
    %v1094 = vcvt.s32.f32 %v1093
    %v1095 = vmul.f32 %v428, %v1094
    %v1096 = vmul.f32 %v430, %v1094
    %v1097 = vsel %vm407, %v1095, 0.0
    %1098 = vadd.xlane.f32.xlu0 %v1097
    %v1099 = vpop.xlane.xlu0 %1098
    %v1100 = vsel %vm411, %v1096, 0.0
    %1101 = vadd.xlane.f32.xlu0 %v1100
    %v1102 = vpop.xlane.xlu0 %1101
    %v1103 = vmul.f32 %v1099, %v1086
    %v1104 = vmul.f32 %v1102, %v1089
    %v1105 = vadd.f32 %v879, %v1103
    %v1106 = vadd.f32 %v880, %v1104
    %s1107 = scalar_lea.vmem [#allocation13], 96
    %v1108 = vld [vmem:[%s1107] sm:$0xf]
    %v1109 = vld [vmem:[%s1107 + $0x4] sm:$0xf]
    %v1110 = vld [vmem:[%s1107 + $0x8] sm:$0xf]
    %v1111 = vld [vmem:[%s1107 + $0xc] sm:$0xf]
    %v1112 = vld [vmem:[%s1107 + $0x10] sm:$0xf]
    %v1113 = vld [vmem:[%s1107 + $0x14] sm:$0xf]
    %v1114 = vld [vmem:[%s1107 + $0x18] sm:$0xf]
    %v1115 = vld [vmem:[%s1107 + $0x1c] sm:$0xf]
    %s1116 = scalar_lea.vmem [#allocation14], 3
    %v1117 = vld [vmem:[%s1116] sm:$0x1]
    %v1119 = vlaneseq
    %v1120 = vshrl.u32 %v1119, 7
    %v1121 = vsub.s32 0, %v1120
    %v1122 = vrot.slane %v1117, %v1121
    %v1132 = vunpack.c.l.b16 %v1108
    %v1133 = vunpack.c.l.b16 %v1109
    %v1134 = vunpack.c.l.b16 %v1110
    %v1135 = vunpack.c.l.b16 %v1111
    %v1136 = vunpack.c.l.b16 %v1112
    %v1137 = vunpack.c.l.b16 %v1113
    %v1138 = vunpack.c.l.b16 %v1114
    %v1139 = vunpack.c.l.b16 %v1115
    %v1140 = vpack.c.b16 %v1133, %v1132
    %v1141 = vpack.c.b16 %v1135, %v1134
    %v1142 = vpack.c.b16 %v1137, %v1136
    %v1143 = vpack.c.b16 %v1139, %v1138
    %1148 = vmatprep.subr.bf16.mxu0 0
    %1149 = vmatpush1.bf16.msra.mxu0 %v1140
    %1150 = vmatprep.subr.bf16.mxu0 0
    %1151 = vmatpush1.bf16.msra.mxu0 %v1141
    %1152 = vmatprep.subr.bf16.mxu0 0
    %1153 = vmatpush1.bf16.msra.mxu0 %v1142
    %1154 = vmatprep.subr.bf16.mxu0 0
    %1155 = vmatpush1.bf16.msra.mxu0 %v1143
    %1156 = vmatprep.subr.bf16.mxu0 0
    %1157 = vmatpush1.bf16.msra.mxu0 0
    %1158 = vmatprep.subr.bf16.mxu0 0
    %1159 = vmatpush1.bf16.msra.mxu0 0
    %1160 = vmatprep.subr.bf16.mxu0 0
    %1161 = vmatpush1.bf16.msra.mxu0 0
    %1162 = vmatprep.subr.bf16.mxu0 0
    %1163 = vmatpush1.bf16.msra.mxu0 0
    %1164 = vmatprep.subr.bf16.mxu0 0
    %1165 = vmatpush1.bf16.msra.mxu0 0
    %1166 = vmatprep.subr.bf16.mxu0 0
    %1167 = vmatpush1.bf16.msra.mxu0 0
    %1168 = vmatprep.subr.bf16.mxu0 0
    %1169 = vmatpush1.bf16.msra.mxu0 0
    %1170 = vmatprep.subr.bf16.mxu0 0
    %1171 = vmatpush1.bf16.msra.mxu0 0
    %1172 = vmatprep.subr.bf16.mxu0 0
    %1173 = vmatpush1.bf16.msra.mxu0 0
    %1174 = vmatprep.subr.bf16.mxu0 0
    %1175 = vmatpush1.bf16.msra.mxu0 0
    %1176 = vmatprep.subr.bf16.mxu0 0
    %1177 = vmatpush1.bf16.msra.mxu0 0
    %1178 = vmatprep.subr.bf16.mxu0 0
    %1179 = vmatpush1.bf16.msra.mxu0 0
    %1180 = vmatprep.mubr.bf16.mxu0 0
    %1181 = vmatmul.mubr.bf16.gmra.mrb[0].mxu0 %v364
    %v1182 = vpop.f32.mrb[0].mxu0
    %v1183 = vadd.f32 %v1122, %v1182
    %v1184 = vpop.f32.mrb[0].mxu0
    %v1185 = vpop.f32.mrb[0].mxu0
    %v1186 = vadd.f32 %v1122, %v1185
    %v1187 = vpop.f32.mrb[0].mxu0
    %1188 = vdwg.mxu0
    %v1189 = vxor.u32 %v1183, 2147483648
    %v1190 = vxor.u32 %v1186, 2147483648
    %v1191 = vmul.f32 %v1189, 1.442695
    %v1192 = vpow.pop %v1191
    %v1193 = vmul.f32 %v1190, 1.442695
    %v1194 = vpow.pop %v1193
    %v1195 = vadd.f32 %v1192, 1.0
    %v1196 = vadd.f32 %v1194, 1.0
    %v1197 = vrcp.pop %v1195
    %v1198 = vmul.f32 1.0, %v1197
    %v1199 = vrcp.pop %v1196
    %v1200 = vmul.f32 1.0, %v1199
    %v1201 = vmul.f32 %v1183, %v1198
    %v1202 = vmul.f32 %v1186, %v1200
    %v1203 = vpack.c.bf16 %v1202, %v1201
    %s1204 = scalar_lea.vmem [#allocation16], 192
    %v1205 = vld [vmem:[%s1204] sm:$0xf]
    %v1206 = vld [vmem:[%s1204 + $0x4] sm:$0xf]
    %v1207 = vld [vmem:[%s1204 + $0x8] sm:$0xf]
    %v1208 = vld [vmem:[%s1204 + $0xc] sm:$0xf]
    %v1209 = vld [vmem:[%s1204 + $0x10] sm:$0xf]
    %v1210 = vld [vmem:[%s1204 + $0x14] sm:$0xf]
    %v1211 = vld [vmem:[%s1204 + $0x18] sm:$0xf]
    %v1212 = vld [vmem:[%s1204 + $0x1c] sm:$0xf]
    %v1213 = vld [vmem:[%s1204 + $0x20] sm:$0xf]
    %v1214 = vld [vmem:[%s1204 + $0x24] sm:$0xf]
    %v1215 = vld [vmem:[%s1204 + $0x28] sm:$0xf]
    %v1216 = vld [vmem:[%s1204 + $0x2c] sm:$0xf]
    %v1217 = vld [vmem:[%s1204 + $0x30] sm:$0xf]
    %v1218 = vld [vmem:[%s1204 + $0x34] sm:$0xf]
    %v1219 = vld [vmem:[%s1204 + $0x38] sm:$0xf]
    %v1220 = vld [vmem:[%s1204 + $0x3c] sm:$0xf]
    %s1221 = scalar_lea.vmem [#allocation17], 3
    %v1222 = vld [vmem:[%s1221] sm:$0x1]
    %v1224 = vlaneseq
    %v1225 = vshrl.u32 %v1224, 7
    %v1226 = vsub.s32 0, %v1225
    %v1227 = vrot.slane %v1222, %v1226
    %v1245 = vunpack.c.l.b16 %v1205
    %v1246 = vunpack.c.l.b16 %v1206
    %v1247 = vunpack.c.l.b16 %v1207
    %v1248 = vunpack.c.l.b16 %v1208
    %v1249 = vunpack.c.l.b16 %v1209
    %v1250 = vunpack.c.l.b16 %v1210
    %v1251 = vunpack.c.l.b16 %v1211
    %v1252 = vunpack.c.l.b16 %v1212
    %v1253 = vunpack.c.l.b16 %v1213
    %v1254 = vunpack.c.l.b16 %v1214
    %v1255 = vunpack.c.l.b16 %v1215
    %v1256 = vunpack.c.l.b16 %v1216
    %v1257 = vunpack.c.l.b16 %v1217
    %v1258 = vunpack.c.l.b16 %v1218
    %v1259 = vunpack.c.l.b16 %v1219
    %v1260 = vunpack.c.l.b16 %v1220
    %v1261 = vpack.c.b16 %v1246, %v1245
    %v1262 = vpack.c.b16 %v1248, %v1247
    %v1263 = vpack.c.b16 %v1250, %v1249
    %v1264 = vpack.c.b16 %v1252, %v1251
    %v1265 = vpack.c.b16 %v1254, %v1253
    %v1266 = vpack.c.b16 %v1256, %v1255
    %v1267 = vpack.c.b16 %v1258, %v1257
    %v1268 = vpack.c.b16 %v1260, %v1259
    %1277 = vmatprep.subr.bf16.mxu0 0
    %1278 = vmatpush1.bf16.msra.mxu0 %v1261
    %1279 = vmatprep.subr.bf16.mxu0 0
    %1280 = vmatpush1.bf16.msra.mxu0 %v1262
    %1281 = vmatprep.subr.bf16.mxu0 0
    %1282 = vmatpush1.bf16.msra.mxu0 %v1263
    %1283 = vmatprep.subr.bf16.mxu0 0
    %1284 = vmatpush1.bf16.msra.mxu0 %v1264
    %1285 = vmatprep.subr.bf16.mxu0 0
    %1286 = vmatpush1.bf16.msra.mxu0 %v1265
    %1287 = vmatprep.subr.bf16.mxu0 0
    %1288 = vmatpush1.bf16.msra.mxu0 %v1266
    %1289 = vmatprep.subr.bf16.mxu0 0
    %1290 = vmatpush1.bf16.msra.mxu0 %v1267
    %1291 = vmatprep.subr.bf16.mxu0 0
    %1292 = vmatpush1.bf16.msra.mxu0 %v1268
    %1293 = vmatprep.subr.bf16.mxu0 0
    %1294 = vmatpush1.bf16.msra.mxu0 0
    %1295 = vmatprep.subr.bf16.mxu0 0
    %1296 = vmatpush1.bf16.msra.mxu0 0
    %1297 = vmatprep.subr.bf16.mxu0 0
    %1298 = vmatpush1.bf16.msra.mxu0 0
    %1299 = vmatprep.subr.bf16.mxu0 0
    %1300 = vmatpush1.bf16.msra.mxu0 0
    %1301 = vmatprep.subr.bf16.mxu0 0
    %1302 = vmatpush1.bf16.msra.mxu0 0
    %1303 = vmatprep.subr.bf16.mxu0 0
    %1304 = vmatpush1.bf16.msra.mxu0 0
    %1305 = vmatprep.subr.bf16.mxu0 0
    %1306 = vmatpush1.bf16.msra.mxu0 0
    %1307 = vmatprep.subr.bf16.mxu0 0
    %1308 = vmatpush1.bf16.msra.mxu0 0
    %1309 = vmatprep.mubr.bf16.mxu0 0
    %1310 = vmatmul.mubr.bf16.gmra.mrb[0].mxu0 %v1203
    %v1311 = vpop.f32.mrb[0].mxu0
    %v1312 = vadd.f32 %v1227, %v1311
    %v1313 = vpop.f32.mrb[0].mxu0
    %v1314 = vpop.f32.mrb[0].mxu0
    %v1315 = vadd.f32 %v1227, %v1314
    %v1316 = vpop.f32.mrb[0].mxu0
    %1317 = vdwg.mxu0
    %vm1318 = vcmp.eq.s32.totalorder %v639, 3
    %v1319 = vsel %vm1318, 1, 0
    %v1320 = vcvt.s32.f32 %v1319
    %v1321 = vmul.f32 %v428, %v1320
    %v1322 = vmul.f32 %v430, %v1320
    %v1323 = vsel %vm407, %v1321, 0.0
    %1324 = vadd.xlane.f32.xlu0 %v1323
    %v1325 = vpop.xlane.xlu0 %1324
    %v1326 = vsel %vm411, %v1322, 0.0
    %1327 = vadd.xlane.f32.xlu0 %v1326
    %v1328 = vpop.xlane.xlu0 %1327
    %v1329 = vmul.f32 %v1325, %v1312
    %v1330 = vmul.f32 %v1328, %v1315
    %v1331 = vadd.f32 %v1105, %v1329
    %v1332 = vadd.f32 %v1106, %v1330
    %v1333 = vmul.f32 %v1331, 0.5
    %v1334 = vmul.f32 %v1332, 0.5
    %v1335 = vadd.f32 %v198, %v1333
    %v1336 = vadd.f32 %v199, %v1334
    %v1337 = vsel %vm200, %v1335, 0.0
    %1338 = vadd.xlane.f32.xlu0 %v1337
    %v1339 = vpop.xlane.xlu0 %1338
    %v1340 = vsel %vm204, %v1336, 0.0
    %1341 = vadd.xlane.f32.xlu0 %v1340
    %v1342 = vpop.xlane.xlu0 %1341
    %v1343 = vmul.f32 %v1339, %v208
    %v1344 = vmul.f32 %v1342, %v208
    %v1345 = vsub.f32 %v1335, %v1343
    %v1346 = vsub.f32 %v1336, %v1344
    %v1347 = vmul.f32 %v1345, %v1345
    %v1348 = vmul.f32 %v1346, %v1346
    %v1349 = vsel %vm200, %v1347, 0.0
    %1350 = vadd.xlane.f32.xlu0 %v1349
    %v1351 = vpop.xlane.xlu0 %1350
    %v1352 = vsel %vm204, %v1348, 0.0
    %1353 = vadd.xlane.f32.xlu0 %v1352
    %v1354 = vpop.xlane.xlu0 %1353
    %v1355 = vmul.f32 %v1351, %v208
    %v1356 = vmul.f32 %v1354, %v208
    %v1357 = vadd.f32 %v1355, 1e-12
    %v1358 = vadd.f32 %v1356, 1e-12
    %v1359 = vrsqrt.pop %v1357
    %v1360 = vrsqrt.pop %v1358
    %v1361 = vmul.f32 %v1345, %v1359
    %v1362 = vmul.f32 %v1346, %v1360
    %v1363 = vld [vmem:[#allocation19] sm:$0x1]
    %v1365 = vlaneseq
    %v1366 = vshrl.u32 %v1365, 7
    %v1367 = vsub.s32 0, %v1366
    %v1368 = vrot.slane %v1363, %v1367
    %v1370 = vmul.f32 %v1361, %v1368
    %v1371 = vmul.f32 %v1362, %v1368
    %v1372 = vld [vmem:[#allocation20] sm:$0x1]
    %v1374 = vlaneseq
    %v1375 = vshrl.u32 %v1374, 7
    %v1376 = vsub.s32 0, %v1375
    %v1377 = vrot.slane %v1372, %v1376
    %v1379 = vadd.f32 %v1370, %v1377
    %v1380 = vadd.f32 %v1371, %v1377
    %1381 = vst.msk [vmem:[#allocation22] sm:$0xff] %vm200, %v1379
    %1382 = vst.msk [vmem:[#allocation22 + $0x8] sm:$0x3f] %vm204, %v1380
    // Predicated region
    $region98: #{net_forward.37} parent=1 // pred_check
      _
    $region99: #{net_forward.37} parent=1 // pred_check_branch
      %1384 = sbr.rel (0) target = $region101
    $region100: #{net_forward.37} parent=1 // pred_region
      %s1386 = ssub.s32 256, 256
      %1387 = vsyncadd [#allocation4], %s1386
      %s1388 = sshll.u32 [#allocation22], 4
      %s1389 = int_to_ptr.vmem [resolvable:$true] %s1388
      %1394 = dma.vmem_to_hbm [thread:$0]  %s1389, 256, %s12, [#allocation4], 128, 128, 8
    $region101: #{net_forward.37} parent=1 // pred_fallthru
      _
    // Predicated region
    $region102: #{net_forward.37} parent=1 // pred_check
      _
    $region103: #{net_forward.37} parent=1 // pred_check_branch
      %1396 = sbr.rel (0) target = $region105
    $region104: #{net_forward.37} parent=1 // pred_region
      %1397 = dma.done [#allocation4], 256
    $region105: #{net_forward.37} parent=1 // pred_fallthru
      _
    %1398 = vsyncpa [#allocation3], 1
    %1399 = vsyncpa [#allocation6], 1
    %1400 = vsyncpa [#allocation9], 1
    %1401 = vsyncpa [#allocation12], 1
    %1402 = vsyncpa [#allocation15], 1
    %1403 = vsyncpa [#allocation18], 1
    %1404 = vsyncpa [#allocation21], 1
    %1405 = vsyncpa [#allocation4], 1

// kernel: net_forward.45
$region0: #{net_forward.45}
  #allocation0 [shape = 'u32[]', space=smem, size = 0x4, offset = 0x4, fixed_abs, tag = 'smem constant byte address 0x4 - core index']
  #allocation1 [shape = 'u32[144,128]{1,0:T(1,128)}', space=vmem, size = 0x12000, scoped, tag = 'internal scratch']
  %s0 = inlined_call_operand.hbm [shape: f32[14,64], index: 0, kind: input, shape index: {}]
  %s1 = inlined_call_operand.hbm [shape: f32[1,64], index: 1, kind: input, shape index: {}]
  %s2 = inlined_call_operand.hbm [shape: f32[1,64], index: 2, kind: input, shape index: {}]
  %s3 = inlined_call_operand.hbm [shape: bf16[64,128], index: 3, kind: input, shape index: {}]
  %s4 = inlined_call_operand.hbm [shape: f32[1,128], index: 4, kind: input, shape index: {}]
  %s5 = inlined_call_operand.hbm [shape: f32[14,128], index: 5, kind: output, shape index: {}]
  %s6 = sld [smem:[#allocation0]]
  $region50: #{net_forward.45} parent=0
    _
  %s8 = ssub.s32 1, %s6
  %s9 = scalar_select 0, %s8, %s6
  $region1: #{net_forward.45} parent=0
    #allocation2 [shape = 'u8[8192]{0}', space=vmem, size = 0x2000, scoped, tag = 'input window, operand 0, single buffered']
    #allocation3 [shape = 's32[1]{0}', space=sflag, size = 0x4, scoped, tag = 'scoped memory for net_forward.45']
    #allocation4 [shape = 's32[1]{0}', space=sflag, size = 0x4, scoped, tag = 'scoped memory for net_forward.45']
    #allocation5 [shape = 'u8[512]{0}', space=vmem, size = 0x400, scoped, tag = 'input window, operand 1, single buffered']
    #allocation6 [shape = 's32[1]{0}', space=sflag, size = 0x4, scoped, tag = 'scoped memory for net_forward.45']
    #allocation7 [shape = 'u8[512]{0}', space=vmem, size = 0x400, scoped, tag = 'input window, operand 2, single buffered']
    #allocation8 [shape = 'u8[16384]{0}', space=vmem, size = 0x4000, scoped, tag = 'input window, operand 3, single buffered']
    #allocation9 [shape = 's32[1]{0}', space=sflag, size = 0x4, scoped, tag = 'scoped memory for net_forward.45']
    #allocation10 [shape = 'u8[512]{0}', space=vmem, size = 0x400, scoped, tag = 'input window, operand 4, single buffered']
    #allocation11 [shape = 'u8[8192]{0}', space=vmem, size = 0x2000, scoped, tag = 'output window, operand 0, single buffered']
    %10 = vsyncpa [#allocation3], 0
    %11 = vsyncpa [#allocation6], 0
    %12 = vsyncpa [#allocation9], 0
    %13 = vsyncpa [#allocation4], 0
    // Predicated region
    $region2: #{net_forward.45} parent=1 // pred_check
      _
    $region3: #{net_forward.45} parent=1 // pred_check_branch
      %15 = sbr.rel (0) target = $region5
    $region4: #{net_forward.45} parent=1 // pred_region
      %s17 = ssub.s32 256, 256
      %18 = vsyncadd [#allocation3], %s17
      %s19 = sshll.u32 [#allocation2], 4
      %s20 = int_to_ptr.vmem [resolvable:$true] %s19
      %25 = dma.hbm_to_vmem [thread:$0]  %s0, 256, %s20, [#allocation3], 128, 128, 8
    $region5: #{net_forward.45} parent=1 // pred_fallthru
      _
    // Predicated region
    $region6: #{net_forward.45} parent=1 // pred_check
      _
    $region7: #{net_forward.45} parent=1 // pred_check_branch
      %27 = sbr.rel (0) target = $region9
    $region8: #{net_forward.45} parent=1 // pred_region
      %s29 = ssub.s32 16, 16
      %30 = vsyncadd [#allocation6], %s29
      %s32 = sshll.u32 [#allocation5], 4
      %s33 = int_to_ptr.vmem [resolvable:$true] %s32
      %35 = dma.hbm_to_vmem [thread:$0]  %s1, 16, %s33, [#allocation6]
    $region9: #{net_forward.45} parent=1 // pred_fallthru
      _
    // Predicated region
    $region10: #{net_forward.45} parent=1 // pred_check
      _
    $region11: #{net_forward.45} parent=1 // pred_check_branch
      %37 = sbr.rel (0) target = $region13
    $region12: #{net_forward.45} parent=1 // pred_region
      %s39 = ssub.s32 16, 16
      %40 = vsyncadd [#allocation6], %s39
      %s42 = sshll.u32 [#allocation7], 4
      %s43 = int_to_ptr.vmem [resolvable:$true] %s42
      %45 = dma.hbm_to_vmem [thread:$0]  %s2, 16, %s43, [#allocation6]
    $region13: #{net_forward.45} parent=1 // pred_fallthru
      _
    // Predicated region
    $region14: #{net_forward.45} parent=1 // pred_check
      _
    $region15: #{net_forward.45} parent=1 // pred_check_branch
      %47 = sbr.rel (0) target = $region17
    $region16: #{net_forward.45} parent=1 // pred_region
      %s49 = ssub.s32 512, 512
      %50 = vsyncadd [#allocation9], %s49
      %s51 = sshll.u32 [#allocation8], 4
      %s52 = int_to_ptr.vmem [resolvable:$true] %s51
      %57 = dma.hbm_to_vmem [thread:$0]  %s3, 512, %s52, [#allocation9], 64, 64, 4
    $region17: #{net_forward.45} parent=1 // pred_fallthru
      _
    // Predicated region
    $region18: #{net_forward.45} parent=1 // pred_check
      _
    $region19: #{net_forward.45} parent=1 // pred_check_branch
      %59 = sbr.rel (0) target = $region21
    $region20: #{net_forward.45} parent=1 // pred_region
      %s61 = ssub.s32 16, 16
      %62 = vsyncadd [#allocation9], %s61
      %s64 = sshll.u32 [#allocation10], 4
      %s65 = int_to_ptr.vmem [resolvable:$true] %s64
      %67 = dma.hbm_to_vmem [thread:$0]  %s4, 16, %s65, [#allocation9]
    $region21: #{net_forward.45} parent=1 // pred_fallthru
      _
    // Predicated region
    $region22: #{net_forward.45} parent=1 // pred_check
      _
    $region23: #{net_forward.45} parent=1 // pred_check_branch
      %69 = sbr.rel (0) target = $region25
    $region24: #{net_forward.45} parent=1 // pred_region
      %70 = dma.done [#allocation3], 256
    $region25: #{net_forward.45} parent=1 // pred_fallthru
      _
    // Predicated region
    $region26: #{net_forward.45} parent=1 // pred_check
      _
    $region27: #{net_forward.45} parent=1 // pred_check_branch
      %72 = sbr.rel (0) target = $region29
    $region28: #{net_forward.45} parent=1 // pred_region
      %73 = dma.done [#allocation6], 16
    $region29: #{net_forward.45} parent=1 // pred_fallthru
      _
    // Predicated region
    $region30: #{net_forward.45} parent=1 // pred_check
      _
    $region31: #{net_forward.45} parent=1 // pred_check_branch
      %75 = sbr.rel (0) target = $region33
    $region32: #{net_forward.45} parent=1 // pred_region
      %76 = dma.done [#allocation6], 16
    $region33: #{net_forward.45} parent=1 // pred_fallthru
      _
    // Predicated region
    $region34: #{net_forward.45} parent=1 // pred_check
      _
    $region35: #{net_forward.45} parent=1 // pred_check_branch
      %78 = sbr.rel (0) target = $region37
    $region36: #{net_forward.45} parent=1 // pred_region
      %79 = dma.done [#allocation9], 512
    $region37: #{net_forward.45} parent=1 // pred_fallthru
      _
    // Predicated region
    $region38: #{net_forward.45} parent=1 // pred_check
      _
    $region39: #{net_forward.45} parent=1 // pred_check_branch
      %81 = sbr.rel (0) target = $region41
    $region40: #{net_forward.45} parent=1 // pred_region
      %82 = dma.done [#allocation9], 16
    $region41: #{net_forward.45} parent=1 // pred_fallthru
      _
    %v84 = vld [vmem:[#allocation2] sm:$0xff]
    %v85 = vld [vmem:[#allocation2 + $0x8] sm:$0x3f]
    %vm86 = vcmask 523264
    %v87 = vsel %vm86, %v84, 0.0
    %88 = vadd.xlane.f32.xlu0 %v87
    %v89 = vpop.xlane.xlu0 %88
    %vm90 = vcmask 521216
    %v91 = vsel %vm90, %v85, 0.0
    %92 = vadd.xlane.f32.xlu0 %v91
    %v93 = vpop.xlane.xlu0 %92
    %v94 = vrcp.pop 64.0
    %v95 = vmul.f32 %v89, %v94
    %v96 = vmul.f32 %v93, %v94
    %v97 = vsub.f32 %v84, %v95
    %v98 = vsub.f32 %v85, %v96
    %v99 = vmul.f32 %v97, %v97
    %v100 = vmul.f32 %v98, %v98
    %v101 = vsel %vm86, %v99, 0.0
    %102 = vadd.xlane.f32.xlu0 %v101
    %v103 = vpop.xlane.xlu0 %102
    %v104 = vsel %vm90, %v100, 0.0
    %105 = vadd.xlane.f32.xlu0 %v104
    %v106 = vpop.xlane.xlu0 %105
    %v107 = vmul.f32 %v103, %v94
    %v108 = vmul.f32 %v106, %v94
    %v109 = vadd.f32 %v107, 1e-12
    %v110 = vadd.f32 %v108, 1e-12
    %v111 = vrsqrt.pop %v109
    %v112 = vrsqrt.pop %v110
    %v113 = vmul.f32 %v97, %v111
    %v114 = vmul.f32 %v98, %v112
    %v115 = vld [vmem:[#allocation5] sm:$0x1]
    %v117 = vlaneseq
    %v118 = vshrl.u32 %v117, 7
    %v119 = vsub.s32 0, %v118
    %v120 = vrot.slane %v115, %v119
    %v122 = vmul.f32 %v113, %v120
    %v123 = vmul.f32 %v114, %v120
    %v124 = vld [vmem:[#allocation7] sm:$0x1]
    %v126 = vlaneseq
    %v127 = vshrl.u32 %v126, 7
    %v128 = vsub.s32 0, %v127
    %v129 = vrot.slane %v124, %v128
    %v131 = vadd.f32 %v122, %v129
    %v132 = vadd.f32 %v123, %v129
    %v133 = vpack.c.bf16 %v132, %v131
    %v134 = vld [vmem:[#allocation8] sm:$0xf]
    %v135 = vld [vmem:[#allocation8 + $0x4] sm:$0xf]
    %v136 = vld [vmem:[#allocation8 + $0x8] sm:$0xf]
    %v137 = vld [vmem:[#allocation8 + $0xc] sm:$0xf]
    %v138 = vld [vmem:[#allocation8 + $0x10] sm:$0xf]
    %v139 = vld [vmem:[#allocation8 + $0x14] sm:$0xf]
    %v140 = vld [vmem:[#allocation8 + $0x18] sm:$0xf]
    %v141 = vld [vmem:[#allocation8 + $0x1c] sm:$0xf]
    %v142 = vld [vmem:[#allocation10] sm:$0x1]
    %v144 = vlaneseq
    %v145 = vshrl.u32 %v144, 7
    %v146 = vsub.s32 0, %v145
    %v147 = vrot.slane %v142, %v146
    %v157 = vunpack.c.l.b16 %v134
    %v158 = vunpack.c.l.b16 %v135
    %v159 = vunpack.c.l.b16 %v136
    %v160 = vunpack.c.l.b16 %v137
    %v161 = vunpack.c.l.b16 %v138
    %v162 = vunpack.c.l.b16 %v139
    %v163 = vunpack.c.l.b16 %v140
    %v164 = vunpack.c.l.b16 %v141
    %v165 = vpack.c.b16 %v158, %v157
    %v166 = vpack.c.b16 %v160, %v159
    %v167 = vpack.c.b16 %v162, %v161
    %v168 = vpack.c.b16 %v164, %v163
    %v174 = vsel %vm86, %v133, 0
    %176 = vmatprep.subr.bf16.mxu0 0
    %177 = vmatpush1.bf16.msra.mxu0 %v165
    %178 = vmatprep.subr.bf16.mxu0 0
    %179 = vmatpush1.bf16.msra.mxu0 %v166
    %180 = vmatprep.subr.bf16.mxu0 0
    %181 = vmatpush1.bf16.msra.mxu0 %v167
    %182 = vmatprep.subr.bf16.mxu0 0
    %183 = vmatpush1.bf16.msra.mxu0 %v168
    %184 = vmatprep.subr.bf16.mxu0 0
    %185 = vmatpush1.bf16.msra.mxu0 0
    %186 = vmatprep.subr.bf16.mxu0 0
    %187 = vmatpush1.bf16.msra.mxu0 0
    %188 = vmatprep.subr.bf16.mxu0 0
    %189 = vmatpush1.bf16.msra.mxu0 0
    %190 = vmatprep.subr.bf16.mxu0 0
    %191 = vmatpush1.bf16.msra.mxu0 0
    %192 = vmatprep.subr.bf16.mxu0 0
    %193 = vmatpush1.bf16.msra.mxu0 0
    %194 = vmatprep.subr.bf16.mxu0 0
    %195 = vmatpush1.bf16.msra.mxu0 0
    %196 = vmatprep.subr.bf16.mxu0 0
    %197 = vmatpush1.bf16.msra.mxu0 0
    %198 = vmatprep.subr.bf16.mxu0 0
    %199 = vmatpush1.bf16.msra.mxu0 0
    %200 = vmatprep.subr.bf16.mxu0 0
    %201 = vmatpush1.bf16.msra.mxu0 0
    %202 = vmatprep.subr.bf16.mxu0 0
    %203 = vmatpush1.bf16.msra.mxu0 0
    %204 = vmatprep.subr.bf16.mxu0 0
    %205 = vmatpush1.bf16.msra.mxu0 0
    %206 = vmatprep.subr.bf16.mxu0 0
    %207 = vmatpush1.bf16.msra.mxu0 0
    %208 = vmatprep.mubr.bf16.mxu0 0
    %209 = vmatmul.mubr.bf16.gmra.mrb[0].mxu0 %v174
    %v210 = vpop.f32.mrb[0].mxu0
    %v211 = vadd.f32 %v147, %v210
    %v212 = vpop.f32.mrb[0].mxu0
    %v213 = vpop.f32.mrb[0].mxu0
    %v214 = vadd.f32 %v147, %v213
    %v215 = vpop.f32.mrb[0].mxu0
    %216 = vdwg.mxu0
    %217 = vst [vmem:[#allocation11] sm:$0xff] %v211
    %218 = vst [vmem:[#allocation11 + $0x8] sm:$0x3f] %v214
    // Predicated region
    $region42: #{net_forward.45} parent=1 // pred_check
      _
    $region43: #{net_forward.45} parent=1 // pred_check_branch
      %220 = sbr.rel (0) target = $region45
    $region44: #{net_forward.45} parent=1 // pred_region
      %s222 = ssub.s32 256, 256
      %223 = vsyncadd [#allocation4], %s222
      %s224 = sshll.u32 [#allocation11], 4
      %s225 = int_to_ptr.vmem [resolvable:$true] %s224
      %230 = dma.vmem_to_hbm [thread:$0]  %s225, 256, %s5, [#allocation4], 128, 128, 8
    $region45: #{net_forward.45} parent=1 // pred_fallthru
      _
    // Predicated region
    $region46: #{net_forward.45} parent=1 // pred_check
      _
    $region47: #{net_forward.45} parent=1 // pred_check_branch
      %232 = sbr.rel (0) target = $region49
    $region48: #{net_forward.45} parent=1 // pred_region
      %233 = dma.done [#allocation4], 256
    $region49: #{net_forward.45} parent=1 // pred_fallthru
      _
    %234 = vsyncpa [#allocation3], 1
    %235 = vsyncpa [#allocation6], 1
    %236 = vsyncpa [#allocation9], 1
    %237 = vsyncpa [#allocation4], 1

// kernel: net_forward.26
$region0: #{net_forward.26}
  #allocation0 [shape = 'u32[]', space=smem, size = 0x4, offset = 0x4, fixed_abs, tag = 'smem constant byte address 0x4 - core index']
  #allocation1 [shape = 'u32[144,128]{1,0:T(1,128)}', space=vmem, size = 0x12000, scoped, tag = 'internal scratch']
  %s0 = inlined_call_operand.hbm [shape: bf16[2,64], index: 0, kind: input, shape index: {}]
  %s1 = inlined_call_operand.hbm [shape: bf16[64,128], index: 1, kind: input, shape index: {}]
  %s2 = inlined_call_operand.hbm [shape: f32[1,128], index: 2, kind: input, shape index: {}]
  %s3 = inlined_call_operand.hbm [shape: f32[2,128], index: 3, kind: output, shape index: {}]
  %s4 = sld [smem:[#allocation0]]
  $region34: #{net_forward.26} parent=0
    _
  %s6 = ssub.s32 1, %s4
  %s7 = scalar_select 0, %s6, %s4
  $region1: #{net_forward.26} parent=0
    #allocation2 [shape = 'u8[512]{0}', space=vmem, size = 0x400, scoped, tag = 'input window, operand 0, single buffered']
    #allocation3 [shape = 's32[1]{0}', space=sflag, size = 0x4, scoped, tag = 'scoped memory for net_forward.26']
    #allocation4 [shape = 's32[1]{0}', space=sflag, size = 0x4, scoped, tag = 'scoped memory for net_forward.26']
    #allocation5 [shape = 'u8[16384]{0}', space=vmem, size = 0x4000, scoped, tag = 'input window, operand 1, single buffered']
    #allocation6 [shape = 's32[1]{0}', space=sflag, size = 0x4, scoped, tag = 'scoped memory for net_forward.26']
    #allocation7 [shape = 'u8[512]{0}', space=vmem, size = 0x400, scoped, tag = 'input window, operand 2, single buffered']
    #allocation8 [shape = 'u8[1024]{0}', space=vmem, size = 0x400, scoped, tag = 'output window, operand 0, single buffered']
    %8 = vsyncpa [#allocation3], 0
    %9 = vsyncpa [#allocation6], 0
    %10 = vsyncpa [#allocation4], 0
    // Predicated region
    $region2: #{net_forward.26} parent=1 // pred_check
      _
    $region3: #{net_forward.26} parent=1 // pred_check_branch
      %12 = sbr.rel (0) target = $region5
    $region4: #{net_forward.26} parent=1 // pred_region
      %s14 = ssub.s32 16, 16
      %15 = vsyncadd [#allocation3], %s14
      %s17 = sshll.u32 [#allocation2], 4
      %s18 = int_to_ptr.vmem [resolvable:$true] %s17
      %20 = dma.hbm_to_vmem [thread:$0]  %s0, 16, %s18, [#allocation3]
    $region5: #{net_forward.26} parent=1 // pred_fallthru
      _
    // Predicated region
    $region6: #{net_forward.26} parent=1 // pred_check
      _
    $region7: #{net_forward.26} parent=1 // pred_check_branch
      %22 = sbr.rel (0) target = $region9
    $region8: #{net_forward.26} parent=1 // pred_region
      %s24 = ssub.s32 512, 512
      %25 = vsyncadd [#allocation6], %s24
      %s26 = sshll.u32 [#allocation5], 4
      %s27 = int_to_ptr.vmem [resolvable:$true] %s26
      %32 = dma.hbm_to_vmem [thread:$0]  %s1, 512, %s27, [#allocation6], 64, 64, 4
    $region9: #{net_forward.26} parent=1 // pred_fallthru
      _
    // Predicated region
    $region10: #{net_forward.26} parent=1 // pred_check
      _
    $region11: #{net_forward.26} parent=1 // pred_check_branch
      %34 = sbr.rel (0) target = $region13
    $region12: #{net_forward.26} parent=1 // pred_region
      %s36 = ssub.s32 16, 16
      %37 = vsyncadd [#allocation6], %s36
      %s39 = sshll.u32 [#allocation7], 4
      %s40 = int_to_ptr.vmem [resolvable:$true] %s39
      %42 = dma.hbm_to_vmem [thread:$0]  %s2, 16, %s40, [#allocation6]
    $region13: #{net_forward.26} parent=1 // pred_fallthru
      _
    // Predicated region
    $region14: #{net_forward.26} parent=1 // pred_check
      _
    $region15: #{net_forward.26} parent=1 // pred_check_branch
      %44 = sbr.rel (0) target = $region17
    $region16: #{net_forward.26} parent=1 // pred_region
      %45 = dma.done [#allocation3], 16
    $region17: #{net_forward.26} parent=1 // pred_fallthru
      _
    // Predicated region
    $region18: #{net_forward.26} parent=1 // pred_check
      _
    $region19: #{net_forward.26} parent=1 // pred_check_branch
      %47 = sbr.rel (0) target = $region21
    $region20: #{net_forward.26} parent=1 // pred_region
      %48 = dma.done [#allocation6], 512
    $region21: #{net_forward.26} parent=1 // pred_fallthru
      _
    // Predicated region
    $region22: #{net_forward.26} parent=1 // pred_check
      _
    $region23: #{net_forward.26} parent=1 // pred_check_branch
      %50 = sbr.rel (0) target = $region25
    $region24: #{net_forward.26} parent=1 // pred_region
      %51 = dma.done [#allocation6], 16
    $region25: #{net_forward.26} parent=1 // pred_fallthru
      _
    %v53 = vld [vmem:[#allocation2] sm:$0x1]
    %v54 = vld [vmem:[#allocation5] sm:$0xf]
    %v55 = vld [vmem:[#allocation5 + $0x4] sm:$0xf]
    %v56 = vld [vmem:[#allocation5 + $0x8] sm:$0xf]
    %v57 = vld [vmem:[#allocation5 + $0xc] sm:$0xf]
    %v58 = vld [vmem:[#allocation5 + $0x10] sm:$0xf]
    %v59 = vld [vmem:[#allocation5 + $0x14] sm:$0xf]
    %v60 = vld [vmem:[#allocation5 + $0x18] sm:$0xf]
    %v61 = vld [vmem:[#allocation5 + $0x1c] sm:$0xf]
    %v62 = vld [vmem:[#allocation7] sm:$0x1]
    %v64 = vlaneseq
    %v65 = vshrl.u32 %v64, 7
    %v66 = vsub.s32 0, %v65
    %v67 = vrot.slane %v62, %v66
    %v77 = vunpack.c.l.b16 %v54
    %v78 = vunpack.c.l.b16 %v55
    %v79 = vunpack.c.l.b16 %v56
    %v80 = vunpack.c.l.b16 %v57
    %v81 = vunpack.c.l.b16 %v58
    %v82 = vunpack.c.l.b16 %v59
    %v83 = vunpack.c.l.b16 %v60
    %v84 = vunpack.c.l.b16 %v61
    %v85 = vpack.c.b16 %v78, %v77
    %v86 = vpack.c.b16 %v80, %v79
    %v87 = vpack.c.b16 %v82, %v81
    %v88 = vpack.c.b16 %v84, %v83
    %vm93 = vcmask 523264
    %v95 = vsel %vm93, %v53, 0
    %97 = vmatprep.subr.bf16.mxu0 0
    %98 = vmatpush1.bf16.msra.mxu0 %v85
    %99 = vmatprep.subr.bf16.mxu0 0
    %100 = vmatpush1.bf16.msra.mxu0 %v86
    %101 = vmatprep.subr.bf16.mxu0 0
    %102 = vmatpush1.bf16.msra.mxu0 %v87
    %103 = vmatprep.subr.bf16.mxu0 0
    %104 = vmatpush1.bf16.msra.mxu0 %v88
    %105 = vmatprep.subr.bf16.mxu0 0
    %106 = vmatpush1.bf16.msra.mxu0 0
    %107 = vmatprep.subr.bf16.mxu0 0
    %108 = vmatpush1.bf16.msra.mxu0 0
    %109 = vmatprep.subr.bf16.mxu0 0
    %110 = vmatpush1.bf16.msra.mxu0 0
    %111 = vmatprep.subr.bf16.mxu0 0
    %112 = vmatpush1.bf16.msra.mxu0 0
    %113 = vmatprep.subr.bf16.mxu0 0
    %114 = vmatpush1.bf16.msra.mxu0 0
    %115 = vmatprep.subr.bf16.mxu0 0
    %116 = vmatpush1.bf16.msra.mxu0 0
    %117 = vmatprep.subr.bf16.mxu0 0
    %118 = vmatpush1.bf16.msra.mxu0 0
    %119 = vmatprep.subr.bf16.mxu0 0
    %120 = vmatpush1.bf16.msra.mxu0 0
    %121 = vmatprep.subr.bf16.mxu0 0
    %122 = vmatpush1.bf16.msra.mxu0 0
    %123 = vmatprep.subr.bf16.mxu0 0
    %124 = vmatpush1.bf16.msra.mxu0 0
    %125 = vmatprep.subr.bf16.mxu0 0
    %126 = vmatpush1.bf16.msra.mxu0 0
    %127 = vmatprep.subr.bf16.mxu0 0
    %128 = vmatpush1.bf16.msra.mxu0 0
    %129 = vmatprep.mubr.bf16.mxu0 0
    %130 = vmatmul.mubr.bf16.gmra.mrb[0].mxu0 %v95
    %v131 = vpop.f32.mrb[0].mxu0
    %v132 = vadd.f32 %v67, %v131
    %v133 = vpop.f32.mrb[0].mxu0
    %v134 = vpop.f32.mrb[0].mxu0
    %v135 = vpop.f32.mrb[0].mxu0
    %136 = vdwg.mxu0
    %137 = vst [vmem:[#allocation8] sm:$0x3] %v132
    // Predicated region
    $region26: #{net_forward.26} parent=1 // pred_check
      _
    $region27: #{net_forward.26} parent=1 // pred_check_branch
      %139 = sbr.rel (0) target = $region29
    $region28: #{net_forward.26} parent=1 // pred_region
      %s141 = ssub.s32 32, 32
      %142 = vsyncadd [#allocation4], %s141
      %s144 = sshll.u32 [#allocation8], 4
      %s145 = int_to_ptr.vmem [resolvable:$true] %s144
      %147 = dma.vmem_to_hbm [thread:$0]  %s145, 32, %s3, [#allocation4]
    $region29: #{net_forward.26} parent=1 // pred_fallthru
      _
    // Predicated region
    $region30: #{net_forward.26} parent=1 // pred_check
      _
    $region31: #{net_forward.26} parent=1 // pred_check_branch
      %149 = sbr.rel (0) target = $region33
    $region32: #{net_forward.26} parent=1 // pred_region
      %150 = dma.done [#allocation4], 32
    $region33: #{net_forward.26} parent=1 // pred_fallthru
      _
    %151 = vsyncpa [#allocation3], 1
    %152 = vsyncpa [#allocation6], 1
    %153 = vsyncpa [#allocation4], 1

</llo_original>
